<compile_context>
chip_gen: v5e
topology: v5e:2x2
jax: 0.10.0
libtpu: 0.0.40
codegen_flags: <defaults>
</compile_context>

<pallas_src>
import functools

import numpy as np
import jax
import jax.numpy as jnp
from jax import lax
from jax.experimental import pallas as pl

# ---- cfg['model_params'] (synthetic, small) ----
ALPHA = 0.1             # leaky_relu negative slope
LSTM_HIDDEN = 16        # encoder LSTM hidden size (== conv1 in-channels)
FUTURE_FRAMES = 5
NUM_TRAJ = 3
OUT_FLAT = 2 * FUTURE_FRAMES * NUM_TRAJ      # 30
FK = OUT_FLAT // 2                           # decoder sequence length (15)
DEC_HIDDEN = 30                              # nn.LSTM(64, 30, 1)

# SocialPooling spatial constants (13x13 mask grid, conv1 3x3, conv2 (3,1), pool (2,1))
GRID = 13
C1W = GRID - 2          # 11  (conv1 output width == height)
C1H = GRID - 2          # 11
C2H = C1H - 2           # 9
PH = C2H // 2           # 4
POOL_FLAT = 16 * PH * C1W    # 704


def _leaky(x, alpha):
    return jnp.where(x >= 0, x, alpha * x)


# ----------------------------------------------------------------------------
# Kernel 1: encoder LSTM (nbrs batch ++ ego batch), time loop inside the kernel,
# fused 4-gate matmuls, leaky_relu fused into the final hidden state.
# ----------------------------------------------------------------------------
def _encoder_lstm_kernel(x_ref, wih_ref, whh_ref, b_ref, o_ref, *, T, H, alpha):
    Bt = o_ref.shape[0]
    wih = wih_ref[...]            # (I, 4H)
    whh = whh_ref[...]            # (H, 4H)
    bias = b_ref[...]             # (1, 4H)  (= b_ih + b_hh)

    def step(t, carry):
        h, c = carry
        x_t = x_ref[t]            # (Bt, I)
        g = (jnp.dot(x_t, wih, preferred_element_type=jnp.float32)
             + jnp.dot(h, whh, preferred_element_type=jnp.float32)
             + bias)
        i = jax.nn.sigmoid(g[:, 0:H])
        f = jax.nn.sigmoid(g[:, H:2 * H])
        gg = jnp.tanh(g[:, 2 * H:3 * H])
        o = jax.nn.sigmoid(g[:, 3 * H:4 * H])
        c = f * c + i * gg
        h = o * jnp.tanh(c)
        return (h, c)

    h0 = jnp.zeros((Bt, H), jnp.float32)
    c0 = jnp.zeros((Bt, H), jnp.float32)
    h, _ = lax.fori_loop(0, T, step, (h0, c0), unroll=True)
    o_ref[...] = _leaky(h, alpha)


def pallas_encoder_lstm(x_tbi, wih, whh, b, *, alpha=ALPHA):
    T, Bt, _ = x_tbi.shape
    H = whh.shape[0]
    kern = functools.partial(_encoder_lstm_kernel, T=T, H=H, alpha=alpha)
    return pl.pallas_call(
        kern,
        out_shape=jax.ShapeDtypeStruct((Bt, H), jnp.float32),
    )(x_tbi, wih, whh, b)


# ----------------------------------------------------------------------------
# Kernel 2: conv1 + conv2 + maxpool of the social grid and the ComplexNet
# stand-in conv + spatial mean, all as shift-and-matmul.  Horizontal taps are
# already folded onto the channel axis by the wrapper, so every vertical tap is
# a contiguous static row-slice of a 2D matrix -> plain 2D MXU matmuls.
# ----------------------------------------------------------------------------
def _social_conv_kernel(x_ref, im_ref, w1_ref, b1_ref, w2_ref, b2_ref,
                        wc_ref, bc_ref, pooled_ref, feat_ref, *,
                        B, alpha, img_rows, img_stride, img_out_rows):
    b1 = b1_ref[...]
    b2 = b2_ref[...]
    bc = bc_ref[...]
    o1 = w1_ref.shape[2]          # 64
    o2 = w2_ref.shape[2]          # 16
    oc = wc_ref.shape[2]          # 8

    for b in range(B):
        # conv1 (3x3, H -> 64): rows of x are (h, w), h in [0,13), w in [0,11)
        base = b * (GRID * C1W)                           # 143 rows per batch element
        acc1 = jnp.zeros((C1H * C1W, o1), jnp.float32)
        for di in range(3):
            r0 = base + di * C1W
            acc1 = acc1 + jnp.dot(x_ref[r0:r0 + C1H * C1W, :], w1_ref[di],
                                  preferred_element_type=jnp.float32)
        c1 = _leaky(acc1 + b1, alpha)                     # (121, 64), row = h*11 + w

        # conv2 ((3,1), 64 -> 16): vertical taps only -> contiguous slices of c1
        acc2 = jnp.zeros((C2H * C1W, o2), jnp.float32)
        for di in range(3):
            r0 = di * C1W
            acc2 = acc2 + jnp.dot(c1[r0:r0 + C2H * C1W, :], w2_ref[di],
                                  preferred_element_type=jnp.float32)
        c2 = _leaky(acc2 + b2, alpha)                     # (99, 16), row = h*11 + w

        # MaxPool2d((2,1)): pair consecutive h rows
        for hp in range(PH):
            r0 = 2 * hp * C1W
            pooled_ref[b * PH * C1W + hp * C1W:
                       b * PH * C1W + (hp + 1) * C1W, :] = jnp.maximum(
                c2[r0:r0 + C1W, :], c2[r0 + C1W:r0 + 2 * C1W, :])

        # ComplexNet stand-in: conv(3x3, 3 -> 8) + leaky + spatial mean
        ib = b * img_rows
        accc = jnp.zeros((img_out_rows, oc), jnp.float32)
        for di in range(3):
            r0 = ib + di * img_stride
            accc = accc + jnp.dot(im_ref[r0:r0 + img_out_rows, :], wc_ref[di],
                                  preferred_element_type=jnp.float32)
        cc = _leaky(accc + bc, alpha)
        feat_ref[b:b + 1, :] = jnp.mean(cc, axis=0, keepdims=True)


def pallas_social_conv(x2d, im2d, w1s, b1, w2s, b2, wcs, bc, *, B, img_h, img_w,
                       alpha=ALPHA):
    wo = img_w - 2
    kern = functools.partial(_social_conv_kernel, B=B, alpha=alpha,
                             img_rows=img_h * wo, img_stride=wo,
                             img_out_rows=(img_h - 2) * wo)
    return pl.pallas_call(
        kern,
        out_shape=(jax.ShapeDtypeStruct((B * PH * C1W, w2s.shape[2]), jnp.float32),
                   jax.ShapeDtypeStruct((B, wcs.shape[2]), jnp.float32)),
    )(x2d, im2d, w1s, b1, w2s, b2, wcs, bc)


# ----------------------------------------------------------------------------
# Kernel 3: decoder.  All remaining Linears + decoder LSTM (constant input
# projection hoisted, statically unrolled so per-step outputs land in static
# lane positions) + both softmaxes with approximate reciprocal.
# ----------------------------------------------------------------------------
def _decoder_kernel(flat_ref, ego_ref, feat_ref,
                    wred_ref, bred_ref, wveh_ref, bveh_ref, wfc_ref, bfc_ref,
                    wcp_ref, bcp_ref, wcc_ref, bcc_ref,
                    wih_ref, whh_ref, bdec_ref, wop_ref, bop_ref,
                    wcs_ref, bcs_ref, wss_ref, bss_ref,
                    wcf_ref, bcf_ref, wccf_ref, bccf_ref, wscf_ref, bscf_ref,
                    pred_ref, conf_ref, *, alpha, fk, dh):
    f32 = jnp.float32

    # SocialPooling tail
    nbrs_red = jnp.dot(flat_ref[...], wred_ref[...], preferred_element_type=f32) + bred_ref[...]
    x_ego = jnp.dot(ego_ref[...], wveh_ref[...], preferred_element_type=f32) + bveh_ref[...]
    tcat = jnp.concatenate([nbrs_red, x_ego], axis=1)                 # (B, 64)
    tc = jnp.dot(tcat, wfc_ref[...], preferred_element_type=f32) + bfc_ref[...]

    # ComplexNet stand-in heads
    feat = feat_ref[...]
    cnn_pred = jnp.dot(feat, wcp_ref[...], preferred_element_type=f32) + bcp_ref[...]   # (B, 30)
    cnn_conf = jnp.dot(feat, wcc_ref[...], preferred_element_type=f32) + bcc_ref[...]   # (B, 3)

    # decoder LSTM: input == tc at every step -> hoist x@Wih (+bias) out of the loop
    B = tc.shape[0]
    xw = jnp.dot(tc, wih_ref[...], preferred_element_type=f32) + bdec_ref[...]          # (B, 4*dh)
    whh = whh_ref[...]
    wop = wop_ref[...]
    bop = bop_ref[...]
    h = jnp.zeros((B, dh), f32)
    c = jnp.zeros((B, dh), f32)
    steps = []
    for _ in range(fk):
        g = xw + jnp.dot(h, whh, preferred_element_type=f32)          # (B, 4*dh)
        i = jax.nn.sigmoid(g[:, 0:dh])
        f = jax.nn.sigmoid(g[:, dh:2 * dh])
        gg = jnp.tanh(g[:, 2 * dh:3 * dh])
        o = jax.nn.sigmoid(g[:, 3 * dh:4 * dh])
        c = f * c + i * gg
        h = o * jnp.tanh(c)
        # leaky(LSTM output) -> output_predictions, per step -> static lane slot
        steps.append(jnp.dot(_leaky(h, alpha), wop, preferred_element_type=f32) + bop)  # (B, 2)
    csp_pred = jnp.concatenate(steps, axis=1)                          # (B, 2*fk)

    preds = (jnp.dot(cnn_pred, wcs_ref[...], preferred_element_type=f32) + bcs_ref[...]
             + jnp.dot(csp_pred, wss_ref[...], preferred_element_type=f32) + bss_ref[...])
    pred_ref[...] = preds

    # csp confidences = softmax(confidences(predictions))
    lg = jnp.dot(preds, wcf_ref[...], preferred_element_type=f32) + bcf_ref[...]
    lg = lg - jnp.max(lg, axis=-1, keepdims=True)
    e = jnp.exp(lg)
    csp_conf = e * pl.reciprocal(jnp.sum(e, axis=-1, keepdims=True), approx=True)

    cl = (jnp.dot(cnn_conf, wccf_ref[...], preferred_element_type=f32) + bccf_ref[...]
          + jnp.dot(csp_conf, wscf_ref[...], preferred_element_type=f32) + bscf_ref[...])
    cl = cl - jnp.max(cl, axis=-1, keepdims=True)
    ec = jnp.exp(cl)
    conf_ref[...] = ec * pl.reciprocal(jnp.sum(ec, axis=-1, keepdims=True), approx=True)


def pallas_decoder(flat, ego, feat, *weights, alpha=ALPHA):
    B = flat.shape[0]
    kern = functools.partial(_decoder_kernel, alpha=alpha, fk=FK, dh=DEC_HIDDEN)
    return pl.pallas_call(
        kern,
        out_shape=(jax.ShapeDtypeStruct((B, OUT_FLAT), jnp.float32),
                   jax.ShapeDtypeStruct((B, NUM_TRAJ), jnp.float32)),
    )(flat, ego, feat, *weights)


# ----------------------------------------------------------------------------
# torch masked_scatter_ semantics (JAX glue, data-dependent packing): fill
# mask-true cells row-major with source elements taken row-major.
# NOTE: matches torch only when #true cells per batch == N (data-pipeline invariant).
# ----------------------------------------------------------------------------
def masked_scatter(masks_b1313, src_bnh, hidden):
    B = masks_b1313.shape[0]
    mask4 = jnp.repeat(masks_b1313.astype(bool)[..., None], hidden, axis=3)
    mflat = mask4.reshape(-1)
    sflat = src_bnh.reshape(-1)
    idx = jnp.clip(jnp.cumsum(mflat.astype(jnp.int32)) - 1, 0, sflat.shape[0] - 1)
    out = jnp.where(mflat, sflat[idx], 0.0)
    return out.reshape(B, masks_b1313.shape[1], masks_b1313.shape[2], hidden)


# ----------------------------------------------------------------------------
# Parameter initialization (deterministic, synthetic).
# ----------------------------------------------------------------------------
def _uniform(key, shape, fan_in):
    bound = 1.0 / float(fan_in) ** 0.5
    return jax.random.uniform(key, shape, jnp.float32, -bound, bound)


def init_params(key):
    ks = iter(jax.random.split(key, 40))
    H = LSTM_HIDDEN
    p = {}
    # CSPEncoder: nn.LSTM(2, H, 1) -- 4 gates fused along columns in (i|f|g|o) order
    p['enc_wih'] = _uniform(next(ks), (2, 4 * H), H)
    p['enc_whh'] = _uniform(next(ks), (H, 4 * H), H)
    p['enc_b'] = _uniform(next(ks), (1, 4 * H), H)          # b_ih + b_hh combined
    # SocialPooling (conv weights kept in torch (O, C, KH, KW) layout)
    p['conv1_w'] = _uniform(next(ks), (64, H, 3, 3), H * 9)
    p['conv1_b'] = _uniform(next(ks), (1, 64), H * 9)
    p['conv2_w'] = _uniform(next(ks), (16, 64, 3, 1), 64 * 3)
    p['conv2_b'] = _uniform(next(ks), (1, 16), 64 * 3)
    p['social_red_w'] = _uniform(next(ks), (POOL_FLAT, 32), POOL_FLAT)  # rows in torch CHW order
    p['social_red_b'] = _uniform(next(ks), (1, 32), POOL_FLAT)
    p['veh_dyn_w'] = _uniform(next(ks), (H, 32), H)
    p['veh_dyn_b'] = _uniform(next(ks), (1, 32), H)
    # ComplexNet stand-in (see TODO at top)
    p['cnn_conv_w'] = _uniform(next(ks), (8, 3, 3, 3), 27)
    p['cnn_conv_b'] = _uniform(next(ks), (1, 8), 27)
    p['cnn_pred_w'] = _uniform(next(ks), (8, OUT_FLAT), 8)
    p['cnn_pred_b'] = _uniform(next(ks), (1, OUT_FLAT), 8)
    p['cnn_conf_w'] = _uniform(next(ks), (8, NUM_TRAJ), 8)
    p['cnn_conf_b'] = _uniform(next(ks), (1, NUM_TRAJ), 8)
    # CSPDecoder
    p['traj_fc_w'] = _uniform(next(ks), (64, 64), 64)
    p['traj_fc_b'] = _uniform(next(ks), (1, 64), 64)
    p['dec_wih'] = _uniform(next(ks), (64, 4 * DEC_HIDDEN), DEC_HIDDEN)
    p['dec_whh'] = _uniform(next(ks), (DEC_HIDDEN, 4 * DEC_HIDDEN), DEC_HIDDEN)
    p['dec_b'] = _uniform(next(ks), (1, 4 * DEC_HIDDEN), DEC_HIDDEN)
    p['out_pred_w'] = _uniform(next(ks), (DEC_HIDDEN, 2), DEC_HIDDEN)
    p['out_pred_b'] = _uniform(next(ks), (1, 2), DEC_HIDDEN)
    p['conv_scale_w'] = _uniform(next(ks), (OUT_FLAT, OUT_FLAT), OUT_FLAT)
    p['conv_scale_b'] = _uniform(next(ks), (1, OUT_FLAT), OUT_FLAT)
    p['csp_scale_w'] = _uniform(next(ks), (OUT_FLAT, OUT_FLAT), OUT_FLAT)
    p['csp_scale_b'] = _uniform(next(ks), (1, OUT_FLAT), OUT_FLAT)
    p['conf_w'] = _uniform(next(ks), (OUT_FLAT, NUM_TRAJ), OUT_FLAT)
    p['conf_b'] = _uniform(next(ks), (1, NUM_TRAJ), OUT_FLAT)
    p['conv_conf_w'] = _uniform(next(ks), (NUM_TRAJ, NUM_TRAJ), NUM_TRAJ)
    p['conv_conf_b'] = _uniform(next(ks), (1, NUM_TRAJ), NUM_TRAJ)
    p['csp_conf_w'] = _uniform(next(ks), (NUM_TRAJ, NUM_TRAJ), NUM_TRAJ)
    p['csp_conf_b'] = _uniform(next(ks), (1, NUM_TRAJ), NUM_TRAJ)
    return p


# ----------------------------------------------------------------------------
# CSP.forward  (3 pallas_call launches total)
# ----------------------------------------------------------------------------
def csp_forward(params, nbrs_hist, ego_hist, masks, ego_curr, ims):
    # ego_curr is accepted but unused, exactly like the torch forward.
    B, N, T, _ = nbrs_hist.shape
    H = LSTM_HIDDEN
    assert ego_hist.shape[1] == T   # shared encoder sequence length (data-pipeline invariant)

    # ----- CSPEncoder: ONE fused LSTM launch over [nbrs batch ++ ego batch] -----
    nbrs_seq = nbrs_hist.reshape(B * N, T, 2).transpose(1, 0, 2)      # (T, B*N, 2)
    ego_seq = ego_hist.transpose(1, 0, 2)                             # (T, B, 2)
    enc_in = jnp.concatenate([nbrs_seq, ego_seq], axis=1).astype(jnp.float32)
    h_last = pallas_encoder_lstm(enc_in, params['enc_wih'], params['enc_whh'],
                                 params['enc_b'])                     # (B*N+B, H), leaky fused
    nbrs_encoded = h_last[:B * N].reshape(B, N, H)
    ego_encoded = h_last[B * N:]                                      # (B, H)

    # ----- SocialPooling conv inputs (wrapper glue) -----
    social = masked_scatter(masks, nbrs_encoded, H)                   # (B, 13, 13, H) NHWC
    # stack the 3 horizontal conv taps onto the channel axis so the kernel only
    # needs vertical shifts (contiguous static row slices of a 2D matrix)
    x_w = jnp.concatenate([social[:, :, dj:dj + C1W, :] for dj in range(3)], axis=-1)
    x2d = x_w.reshape(B * GRID * C1W, 3 * H)                          # (B*143, 3H)

    CI, HI, WI = ims.shape[1], ims.shape[2], ims.shape[3]
    WO = WI - 2
    ims_nhwc = ims.transpose(0, 2, 3, 1).astype(jnp.float32)          # (B, HI, WI, CI)
    im_w = jnp.concatenate([ims_nhwc[:, :, dj:dj + WO, :] for dj in range(3)], axis=-1)
    im2d = im_w.reshape(B * HI * WO, 3 * CI)

    # conv weights -> shift-and-matmul layout: (tap_di, dj*Cin + c, Cout)
    w1s = params['conv1_w'].transpose(2, 3, 1, 0).reshape(3, 3 * H, 64)
    w2s = params['conv2_w'][:, :, :, 0].transpose(2, 1, 0)            # (3, 64, 16)
    wcs = params['cnn_conv_w'].transpose(2, 3, 1, 0).reshape(3, 3 * CI, 8)

    pooled2d, feat = pallas_social_conv(
        x2d, im2d, w1s, params['conv1_b'], w2s, params['conv2_b'],
        wcs, params['cnn_conv_b'], B=B, img_h=HI, img_w=WI)
    flat = pooled2d.reshape(B, POOL_FLAT)                             # (B, 704) in (hp, w, c) order

    # reorder social_reduction rows from torch CHW-flatten order to the kernel's
    # (hp, w, c) flatten order -> numerically identical Linear.
    hp = np.arange(PH)[:, None, None]
    w = np.arange(C1W)[None, :, None]
    c = np.arange(16)[None, None, :]
    perm = (c * (PH * C1W) + hp * C1W + w).reshape(-1)                # (704,)
    w_red = params['social_red_w'][perm]

    # ----- CSPDecoder + ComplexNet heads + all scalings/softmaxes in ONE launch -----
    preds, confs = pallas_decoder(
        flat, ego_encoded, feat,
        w_red, params['social_red_b'], params['veh_dyn_w'], params['veh_dyn_b'],
        params['traj_fc_w'], params['traj_fc_b'],
        params['cnn_pred_w'], params['cnn_pred_b'],
        params['cnn_conf_w'], params['cnn_conf_b'],
        params['dec_wih'], params['dec_whh'], params['dec_b'],
        params['out_pred_w'], params['out_pred_b'],
        params['conv_scale_w'], params['conv_scale_b'],
        params['csp_scale_w'], params['csp_scale_b'],
        params['conf_w'], params['conf_b'],
        params['conv_conf_w'], params['conv_conf_b'],
        params['csp_conf_w'], params['csp_conf_b'])

    predictions = preds.reshape(B, NUM_TRAJ, FUTURE_FRAMES, 2)
    return predictions, confs


if __name__ == "__main__":
    key = jax.random.PRNGKey(0)
    k1, k2, k3, k4, kp = jax.random.split(key, 5)

    B, N, T = 2, 4, 10
    nbrs_hist = jax.random.normal(k1, (B, N, T, 2), jnp.float32)
    ego_hist = jax.random.normal(k2, (B, T, 2), jnp.float32)
    # masks: exactly N true cells per batch element -> masked_scatter consumes
    # all B*N neighbor encodings (as in the original data pipeline).
    masks = jnp.zeros((B, 13, 13), jnp.float32)
    for b in range(B):
        for n in range(N):
            masks = masks.at[b, 3 + n, 5 + b].set(1.0)
    ego_curr = jax.random.normal(k3, (B, 2), jnp.float32)   # unused by forward (as in torch)
    ims = jax.random.normal(k4, (B, 3, 16, 16), jnp.float32)

    params = init_params(kp)

    fwd = jax.jit(csp_forward)
    preds, confs = fwd(params, nbrs_hist, ego_hist, masks, ego_curr, ims)
    jax.block_until_ready((preds, confs))

    assert preds.shape == (B, NUM_TRAJ, FUTURE_FRAMES, 2), preds.shape
    assert confs.shape == (B, NUM_TRAJ), confs.shape
    assert bool(jnp.all(jnp.isfinite(preds))) and bool(jnp.all(jnp.isfinite(confs)))
    print("KERNEL_OK")
</pallas_src>

<mosaic_0001>
module attributes {stable_mosaic.version = 11 : i64} {
  func.func @_encoder_lstm_kernel(%arg0: memref<10x10x2xf32, #tpu.memory_space<vmem>>, %arg1: memref<2x64xf32, #tpu.memory_space<vmem>>, %arg2: memref<16x64xf32, #tpu.memory_space<vmem>>, %arg3: memref<1x64xf32, #tpu.memory_space<vmem>>, %arg4: memref<10x16xf32, #tpu.memory_space<vmem>>) attributes {dimension_semantics = [], scalar_prefetch = 0 : i64, scratch_operands = 0 : i64, tpu.core_type = #tpu.core_type<tc>} {
    %c0 = arith.constant 0 : index
    %c0_0 = arith.constant 0 : index
    %0 = vector.load %arg1[%c0, %c0_0] : memref<2x64xf32, #tpu.memory_space<vmem>>, vector<2x64xf32>
    %c0_1 = arith.constant 0 : index
    %c0_2 = arith.constant 0 : index
    %1 = vector.load %arg2[%c0_1, %c0_2] : memref<16x64xf32, #tpu.memory_space<vmem>>, vector<16x64xf32>
    %c0_3 = arith.constant 0 : index
    %c0_4 = arith.constant 0 : index
    %2 = vector.load %arg3[%c0_3, %c0_4] : memref<1x64xf32, #tpu.memory_space<vmem>>, vector<1x64xf32>
    %cst = arith.constant 0.000000e+00 : f32
    %3 = vector.broadcast %cst : f32 to vector<10x16xf32>
    %cst_5 = arith.constant 0.000000e+00 : f32
    %4 = vector.broadcast %cst_5 : f32 to vector<10x16xf32>
    %c0_i32 = arith.constant 0 : i32
    %5 = arith.index_cast %c0_i32 : i32 to index
    %c0_6 = arith.constant 0 : index
    %c0_7 = arith.constant 0 : index
    %6 = vector.load %arg0[%5, %c0_6, %c0_7] : memref<10x10x2xf32, #tpu.memory_space<vmem>>, vector<1x10x2xf32>
    %7 = vector.shape_cast %6 : vector<1x10x2xf32> to vector<10x2xf32>
    %cst_8 = arith.constant dense<0.000000e+00> : vector<10x64xf32>
    %8 = tpu.matmul %7, %0, %cst_8 {dimension_numbers = #tpu.dot_dimension_numbers<[1], [0], [0], [1], [0, 0, 1, 1], [], []>} : vector<10x2xf32>, vector<2x64xf32>, vector<10x64xf32> -> vector<10x64xf32>
    %cst_9 = arith.constant dense<0.000000e+00> : vector<10x64xf32>
    %9 = tpu.matmul %3, %1, %cst_9 {dimension_numbers = #tpu.dot_dimension_numbers<[1], [0], [0], [1], [0, 0, 1, 1], [], []>} : vector<10x16xf32>, vector<16x64xf32>, vector<10x64xf32> -> vector<10x64xf32>
    %10 = arith.addf %8, %9 : vector<10x64xf32>
    %11 = vector.broadcast %2 : vector<1x64xf32> to vector<10x64xf32>
    %12 = arith.addf %10, %11 : vector<10x64xf32>
    %13 = vector.extract_strided_slice %12 {offsets = [0, 0], sizes = [10, 16], strides = [1, 1]} : vector<10x64xf32> to vector<10x16xf32>
    %14 = arith.negf %13 : vector<10x16xf32>
    %15 = math.exp %14 : vector<10x16xf32>
    %cst_10 = arith.constant 1.000000e+00 : f32
    %16 = vector.broadcast %cst_10 : f32 to vector<10x16xf32>
    %17 = arith.addf %16, %15 : vector<10x16xf32>
    %18 = arith.divf %16, %17 : vector<10x16xf32>
    %19 = vector.extract_strided_slice %12 {offsets = [0, 16], sizes = [10, 16], strides = [1, 1]} : vector<10x64xf32> to vector<10x16xf32>
    %20 = arith.negf %19 : vector<10x16xf32>
    %21 = math.exp %20 : vector<10x16xf32>
    %cst_11 = arith.constant 1.000000e+00 : f32
    %22 = vector.broadcast %cst_11 : f32 to vector<10x16xf32>
    %23 = arith.addf %22, %21 : vector<10x16xf32>
    %24 = arith.divf %22, %23 : vector<10x16xf32>
    %25 = vector.extract_strided_slice %12 {offsets = [0, 32], sizes = [10, 16], strides = [1, 1]} : vector<10x64xf32> to vector<10x16xf32>
    %26 = math.tanh %25 : vector<10x16xf32>
    %27 = vector.extract_strided_slice %12 {offsets = [0, 48], sizes = [10, 16], strides = [1, 1]} : vector<10x64xf32> to vector<10x16xf32>
    %28 = arith.negf %27 : vector<10x16xf32>
    %29 = math.exp %28 : vector<10x16xf32>
    %cst_12 = arith.constant 1.000000e+00 : f32
    %30 = vector.broadcast %cst_12 : f32 to vector<10x16xf32>
    %31 = arith.addf %30, %29 : vector<10x16xf32>
    %32 = arith.divf %30, %31 : vector<10x16xf32>
    %33 = arith.mulf %24, %4 : vector<10x16xf32>
    %34 = arith.mulf %18, %26 : vector<10x16xf32>
    %35 = arith.addf %33, %34 : vector<10x16xf32>
    %36 = math.tanh %35 : vector<10x16xf32>
    %37 = arith.mulf %32, %36 : vector<10x16xf32>
    %c1_i32 = arith.constant 1 : i32
    %38 = arith.index_cast %c1_i32 : i32 to index
    %c0_13 = arith.constant 0 : index
    %c0_14 = arith.constant 0 : index
    %39 = vector.load %arg0[%38, %c0_13, %c0_14] : memref<10x10x2xf32, #tpu.memory_space<vmem>>, vector<1x10x2xf32>
    %40 = vector.shape_cast %39 : vector<1x10x2xf32> to vector<10x2xf32>
    %cst_15 = arith.constant dense<0.000000e+00> : vector<10x64xf32>
    %41 = tpu.matmul %40, %0, %cst_15 {dimension_numbers = #tpu.dot_dimension_numbers<[1], [0], [0], [1], [0, 0, 1, 1], [], []>} : vector<10x2xf32>, vector<2x64xf32>, vector<10x64xf32> -> vector<10x64xf32>
    %cst_16 = arith.constant dense<0.000000e+00> : vector<10x64xf32>
    %42 = tpu.matmul %37, %1, %cst_16 {dimension_numbers = #tpu.dot_dimension_numbers<[1], [0], [0], [1], [0, 0, 1, 1], [], []>} : vector<10x16xf32>, vector<16x64xf32>, vector<10x64xf32> -> vector<10x64xf32>
    %43 = arith.addf %41, %42 : vector<10x64xf32>
    %44 = vector.broadcast %2 : vector<1x64xf32> to vector<10x64xf32>
    %45 = arith.addf %43, %44 : vector<10x64xf32>
    %46 = vector.extract_strided_slice %45 {offsets = [0, 0], sizes = [10, 16], strides = [1, 1]} : vector<10x64xf32> to vector<10x16xf32>
    %47 = arith.negf %46 : vector<10x16xf32>
    %48 = math.exp %47 : vector<10x16xf32>
    %cst_17 = arith.constant 1.000000e+00 : f32
    %49 = vector.broadcast %cst_17 : f32 to vector<10x16xf32>
    %50 = arith.addf %49, %48 : vector<10x16xf32>
    %51 = arith.divf %49, %50 : vector<10x16xf32>
    %52 = vector.extract_strided_slice %45 {offsets = [0, 16], sizes = [10, 16], strides = [1, 1]} : vector<10x64xf32> to vector<10x16xf32>
    %53 = arith.negf %52 : vector<10x16xf32>
    %54 = math.exp %53 : vector<10x16xf32>
    %cst_18 = arith.constant 1.000000e+00 : f32
    %55 = vector.broadcast %cst_18 : f32 to vector<10x16xf32>
    %56 = arith.addf %55, %54 : vector<10x16xf32>
    %57 = arith.divf %55, %56 : vector<10x16xf32>
    %58 = vector.extract_strided_slice %45 {offsets = [0, 32], sizes = [10, 16], strides = [1, 1]} : vector<10x64xf32> to vector<10x16xf32>
    %59 = math.tanh %58 : vector<10x16xf32>
    %60 = vector.extract_strided_slice %45 {offsets = [0, 48], sizes = [10, 16], strides = [1, 1]} : vector<10x64xf32> to vector<10x16xf32>
    %61 = arith.negf %60 : vector<10x16xf32>
    %62 = math.exp %61 : vector<10x16xf32>
    %cst_19 = arith.constant 1.000000e+00 : f32
    %63 = vector.broadcast %cst_19 : f32 to vector<10x16xf32>
    %64 = arith.addf %63, %62 : vector<10x16xf32>
    %65 = arith.divf %63, %64 : vector<10x16xf32>
    %66 = arith.mulf %57, %35 : vector<10x16xf32>
    %67 = arith.mulf %51, %59 : vector<10x16xf32>
    %68 = arith.addf %66, %67 : vector<10x16xf32>
    %69 = math.tanh %68 : vector<10x16xf32>
    %70 = arith.mulf %65, %69 : vector<10x16xf32>
    %c2_i32 = arith.constant 2 : i32
    %71 = arith.index_cast %c2_i32 : i32 to index
    %c0_20 = arith.constant 0 : index
    %c0_21 = arith.constant 0 : index
    %72 = vector.load %arg0[%71, %c0_20, %c0_21] : memref<10x10x2xf32, #tpu.memory_space<vmem>>, vector<1x10x2xf32>
    %73 = vector.shape_cast %72 : vector<1x10x2xf32> to vector<10x2xf32>
    %cst_22 = arith.constant dense<0.000000e+00> : vector<10x64xf32>
    %74 = tpu.matmul %73, %0, %cst_22 {dimension_numbers = #tpu.dot_dimension_numbers<[1], [0], [0], [1], [0, 0, 1, 1], [], []>} : vector<10x2xf32>, vector<2x64xf32>, vector<10x64xf32> -> vector<10x64xf32>
    %cst_23 = arith.constant dense<0.000000e+00> : vector<10x64xf32>
    %75 = tpu.matmul %70, %1, %cst_23 {dimension_numbers = #tpu.dot_dimension_numbers<[1], [0], [0], [1], [0, 0, 1, 1], [], []>} : vector<10x16xf32>, vector<16x64xf32>, vector<10x64xf32> -> vector<10x64xf32>
    %76 = arith.addf %74, %75 : vector<10x64xf32>
    %77 = vector.broadcast %2 : vector<1x64xf32> to vector<10x64xf32>
    %78 = arith.addf %76, %77 : vector<10x64xf32>
    %79 = vector.extract_strided_slice %78 {offsets = [0, 0], sizes = [10, 16], strides = [1, 1]} : vector<10x64xf32> to vector<10x16xf32>
    %80 = arith.negf %79 : vector<10x16xf32>
    %81 = math.exp %80 : vector<10x16xf32>
    %cst_24 = arith.constant 1.000000e+00 : f32
    %82 = vector.broadcast %cst_24 : f32 to vector<10x16xf32>
    %83 = arith.addf %82, %81 : vector<10x16xf32>
    %84 = arith.divf %82, %83 : vector<10x16xf32>
    %85 = vector.extract_strided_slice %78 {offsets = [0, 16], sizes = [10, 16], strides = [1, 1]} : vector<10x64xf32> to vector<10x16xf32>
    %86 = arith.negf %85 : vector<10x16xf32>
    %87 = math.exp %86 : vector<10x16xf32>
    %cst_25 = arith.constant 1.000000e+00 : f32
    %88 = vector.broadcast %cst_25 : f32 to vector<10x16xf32>
    %89 = arith.addf %88, %87 : vector<10x16xf32>
    %90 = arith.divf %88, %89 : vector<10x16xf32>
    %91 = vector.extract_strided_slice %78 {offsets = [0, 32], sizes = [10, 16], strides = [1, 1]} : vector<10x64xf32> to vector<10x16xf32>
    %92 = math.tanh %91 : vector<10x16xf32>
    %93 = vector.extract_strided_slice %78 {offsets = [0, 48], sizes = [10, 16], strides = [1, 1]} : vector<10x64xf32> to vector<10x16xf32>
    %94 = arith.negf %93 : vector<10x16xf32>
    %95 = math.exp %94 : vector<10x16xf32>
    %cst_26 = arith.constant 1.000000e+00 : f32
    %96 = vector.broadcast %cst_26 : f32 to vector<10x16xf32>
    %97 = arith.addf %96, %95 : vector<10x16xf32>
    %98 = arith.divf %96, %97 : vector<10x16xf32>
    %99 = arith.mulf %90, %68 : vector<10x16xf32>
    %100 = arith.mulf %84, %92 : vector<10x16xf32>
    %101 = arith.addf %99, %100 : vector<10x16xf32>
    %102 = math.tanh %101 : vector<10x16xf32>
    %103 = arith.mulf %98, %102 : vector<10x16xf32>
    %c3_i32 = arith.constant 3 : i32
    %104 = arith.index_cast %c3_i32 : i32 to index
    %c0_27 = arith.constant 0 : index
    %c0_28 = arith.constant 0 : index
    %105 = vector.load %arg0[%104, %c0_27, %c0_28] : memref<10x10x2xf32, #tpu.memory_space<vmem>>, vector<1x10x2xf32>
    %106 = vector.shape_cast %105 : vector<1x10x2xf32> to vector<10x2xf32>
    %cst_29 = arith.constant dense<0.000000e+00> : vector<10x64xf32>
    %107 = tpu.matmul %106, %0, %cst_29 {dimension_numbers = #tpu.dot_dimension_numbers<[1], [0], [0], [1], [0, 0, 1, 1], [], []>} : vector<10x2xf32>, vector<2x64xf32>, vector<10x64xf32> -> vector<10x64xf32>
    %cst_30 = arith.constant dense<0.000000e+00> : vector<10x64xf32>
    %108 = tpu.matmul %103, %1, %cst_30 {dimension_numbers = #tpu.dot_dimension_numbers<[1], [0], [0], [1], [0, 0, 1, 1], [], []>} : vector<10x16xf32>, vector<16x64xf32>, vector<10x64xf32> -> vector<10x64xf32>
    %109 = arith.addf %107, %108 : vector<10x64xf32>
    %110 = vector.broadcast %2 : vector<1x64xf32> to vector<10x64xf32>
    %111 = arith.addf %109, %110 : vector<10x64xf32>
    %112 = vector.extract_strided_slice %111 {offsets = [0, 0], sizes = [10, 16], strides = [1, 1]} : vector<10x64xf32> to vector<10x16xf32>
    %113 = arith.negf %112 : vector<10x16xf32>
    %114 = math.exp %113 : vector<10x16xf32>
    %cst_31 = arith.constant 1.000000e+00 : f32
    %115 = vector.broadcast %cst_31 : f32 to vector<10x16xf32>
    %116 = arith.addf %115, %114 : vector<10x16xf32>
    %117 = arith.divf %115, %116 : vector<10x16xf32>
    %118 = vector.extract_strided_slice %111 {offsets = [0, 16], sizes = [10, 16], strides = [1, 1]} : vector<10x64xf32> to vector<10x16xf32>
    %119 = arith.negf %118 : vector<10x16xf32>
    %120 = math.exp %119 : vector<10x16xf32>
    %cst_32 = arith.constant 1.000000e+00 : f32
    %121 = vector.broadcast %cst_32 : f32 to vector<10x16xf32>
    %122 = arith.addf %121, %120 : vector<10x16xf32>
    %123 = arith.divf %121, %122 : vector<10x16xf32>
    %124 = vector.extract_strided_slice %111 {offsets = [0, 32], sizes = [10, 16], strides = [1, 1]} : vector<10x64xf32> to vector<10x16xf32>
    %125 = math.tanh %124 : vector<10x16xf32>
    %126 = vector.extract_strided_slice %111 {offsets = [0, 48], sizes = [10, 16], strides = [1, 1]} : vector<10x64xf32> to vector<10x16xf32>
    %127 = arith.negf %126 : vector<10x16xf32>
    %128 = math.exp %127 : vector<10x16xf32>
    %cst_33 = arith.constant 1.000000e+00 : f32
    %129 = vector.broadcast %cst_33 : f32 to vector<10x16xf32>
    %130 = arith.addf %129, %128 : vector<10x16xf32>
    %131 = arith.divf %129, %130 : vector<10x16xf32>
    %132 = arith.mulf %123, %101 : vector<10x16xf32>
    %133 = arith.mulf %117, %125 : vector<10x16xf32>
    %134 = arith.addf %132, %133 : vector<10x16xf32>
    %135 = math.tanh %134 : vector<10x16xf32>
    %136 = arith.mulf %131, %135 : vector<10x16xf32>
    %c4_i32 = arith.constant 4 : i32
    %137 = arith.index_cast %c4_i32 : i32 to index
    %c0_34 = arith.constant 0 : index
    %c0_35 = arith.constant 0 : index
    %138 = vector.load %arg0[%137, %c0_34, %c0_35] : memref<10x10x2xf32, #tpu.memory_space<vmem>>, vector<1x10x2xf32>
    %139 = vector.shape_cast %138 : vector<1x10x2xf32> to vector<10x2xf32>
    %cst_36 = arith.constant dense<0.000000e+00> : vector<10x64xf32>
    %140 = tpu.matmul %139, %0, %cst_36 {dimension_numbers = #tpu.dot_dimension_numbers<[1], [0], [0], [1], [0, 0, 1, 1], [], []>} : vector<10x2xf32>, vector<2x64xf32>, vector<10x64xf32> -> vector<10x64xf32>
    %cst_37 = arith.constant dense<0.000000e+00> : vector<10x64xf32>
    %141 = tpu.matmul %136, %1, %cst_37 {dimension_numbers = #tpu.dot_dimension_numbers<[1], [0], [0], [1], [0, 0, 1, 1], [], []>} : vector<10x16xf32>, vector<16x64xf32>, vector<10x64xf32> -> vector<10x64xf32>
    %142 = arith.addf %140, %141 : vector<10x64xf32>
    %143 = vector.broadcast %2 : vector<1x64xf32> to vector<10x64xf32>
    %144 = arith.addf %142, %143 : vector<10x64xf32>
    %145 = vector.extract_strided_slice %144 {offsets = [0, 0], sizes = [10, 16], strides = [1, 1]} : vector<10x64xf32> to vector<10x16xf32>
    %146 = arith.negf %145 : vector<10x16xf32>
    %147 = math.exp %146 : vector<10x16xf32>
    %cst_38 = arith.constant 1.000000e+00 : f32
    %148 = vector.broadcast %cst_38 : f32 to vector<10x16xf32>
    %149 = arith.addf %148, %147 : vector<10x16xf32>
    %150 = arith.divf %148, %149 : vector<10x16xf32>
    %151 = vector.extract_strided_slice %144 {offsets = [0, 16], sizes = [10, 16], strides = [1, 1]} : vector<10x64xf32> to vector<10x16xf32>
    %152 = arith.negf %151 : vector<10x16xf32>
    %153 = math.exp %152 : vector<10x16xf32>
    %cst_39 = arith.constant 1.000000e+00 : f32
    %154 = vector.broadcast %cst_39 : f32 to vector<10x16xf32>
    %155 = arith.addf %154, %153 : vector<10x16xf32>
    %156 = arith.divf %154, %155 : vector<10x16xf32>
    %157 = vector.extract_strided_slice %144 {offsets = [0, 32], sizes = [10, 16], strides = [1, 1]} : vector<10x64xf32> to vector<10x16xf32>
    %158 = math.tanh %157 : vector<10x16xf32>
    %159 = vector.extract_strided_slice %144 {offsets = [0, 48], sizes = [10, 16], strides = [1, 1]} : vector<10x64xf32> to vector<10x16xf32>
    %160 = arith.negf %159 : vector<10x16xf32>
    %161 = math.exp %160 : vector<10x16xf32>
    %cst_40 = arith.constant 1.000000e+00 : f32
    %162 = vector.broadcast %cst_40 : f32 to vector<10x16xf32>
    %163 = arith.addf %162, %161 : vector<10x16xf32>
    %164 = arith.divf %162, %163 : vector<10x16xf32>
    %165 = arith.mulf %156, %134 : vector<10x16xf32>
    %166 = arith.mulf %150, %158 : vector<10x16xf32>
    %167 = arith.addf %165, %166 : vector<10x16xf32>
    %168 = math.tanh %167 : vector<10x16xf32>
    %169 = arith.mulf %164, %168 : vector<10x16xf32>
    %c5_i32 = arith.constant 5 : i32
    %170 = arith.index_cast %c5_i32 : i32 to index
    %c0_41 = arith.constant 0 : index
    %c0_42 = arith.constant 0 : index
    %171 = vector.load %arg0[%170, %c0_41, %c0_42] : memref<10x10x2xf32, #tpu.memory_space<vmem>>, vector<1x10x2xf32>
    %172 = vector.shape_cast %171 : vector<1x10x2xf32> to vector<10x2xf32>
    %cst_43 = arith.constant dense<0.000000e+00> : vector<10x64xf32>
    %173 = tpu.matmul %172, %0, %cst_43 {dimension_numbers = #tpu.dot_dimension_numbers<[1], [0], [0], [1], [0, 0, 1, 1], [], []>} : vector<10x2xf32>, vector<2x64xf32>, vector<10x64xf32> -> vector<10x64xf32>
    %cst_44 = arith.constant dense<0.000000e+00> : vector<10x64xf32>
    %174 = tpu.matmul %169, %1, %cst_44 {dimension_numbers = #tpu.dot_dimension_numbers<[1], [0], [0], [1], [0, 0, 1, 1], [], []>} : vector<10x16xf32>, vector<16x64xf32>, vector<10x64xf32> -> vector<10x64xf32>
    %175 = arith.addf %173, %174 : vector<10x64xf32>
    %176 = vector.broadcast %2 : vector<1x64xf32> to vector<10x64xf32>
    %177 = arith.addf %175, %176 : vector<10x64xf32>
    %178 = vector.extract_strided_slice %177 {offsets = [0, 0], sizes = [10, 16], strides = [1, 1]} : vector<10x64xf32> to vector<10x16xf32>
    %179 = arith.negf %178 : vector<10x16xf32>
    %180 = math.exp %179 : vector<10x16xf32>
    %cst_45 = arith.constant 1.000000e+00 : f32
    %181 = vector.broadcast %cst_45 : f32 to vector<10x16xf32>
    %182 = arith.addf %181, %180 : vector<10x16xf32>
    %183 = arith.divf %181, %182 : vector<10x16xf32>
    %184 = vector.extract_strided_slice %177 {offsets = [0, 16], sizes = [10, 16], strides = [1, 1]} : vector<10x64xf32> to vector<10x16xf32>
    %185 = arith.negf %184 : vector<10x16xf32>
    %186 = math.exp %185 : vector<10x16xf32>
    %cst_46 = arith.constant 1.000000e+00 : f32
    %187 = vector.broadcast %cst_46 : f32 to vector<10x16xf32>
    %188 = arith.addf %187, %186 : vector<10x16xf32>
    %189 = arith.divf %187, %188 : vector<10x16xf32>
    %190 = vector.extract_strided_slice %177 {offsets = [0, 32], sizes = [10, 16], strides = [1, 1]} : vector<10x64xf32> to vector<10x16xf32>
    %191 = math.tanh %190 : vector<10x16xf32>
    %192 = vector.extract_strided_slice %177 {offsets = [0, 48], sizes = [10, 16], strides = [1, 1]} : vector<10x64xf32> to vector<10x16xf32>
    %193 = arith.negf %192 : vector<10x16xf32>
    %194 = math.exp %193 : vector<10x16xf32>
    %cst_47 = arith.constant 1.000000e+00 : f32
    %195 = vector.broadcast %cst_47 : f32 to vector<10x16xf32>
    %196 = arith.addf %195, %194 : vector<10x16xf32>
    %197 = arith.divf %195, %196 : vector<10x16xf32>
    %198 = arith.mulf %189, %167 : vector<10x16xf32>
    %199 = arith.mulf %183, %191 : vector<10x16xf32>
    %200 = arith.addf %198, %199 : vector<10x16xf32>
    %201 = math.tanh %200 : vector<10x16xf32>
    %202 = arith.mulf %197, %201 : vector<10x16xf32>
    %c6_i32 = arith.constant 6 : i32
    %203 = arith.index_cast %c6_i32 : i32 to index
    %c0_48 = arith.constant 0 : index
    %c0_49 = arith.constant 0 : index
    %204 = vector.load %arg0[%203, %c0_48, %c0_49] : memref<10x10x2xf32, #tpu.memory_space<vmem>>, vector<1x10x2xf32>
    %205 = vector.shape_cast %204 : vector<1x10x2xf32> to vector<10x2xf32>
    %cst_50 = arith.constant dense<0.000000e+00> : vector<10x64xf32>
    %206 = tpu.matmul %205, %0, %cst_50 {dimension_numbers = #tpu.dot_dimension_numbers<[1], [0], [0], [1], [0, 0, 1, 1], [], []>} : vector<10x2xf32>, vector<2x64xf32>, vector<10x64xf32> -> vector<10x64xf32>
    %cst_51 = arith.constant dense<0.000000e+00> : vector<10x64xf32>
    %207 = tpu.matmul %202, %1, %cst_51 {dimension_numbers = #tpu.dot_dimension_numbers<[1], [0], [0], [1], [0, 0, 1, 1], [], []>} : vector<10x16xf32>, vector<16x64xf32>, vector<10x64xf32> -> vector<10x64xf32>
    %208 = arith.addf %206, %207 : vector<10x64xf32>
    %209 = vector.broadcast %2 : vector<1x64xf32> to vector<10x64xf32>
    %210 = arith.addf %208, %209 : vector<10x64xf32>
    %211 = vector.extract_strided_slice %210 {offsets = [0, 0], sizes = [10, 16], strides = [1, 1]} : vector<10x64xf32> to vector<10x16xf32>
    %212 = arith.negf %211 : vector<10x16xf32>
    %213 = math.exp %212 : vector<10x16xf32>
    %cst_52 = arith.constant 1.000000e+00 : f32
    %214 = vector.broadcast %cst_52 : f32 to vector<10x16xf32>
    %215 = arith.addf %214, %213 : vector<10x16xf32>
    %216 = arith.divf %214, %215 : vector<10x16xf32>
    %217 = vector.extract_strided_slice %210 {offsets = [0, 16], sizes = [10, 16], strides = [1, 1]} : vector<10x64xf32> to vector<10x16xf32>
    %218 = arith.negf %217 : vector<10x16xf32>
    %219 = math.exp %218 : vector<10x16xf32>
    %cst_53 = arith.constant 1.000000e+00 : f32
    %220 = vector.broadcast %cst_53 : f32 to vector<10x16xf32>
    %221 = arith.addf %220, %219 : vector<10x16xf32>
    %222 = arith.divf %220, %221 : vector<10x16xf32>
    %223 = vector.extract_strided_slice %210 {offsets = [0, 32], sizes = [10, 16], strides = [1, 1]} : vector<10x64xf32> to vector<10x16xf32>
    %224 = math.tanh %223 : vector<10x16xf32>
    %225 = vector.extract_strided_slice %210 {offsets = [0, 48], sizes = [10, 16], strides = [1, 1]} : vector<10x64xf32> to vector<10x16xf32>
    %226 = arith.negf %225 : vector<10x16xf32>
    %227 = math.exp %226 : vector<10x16xf32>
    %cst_54 = arith.constant 1.000000e+00 : f32
    %228 = vector.broadcast %cst_54 : f32 to vector<10x16xf32>
    %229 = arith.addf %228, %227 : vector<10x16xf32>
    %230 = arith.divf %228, %229 : vector<10x16xf32>
    %231 = arith.mulf %222, %200 : vector<10x16xf32>
    %232 = arith.mulf %216, %224 : vector<10x16xf32>
    %233 = arith.addf %231, %232 : vector<10x16xf32>
    %234 = math.tanh %233 : vector<10x16xf32>
    %235 = arith.mulf %230, %234 : vector<10x16xf32>
    %c7_i32 = arith.constant 7 : i32
    %236 = arith.index_cast %c7_i32 : i32 to index
    %c0_55 = arith.constant 0 : index
    %c0_56 = arith.constant 0 : index
    %237 = vector.load %arg0[%236, %c0_55, %c0_56] : memref<10x10x2xf32, #tpu.memory_space<vmem>>, vector<1x10x2xf32>
    %238 = vector.shape_cast %237 : vector<1x10x2xf32> to vector<10x2xf32>
    %cst_57 = arith.constant dense<0.000000e+00> : vector<10x64xf32>
    %239 = tpu.matmul %238, %0, %cst_57 {dimension_numbers = #tpu.dot_dimension_numbers<[1], [0], [0], [1], [0, 0, 1, 1], [], []>} : vector<10x2xf32>, vector<2x64xf32>, vector<10x64xf32> -> vector<10x64xf32>
    %cst_58 = arith.constant dense<0.000000e+00> : vector<10x64xf32>
    %240 = tpu.matmul %235, %1, %cst_58 {dimension_numbers = #tpu.dot_dimension_numbers<[1], [0], [0], [1], [0, 0, 1, 1], [], []>} : vector<10x16xf32>, vector<16x64xf32>, vector<10x64xf32> -> vector<10x64xf32>
    %241 = arith.addf %239, %240 : vector<10x64xf32>
    %242 = vector.broadcast %2 : vector<1x64xf32> to vector<10x64xf32>
    %243 = arith.addf %241, %242 : vector<10x64xf32>
    %244 = vector.extract_strided_slice %243 {offsets = [0, 0], sizes = [10, 16], strides = [1, 1]} : vector<10x64xf32> to vector<10x16xf32>
    %245 = arith.negf %244 : vector<10x16xf32>
    %246 = math.exp %245 : vector<10x16xf32>
    %cst_59 = arith.constant 1.000000e+00 : f32
    %247 = vector.broadcast %cst_59 : f32 to vector<10x16xf32>
    %248 = arith.addf %247, %246 : vector<10x16xf32>
    %249 = arith.divf %247, %248 : vector<10x16xf32>
    %250 = vector.extract_strided_slice %243 {offsets = [0, 16], sizes = [10, 16], strides = [1, 1]} : vector<10x64xf32> to vector<10x16xf32>
    %251 = arith.negf %250 : vector<10x16xf32>
    %252 = math.exp %251 : vector<10x16xf32>
    %cst_60 = arith.constant 1.000000e+00 : f32
    %253 = vector.broadcast %cst_60 : f32 to vector<10x16xf32>
    %254 = arith.addf %253, %252 : vector<10x16xf32>
    %255 = arith.divf %253, %254 : vector<10x16xf32>
    %256 = vector.extract_strided_slice %243 {offsets = [0, 32], sizes = [10, 16], strides = [1, 1]} : vector<10x64xf32> to vector<10x16xf32>
    %257 = math.tanh %256 : vector<10x16xf32>
    %258 = vector.extract_strided_slice %243 {offsets = [0, 48], sizes = [10, 16], strides = [1, 1]} : vector<10x64xf32> to vector<10x16xf32>
    %259 = arith.negf %258 : vector<10x16xf32>
    %260 = math.exp %259 : vector<10x16xf32>
    %cst_61 = arith.constant 1.000000e+00 : f32
    %261 = vector.broadcast %cst_61 : f32 to vector<10x16xf32>
    %262 = arith.addf %261, %260 : vector<10x16xf32>
    %263 = arith.divf %261, %262 : vector<10x16xf32>
    %264 = arith.mulf %255, %233 : vector<10x16xf32>
    %265 = arith.mulf %249, %257 : vector<10x16xf32>
    %266 = arith.addf %264, %265 : vector<10x16xf32>
    %267 = math.tanh %266 : vector<10x16xf32>
    %268 = arith.mulf %263, %267 : vector<10x16xf32>
    %c8_i32 = arith.constant 8 : i32
    %269 = arith.index_cast %c8_i32 : i32 to index
    %c0_62 = arith.constant 0 : index
    %c0_63 = arith.constant 0 : index
    %270 = vector.load %arg0[%269, %c0_62, %c0_63] : memref<10x10x2xf32, #tpu.memory_space<vmem>>, vector<1x10x2xf32>
    %271 = vector.shape_cast %270 : vector<1x10x2xf32> to vector<10x2xf32>
    %cst_64 = arith.constant dense<0.000000e+00> : vector<10x64xf32>
    %272 = tpu.matmul %271, %0, %cst_64 {dimension_numbers = #tpu.dot_dimension_numbers<[1], [0], [0], [1], [0, 0, 1, 1], [], []>} : vector<10x2xf32>, vector<2x64xf32>, vector<10x64xf32> -> vector<10x64xf32>
    %cst_65 = arith.constant dense<0.000000e+00> : vector<10x64xf32>
    %273 = tpu.matmul %268, %1, %cst_65 {dimension_numbers = #tpu.dot_dimension_numbers<[1], [0], [0], [1], [0, 0, 1, 1], [], []>} : vector<10x16xf32>, vector<16x64xf32>, vector<10x64xf32> -> vector<10x64xf32>
    %274 = arith.addf %272, %273 : vector<10x64xf32>
    %275 = vector.broadcast %2 : vector<1x64xf32> to vector<10x64xf32>
    %276 = arith.addf %274, %275 : vector<10x64xf32>
    %277 = vector.extract_strided_slice %276 {offsets = [0, 0], sizes = [10, 16], strides = [1, 1]} : vector<10x64xf32> to vector<10x16xf32>
    %278 = arith.negf %277 : vector<10x16xf32>
    %279 = math.exp %278 : vector<10x16xf32>
    %cst_66 = arith.constant 1.000000e+00 : f32
    %280 = vector.broadcast %cst_66 : f32 to vector<10x16xf32>
    %281 = arith.addf %280, %279 : vector<10x16xf32>
    %282 = arith.divf %280, %281 : vector<10x16xf32>
    %283 = vector.extract_strided_slice %276 {offsets = [0, 16], sizes = [10, 16], strides = [1, 1]} : vector<10x64xf32> to vector<10x16xf32>
    %284 = arith.negf %283 : vector<10x16xf32>
    %285 = math.exp %284 : vector<10x16xf32>
    %cst_67 = arith.constant 1.000000e+00 : f32
    %286 = vector.broadcast %cst_67 : f32 to vector<10x16xf32>
    %287 = arith.addf %286, %285 : vector<10x16xf32>
    %288 = arith.divf %286, %287 : vector<10x16xf32>
    %289 = vector.extract_strided_slice %276 {offsets = [0, 32], sizes = [10, 16], strides = [1, 1]} : vector<10x64xf32> to vector<10x16xf32>
    %290 = math.tanh %289 : vector<10x16xf32>
    %291 = vector.extract_strided_slice %276 {offsets = [0, 48], sizes = [10, 16], strides = [1, 1]} : vector<10x64xf32> to vector<10x16xf32>
    %292 = arith.negf %291 : vector<10x16xf32>
    %293 = math.exp %292 : vector<10x16xf32>
    %cst_68 = arith.constant 1.000000e+00 : f32
    %294 = vector.broadcast %cst_68 : f32 to vector<10x16xf32>
    %295 = arith.addf %294, %293 : vector<10x16xf32>
    %296 = arith.divf %294, %295 : vector<10x16xf32>
    %297 = arith.mulf %288, %266 : vector<10x16xf32>
    %298 = arith.mulf %282, %290 : vector<10x16xf32>
    %299 = arith.addf %297, %298 : vector<10x16xf32>
    %300 = math.tanh %299 : vector<10x16xf32>
    %301 = arith.mulf %296, %300 : vector<10x16xf32>
    %c9_i32 = arith.constant 9 : i32
    %302 = arith.index_cast %c9_i32 : i32 to index
    %c0_69 = arith.constant 0 : index
    %c0_70 = arith.constant 0 : index
    %303 = vector.load %arg0[%302, %c0_69, %c0_70] : memref<10x10x2xf32, #tpu.memory_space<vmem>>, vector<1x10x2xf32>
    %304 = vector.shape_cast %303 : vector<1x10x2xf32> to vector<10x2xf32>
    %cst_71 = arith.constant dense<0.000000e+00> : vector<10x64xf32>
    %305 = tpu.matmul %304, %0, %cst_71 {dimension_numbers = #tpu.dot_dimension_numbers<[1], [0], [0], [1], [0, 0, 1, 1], [], []>} : vector<10x2xf32>, vector<2x64xf32>, vector<10x64xf32> -> vector<10x64xf32>
    %cst_72 = arith.constant dense<0.000000e+00> : vector<10x64xf32>
    %306 = tpu.matmul %301, %1, %cst_72 {dimension_numbers = #tpu.dot_dimension_numbers<[1], [0], [0], [1], [0, 0, 1, 1], [], []>} : vector<10x16xf32>, vector<16x64xf32>, vector<10x64xf32> -> vector<10x64xf32>
    %307 = arith.addf %305, %306 : vector<10x64xf32>
    %308 = vector.broadcast %2 : vector<1x64xf32> to vector<10x64xf32>
    %309 = arith.addf %307, %308 : vector<10x64xf32>
    %310 = vector.extract_strided_slice %309 {offsets = [0, 0], sizes = [10, 16], strides = [1, 1]} : vector<10x64xf32> to vector<10x16xf32>
    %311 = arith.negf %310 : vector<10x16xf32>
    %312 = math.exp %311 : vector<10x16xf32>
    %cst_73 = arith.constant 1.000000e+00 : f32
    %313 = vector.broadcast %cst_73 : f32 to vector<10x16xf32>
    %314 = arith.addf %313, %312 : vector<10x16xf32>
    %315 = arith.divf %313, %314 : vector<10x16xf32>
    %316 = vector.extract_strided_slice %309 {offsets = [0, 16], sizes = [10, 16], strides = [1, 1]} : vector<10x64xf32> to vector<10x16xf32>
    %317 = arith.negf %316 : vector<10x16xf32>
    %318 = math.exp %317 : vector<10x16xf32>
    %cst_74 = arith.constant 1.000000e+00 : f32
    %319 = vector.broadcast %cst_74 : f32 to vector<10x16xf32>
    %320 = arith.addf %319, %318 : vector<10x16xf32>
    %321 = arith.divf %319, %320 : vector<10x16xf32>
    %322 = vector.extract_strided_slice %309 {offsets = [0, 32], sizes = [10, 16], strides = [1, 1]} : vector<10x64xf32> to vector<10x16xf32>
    %323 = math.tanh %322 : vector<10x16xf32>
    %324 = vector.extract_strided_slice %309 {offsets = [0, 48], sizes = [10, 16], strides = [1, 1]} : vector<10x64xf32> to vector<10x16xf32>
    %325 = arith.negf %324 : vector<10x16xf32>
    %326 = math.exp %325 : vector<10x16xf32>
    %cst_75 = arith.constant 1.000000e+00 : f32
    %327 = vector.broadcast %cst_75 : f32 to vector<10x16xf32>
    %328 = arith.addf %327, %326 : vector<10x16xf32>
    %329 = arith.divf %327, %328 : vector<10x16xf32>
    %330 = arith.mulf %321, %299 : vector<10x16xf32>
    %331 = arith.mulf %315, %323 : vector<10x16xf32>
    %332 = arith.addf %330, %331 : vector<10x16xf32>
    %333 = math.tanh %332 : vector<10x16xf32>
    %334 = arith.mulf %329, %333 : vector<10x16xf32>
    %c10_i32 = arith.constant 10 : i32
    %cst_76 = arith.constant 0.000000e+00 : f32
    %335 = vector.broadcast %cst_76 : f32 to vector<10x16xf32>
    %336 = arith.cmpf oge, %334, %335 : vector<10x16xf32>
    %cst_77 = arith.constant 1.000000e-01 : f32
    %337 = vector.broadcast %cst_77 : f32 to vector<10x16xf32>
    %338 = arith.mulf %337, %334 : vector<10x16xf32>
    %339 = arith.select %336, %334, %338 : vector<10x16xi1>, vector<10x16xf32>
    %c0_78 = arith.constant 0 : index
    %c0_79 = arith.constant 0 : index
    %340 = vector.load %arg4[%c0_78, %c0_79] : memref<10x16xf32, #tpu.memory_space<vmem>>, vector<10x16xf32>
    tpu.vector_store %arg4[%c0_78, %c0_79], %339 {strides = array<i32>} : memref<10x16xf32, #tpu.memory_space<vmem>>, vector<10x16xf32>,
    return
  }
}

module attributes {stable_mosaic.version = 11 : i64} {
  func.func @_social_conv_kernel(%arg0: memref<286x48xf32, #tpu.memory_space<vmem>>, %arg1: memref<448x9xf32, #tpu.memory_space<vmem>>, %arg2: memref<3x48x64xf32, #tpu.memory_space<vmem>>, %arg3: memref<1x64xf32, #tpu.memory_space<vmem>>, %arg4: memref<3x64x16xf32, #tpu.memory_space<vmem>>, %arg5: memref<1x16xf32, #tpu.memory_space<vmem>>, %arg6: memref<3x9x8xf32, #tpu.memory_space<vmem>>, %arg7: memref<1x8xf32, #tpu.memory_space<vmem>>, %arg8: memref<88x16xf32, #tpu.memory_space<vmem>>, %arg9: memref<2x8xf32, #tpu.memory_space<vmem>>) attributes {dimension_semantics = [], scalar_prefetch = 0 : i64, scratch_operands = 0 : i64, tpu.core_type = #tpu.core_type<tc>} {
    %c0 = arith.constant 0 : index
    %c0_0 = arith.constant 0 : index
    %0 = vector.load %arg3[%c0, %c0_0] : memref<1x64xf32, #tpu.memory_space<vmem>>, vector<1x64xf32>
    %c0_1 = arith.constant 0 : index
    %c0_2 = arith.constant 0 : index
    %1 = vector.load %arg5[%c0_1, %c0_2] : memref<1x16xf32, #tpu.memory_space<vmem>>, vector<1x16xf32>
    %c0_3 = arith.constant 0 : index
    %c0_4 = arith.constant 0 : index
    %2 = vector.load %arg7[%c0_3, %c0_4] : memref<1x8xf32, #tpu.memory_space<vmem>>, vector<1x8xf32>
    %cst = arith.constant 0.000000e+00 : f32
    %3 = vector.broadcast %cst : f32 to vector<121x64xf32>
    %c0_5 = arith.constant 0 : index
    %c0_6 = arith.constant 0 : index
    %4 = vector.load %arg0[%c0_5, %c0_6] : memref<286x48xf32, #tpu.memory_space<vmem>>, vector<121x48xf32>
    %c0_7 = arith.constant 0 : index
    %c0_8 = arith.constant 0 : index
    %c0_9 = arith.constant 0 : index
    %5 = vector.load %arg2[%c0_7, %c0_8, %c0_9] : memref<3x48x64xf32, #tpu.memory_space<vmem>>, vector<1x48x64xf32>
    %6 = vector.shape_cast %5 : vector<1x48x64xf32> to vector<48x64xf32>
    %cst_10 = arith.constant dense<0.000000e+00> : vector<121x64xf32>
    %7 = tpu.matmul %4, %6, %cst_10 {dimension_numbers = #tpu.dot_dimension_numbers<[1], [0], [0], [1], [0, 0, 1, 1], [], []>} : vector<121x48xf32>, vector<48x64xf32>, vector<121x64xf32> -> vector<121x64xf32>
    %8 = arith.addf %3, %7 : vector<121x64xf32>
    %c11 = arith.constant 11 : index
    %c0_11 = arith.constant 0 : index
    %9 = vector.load %arg0[%c11, %c0_11] : memref<286x48xf32, #tpu.memory_space<vmem>>, vector<121x48xf32>
    %c1 = arith.constant 1 : index
    %c0_12 = arith.constant 0 : index
    %c0_13 = arith.constant 0 : index
    %10 = vector.load %arg2[%c1, %c0_12, %c0_13] : memref<3x48x64xf32, #tpu.memory_space<vmem>>, vector<1x48x64xf32>
    %11 = vector.shape_cast %10 : vector<1x48x64xf32> to vector<48x64xf32>
    %cst_14 = arith.constant dense<0.000000e+00> : vector<121x64xf32>
    %12 = tpu.matmul %9, %11, %cst_14 {dimension_numbers = #tpu.dot_dimension_numbers<[1], [0], [0], [1], [0, 0, 1, 1], [], []>} : vector<121x48xf32>, vector<48x64xf32>, vector<121x64xf32> -> vector<121x64xf32>
    %13 = arith.addf %8, %12 : vector<121x64xf32>
    %c22 = arith.constant 22 : index
    %c0_15 = arith.constant 0 : index
    %14 = vector.load %arg0[%c22, %c0_15] : memref<286x48xf32, #tpu.memory_space<vmem>>, vector<121x48xf32>
    %c2 = arith.constant 2 : index
    %c0_16 = arith.constant 0 : index
    %c0_17 = arith.constant 0 : index
    %15 = vector.load %arg2[%c2, %c0_16, %c0_17] : memref<3x48x64xf32, #tpu.memory_space<vmem>>, vector<1x48x64xf32>
    %16 = vector.shape_cast %15 : vector<1x48x64xf32> to vector<48x64xf32>
    %cst_18 = arith.constant dense<0.000000e+00> : vector<121x64xf32>
    %17 = tpu.matmul %14, %16, %cst_18 {dimension_numbers = #tpu.dot_dimension_numbers<[1], [0], [0], [1], [0, 0, 1, 1], [], []>} : vector<121x48xf32>, vector<48x64xf32>, vector<121x64xf32> -> vector<121x64xf32>
    %18 = arith.addf %13, %17 : vector<121x64xf32>
    %19 = vector.broadcast %0 : vector<1x64xf32> to vector<121x64xf32>
    %20 = arith.addf %18, %19 : vector<121x64xf32>
    %cst_19 = arith.constant 0.000000e+00 : f32
    %21 = vector.broadcast %cst_19 : f32 to vector<121x64xf32>
    %22 = arith.cmpf oge, %20, %21 : vector<121x64xf32>
    %cst_20 = arith.constant 1.000000e-01 : f32
    %23 = vector.broadcast %cst_20 : f32 to vector<121x64xf32>
    %24 = arith.mulf %23, %20 : vector<121x64xf32>
    %25 = arith.select %22, %20, %24 : vector<121x64xi1>, vector<121x64xf32>
    %cst_21 = arith.constant 0.000000e+00 : f32
    %26 = vector.broadcast %cst_21 : f32 to vector<99x16xf32>
    %27 = vector.extract_strided_slice %25 {offsets = [0, 0], sizes = [99, 64], strides = [1, 1]} : vector<121x64xf32> to vector<99x64xf32>
    %c0_22 = arith.constant 0 : index
    %c0_23 = arith.constant 0 : index
    %c0_24 = arith.constant 0 : index
    %28 = vector.load %arg4[%c0_22, %c0_23, %c0_24] : memref<3x64x16xf32, #tpu.memory_space<vmem>>, vector<1x64x16xf32>
    %29 = vector.shape_cast %28 : vector<1x64x16xf32> to vector<64x16xf32>
    %cst_25 = arith.constant dense<0.000000e+00> : vector<99x16xf32>
    %30 = tpu.matmul %27, %29, %cst_25 {dimension_numbers = #tpu.dot_dimension_numbers<[1], [0], [0], [1], [0, 0, 1, 1], [], []>} : vector<99x64xf32>, vector<64x16xf32>, vector<99x16xf32> -> vector<99x16xf32>
    %31 = arith.addf %26, %30 : vector<99x16xf32>
    %32 = vector.extract_strided_slice %25 {offsets = [11, 0], sizes = [99, 64], strides = [1, 1]} : vector<121x64xf32> to vector<99x64xf32>
    %c1_26 = arith.constant 1 : index
    %c0_27 = arith.constant 0 : index
    %c0_28 = arith.constant 0 : index
    %33 = vector.load %arg4[%c1_26, %c0_27, %c0_28] : memref<3x64x16xf32, #tpu.memory_space<vmem>>, vector<1x64x16xf32>
    %34 = vector.shape_cast %33 : vector<1x64x16xf32> to vector<64x16xf32>
    %cst_29 = arith.constant dense<0.000000e+00> : vector<99x16xf32>
    %35 = tpu.matmul %32, %34, %cst_29 {dimension_numbers = #tpu.dot_dimension_numbers<[1], [0], [0], [1], [0, 0, 1, 1], [], []>} : vector<99x64xf32>, vector<64x16xf32>, vector<99x16xf32> -> vector<99x16xf32>
    %36 = arith.addf %31, %35 : vector<99x16xf32>
    %37 = vector.extract_strided_slice %25 {offsets = [22, 0], sizes = [99, 64], strides = [1, 1]} : vector<121x64xf32> to vector<99x64xf32>
    %c2_30 = arith.constant 2 : index
    %c0_31 = arith.constant 0 : index
    %c0_32 = arith.constant 0 : index
    %38 = vector.load %arg4[%c2_30, %c0_31, %c0_32] : memref<3x64x16xf32, #tpu.memory_space<vmem>>, vector<1x64x16xf32>
    %39 = vector.shape_cast %38 : vector<1x64x16xf32> to vector<64x16xf32>
    %cst_33 = arith.constant dense<0.000000e+00> : vector<99x16xf32>
    %40 = tpu.matmul %37, %39, %cst_33 {dimension_numbers = #tpu.dot_dimension_numbers<[1], [0], [0], [1], [0, 0, 1, 1], [], []>} : vector<99x64xf32>, vector<64x16xf32>, vector<99x16xf32> -> vector<99x16xf32>
    %41 = arith.addf %36, %40 : vector<99x16xf32>
    %42 = vector.broadcast %1 : vector<1x16xf32> to vector<99x16xf32>
    %43 = arith.addf %41, %42 : vector<99x16xf32>
    %cst_34 = arith.constant 0.000000e+00 : f32
    %44 = vector.broadcast %cst_34 : f32 to vector<99x16xf32>
    %45 = arith.cmpf oge, %43, %44 : vector<99x16xf32>
    %cst_35 = arith.constant 1.000000e-01 : f32
    %46 = vector.broadcast %cst_35 : f32 to vector<99x16xf32>
    %47 = arith.mulf %46, %43 : vector<99x16xf32>
    %48 = arith.select %45, %43, %47 : vector<99x16xi1>, vector<99x16xf32>
    %49 = vector.extract_strided_slice %48 {offsets = [0, 0], sizes = [11, 16], strides = [1, 1]} : vector<99x16xf32> to vector<11x16xf32>
    %50 = vector.extract_strided_slice %48 {offsets = [11, 0], sizes = [11, 16], strides = [1, 1]} : vector<99x16xf32> to vector<11x16xf32>
    %51 = arith.maximumf %49, %50 : vector<11x16xf32>
    %c0_36 = arith.constant 0 : index
    %c0_37 = arith.constant 0 : index
    %52 = vector.load %arg8[%c0_36, %c0_37] : memref<88x16xf32, #tpu.memory_space<vmem>>, vector<11x16xf32>
    tpu.vector_store %arg8[%c0_36, %c0_37], %51 {strides = array<i32>} : memref<88x16xf32, #tpu.memory_space<vmem>>, vector<11x16xf32>,
    %53 = vector.extract_strided_slice %48 {offsets = [22, 0], sizes = [11, 16], strides = [1, 1]} : vector<99x16xf32> to vector<11x16xf32>
    %54 = vector.extract_strided_slice %48 {offsets = [33, 0], sizes = [11, 16], strides = [1, 1]} : vector<99x16xf32> to vector<11x16xf32>
    %55 = arith.maximumf %53, %54 : vector<11x16xf32>
    %c11_38 = arith.constant 11 : index
    %c0_39 = arith.constant 0 : index
    %56 = vector.load %arg8[%c11_38, %c0_39] : memref<88x16xf32, #tpu.memory_space<vmem>>, vector<11x16xf32>
    tpu.vector_store %arg8[%c11_38, %c0_39], %55 {strides = array<i32>} : memref<88x16xf32, #tpu.memory_space<vmem>>, vector<11x16xf32>,
    %57 = vector.extract_strided_slice %48 {offsets = [44, 0], sizes = [11, 16], strides = [1, 1]} : vector<99x16xf32> to vector<11x16xf32>
    %58 = vector.extract_strided_slice %48 {offsets = [55, 0], sizes = [11, 16], strides = [1, 1]} : vector<99x16xf32> to vector<11x16xf32>
    %59 = arith.maximumf %57, %58 : vector<11x16xf32>
    %c22_40 = arith.constant 22 : index
    %c0_41 = arith.constant 0 : index
    %60 = vector.load %arg8[%c22_40, %c0_41] : memref<88x16xf32, #tpu.memory_space<vmem>>, vector<11x16xf32>
    tpu.vector_store %arg8[%c22_40, %c0_41], %59 {strides = array<i32>} : memref<88x16xf32, #tpu.memory_space<vmem>>, vector<11x16xf32>,
    %61 = vector.extract_strided_slice %48 {offsets = [66, 0], sizes = [11, 16], strides = [1, 1]} : vector<99x16xf32> to vector<11x16xf32>
    %62 = vector.extract_strided_slice %48 {offsets = [77, 0], sizes = [11, 16], strides = [1, 1]} : vector<99x16xf32> to vector<11x16xf32>
    %63 = arith.maximumf %61, %62 : vector<11x16xf32>
    %c33 = arith.constant 33 : index
    %c0_42 = arith.constant 0 : index
    %64 = vector.load %arg8[%c33, %c0_42] : memref<88x16xf32, #tpu.memory_space<vmem>>, vector<11x16xf32>
    tpu.vector_store %arg8[%c33, %c0_42], %63 {strides = array<i32>} : memref<88x16xf32, #tpu.memory_space<vmem>>, vector<11x16xf32>,
    %cst_43 = arith.constant 0.000000e+00 : f32
    %65 = vector.broadcast %cst_43 : f32 to vector<196x8xf32>
    %c0_44 = arith.constant 0 : index
    %c0_45 = arith.constant 0 : index
    %66 = vector.load %arg1[%c0_44, %c0_45] : memref<448x9xf32, #tpu.memory_space<vmem>>, vector<196x9xf32>
    %c0_46 = arith.constant 0 : index
    %c0_47 = arith.constant 0 : index
    %c0_48 = arith.constant 0 : index
    %67 = vector.load %arg6[%c0_46, %c0_47, %c0_48] : memref<3x9x8xf32, #tpu.memory_space<vmem>>, vector<1x9x8xf32>
    %68 = vector.shape_cast %67 : vector<1x9x8xf32> to vector<9x8xf32>
    %cst_49 = arith.constant dense<0.000000e+00> : vector<196x8xf32>
    %69 = tpu.matmul %66, %68, %cst_49 {dimension_numbers = #tpu.dot_dimension_numbers<[1], [0], [0], [1], [0, 0, 1, 1], [], []>} : vector<196x9xf32>, vector<9x8xf32>, vector<196x8xf32> -> vector<196x8xf32>
    %70 = arith.addf %65, %69 : vector<196x8xf32>
    %c14 = arith.constant 14 : index
    %c0_50 = arith.constant 0 : index
    %71 = vector.load %arg1[%c14, %c0_50] : memref<448x9xf32, #tpu.memory_space<vmem>>, vector<196x9xf32>
    %c1_51 = arith.constant 1 : index
    %c0_52 = arith.constant 0 : index
    %c0_53 = arith.constant 0 : index
    %72 = vector.load %arg6[%c1_51, %c0_52, %c0_53] : memref<3x9x8xf32, #tpu.memory_space<vmem>>, vector<1x9x8xf32>
    %73 = vector.shape_cast %72 : vector<1x9x8xf32> to vector<9x8xf32>
    %cst_54 = arith.constant dense<0.000000e+00> : vector<196x8xf32>
    %74 = tpu.matmul %71, %73, %cst_54 {dimension_numbers = #tpu.dot_dimension_numbers<[1], [0], [0], [1], [0, 0, 1, 1], [], []>} : vector<196x9xf32>, vector<9x8xf32>, vector<196x8xf32> -> vector<196x8xf32>
    %75 = arith.addf %70, %74 : vector<196x8xf32>
    %c28 = arith.constant 28 : index
    %c0_55 = arith.constant 0 : index
    %76 = vector.load %arg1[%c28, %c0_55] : memref<448x9xf32, #tpu.memory_space<vmem>>, vector<196x9xf32>
    %c2_56 = arith.constant 2 : index
    %c0_57 = arith.constant 0 : index
    %c0_58 = arith.constant 0 : index
    %77 = vector.load %arg6[%c2_56, %c0_57, %c0_58] : memref<3x9x8xf32, #tpu.memory_space<vmem>>, vector<1x9x8xf32>
    %78 = vector.shape_cast %77 : vector<1x9x8xf32> to vector<9x8xf32>
    %cst_59 = arith.constant dense<0.000000e+00> : vector<196x8xf32>
    %79 = tpu.matmul %76, %78, %cst_59 {dimension_numbers = #tpu.dot_dimension_numbers<[1], [0], [0], [1], [0, 0, 1, 1], [], []>} : vector<196x9xf32>, vector<9x8xf32>, vector<196x8xf32> -> vector<196x8xf32>
    %80 = arith.addf %75, %79 : vector<196x8xf32>
    %81 = vector.broadcast %2 : vector<1x8xf32> to vector<196x8xf32>
    %82 = arith.addf %80, %81 : vector<196x8xf32>
    %cst_60 = arith.constant 0.000000e+00 : f32
    %83 = vector.broadcast %cst_60 : f32 to vector<196x8xf32>
    %84 = arith.cmpf oge, %82, %83 : vector<196x8xf32>
    %cst_61 = arith.constant 1.000000e-01 : f32
    %85 = vector.broadcast %cst_61 : f32 to vector<196x8xf32>
    %86 = arith.mulf %85, %82 : vector<196x8xf32>
    %87 = arith.select %84, %82, %86 : vector<196x8xi1>, vector<196x8xf32>
    %cst_62 = arith.constant dense<0.000000e+00> : vector<8xf32>
    %88 = vector.multi_reduction <add>, %87, %cst_62 [0] : vector<196x8xf32> to vector<8xf32>
    %89 = vector.shape_cast %88 : vector<8xf32> to vector<1x8xf32>
    %cst_63 = arith.constant 1.960000e+02 : f32
    %90 = vector.broadcast %cst_63 : f32 to vector<1x8xf32>
    %91 = arith.divf %89, %90 : vector<1x8xf32>
    %c0_64 = arith.constant 0 : index
    %c0_65 = arith.constant 0 : index
    %92 = vector.load %arg9[%c0_64, %c0_65] : memref<2x8xf32, #tpu.memory_space<vmem>>, vector<1x8xf32>
    tpu.vector_store %arg9[%c0_64, %c0_65], %91 {strides = array<i32>} : memref<2x8xf32, #tpu.memory_space<vmem>>, vector<1x8xf32>,
    %cst_66 = arith.constant 0.000000e+00 : f32
    %93 = vector.broadcast %cst_66 : f32 to vector<121x64xf32>
    %c143 = arith.constant 143 : index
    %c0_67 = arith.constant 0 : index
    %94 = vector.load %arg0[%c143, %c0_67] : memref<286x48xf32, #tpu.memory_space<vmem>>, vector<121x48xf32>
    %c0_68 = arith.constant 0 : index
    %c0_69 = arith.constant 0 : index
    %c0_70 = arith.constant 0 : index
    %95 = vector.load %arg2[%c0_68, %c0_69, %c0_70] : memref<3x48x64xf32, #tpu.memory_space<vmem>>, vector<1x48x64xf32>
    %96 = vector.shape_cast %95 : vector<1x48x64xf32> to vector<48x64xf32>
    %cst_71 = arith.constant dense<0.000000e+00> : vector<121x64xf32>
    %97 = tpu.matmul %94, %96, %cst_71 {dimension_numbers = #tpu.dot_dimension_numbers<[1], [0], [0], [1], [0, 0, 1, 1], [], []>} : vector<121x48xf32>, vector<48x64xf32>, vector<121x64xf32> -> vector<121x64xf32>
    %98 = arith.addf %93, %97 : vector<121x64xf32>
    %c154 = arith.constant 154 : index
    %c0_72 = arith.constant 0 : index
    %99 = vector.load %arg0[%c154, %c0_72] : memref<286x48xf32, #tpu.memory_space<vmem>>, vector<121x48xf32>
    %c1_73 = arith.constant 1 : index
    %c0_74 = arith.constant 0 : index
    %c0_75 = arith.constant 0 : index
    %100 = vector.load %arg2[%c1_73, %c0_74, %c0_75] : memref<3x48x64xf32, #tpu.memory_space<vmem>>, vector<1x48x64xf32>
    %101 = vector.shape_cast %100 : vector<1x48x64xf32> to vector<48x64xf32>
    %cst_76 = arith.constant dense<0.000000e+00> : vector<121x64xf32>
    %102 = tpu.matmul %99, %101, %cst_76 {dimension_numbers = #tpu.dot_dimension_numbers<[1], [0], [0], [1], [0, 0, 1, 1], [], []>} : vector<121x48xf32>, vector<48x64xf32>, vector<121x64xf32> -> vector<121x64xf32>
    %103 = arith.addf %98, %102 : vector<121x64xf32>
    %c165 = arith.constant 165 : index
    %c0_77 = arith.constant 0 : index
    %104 = vector.load %arg0[%c165, %c0_77] : memref<286x48xf32, #tpu.memory_space<vmem>>, vector<121x48xf32>
    %c2_78 = arith.constant 2 : index
    %c0_79 = arith.constant 0 : index
    %c0_80 = arith.constant 0 : index
    %105 = vector.load %arg2[%c2_78, %c0_79, %c0_80] : memref<3x48x64xf32, #tpu.memory_space<vmem>>, vector<1x48x64xf32>
    %106 = vector.shape_cast %105 : vector<1x48x64xf32> to vector<48x64xf32>
    %cst_81 = arith.constant dense<0.000000e+00> : vector<121x64xf32>
    %107 = tpu.matmul %104, %106, %cst_81 {dimension_numbers = #tpu.dot_dimension_numbers<[1], [0], [0], [1], [0, 0, 1, 1], [], []>} : vector<121x48xf32>, vector<48x64xf32>, vector<121x64xf32> -> vector<121x64xf32>
    %108 = arith.addf %103, %107 : vector<121x64xf32>
    %109 = vector.broadcast %0 : vector<1x64xf32> to vector<121x64xf32>
    %110 = arith.addf %108, %109 : vector<121x64xf32>
    %cst_82 = arith.constant 0.000000e+00 : f32
    %111 = vector.broadcast %cst_82 : f32 to vector<121x64xf32>
    %112 = arith.cmpf oge, %110, %111 : vector<121x64xf32>
    %cst_83 = arith.constant 1.000000e-01 : f32
    %113 = vector.broadcast %cst_83 : f32 to vector<121x64xf32>
    %114 = arith.mulf %113, %110 : vector<121x64xf32>
    %115 = arith.select %112, %110, %114 : vector<121x64xi1>, vector<121x64xf32>
    %cst_84 = arith.constant 0.000000e+00 : f32
    %116 = vector.broadcast %cst_84 : f32 to vector<99x16xf32>
    %117 = vector.extract_strided_slice %115 {offsets = [0, 0], sizes = [99, 64], strides = [1, 1]} : vector<121x64xf32> to vector<99x64xf32>
    %c0_85 = arith.constant 0 : index
    %c0_86 = arith.constant 0 : index
    %c0_87 = arith.constant 0 : index
    %118 = vector.load %arg4[%c0_85, %c0_86, %c0_87] : memref<3x64x16xf32, #tpu.memory_space<vmem>>, vector<1x64x16xf32>
    %119 = vector.shape_cast %118 : vector<1x64x16xf32> to vector<64x16xf32>
    %cst_88 = arith.constant dense<0.000000e+00> : vector<99x16xf32>
    %120 = tpu.matmul %117, %119, %cst_88 {dimension_numbers = #tpu.dot_dimension_numbers<[1], [0], [0], [1], [0, 0, 1, 1], [], []>} : vector<99x64xf32>, vector<64x16xf32>, vector<99x16xf32> -> vector<99x16xf32>
    %121 = arith.addf %116, %120 : vector<99x16xf32>
    %122 = vector.extract_strided_slice %115 {offsets = [11, 0], sizes = [99, 64], strides = [1, 1]} : vector<121x64xf32> to vector<99x64xf32>
    %c1_89 = arith.constant 1 : index
    %c0_90 = arith.constant 0 : index
    %c0_91 = arith.constant 0 : index
    %123 = vector.load %arg4[%c1_89, %c0_90, %c0_91] : memref<3x64x16xf32, #tpu.memory_space<vmem>>, vector<1x64x16xf32>
    %124 = vector.shape_cast %123 : vector<1x64x16xf32> to vector<64x16xf32>
    %cst_92 = arith.constant dense<0.000000e+00> : vector<99x16xf32>
    %125 = tpu.matmul %122, %124, %cst_92 {dimension_numbers = #tpu.dot_dimension_numbers<[1], [0], [0], [1], [0, 0, 1, 1], [], []>} : vector<99x64xf32>, vector<64x16xf32>, vector<99x16xf32> -> vector<99x16xf32>
    %126 = arith.addf %121, %125 : vector<99x16xf32>
    %127 = vector.extract_strided_slice %115 {offsets = [22, 0], sizes = [99, 64], strides = [1, 1]} : vector<121x64xf32> to vector<99x64xf32>
    %c2_93 = arith.constant 2 : index
    %c0_94 = arith.constant 0 : index
    %c0_95 = arith.constant 0 : index
    %128 = vector.load %arg4[%c2_93, %c0_94, %c0_95] : memref<3x64x16xf32, #tpu.memory_space<vmem>>, vector<1x64x16xf32>
    %129 = vector.shape_cast %128 : vector<1x64x16xf32> to vector<64x16xf32>
    %cst_96 = arith.constant dense<0.000000e+00> : vector<99x16xf32>
    %130 = tpu.matmul %127, %129, %cst_96 {dimension_numbers = #tpu.dot_dimension_numbers<[1], [0], [0], [1], [0, 0, 1, 1], [], []>} : vector<99x64xf32>, vector<64x16xf32>, vector<99x16xf32> -> vector<99x16xf32>
    %131 = arith.addf %126, %130 : vector<99x16xf32>
    %132 = vector.broadcast %1 : vector<1x16xf32> to vector<99x16xf32>
    %133 = arith.addf %131, %132 : vector<99x16xf32>
    %cst_97 = arith.constant 0.000000e+00 : f32
    %134 = vector.broadcast %cst_97 : f32 to vector<99x16xf32>
    %135 = arith.cmpf oge, %133, %134 : vector<99x16xf32>
    %cst_98 = arith.constant 1.000000e-01 : f32
    %136 = vector.broadcast %cst_98 : f32 to vector<99x16xf32>
    %137 = arith.mulf %136, %133 : vector<99x16xf32>
    %138 = arith.select %135, %133, %137 : vector<99x16xi1>, vector<99x16xf32>
    %139 = vector.extract_strided_slice %138 {offsets = [0, 0], sizes = [11, 16], strides = [1, 1]} : vector<99x16xf32> to vector<11x16xf32>
    %140 = vector.extract_strided_slice %138 {offsets = [11, 0], sizes = [11, 16], strides = [1, 1]} : vector<99x16xf32> to vector<11x16xf32>
    %141 = arith.maximumf %139, %140 : vector<11x16xf32>
    %c44 = arith.constant 44 : index
    %c0_99 = arith.constant 0 : index
    %142 = vector.load %arg8[%c44, %c0_99] : memref<88x16xf32, #tpu.memory_space<vmem>>, vector<11x16xf32>
    tpu.vector_store %arg8[%c44, %c0_99], %141 {strides = array<i32>} : memref<88x16xf32, #tpu.memory_space<vmem>>, vector<11x16xf32>,
    %143 = vector.extract_strided_slice %138 {offsets = [22, 0], sizes = [11, 16], strides = [1, 1]} : vector<99x16xf32> to vector<11x16xf32>
    %144 = vector.extract_strided_slice %138 {offsets = [33, 0], sizes = [11, 16], strides = [1, 1]} : vector<99x16xf32> to vector<11x16xf32>
    %145 = arith.maximumf %143, %144 : vector<11x16xf32>
    %c55 = arith.constant 55 : index
    %c0_100 = arith.constant 0 : index
    %146 = vector.load %arg8[%c55, %c0_100] : memref<88x16xf32, #tpu.memory_space<vmem>>, vector<11x16xf32>
    tpu.vector_store %arg8[%c55, %c0_100], %145 {strides = array<i32>} : memref<88x16xf32, #tpu.memory_space<vmem>>, vector<11x16xf32>,
    %147 = vector.extract_strided_slice %138 {offsets = [44, 0], sizes = [11, 16], strides = [1, 1]} : vector<99x16xf32> to vector<11x16xf32>
    %148 = vector.extract_strided_slice %138 {offsets = [55, 0], sizes = [11, 16], strides = [1, 1]} : vector<99x16xf32> to vector<11x16xf32>
    %149 = arith.maximumf %147, %148 : vector<11x16xf32>
    %c66 = arith.constant 66 : index
    %c0_101 = arith.constant 0 : index
    %150 = vector.load %arg8[%c66, %c0_101] : memref<88x16xf32, #tpu.memory_space<vmem>>, vector<11x16xf32>
    tpu.vector_store %arg8[%c66, %c0_101], %149 {strides = array<i32>} : memref<88x16xf32, #tpu.memory_space<vmem>>, vector<11x16xf32>,
    %151 = vector.extract_strided_slice %138 {offsets = [66, 0], sizes = [11, 16], strides = [1, 1]} : vector<99x16xf32> to vector<11x16xf32>
    %152 = vector.extract_strided_slice %138 {offsets = [77, 0], sizes = [11, 16], strides = [1, 1]} : vector<99x16xf32> to vector<11x16xf32>
    %153 = arith.maximumf %151, %152 : vector<11x16xf32>
    %c77 = arith.constant 77 : index
    %c0_102 = arith.constant 0 : index
    %154 = vector.load %arg8[%c77, %c0_102] : memref<88x16xf32, #tpu.memory_space<vmem>>, vector<11x16xf32>
    tpu.vector_store %arg8[%c77, %c0_102], %153 {strides = array<i32>} : memref<88x16xf32, #tpu.memory_space<vmem>>, vector<11x16xf32>,
    %cst_103 = arith.constant 0.000000e+00 : f32
    %155 = vector.broadcast %cst_103 : f32 to vector<196x8xf32>
    %c224 = arith.constant 224 : index
    %c0_104 = arith.constant 0 : index
    %156 = vector.load %arg1[%c224, %c0_104] : memref<448x9xf32, #tpu.memory_space<vmem>>, vector<196x9xf32>
    %c0_105 = arith.constant 0 : index
    %c0_106 = arith.constant 0 : index
    %c0_107 = arith.constant 0 : index
    %157 = vector.load %arg6[%c0_105, %c0_106, %c0_107] : memref<3x9x8xf32, #tpu.memory_space<vmem>>, vector<1x9x8xf32>
    %158 = vector.shape_cast %157 : vector<1x9x8xf32> to vector<9x8xf32>
    %cst_108 = arith.constant dense<0.000000e+00> : vector<196x8xf32>
    %159 = tpu.matmul %156, %158, %cst_108 {dimension_numbers = #tpu.dot_dimension_numbers<[1], [0], [0], [1], [0, 0, 1, 1], [], []>} : vector<196x9xf32>, vector<9x8xf32>, vector<196x8xf32> -> vector<196x8xf32>
    %160 = arith.addf %155, %159 : vector<196x8xf32>
    %c238 = arith.constant 238 : index
    %c0_109 = arith.constant 0 : index
    %161 = vector.load %arg1[%c238, %c0_109] : memref<448x9xf32, #tpu.memory_space<vmem>>, vector<196x9xf32>
    %c1_110 = arith.constant 1 : index
    %c0_111 = arith.constant 0 : index
    %c0_112 = arith.constant 0 : index
    %162 = vector.load %arg6[%c1_110, %c0_111, %c0_112] : memref<3x9x8xf32, #tpu.memory_space<vmem>>, vector<1x9x8xf32>
    %163 = vector.shape_cast %162 : vector<1x9x8xf32> to vector<9x8xf32>
    %cst_113 = arith.constant dense<0.000000e+00> : vector<196x8xf32>
    %164 = tpu.matmul %161, %163, %cst_113 {dimension_numbers = #tpu.dot_dimension_numbers<[1], [0], [0], [1], [0, 0, 1, 1], [], []>} : vector<196x9xf32>, vector<9x8xf32>, vector<196x8xf32> -> vector<196x8xf32>
    %165 = arith.addf %160, %164 : vector<196x8xf32>
    %c252 = arith.constant 252 : index
    %c0_114 = arith.constant 0 : index
    %166 = vector.load %arg1[%c252, %c0_114] : memref<448x9xf32, #tpu.memory_space<vmem>>, vector<196x9xf32>
    %c2_115 = arith.constant 2 : index
    %c0_116 = arith.constant 0 : index
    %c0_117 = arith.constant 0 : index
    %167 = vector.load %arg6[%c2_115, %c0_116, %c0_117] : memref<3x9x8xf32, #tpu.memory_space<vmem>>, vector<1x9x8xf32>
    %168 = vector.shape_cast %167 : vector<1x9x8xf32> to vector<9x8xf32>
    %cst_118 = arith.constant dense<0.000000e+00> : vector<196x8xf32>
    %169 = tpu.matmul %166, %168, %cst_118 {dimension_numbers = #tpu.dot_dimension_numbers<[1], [0], [0], [1], [0, 0, 1, 1], [], []>} : vector<196x9xf32>, vector<9x8xf32>, vector<196x8xf32> -> vector<196x8xf32>
    %170 = arith.addf %165, %169 : vector<196x8xf32>
    %171 = vector.broadcast %2 : vector<1x8xf32> to vector<196x8xf32>
    %172 = arith.addf %170, %171 : vector<196x8xf32>
    %cst_119 = arith.constant 0.000000e+00 : f32
    %173 = vector.broadcast %cst_119 : f32 to vector<196x8xf32>
    %174 = arith.cmpf oge, %172, %173 : vector<196x8xf32>
    %cst_120 = arith.constant 1.000000e-01 : f32
    %175 = vector.broadcast %cst_120 : f32 to vector<196x8xf32>
    %176 = arith.mulf %175, %172 : vector<196x8xf32>
    %177 = arith.select %174, %172, %176 : vector<196x8xi1>, vector<196x8xf32>
    %cst_121 = arith.constant dense<0.000000e+00> : vector<8xf32>
    %178 = vector.multi_reduction <add>, %177, %cst_121 [0] : vector<196x8xf32> to vector<8xf32>
    %179 = vector.shape_cast %178 : vector<8xf32> to vector<1x8xf32>
    %cst_122 = arith.constant 1.960000e+02 : f32
    %180 = vector.broadcast %cst_122 : f32 to vector<1x8xf32>
    %181 = arith.divf %179, %180 : vector<1x8xf32>
    %c1_123 = arith.constant 1 : index
    %c0_124 = arith.constant 0 : index
    %182 = vector.load %arg9[%c1_123, %c0_124] : memref<2x8xf32, #tpu.memory_space<vmem>>, vector<1x8xf32>
    tpu.vector_store %arg9[%c1_123, %c0_124], %181 {strides = array<i32>} : memref<2x8xf32, #tpu.memory_space<vmem>>, vector<1x8xf32>,
    return
  }
}

module attributes {stable_mosaic.version = 11 : i64} {
  func.func @_decoder_kernel(%arg0: memref<2x704xf32, #tpu.memory_space<vmem>>, %arg1: memref<2x16xf32, #tpu.memory_space<vmem>>, %arg2: memref<2x8xf32, #tpu.memory_space<vmem>>, %arg3: memref<704x32xf32, #tpu.memory_space<vmem>>, %arg4: memref<1x32xf32, #tpu.memory_space<vmem>>, %arg5: memref<16x32xf32, #tpu.memory_space<vmem>>, %arg6: memref<1x32xf32, #tpu.memory_space<vmem>>, %arg7: memref<64x64xf32, #tpu.memory_space<vmem>>, %arg8: memref<1x64xf32, #tpu.memory_space<vmem>>, %arg9: memref<8x30xf32, #tpu.memory_space<vmem>>, %arg10: memref<1x30xf32, #tpu.memory_space<vmem>>, %arg11: memref<8x3xf32, #tpu.memory_space<vmem>>, %arg12: memref<1x3xf32, #tpu.memory_space<vmem>>, %arg13: memref<64x120xf32, #tpu.memory_space<vmem>>, %arg14: memref<30x120xf32, #tpu.memory_space<vmem>>, %arg15: memref<1x120xf32, #tpu.memory_space<vmem>>, %arg16: memref<30x2xf32, #tpu.memory_space<vmem>>, %arg17: memref<1x2xf32, #tpu.memory_space<vmem>>, %arg18: memref<30x30xf32, #tpu.memory_space<vmem>>, %arg19: memref<1x30xf32, #tpu.memory_space<vmem>>, %arg20: memref<30x30xf32, #tpu.memory_space<vmem>>, %arg21: memref<1x30xf32, #tpu.memory_space<vmem>>, %arg22: memref<30x3xf32, #tpu.memory_space<vmem>>, %arg23: memref<1x3xf32, #tpu.memory_space<vmem>>, %arg24: memref<3x3xf32, #tpu.memory_space<vmem>>, %arg25: memref<1x3xf32, #tpu.memory_space<vmem>>, %arg26: memref<3x3xf32, #tpu.memory_space<vmem>>, %arg27: memref<1x3xf32, #tpu.memory_space<vmem>>, %arg28: memref<2x30xf32, #tpu.memory_space<vmem>>, %arg29: memref<2x3xf32, #tpu.memory_space<vmem>>) attributes {dimension_semantics = [], scalar_prefetch = 0 : i64, scratch_operands = 0 : i64, tpu.core_type = #tpu.core_type<tc>} {
    %c0 = arith.constant 0 : index
    %c0_0 = arith.constant 0 : index
    %0 = vector.load %arg0[%c0, %c0_0] : memref<2x704xf32, #tpu.memory_space<vmem>>, vector<2x704xf32>
    %c0_1 = arith.constant 0 : index
    %c0_2 = arith.constant 0 : index
    %1 = vector.load %arg3[%c0_1, %c0_2] : memref<704x32xf32, #tpu.memory_space<vmem>>, vector<704x32xf32>
    %cst = arith.constant dense<0.000000e+00> : vector<2x32xf32>
    %2 = tpu.matmul %0, %1, %cst {dimension_numbers = #tpu.dot_dimension_numbers<[1], [0], [0], [1], [0, 0, 1, 1], [], []>} : vector<2x704xf32>, vector<704x32xf32>, vector<2x32xf32> -> vector<2x32xf32>
    %c0_3 = arith.constant 0 : index
    %c0_4 = arith.constant 0 : index
    %3 = vector.load %arg4[%c0_3, %c0_4] : memref<1x32xf32, #tpu.memory_space<vmem>>, vector<1x32xf32>
    %4 = vector.broadcast %3 : vector<1x32xf32> to vector<2x32xf32>
    %5 = arith.addf %2, %4 : vector<2x32xf32>
    %c0_5 = arith.constant 0 : index
    %c0_6 = arith.constant 0 : index
    %6 = vector.load %arg1[%c0_5, %c0_6] : memref<2x16xf32, #tpu.memory_space<vmem>>, vector<2x16xf32>
    %c0_7 = arith.constant 0 : index
    %c0_8 = arith.constant 0 : index
    %7 = vector.load %arg5[%c0_7, %c0_8] : memref<16x32xf32, #tpu.memory_space<vmem>>, vector<16x32xf32>
    %cst_9 = arith.constant dense<0.000000e+00> : vector<2x32xf32>
    %8 = tpu.matmul %6, %7, %cst_9 {dimension_numbers = #tpu.dot_dimension_numbers<[1], [0], [0], [1], [0, 0, 1, 1], [], []>} : vector<2x16xf32>, vector<16x32xf32>, vector<2x32xf32> -> vector<2x32xf32>
    %c0_10 = arith.constant 0 : index
    %c0_11 = arith.constant 0 : index
    %9 = vector.load %arg6[%c0_10, %c0_11] : memref<1x32xf32, #tpu.memory_space<vmem>>, vector<1x32xf32>
    %10 = vector.broadcast %9 : vector<1x32xf32> to vector<2x32xf32>
    %11 = arith.addf %8, %10 : vector<2x32xf32>
    %12 = tpu.concatenate %5, %11 in 1 : vector<2x32xf32>, vector<2x32xf32> -> vector<2x64xf32>
    %c0_12 = arith.constant 0 : index
    %c0_13 = arith.constant 0 : index
    %13 = vector.load %arg7[%c0_12, %c0_13] : memref<64x64xf32, #tpu.memory_space<vmem>>, vector<64x64xf32>
    %cst_14 = arith.constant dense<0.000000e+00> : vector<2x64xf32>
    %14 = tpu.matmul %12, %13, %cst_14 {dimension_numbers = #tpu.dot_dimension_numbers<[1], [0], [0], [1], [0, 0, 1, 1], [], []>} : vector<2x64xf32>, vector<64x64xf32>, vector<2x64xf32> -> vector<2x64xf32>
    %c0_15 = arith.constant 0 : index
    %c0_16 = arith.constant 0 : index
    %15 = vector.load %arg8[%c0_15, %c0_16] : memref<1x64xf32, #tpu.memory_space<vmem>>, vector<1x64xf32>
    %16 = vector.broadcast %15 : vector<1x64xf32> to vector<2x64xf32>
    %17 = arith.addf %14, %16 : vector<2x64xf32>
    %c0_17 = arith.constant 0 : index
    %c0_18 = arith.constant 0 : index
    %18 = vector.load %arg2[%c0_17, %c0_18] : memref<2x8xf32, #tpu.memory_space<vmem>>, vector<2x8xf32>
    %c0_19 = arith.constant 0 : index
    %c0_20 = arith.constant 0 : index
    %19 = vector.load %arg9[%c0_19, %c0_20] : memref<8x30xf32, #tpu.memory_space<vmem>>, vector<8x30xf32>
    %cst_21 = arith.constant dense<0.000000e+00> : vector<2x30xf32>
    %20 = tpu.matmul %18, %19, %cst_21 {dimension_numbers = #tpu.dot_dimension_numbers<[1], [0], [0], [1], [0, 0, 1, 1], [], []>} : vector<2x8xf32>, vector<8x30xf32>, vector<2x30xf32> -> vector<2x30xf32>
    %c0_22 = arith.constant 0 : index
    %c0_23 = arith.constant 0 : index
    %21 = vector.load %arg10[%c0_22, %c0_23] : memref<1x30xf32, #tpu.memory_space<vmem>>, vector<1x30xf32>
    %22 = vector.broadcast %21 : vector<1x30xf32> to vector<2x30xf32>
    %23 = arith.addf %20, %22 : vector<2x30xf32>
    %c0_24 = arith.constant 0 : index
    %c0_25 = arith.constant 0 : index
    %24 = vector.load %arg11[%c0_24, %c0_25] : memref<8x3xf32, #tpu.memory_space<vmem>>, vector<8x3xf32>
    %cst_26 = arith.constant dense<0.000000e+00> : vector<2x3xf32>
    %25 = tpu.matmul %18, %24, %cst_26 {dimension_numbers = #tpu.dot_dimension_numbers<[1], [0], [0], [1], [0, 0, 1, 1], [], []>} : vector<2x8xf32>, vector<8x3xf32>, vector<2x3xf32> -> vector<2x3xf32>
    %c0_27 = arith.constant 0 : index
    %c0_28 = arith.constant 0 : index
    %26 = vector.load %arg12[%c0_27, %c0_28] : memref<1x3xf32, #tpu.memory_space<vmem>>, vector<1x3xf32>
    %27 = vector.broadcast %26 : vector<1x3xf32> to vector<2x3xf32>
    %28 = arith.addf %25, %27 : vector<2x3xf32>
    %c0_29 = arith.constant 0 : index
    %c0_30 = arith.constant 0 : index
    %29 = vector.load %arg13[%c0_29, %c0_30] : memref<64x120xf32, #tpu.memory_space<vmem>>, vector<64x120xf32>
    %cst_31 = arith.constant dense<0.000000e+00> : vector<2x120xf32>
    %30 = tpu.matmul %17, %29, %cst_31 {dimension_numbers = #tpu.dot_dimension_numbers<[1], [0], [0], [1], [0, 0, 1, 1], [], []>} : vector<2x64xf32>, vector<64x120xf32>, vector<2x120xf32> -> vector<2x120xf32>
    %c0_32 = arith.constant 0 : index
    %c0_33 = arith.constant 0 : index
    %31 = vector.load %arg15[%c0_32, %c0_33] : memref<1x120xf32, #tpu.memory_space<vmem>>, vector<1x120xf32>
    %32 = vector.broadcast %31 : vector<1x120xf32> to vector<2x120xf32>
    %33 = arith.addf %30, %32 : vector<2x120xf32>
    %c0_34 = arith.constant 0 : index
    %c0_35 = arith.constant 0 : index
    %34 = vector.load %arg14[%c0_34, %c0_35] : memref<30x120xf32, #tpu.memory_space<vmem>>, vector<30x120xf32>
    %c0_36 = arith.constant 0 : index
    %c0_37 = arith.constant 0 : index
    %35 = vector.load %arg16[%c0_36, %c0_37] : memref<30x2xf32, #tpu.memory_space<vmem>>, vector<30x2xf32>
    %c0_38 = arith.constant 0 : index
    %c0_39 = arith.constant 0 : index
    %36 = vector.load %arg17[%c0_38, %c0_39] : memref<1x2xf32, #tpu.memory_space<vmem>>, vector<1x2xf32>
    %cst_40 = arith.constant 0.000000e+00 : f32
    %37 = vector.broadcast %cst_40 : f32 to vector<2x30xf32>
    %cst_41 = arith.constant 0.000000e+00 : f32
    %38 = vector.broadcast %cst_41 : f32 to vector<2x30xf32>
    %cst_42 = arith.constant dense<0.000000e+00> : vector<2x120xf32>
    %39 = tpu.matmul %37, %34, %cst_42 {dimension_numbers = #tpu.dot_dimension_numbers<[1], [0], [0], [1], [0, 0, 1, 1], [], []>} : vector<2x30xf32>, vector<30x120xf32>, vector<2x120xf32> -> vector<2x120xf32>
    %40 = arith.addf %33, %39 : vector<2x120xf32>
    %41 = vector.extract_strided_slice %40 {offsets = [0, 0], sizes = [2, 30], strides = [1, 1]} : vector<2x120xf32> to vector<2x30xf32>
    %42 = arith.negf %41 : vector<2x30xf32>
    %43 = math.exp %42 : vector<2x30xf32>
    %cst_43 = arith.constant 1.000000e+00 : f32
    %44 = vector.broadcast %cst_43 : f32 to vector<2x30xf32>
    %45 = arith.addf %44, %43 : vector<2x30xf32>
    %46 = arith.divf %44, %45 : vector<2x30xf32>
    %47 = vector.extract_strided_slice %40 {offsets = [0, 30], sizes = [2, 30], strides = [1, 1]} : vector<2x120xf32> to vector<2x30xf32>
    %48 = arith.negf %47 : vector<2x30xf32>
    %49 = math.exp %48 : vector<2x30xf32>
    %cst_44 = arith.constant 1.000000e+00 : f32
    %50 = vector.broadcast %cst_44 : f32 to vector<2x30xf32>
    %51 = arith.addf %50, %49 : vector<2x30xf32>
    %52 = arith.divf %50, %51 : vector<2x30xf32>
    %53 = vector.extract_strided_slice %40 {offsets = [0, 60], sizes = [2, 30], strides = [1, 1]} : vector<2x120xf32> to vector<2x30xf32>
    %54 = math.tanh %53 : vector<2x30xf32>
    %55 = vector.extract_strided_slice %40 {offsets = [0, 90], sizes = [2, 30], strides = [1, 1]} : vector<2x120xf32> to vector<2x30xf32>
    %56 = arith.negf %55 : vector<2x30xf32>
    %57 = math.exp %56 : vector<2x30xf32>
    %cst_45 = arith.constant 1.000000e+00 : f32
    %58 = vector.broadcast %cst_45 : f32 to vector<2x30xf32>
    %59 = arith.addf %58, %57 : vector<2x30xf32>
    %60 = arith.divf %58, %59 : vector<2x30xf32>
    %61 = arith.mulf %52, %38 : vector<2x30xf32>
    %62 = arith.mulf %46, %54 : vector<2x30xf32>
    %63 = arith.addf %61, %62 : vector<2x30xf32>
    %64 = math.tanh %63 : vector<2x30xf32>
    %65 = arith.mulf %60, %64 : vector<2x30xf32>
    %cst_46 = arith.constant 0.000000e+00 : f32
    %66 = vector.broadcast %cst_46 : f32 to vector<2x30xf32>
    %67 = arith.cmpf oge, %65, %66 : vector<2x30xf32>
    %cst_47 = arith.constant 1.000000e-01 : f32
    %68 = vector.broadcast %cst_47 : f32 to vector<2x30xf32>
    %69 = arith.mulf %68, %65 : vector<2x30xf32>
    %70 = arith.select %67, %65, %69 : vector<2x30xi1>, vector<2x30xf32>
    %cst_48 = arith.constant dense<0.000000e+00> : vector<2x2xf32>
    %71 = tpu.matmul %70, %35, %cst_48 {dimension_numbers = #tpu.dot_dimension_numbers<[1], [0], [0], [1], [0, 0, 1, 1], [], []>} : vector<2x30xf32>, vector<30x2xf32>, vector<2x2xf32> -> vector<2x2xf32>
    %72 = vector.broadcast %36 : vector<1x2xf32> to vector<2x2xf32>
    %73 = arith.addf %71, %72 : vector<2x2xf32>
    %cst_49 = arith.constant dense<0.000000e+00> : vector<2x120xf32>
    %74 = tpu.matmul %65, %34, %cst_49 {dimension_numbers = #tpu.dot_dimension_numbers<[1], [0], [0], [1], [0, 0, 1, 1], [], []>} : vector<2x30xf32>, vector<30x120xf32>, vector<2x120xf32> -> vector<2x120xf32>
    %75 = arith.addf %33, %74 : vector<2x120xf32>
    %76 = vector.extract_strided_slice %75 {offsets = [0, 0], sizes = [2, 30], strides = [1, 1]} : vector<2x120xf32> to vector<2x30xf32>
    %77 = arith.negf %76 : vector<2x30xf32>
    %78 = math.exp %77 : vector<2x30xf32>
    %cst_50 = arith.constant 1.000000e+00 : f32
    %79 = vector.broadcast %cst_50 : f32 to vector<2x30xf32>
    %80 = arith.addf %79, %78 : vector<2x30xf32>
    %81 = arith.divf %79, %80 : vector<2x30xf32>
    %82 = vector.extract_strided_slice %75 {offsets = [0, 30], sizes = [2, 30], strides = [1, 1]} : vector<2x120xf32> to vector<2x30xf32>
    %83 = arith.negf %82 : vector<2x30xf32>
    %84 = math.exp %83 : vector<2x30xf32>
    %cst_51 = arith.constant 1.000000e+00 : f32
    %85 = vector.broadcast %cst_51 : f32 to vector<2x30xf32>
    %86 = arith.addf %85, %84 : vector<2x30xf32>
    %87 = arith.divf %85, %86 : vector<2x30xf32>
    %88 = vector.extract_strided_slice %75 {offsets = [0, 60], sizes = [2, 30], strides = [1, 1]} : vector<2x120xf32> to vector<2x30xf32>
    %89 = math.tanh %88 : vector<2x30xf32>
    %90 = vector.extract_strided_slice %75 {offsets = [0, 90], sizes = [2, 30], strides = [1, 1]} : vector<2x120xf32> to vector<2x30xf32>
    %91 = arith.negf %90 : vector<2x30xf32>
    %92 = math.exp %91 : vector<2x30xf32>
    %cst_52 = arith.constant 1.000000e+00 : f32
    %93 = vector.broadcast %cst_52 : f32 to vector<2x30xf32>
    %94 = arith.addf %93, %92 : vector<2x30xf32>
    %95 = arith.divf %93, %94 : vector<2x30xf32>
    %96 = arith.mulf %87, %63 : vector<2x30xf32>
    %97 = arith.mulf %81, %89 : vector<2x30xf32>
    %98 = arith.addf %96, %97 : vector<2x30xf32>
    %99 = math.tanh %98 : vector<2x30xf32>
    %100 = arith.mulf %95, %99 : vector<2x30xf32>
    %cst_53 = arith.constant 0.000000e+00 : f32
    %101 = vector.broadcast %cst_53 : f32 to vector<2x30xf32>
    %102 = arith.cmpf oge, %100, %101 : vector<2x30xf32>
    %cst_54 = arith.constant 1.000000e-01 : f32
    %103 = vector.broadcast %cst_54 : f32 to vector<2x30xf32>
    %104 = arith.mulf %103, %100 : vector<2x30xf32>
    %105 = arith.select %102, %100, %104 : vector<2x30xi1>, vector<2x30xf32>
    %cst_55 = arith.constant dense<0.000000e+00> : vector<2x2xf32>
    %106 = tpu.matmul %105, %35, %cst_55 {dimension_numbers = #tpu.dot_dimension_numbers<[1], [0], [0], [1], [0, 0, 1, 1], [], []>} : vector<2x30xf32>, vector<30x2xf32>, vector<2x2xf32> -> vector<2x2xf32>
    %107 = vector.broadcast %36 : vector<1x2xf32> to vector<2x2xf32>
    %108 = arith.addf %106, %107 : vector<2x2xf32>
    %cst_56 = arith.constant dense<0.000000e+00> : vector<2x120xf32>
    %109 = tpu.matmul %100, %34, %cst_56 {dimension_numbers = #tpu.dot_dimension_numbers<[1], [0], [0], [1], [0, 0, 1, 1], [], []>} : vector<2x30xf32>, vector<30x120xf32>, vector<2x120xf32> -> vector<2x120xf32>
    %110 = arith.addf %33, %109 : vector<2x120xf32>
    %111 = vector.extract_strided_slice %110 {offsets = [0, 0], sizes = [2, 30], strides = [1, 1]} : vector<2x120xf32> to vector<2x30xf32>
    %112 = arith.negf %111 : vector<2x30xf32>
    %113 = math.exp %112 : vector<2x30xf32>
    %cst_57 = arith.constant 1.000000e+00 : f32
    %114 = vector.broadcast %cst_57 : f32 to vector<2x30xf32>
    %115 = arith.addf %114, %113 : vector<2x30xf32>
    %116 = arith.divf %114, %115 : vector<2x30xf32>
    %117 = vector.extract_strided_slice %110 {offsets = [0, 30], sizes = [2, 30], strides = [1, 1]} : vector<2x120xf32> to vector<2x30xf32>
    %118 = arith.negf %117 : vector<2x30xf32>
    %119 = math.exp %118 : vector<2x30xf32>
    %cst_58 = arith.constant 1.000000e+00 : f32
    %120 = vector.broadcast %cst_58 : f32 to vector<2x30xf32>
    %121 = arith.addf %120, %119 : vector<2x30xf32>
    %122 = arith.divf %120, %121 : vector<2x30xf32>
    %123 = vector.extract_strided_slice %110 {offsets = [0, 60], sizes = [2, 30], strides = [1, 1]} : vector<2x120xf32> to vector<2x30xf32>
    %124 = math.tanh %123 : vector<2x30xf32>
    %125 = vector.extract_strided_slice %110 {offsets = [0, 90], sizes = [2, 30], strides = [1, 1]} : vector<2x120xf32> to vector<2x30xf32>
    %126 = arith.negf %125 : vector<2x30xf32>
    %127 = math.exp %126 : vector<2x30xf32>
    %cst_59 = arith.constant 1.000000e+00 : f32
    %128 = vector.broadcast %cst_59 : f32 to vector<2x30xf32>
    %129 = arith.addf %128, %127 : vector<2x30xf32>
    %130 = arith.divf %128, %129 : vector<2x30xf32>
    %131 = arith.mulf %122, %98 : vector<2x30xf32>
    %132 = arith.mulf %116, %124 : vector<2x30xf32>
    %133 = arith.addf %131, %132 : vector<2x30xf32>
    %134 = math.tanh %133 : vector<2x30xf32>
    %135 = arith.mulf %130, %134 : vector<2x30xf32>
    %cst_60 = arith.constant 0.000000e+00 : f32
    %136 = vector.broadcast %cst_60 : f32 to vector<2x30xf32>
    %137 = arith.cmpf oge, %135, %136 : vector<2x30xf32>
    %cst_61 = arith.constant 1.000000e-01 : f32
    %138 = vector.broadcast %cst_61 : f32 to vector<2x30xf32>
    %139 = arith.mulf %138, %135 : vector<2x30xf32>
    %140 = arith.select %137, %135, %139 : vector<2x30xi1>, vector<2x30xf32>
    %cst_62 = arith.constant dense<0.000000e+00> : vector<2x2xf32>
    %141 = tpu.matmul %140, %35, %cst_62 {dimension_numbers = #tpu.dot_dimension_numbers<[1], [0], [0], [1], [0, 0, 1, 1], [], []>} : vector<2x30xf32>, vector<30x2xf32>, vector<2x2xf32> -> vector<2x2xf32>
    %142 = vector.broadcast %36 : vector<1x2xf32> to vector<2x2xf32>
    %143 = arith.addf %141, %142 : vector<2x2xf32>
    %cst_63 = arith.constant dense<0.000000e+00> : vector<2x120xf32>
    %144 = tpu.matmul %135, %34, %cst_63 {dimension_numbers = #tpu.dot_dimension_numbers<[1], [0], [0], [1], [0, 0, 1, 1], [], []>} : vector<2x30xf32>, vector<30x120xf32>, vector<2x120xf32> -> vector<2x120xf32>
    %145 = arith.addf %33, %144 : vector<2x120xf32>
    %146 = vector.extract_strided_slice %145 {offsets = [0, 0], sizes = [2, 30], strides = [1, 1]} : vector<2x120xf32> to vector<2x30xf32>
    %147 = arith.negf %146 : vector<2x30xf32>
    %148 = math.exp %147 : vector<2x30xf32>
    %cst_64 = arith.constant 1.000000e+00 : f32
    %149 = vector.broadcast %cst_64 : f32 to vector<2x30xf32>
    %150 = arith.addf %149, %148 : vector<2x30xf32>
    %151 = arith.divf %149, %150 : vector<2x30xf32>
    %152 = vector.extract_strided_slice %145 {offsets = [0, 30], sizes = [2, 30], strides = [1, 1]} : vector<2x120xf32> to vector<2x30xf32>
    %153 = arith.negf %152 : vector<2x30xf32>
    %154 = math.exp %153 : vector<2x30xf32>
    %cst_65 = arith.constant 1.000000e+00 : f32
    %155 = vector.broadcast %cst_65 : f32 to vector<2x30xf32>
    %156 = arith.addf %155, %154 : vector<2x30xf32>
    %157 = arith.divf %155, %156 : vector<2x30xf32>
    %158 = vector.extract_strided_slice %145 {offsets = [0, 60], sizes = [2, 30], strides = [1, 1]} : vector<2x120xf32> to vector<2x30xf32>
    %159 = math.tanh %158 : vector<2x30xf32>
    %160 = vector.extract_strided_slice %145 {offsets = [0, 90], sizes = [2, 30], strides = [1, 1]} : vector<2x120xf32> to vector<2x30xf32>
    %161 = arith.negf %160 : vector<2x30xf32>
    %162 = math.exp %161 : vector<2x30xf32>
    %cst_66 = arith.constant 1.000000e+00 : f32
    %163 = vector.broadcast %cst_66 : f32 to vector<2x30xf32>
    %164 = arith.addf %163, %162 : vector<2x30xf32>
    %165 = arith.divf %163, %164 : vector<2x30xf32>
    %166 = arith.mulf %157, %133 : vector<2x30xf32>
    %167 = arith.mulf %151, %159 : vector<2x30xf32>
    %168 = arith.addf %166, %167 : vector<2x30xf32>
    %169 = math.tanh %168 : vector<2x30xf32>
    %170 = arith.mulf %165, %169 : vector<2x30xf32>
    %cst_67 = arith.constant 0.000000e+00 : f32
    %171 = vector.broadcast %cst_67 : f32 to vector<2x30xf32>
    %172 = arith.cmpf oge, %170, %171 : vector<2x30xf32>
    %cst_68 = arith.constant 1.000000e-01 : f32
    %173 = vector.broadcast %cst_68 : f32 to vector<2x30xf32>
    %174 = arith.mulf %173, %170 : vector<2x30xf32>
    %175 = arith.select %172, %170, %174 : vector<2x30xi1>, vector<2x30xf32>
    %cst_69 = arith.constant dense<0.000000e+00> : vector<2x2xf32>
    %176 = tpu.matmul %175, %35, %cst_69 {dimension_numbers = #tpu.dot_dimension_numbers<[1], [0], [0], [1], [0, 0, 1, 1], [], []>} : vector<2x30xf32>, vector<30x2xf32>, vector<2x2xf32> -> vector<2x2xf32>
    %177 = vector.broadcast %36 : vector<1x2xf32> to vector<2x2xf32>
    %178 = arith.addf %176, %177 : vector<2x2xf32>
    %cst_70 = arith.constant dense<0.000000e+00> : vector<2x120xf32>
    %179 = tpu.matmul %170, %34, %cst_70 {dimension_numbers = #tpu.dot_dimension_numbers<[1], [0], [0], [1], [0, 0, 1, 1], [], []>} : vector<2x30xf32>, vector<30x120xf32>, vector<2x120xf32> -> vector<2x120xf32>
    %180 = arith.addf %33, %179 : vector<2x120xf32>
    %181 = vector.extract_strided_slice %180 {offsets = [0, 0], sizes = [2, 30], strides = [1, 1]} : vector<2x120xf32> to vector<2x30xf32>
    %182 = arith.negf %181 : vector<2x30xf32>
    %183 = math.exp %182 : vector<2x30xf32>
    %cst_71 = arith.constant 1.000000e+00 : f32
    %184 = vector.broadcast %cst_71 : f32 to vector<2x30xf32>
    %185 = arith.addf %184, %183 : vector<2x30xf32>
    %186 = arith.divf %184, %185 : vector<2x30xf32>
    %187 = vector.extract_strided_slice %180 {offsets = [0, 30], sizes = [2, 30], strides = [1, 1]} : vector<2x120xf32> to vector<2x30xf32>
    %188 = arith.negf %187 : vector<2x30xf32>
    %189 = math.exp %188 : vector<2x30xf32>
    %cst_72 = arith.constant 1.000000e+00 : f32
    %190 = vector.broadcast %cst_72 : f32 to vector<2x30xf32>
    %191 = arith.addf %190, %189 : vector<2x30xf32>
    %192 = arith.divf %190, %191 : vector<2x30xf32>
    %193 = vector.extract_strided_slice %180 {offsets = [0, 60], sizes = [2, 30], strides = [1, 1]} : vector<2x120xf32> to vector<2x30xf32>
    %194 = math.tanh %193 : vector<2x30xf32>
    %195 = vector.extract_strided_slice %180 {offsets = [0, 90], sizes = [2, 30], strides = [1, 1]} : vector<2x120xf32> to vector<2x30xf32>
    %196 = arith.negf %195 : vector<2x30xf32>
    %197 = math.exp %196 : vector<2x30xf32>
    %cst_73 = arith.constant 1.000000e+00 : f32
    %198 = vector.broadcast %cst_73 : f32 to vector<2x30xf32>
    %199 = arith.addf %198, %197 : vector<2x30xf32>
    %200 = arith.divf %198, %199 : vector<2x30xf32>
    %201 = arith.mulf %192, %168 : vector<2x30xf32>
    %202 = arith.mulf %186, %194 : vector<2x30xf32>
    %203 = arith.addf %201, %202 : vector<2x30xf32>
    %204 = math.tanh %203 : vector<2x30xf32>
    %205 = arith.mulf %200, %204 : vector<2x30xf32>
    %cst_74 = arith.constant 0.000000e+00 : f32
    %206 = vector.broadcast %cst_74 : f32 to vector<2x30xf32>
    %207 = arith.cmpf oge, %205, %206 : vector<2x30xf32>
    %cst_75 = arith.constant 1.000000e-01 : f32
    %208 = vector.broadcast %cst_75 : f32 to vector<2x30xf32>
    %209 = arith.mulf %208, %205 : vector<2x30xf32>
    %210 = arith.select %207, %205, %209 : vector<2x30xi1>, vector<2x30xf32>
    %cst_76 = arith.constant dense<0.000000e+00> : vector<2x2xf32>
    %211 = tpu.matmul %210, %35, %cst_76 {dimension_numbers = #tpu.dot_dimension_numbers<[1], [0], [0], [1], [0, 0, 1, 1], [], []>} : vector<2x30xf32>, vector<30x2xf32>, vector<2x2xf32> -> vector<2x2xf32>
    %212 = vector.broadcast %36 : vector<1x2xf32> to vector<2x2xf32>
    %213 = arith.addf %211, %212 : vector<2x2xf32>
    %cst_77 = arith.constant dense<0.000000e+00> : vector<2x120xf32>
    %214 = tpu.matmul %205, %34, %cst_77 {dimension_numbers = #tpu.dot_dimension_numbers<[1], [0], [0], [1], [0, 0, 1, 1], [], []>} : vector<2x30xf32>, vector<30x120xf32>, vector<2x120xf32> -> vector<2x120xf32>
    %215 = arith.addf %33, %214 : vector<2x120xf32>
    %216 = vector.extract_strided_slice %215 {offsets = [0, 0], sizes = [2, 30], strides = [1, 1]} : vector<2x120xf32> to vector<2x30xf32>
    %217 = arith.negf %216 : vector<2x30xf32>
    %218 = math.exp %217 : vector<2x30xf32>
    %cst_78 = arith.constant 1.000000e+00 : f32
    %219 = vector.broadcast %cst_78 : f32 to vector<2x30xf32>
    %220 = arith.addf %219, %218 : vector<2x30xf32>
    %221 = arith.divf %219, %220 : vector<2x30xf32>
    %222 = vector.extract_strided_slice %215 {offsets = [0, 30], sizes = [2, 30], strides = [1, 1]} : vector<2x120xf32> to vector<2x30xf32>
    %223 = arith.negf %222 : vector<2x30xf32>
    %224 = math.exp %223 : vector<2x30xf32>
    %cst_79 = arith.constant 1.000000e+00 : f32
    %225 = vector.broadcast %cst_79 : f32 to vector<2x30xf32>
    %226 = arith.addf %225, %224 : vector<2x30xf32>
    %227 = arith.divf %225, %226 : vector<2x30xf32>
    %228 = vector.extract_strided_slice %215 {offsets = [0, 60], sizes = [2, 30], strides = [1, 1]} : vector<2x120xf32> to vector<2x30xf32>
    %229 = math.tanh %228 : vector<2x30xf32>
    %230 = vector.extract_strided_slice %215 {offsets = [0, 90], sizes = [2, 30], strides = [1, 1]} : vector<2x120xf32> to vector<2x30xf32>
    %231 = arith.negf %230 : vector<2x30xf32>
    %232 = math.exp %231 : vector<2x30xf32>
    %cst_80 = arith.constant 1.000000e+00 : f32
    %233 = vector.broadcast %cst_80 : f32 to vector<2x30xf32>
    %234 = arith.addf %233, %232 : vector<2x30xf32>
    %235 = arith.divf %233, %234 : vector<2x30xf32>
    %236 = arith.mulf %227, %203 : vector<2x30xf32>
    %237 = arith.mulf %221, %229 : vector<2x30xf32>
    %238 = arith.addf %236, %237 : vector<2x30xf32>
    %239 = math.tanh %238 : vector<2x30xf32>
    %240 = arith.mulf %235, %239 : vector<2x30xf32>
    %cst_81 = arith.constant 0.000000e+00 : f32
    %241 = vector.broadcast %cst_81 : f32 to vector<2x30xf32>
    %242 = arith.cmpf oge, %240, %241 : vector<2x30xf32>
    %cst_82 = arith.constant 1.000000e-01 : f32
    %243 = vector.broadcast %cst_82 : f32 to vector<2x30xf32>
    %244 = arith.mulf %243, %240 : vector<2x30xf32>
    %245 = arith.select %242, %240, %244 : vector<2x30xi1>, vector<2x30xf32>
    %cst_83 = arith.constant dense<0.000000e+00> : vector<2x2xf32>
    %246 = tpu.matmul %245, %35, %cst_83 {dimension_numbers = #tpu.dot_dimension_numbers<[1], [0], [0], [1], [0, 0, 1, 1], [], []>} : vector<2x30xf32>, vector<30x2xf32>, vector<2x2xf32> -> vector<2x2xf32>
    %247 = vector.broadcast %36 : vector<1x2xf32> to vector<2x2xf32>
    %248 = arith.addf %246, %247 : vector<2x2xf32>
    %cst_84 = arith.constant dense<0.000000e+00> : vector<2x120xf32>
    %249 = tpu.matmul %240, %34, %cst_84 {dimension_numbers = #tpu.dot_dimension_numbers<[1], [0], [0], [1], [0, 0, 1, 1], [], []>} : vector<2x30xf32>, vector<30x120xf32>, vector<2x120xf32> -> vector<2x120xf32>
    %250 = arith.addf %33, %249 : vector<2x120xf32>
    %251 = vector.extract_strided_slice %250 {offsets = [0, 0], sizes = [2, 30], strides = [1, 1]} : vector<2x120xf32> to vector<2x30xf32>
    %252 = arith.negf %251 : vector<2x30xf32>
    %253 = math.exp %252 : vector<2x30xf32>
    %cst_85 = arith.constant 1.000000e+00 : f32
    %254 = vector.broadcast %cst_85 : f32 to vector<2x30xf32>
    %255 = arith.addf %254, %253 : vector<2x30xf32>
    %256 = arith.divf %254, %255 : vector<2x30xf32>
    %257 = vector.extract_strided_slice %250 {offsets = [0, 30], sizes = [2, 30], strides = [1, 1]} : vector<2x120xf32> to vector<2x30xf32>
    %258 = arith.negf %257 : vector<2x30xf32>
    %259 = math.exp %258 : vector<2x30xf32>
    %cst_86 = arith.constant 1.000000e+00 : f32
    %260 = vector.broadcast %cst_86 : f32 to vector<2x30xf32>
    %261 = arith.addf %260, %259 : vector<2x30xf32>
    %262 = arith.divf %260, %261 : vector<2x30xf32>
    %263 = vector.extract_strided_slice %250 {offsets = [0, 60], sizes = [2, 30], strides = [1, 1]} : vector<2x120xf32> to vector<2x30xf32>
    %264 = math.tanh %263 : vector<2x30xf32>
    %265 = vector.extract_strided_slice %250 {offsets = [0, 90], sizes = [2, 30], strides = [1, 1]} : vector<2x120xf32> to vector<2x30xf32>
    %266 = arith.negf %265 : vector<2x30xf32>
    %267 = math.exp %266 : vector<2x30xf32>
    %cst_87 = arith.constant 1.000000e+00 : f32
    %268 = vector.broadcast %cst_87 : f32 to vector<2x30xf32>
    %269 = arith.addf %268, %267 : vector<2x30xf32>
    %270 = arith.divf %268, %269 : vector<2x30xf32>
    %271 = arith.mulf %262, %238 : vector<2x30xf32>
    %272 = arith.mulf %256, %264 : vector<2x30xf32>
    %273 = arith.addf %271, %272 : vector<2x30xf32>
    %274 = math.tanh %273 : vector<2x30xf32>
    %275 = arith.mulf %270, %274 : vector<2x30xf32>
    %cst_88 = arith.constant 0.000000e+00 : f32
    %276 = vector.broadcast %cst_88 : f32 to vector<2x30xf32>
    %277 = arith.cmpf oge, %275, %276 : vector<2x30xf32>
    %cst_89 = arith.constant 1.000000e-01 : f32
    %278 = vector.broadcast %cst_89 : f32 to vector<2x30xf32>
    %279 = arith.mulf %278, %275 : vector<2x30xf32>
    %280 = arith.select %277, %275, %279 : vector<2x30xi1>, vector<2x30xf32>
    %cst_90 = arith.constant dense<0.000000e+00> : vector<2x2xf32>
    %281 = tpu.matmul %280, %35, %cst_90 {dimension_numbers = #tpu.dot_dimension_numbers<[1], [0], [0], [1], [0, 0, 1, 1], [], []>} : vector<2x30xf32>, vector<30x2xf32>, vector<2x2xf32> -> vector<2x2xf32>
    %282 = vector.broadcast %36 : vector<1x2xf32> to vector<2x2xf32>
    %283 = arith.addf %281, %282 : vector<2x2xf32>
    %cst_91 = arith.constant dense<0.000000e+00> : vector<2x120xf32>
    %284 = tpu.matmul %275, %34, %cst_91 {dimension_numbers = #tpu.dot_dimension_numbers<[1], [0], [0], [1], [0, 0, 1, 1], [], []>} : vector<2x30xf32>, vector<30x120xf32>, vector<2x120xf32> -> vector<2x120xf32>
    %285 = arith.addf %33, %284 : vector<2x120xf32>
    %286 = vector.extract_strided_slice %285 {offsets = [0, 0], sizes = [2, 30], strides = [1, 1]} : vector<2x120xf32> to vector<2x30xf32>
    %287 = arith.negf %286 : vector<2x30xf32>
    %288 = math.exp %287 : vector<2x30xf32>
    %cst_92 = arith.constant 1.000000e+00 : f32
    %289 = vector.broadcast %cst_92 : f32 to vector<2x30xf32>
    %290 = arith.addf %289, %288 : vector<2x30xf32>
    %291 = arith.divf %289, %290 : vector<2x30xf32>
    %292 = vector.extract_strided_slice %285 {offsets = [0, 30], sizes = [2, 30], strides = [1, 1]} : vector<2x120xf32> to vector<2x30xf32>
    %293 = arith.negf %292 : vector<2x30xf32>
    %294 = math.exp %293 : vector<2x30xf32>
    %cst_93 = arith.constant 1.000000e+00 : f32
    %295 = vector.broadcast %cst_93 : f32 to vector<2x30xf32>
    %296 = arith.addf %295, %294 : vector<2x30xf32>
    %297 = arith.divf %295, %296 : vector<2x30xf32>
    %298 = vector.extract_strided_slice %285 {offsets = [0, 60], sizes = [2, 30], strides = [1, 1]} : vector<2x120xf32> to vector<2x30xf32>
    %299 = math.tanh %298 : vector<2x30xf32>
    %300 = vector.extract_strided_slice %285 {offsets = [0, 90], sizes = [2, 30], strides = [1, 1]} : vector<2x120xf32> to vector<2x30xf32>
    %301 = arith.negf %300 : vector<2x30xf32>
    %302 = math.exp %301 : vector<2x30xf32>
    %cst_94 = arith.constant 1.000000e+00 : f32
    %303 = vector.broadcast %cst_94 : f32 to vector<2x30xf32>
    %304 = arith.addf %303, %302 : vector<2x30xf32>
    %305 = arith.divf %303, %304 : vector<2x30xf32>
    %306 = arith.mulf %297, %273 : vector<2x30xf32>
    %307 = arith.mulf %291, %299 : vector<2x30xf32>
    %308 = arith.addf %306, %307 : vector<2x30xf32>
    %309 = math.tanh %308 : vector<2x30xf32>
    %310 = arith.mulf %305, %309 : vector<2x30xf32>
    %cst_95 = arith.constant 0.000000e+00 : f32
    %311 = vector.broadcast %cst_95 : f32 to vector<2x30xf32>
    %312 = arith.cmpf oge, %310, %311 : vector<2x30xf32>
    %cst_96 = arith.constant 1.000000e-01 : f32
    %313 = vector.broadcast %cst_96 : f32 to vector<2x30xf32>
    %314 = arith.mulf %313, %310 : vector<2x30xf32>
    %315 = arith.select %312, %310, %314 : vector<2x30xi1>, vector<2x30xf32>
    %cst_97 = arith.constant dense<0.000000e+00> : vector<2x2xf32>
    %316 = tpu.matmul %315, %35, %cst_97 {dimension_numbers = #tpu.dot_dimension_numbers<[1], [0], [0], [1], [0, 0, 1, 1], [], []>} : vector<2x30xf32>, vector<30x2xf32>, vector<2x2xf32> -> vector<2x2xf32>
    %317 = vector.broadcast %36 : vector<1x2xf32> to vector<2x2xf32>
    %318 = arith.addf %316, %317 : vector<2x2xf32>
    %cst_98 = arith.constant dense<0.000000e+00> : vector<2x120xf32>
    %319 = tpu.matmul %310, %34, %cst_98 {dimension_numbers = #tpu.dot_dimension_numbers<[1], [0], [0], [1], [0, 0, 1, 1], [], []>} : vector<2x30xf32>, vector<30x120xf32>, vector<2x120xf32> -> vector<2x120xf32>
    %320 = arith.addf %33, %319 : vector<2x120xf32>
    %321 = vector.extract_strided_slice %320 {offsets = [0, 0], sizes = [2, 30], strides = [1, 1]} : vector<2x120xf32> to vector<2x30xf32>
    %322 = arith.negf %321 : vector<2x30xf32>
    %323 = math.exp %322 : vector<2x30xf32>
    %cst_99 = arith.constant 1.000000e+00 : f32
    %324 = vector.broadcast %cst_99 : f32 to vector<2x30xf32>
    %325 = arith.addf %324, %323 : vector<2x30xf32>
    %326 = arith.divf %324, %325 : vector<2x30xf32>
    %327 = vector.extract_strided_slice %320 {offsets = [0, 30], sizes = [2, 30], strides = [1, 1]} : vector<2x120xf32> to vector<2x30xf32>
    %328 = arith.negf %327 : vector<2x30xf32>
    %329 = math.exp %328 : vector<2x30xf32>
    %cst_100 = arith.constant 1.000000e+00 : f32
    %330 = vector.broadcast %cst_100 : f32 to vector<2x30xf32>
    %331 = arith.addf %330, %329 : vector<2x30xf32>
    %332 = arith.divf %330, %331 : vector<2x30xf32>
    %333 = vector.extract_strided_slice %320 {offsets = [0, 60], sizes = [2, 30], strides = [1, 1]} : vector<2x120xf32> to vector<2x30xf32>
    %334 = math.tanh %333 : vector<2x30xf32>
    %335 = vector.extract_strided_slice %320 {offsets = [0, 90], sizes = [2, 30], strides = [1, 1]} : vector<2x120xf32> to vector<2x30xf32>
    %336 = arith.negf %335 : vector<2x30xf32>
    %337 = math.exp %336 : vector<2x30xf32>
    %cst_101 = arith.constant 1.000000e+00 : f32
    %338 = vector.broadcast %cst_101 : f32 to vector<2x30xf32>
    %339 = arith.addf %338, %337 : vector<2x30xf32>
    %340 = arith.divf %338, %339 : vector<2x30xf32>
    %341 = arith.mulf %332, %308 : vector<2x30xf32>
    %342 = arith.mulf %326, %334 : vector<2x30xf32>
    %343 = arith.addf %341, %342 : vector<2x30xf32>
    %344 = math.tanh %343 : vector<2x30xf32>
    %345 = arith.mulf %340, %344 : vector<2x30xf32>
    %cst_102 = arith.constant 0.000000e+00 : f32
    %346 = vector.broadcast %cst_102 : f32 to vector<2x30xf32>
    %347 = arith.cmpf oge, %345, %346 : vector<2x30xf32>
    %cst_103 = arith.constant 1.000000e-01 : f32
    %348 = vector.broadcast %cst_103 : f32 to vector<2x30xf32>
    %349 = arith.mulf %348, %345 : vector<2x30xf32>
    %350 = arith.select %347, %345, %349 : vector<2x30xi1>, vector<2x30xf32>
    %cst_104 = arith.constant dense<0.000000e+00> : vector<2x2xf32>
    %351 = tpu.matmul %350, %35, %cst_104 {dimension_numbers = #tpu.dot_dimension_numbers<[1], [0], [0], [1], [0, 0, 1, 1], [], []>} : vector<2x30xf32>, vector<30x2xf32>, vector<2x2xf32> -> vector<2x2xf32>
    %352 = vector.broadcast %36 : vector<1x2xf32> to vector<2x2xf32>
    %353 = arith.addf %351, %352 : vector<2x2xf32>
    %cst_105 = arith.constant dense<0.000000e+00> : vector<2x120xf32>
    %354 = tpu.matmul %345, %34, %cst_105 {dimension_numbers = #tpu.dot_dimension_numbers<[1], [0], [0], [1], [0, 0, 1, 1], [], []>} : vector<2x30xf32>, vector<30x120xf32>, vector<2x120xf32> -> vector<2x120xf32>
    %355 = arith.addf %33, %354 : vector<2x120xf32>
    %356 = vector.extract_strided_slice %355 {offsets = [0, 0], sizes = [2, 30], strides = [1, 1]} : vector<2x120xf32> to vector<2x30xf32>
    %357 = arith.negf %356 : vector<2x30xf32>
    %358 = math.exp %357 : vector<2x30xf32>
    %cst_106 = arith.constant 1.000000e+00 : f32
    %359 = vector.broadcast %cst_106 : f32 to vector<2x30xf32>
    %360 = arith.addf %359, %358 : vector<2x30xf32>
    %361 = arith.divf %359, %360 : vector<2x30xf32>
    %362 = vector.extract_strided_slice %355 {offsets = [0, 30], sizes = [2, 30], strides = [1, 1]} : vector<2x120xf32> to vector<2x30xf32>
    %363 = arith.negf %362 : vector<2x30xf32>
    %364 = math.exp %363 : vector<2x30xf32>
    %cst_107 = arith.constant 1.000000e+00 : f32
    %365 = vector.broadcast %cst_107 : f32 to vector<2x30xf32>
    %366 = arith.addf %365, %364 : vector<2x30xf32>
    %367 = arith.divf %365, %366 : vector<2x30xf32>
    %368 = vector.extract_strided_slice %355 {offsets = [0, 60], sizes = [2, 30], strides = [1, 1]} : vector<2x120xf32> to vector<2x30xf32>
    %369 = math.tanh %368 : vector<2x30xf32>
    %370 = vector.extract_strided_slice %355 {offsets = [0, 90], sizes = [2, 30], strides = [1, 1]} : vector<2x120xf32> to vector<2x30xf32>
    %371 = arith.negf %370 : vector<2x30xf32>
    %372 = math.exp %371 : vector<2x30xf32>
    %cst_108 = arith.constant 1.000000e+00 : f32
    %373 = vector.broadcast %cst_108 : f32 to vector<2x30xf32>
    %374 = arith.addf %373, %372 : vector<2x30xf32>
    %375 = arith.divf %373, %374 : vector<2x30xf32>
    %376 = arith.mulf %367, %343 : vector<2x30xf32>
    %377 = arith.mulf %361, %369 : vector<2x30xf32>
    %378 = arith.addf %376, %377 : vector<2x30xf32>
    %379 = math.tanh %378 : vector<2x30xf32>
    %380 = arith.mulf %375, %379 : vector<2x30xf32>
    %cst_109 = arith.constant 0.000000e+00 : f32
    %381 = vector.broadcast %cst_109 : f32 to vector<2x30xf32>
    %382 = arith.cmpf oge, %380, %381 : vector<2x30xf32>
    %cst_110 = arith.constant 1.000000e-01 : f32
    %383 = vector.broadcast %cst_110 : f32 to vector<2x30xf32>
    %384 = arith.mulf %383, %380 : vector<2x30xf32>
    %385 = arith.select %382, %380, %384 : vector<2x30xi1>, vector<2x30xf32>
    %cst_111 = arith.constant dense<0.000000e+00> : vector<2x2xf32>
    %386 = tpu.matmul %385, %35, %cst_111 {dimension_numbers = #tpu.dot_dimension_numbers<[1], [0], [0], [1], [0, 0, 1, 1], [], []>} : vector<2x30xf32>, vector<30x2xf32>, vector<2x2xf32> -> vector<2x2xf32>
    %387 = vector.broadcast %36 : vector<1x2xf32> to vector<2x2xf32>
    %388 = arith.addf %386, %387 : vector<2x2xf32>
    %cst_112 = arith.constant dense<0.000000e+00> : vector<2x120xf32>
    %389 = tpu.matmul %380, %34, %cst_112 {dimension_numbers = #tpu.dot_dimension_numbers<[1], [0], [0], [1], [0, 0, 1, 1], [], []>} : vector<2x30xf32>, vector<30x120xf32>, vector<2x120xf32> -> vector<2x120xf32>
    %390 = arith.addf %33, %389 : vector<2x120xf32>
    %391 = vector.extract_strided_slice %390 {offsets = [0, 0], sizes = [2, 30], strides = [1, 1]} : vector<2x120xf32> to vector<2x30xf32>
    %392 = arith.negf %391 : vector<2x30xf32>
    %393 = math.exp %392 : vector<2x30xf32>
    %cst_113 = arith.constant 1.000000e+00 : f32
    %394 = vector.broadcast %cst_113 : f32 to vector<2x30xf32>
    %395 = arith.addf %394, %393 : vector<2x30xf32>
    %396 = arith.divf %394, %395 : vector<2x30xf32>
    %397 = vector.extract_strided_slice %390 {offsets = [0, 30], sizes = [2, 30], strides = [1, 1]} : vector<2x120xf32> to vector<2x30xf32>
    %398 = arith.negf %397 : vector<2x30xf32>
    %399 = math.exp %398 : vector<2x30xf32>
    %cst_114 = arith.constant 1.000000e+00 : f32
    %400 = vector.broadcast %cst_114 : f32 to vector<2x30xf32>
    %401 = arith.addf %400, %399 : vector<2x30xf32>
    %402 = arith.divf %400, %401 : vector<2x30xf32>
    %403 = vector.extract_strided_slice %390 {offsets = [0, 60], sizes = [2, 30], strides = [1, 1]} : vector<2x120xf32> to vector<2x30xf32>
    %404 = math.tanh %403 : vector<2x30xf32>
    %405 = vector.extract_strided_slice %390 {offsets = [0, 90], sizes = [2, 30], strides = [1, 1]} : vector<2x120xf32> to vector<2x30xf32>
    %406 = arith.negf %405 : vector<2x30xf32>
    %407 = math.exp %406 : vector<2x30xf32>
    %cst_115 = arith.constant 1.000000e+00 : f32
    %408 = vector.broadcast %cst_115 : f32 to vector<2x30xf32>
    %409 = arith.addf %408, %407 : vector<2x30xf32>
    %410 = arith.divf %408, %409 : vector<2x30xf32>
    %411 = arith.mulf %402, %378 : vector<2x30xf32>
    %412 = arith.mulf %396, %404 : vector<2x30xf32>
    %413 = arith.addf %411, %412 : vector<2x30xf32>
    %414 = math.tanh %413 : vector<2x30xf32>
    %415 = arith.mulf %410, %414 : vector<2x30xf32>
    %cst_116 = arith.constant 0.000000e+00 : f32
    %416 = vector.broadcast %cst_116 : f32 to vector<2x30xf32>
    %417 = arith.cmpf oge, %415, %416 : vector<2x30xf32>
    %cst_117 = arith.constant 1.000000e-01 : f32
    %418 = vector.broadcast %cst_117 : f32 to vector<2x30xf32>
    %419 = arith.mulf %418, %415 : vector<2x30xf32>
    %420 = arith.select %417, %415, %419 : vector<2x30xi1>, vector<2x30xf32>
    %cst_118 = arith.constant dense<0.000000e+00> : vector<2x2xf32>
    %421 = tpu.matmul %420, %35, %cst_118 {dimension_numbers = #tpu.dot_dimension_numbers<[1], [0], [0], [1], [0, 0, 1, 1], [], []>} : vector<2x30xf32>, vector<30x2xf32>, vector<2x2xf32> -> vector<2x2xf32>
    %422 = vector.broadcast %36 : vector<1x2xf32> to vector<2x2xf32>
    %423 = arith.addf %421, %422 : vector<2x2xf32>
    %cst_119 = arith.constant dense<0.000000e+00> : vector<2x120xf32>
    %424 = tpu.matmul %415, %34, %cst_119 {dimension_numbers = #tpu.dot_dimension_numbers<[1], [0], [0], [1], [0, 0, 1, 1], [], []>} : vector<2x30xf32>, vector<30x120xf32>, vector<2x120xf32> -> vector<2x120xf32>
    %425 = arith.addf %33, %424 : vector<2x120xf32>
    %426 = vector.extract_strided_slice %425 {offsets = [0, 0], sizes = [2, 30], strides = [1, 1]} : vector<2x120xf32> to vector<2x30xf32>
    %427 = arith.negf %426 : vector<2x30xf32>
    %428 = math.exp %427 : vector<2x30xf32>
    %cst_120 = arith.constant 1.000000e+00 : f32
    %429 = vector.broadcast %cst_120 : f32 to vector<2x30xf32>
    %430 = arith.addf %429, %428 : vector<2x30xf32>
    %431 = arith.divf %429, %430 : vector<2x30xf32>
    %432 = vector.extract_strided_slice %425 {offsets = [0, 30], sizes = [2, 30], strides = [1, 1]} : vector<2x120xf32> to vector<2x30xf32>
    %433 = arith.negf %432 : vector<2x30xf32>
    %434 = math.exp %433 : vector<2x30xf32>
    %cst_121 = arith.constant 1.000000e+00 : f32
    %435 = vector.broadcast %cst_121 : f32 to vector<2x30xf32>
    %436 = arith.addf %435, %434 : vector<2x30xf32>
    %437 = arith.divf %435, %436 : vector<2x30xf32>
    %438 = vector.extract_strided_slice %425 {offsets = [0, 60], sizes = [2, 30], strides = [1, 1]} : vector<2x120xf32> to vector<2x30xf32>
    %439 = math.tanh %438 : vector<2x30xf32>
    %440 = vector.extract_strided_slice %425 {offsets = [0, 90], sizes = [2, 30], strides = [1, 1]} : vector<2x120xf32> to vector<2x30xf32>
    %441 = arith.negf %440 : vector<2x30xf32>
    %442 = math.exp %441 : vector<2x30xf32>
    %cst_122 = arith.constant 1.000000e+00 : f32
    %443 = vector.broadcast %cst_122 : f32 to vector<2x30xf32>
    %444 = arith.addf %443, %442 : vector<2x30xf32>
    %445 = arith.divf %443, %444 : vector<2x30xf32>
    %446 = arith.mulf %437, %413 : vector<2x30xf32>
    %447 = arith.mulf %431, %439 : vector<2x30xf32>
    %448 = arith.addf %446, %447 : vector<2x30xf32>
    %449 = math.tanh %448 : vector<2x30xf32>
    %450 = arith.mulf %445, %449 : vector<2x30xf32>
    %cst_123 = arith.constant 0.000000e+00 : f32
    %451 = vector.broadcast %cst_123 : f32 to vector<2x30xf32>
    %452 = arith.cmpf oge, %450, %451 : vector<2x30xf32>
    %cst_124 = arith.constant 1.000000e-01 : f32
    %453 = vector.broadcast %cst_124 : f32 to vector<2x30xf32>
    %454 = arith.mulf %453, %450 : vector<2x30xf32>
    %455 = arith.select %452, %450, %454 : vector<2x30xi1>, vector<2x30xf32>
    %cst_125 = arith.constant dense<0.000000e+00> : vector<2x2xf32>
    %456 = tpu.matmul %455, %35, %cst_125 {dimension_numbers = #tpu.dot_dimension_numbers<[1], [0], [0], [1], [0, 0, 1, 1], [], []>} : vector<2x30xf32>, vector<30x2xf32>, vector<2x2xf32> -> vector<2x2xf32>
    %457 = vector.broadcast %36 : vector<1x2xf32> to vector<2x2xf32>
    %458 = arith.addf %456, %457 : vector<2x2xf32>
    %cst_126 = arith.constant dense<0.000000e+00> : vector<2x120xf32>
    %459 = tpu.matmul %450, %34, %cst_126 {dimension_numbers = #tpu.dot_dimension_numbers<[1], [0], [0], [1], [0, 0, 1, 1], [], []>} : vector<2x30xf32>, vector<30x120xf32>, vector<2x120xf32> -> vector<2x120xf32>
    %460 = arith.addf %33, %459 : vector<2x120xf32>
    %461 = vector.extract_strided_slice %460 {offsets = [0, 0], sizes = [2, 30], strides = [1, 1]} : vector<2x120xf32> to vector<2x30xf32>
    %462 = arith.negf %461 : vector<2x30xf32>
    %463 = math.exp %462 : vector<2x30xf32>
    %cst_127 = arith.constant 1.000000e+00 : f32
    %464 = vector.broadcast %cst_127 : f32 to vector<2x30xf32>
    %465 = arith.addf %464, %463 : vector<2x30xf32>
    %466 = arith.divf %464, %465 : vector<2x30xf32>
    %467 = vector.extract_strided_slice %460 {offsets = [0, 30], sizes = [2, 30], strides = [1, 1]} : vector<2x120xf32> to vector<2x30xf32>
    %468 = arith.negf %467 : vector<2x30xf32>
    %469 = math.exp %468 : vector<2x30xf32>
    %cst_128 = arith.constant 1.000000e+00 : f32
    %470 = vector.broadcast %cst_128 : f32 to vector<2x30xf32>
    %471 = arith.addf %470, %469 : vector<2x30xf32>
    %472 = arith.divf %470, %471 : vector<2x30xf32>
    %473 = vector.extract_strided_slice %460 {offsets = [0, 60], sizes = [2, 30], strides = [1, 1]} : vector<2x120xf32> to vector<2x30xf32>
    %474 = math.tanh %473 : vector<2x30xf32>
    %475 = vector.extract_strided_slice %460 {offsets = [0, 90], sizes = [2, 30], strides = [1, 1]} : vector<2x120xf32> to vector<2x30xf32>
    %476 = arith.negf %475 : vector<2x30xf32>
    %477 = math.exp %476 : vector<2x30xf32>
    %cst_129 = arith.constant 1.000000e+00 : f32
    %478 = vector.broadcast %cst_129 : f32 to vector<2x30xf32>
    %479 = arith.addf %478, %477 : vector<2x30xf32>
    %480 = arith.divf %478, %479 : vector<2x30xf32>
    %481 = arith.mulf %472, %448 : vector<2x30xf32>
    %482 = arith.mulf %466, %474 : vector<2x30xf32>
    %483 = arith.addf %481, %482 : vector<2x30xf32>
    %484 = math.tanh %483 : vector<2x30xf32>
    %485 = arith.mulf %480, %484 : vector<2x30xf32>
    %cst_130 = arith.constant 0.000000e+00 : f32
    %486 = vector.broadcast %cst_130 : f32 to vector<2x30xf32>
    %487 = arith.cmpf oge, %485, %486 : vector<2x30xf32>
    %cst_131 = arith.constant 1.000000e-01 : f32
    %488 = vector.broadcast %cst_131 : f32 to vector<2x30xf32>
    %489 = arith.mulf %488, %485 : vector<2x30xf32>
    %490 = arith.select %487, %485, %489 : vector<2x30xi1>, vector<2x30xf32>
    %cst_132 = arith.constant dense<0.000000e+00> : vector<2x2xf32>
    %491 = tpu.matmul %490, %35, %cst_132 {dimension_numbers = #tpu.dot_dimension_numbers<[1], [0], [0], [1], [0, 0, 1, 1], [], []>} : vector<2x30xf32>, vector<30x2xf32>, vector<2x2xf32> -> vector<2x2xf32>
    %492 = vector.broadcast %36 : vector<1x2xf32> to vector<2x2xf32>
    %493 = arith.addf %491, %492 : vector<2x2xf32>
    %cst_133 = arith.constant dense<0.000000e+00> : vector<2x120xf32>
    %494 = tpu.matmul %485, %34, %cst_133 {dimension_numbers = #tpu.dot_dimension_numbers<[1], [0], [0], [1], [0, 0, 1, 1], [], []>} : vector<2x30xf32>, vector<30x120xf32>, vector<2x120xf32> -> vector<2x120xf32>
    %495 = arith.addf %33, %494 : vector<2x120xf32>
    %496 = vector.extract_strided_slice %495 {offsets = [0, 0], sizes = [2, 30], strides = [1, 1]} : vector<2x120xf32> to vector<2x30xf32>
    %497 = arith.negf %496 : vector<2x30xf32>
    %498 = math.exp %497 : vector<2x30xf32>
    %cst_134 = arith.constant 1.000000e+00 : f32
    %499 = vector.broadcast %cst_134 : f32 to vector<2x30xf32>
    %500 = arith.addf %499, %498 : vector<2x30xf32>
    %501 = arith.divf %499, %500 : vector<2x30xf32>
    %502 = vector.extract_strided_slice %495 {offsets = [0, 30], sizes = [2, 30], strides = [1, 1]} : vector<2x120xf32> to vector<2x30xf32>
    %503 = arith.negf %502 : vector<2x30xf32>
    %504 = math.exp %503 : vector<2x30xf32>
    %cst_135 = arith.constant 1.000000e+00 : f32
    %505 = vector.broadcast %cst_135 : f32 to vector<2x30xf32>
    %506 = arith.addf %505, %504 : vector<2x30xf32>
    %507 = arith.divf %505, %506 : vector<2x30xf32>
    %508 = vector.extract_strided_slice %495 {offsets = [0, 60], sizes = [2, 30], strides = [1, 1]} : vector<2x120xf32> to vector<2x30xf32>
    %509 = math.tanh %508 : vector<2x30xf32>
    %510 = vector.extract_strided_slice %495 {offsets = [0, 90], sizes = [2, 30], strides = [1, 1]} : vector<2x120xf32> to vector<2x30xf32>
    %511 = arith.negf %510 : vector<2x30xf32>
    %512 = math.exp %511 : vector<2x30xf32>
    %cst_136 = arith.constant 1.000000e+00 : f32
    %513 = vector.broadcast %cst_136 : f32 to vector<2x30xf32>
    %514 = arith.addf %513, %512 : vector<2x30xf32>
    %515 = arith.divf %513, %514 : vector<2x30xf32>
    %516 = arith.mulf %507, %483 : vector<2x30xf32>
    %517 = arith.mulf %501, %509 : vector<2x30xf32>
    %518 = arith.addf %516, %517 : vector<2x30xf32>
    %519 = math.tanh %518 : vector<2x30xf32>
    %520 = arith.mulf %515, %519 : vector<2x30xf32>
    %cst_137 = arith.constant 0.000000e+00 : f32
    %521 = vector.broadcast %cst_137 : f32 to vector<2x30xf32>
    %522 = arith.cmpf oge, %520, %521 : vector<2x30xf32>
    %cst_138 = arith.constant 1.000000e-01 : f32
    %523 = vector.broadcast %cst_138 : f32 to vector<2x30xf32>
    %524 = arith.mulf %523, %520 : vector<2x30xf32>
    %525 = arith.select %522, %520, %524 : vector<2x30xi1>, vector<2x30xf32>
    %cst_139 = arith.constant dense<0.000000e+00> : vector<2x2xf32>
    %526 = tpu.matmul %525, %35, %cst_139 {dimension_numbers = #tpu.dot_dimension_numbers<[1], [0], [0], [1], [0, 0, 1, 1], [], []>} : vector<2x30xf32>, vector<30x2xf32>, vector<2x2xf32> -> vector<2x2xf32>
    %527 = vector.broadcast %36 : vector<1x2xf32> to vector<2x2xf32>
    %528 = arith.addf %526, %527 : vector<2x2xf32>
    %cst_140 = arith.constant dense<0.000000e+00> : vector<2x120xf32>
    %529 = tpu.matmul %520, %34, %cst_140 {dimension_numbers = #tpu.dot_dimension_numbers<[1], [0], [0], [1], [0, 0, 1, 1], [], []>} : vector<2x30xf32>, vector<30x120xf32>, vector<2x120xf32> -> vector<2x120xf32>
    %530 = arith.addf %33, %529 : vector<2x120xf32>
    %531 = vector.extract_strided_slice %530 {offsets = [0, 0], sizes = [2, 30], strides = [1, 1]} : vector<2x120xf32> to vector<2x30xf32>
    %532 = arith.negf %531 : vector<2x30xf32>
    %533 = math.exp %532 : vector<2x30xf32>
    %cst_141 = arith.constant 1.000000e+00 : f32
    %534 = vector.broadcast %cst_141 : f32 to vector<2x30xf32>
    %535 = arith.addf %534, %533 : vector<2x30xf32>
    %536 = arith.divf %534, %535 : vector<2x30xf32>
    %537 = vector.extract_strided_slice %530 {offsets = [0, 30], sizes = [2, 30], strides = [1, 1]} : vector<2x120xf32> to vector<2x30xf32>
    %538 = arith.negf %537 : vector<2x30xf32>
    %539 = math.exp %538 : vector<2x30xf32>
    %cst_142 = arith.constant 1.000000e+00 : f32
    %540 = vector.broadcast %cst_142 : f32 to vector<2x30xf32>
    %541 = arith.addf %540, %539 : vector<2x30xf32>
    %542 = arith.divf %540, %541 : vector<2x30xf32>
    %543 = vector.extract_strided_slice %530 {offsets = [0, 60], sizes = [2, 30], strides = [1, 1]} : vector<2x120xf32> to vector<2x30xf32>
    %544 = math.tanh %543 : vector<2x30xf32>
    %545 = vector.extract_strided_slice %530 {offsets = [0, 90], sizes = [2, 30], strides = [1, 1]} : vector<2x120xf32> to vector<2x30xf32>
    %546 = arith.negf %545 : vector<2x30xf32>
    %547 = math.exp %546 : vector<2x30xf32>
    %cst_143 = arith.constant 1.000000e+00 : f32
    %548 = vector.broadcast %cst_143 : f32 to vector<2x30xf32>
    %549 = arith.addf %548, %547 : vector<2x30xf32>
    %550 = arith.divf %548, %549 : vector<2x30xf32>
    %551 = arith.mulf %542, %518 : vector<2x30xf32>
    %552 = arith.mulf %536, %544 : vector<2x30xf32>
    %553 = arith.addf %551, %552 : vector<2x30xf32>
    %554 = math.tanh %553 : vector<2x30xf32>
    %555 = arith.mulf %550, %554 : vector<2x30xf32>
    %cst_144 = arith.constant 0.000000e+00 : f32
    %556 = vector.broadcast %cst_144 : f32 to vector<2x30xf32>
    %557 = arith.cmpf oge, %555, %556 : vector<2x30xf32>
    %cst_145 = arith.constant 1.000000e-01 : f32
    %558 = vector.broadcast %cst_145 : f32 to vector<2x30xf32>
    %559 = arith.mulf %558, %555 : vector<2x30xf32>
    %560 = arith.select %557, %555, %559 : vector<2x30xi1>, vector<2x30xf32>
    %cst_146 = arith.constant dense<0.000000e+00> : vector<2x2xf32>
    %561 = tpu.matmul %560, %35, %cst_146 {dimension_numbers = #tpu.dot_dimension_numbers<[1], [0], [0], [1], [0, 0, 1, 1], [], []>} : vector<2x30xf32>, vector<30x2xf32>, vector<2x2xf32> -> vector<2x2xf32>
    %562 = vector.broadcast %36 : vector<1x2xf32> to vector<2x2xf32>
    %563 = arith.addf %561, %562 : vector<2x2xf32>
    %564 = tpu.concatenate %73, %108, %143, %178, %213, %248, %283, %318, %353, %388, %423, %458, %493, %528, %563 in 1 : vector<2x2xf32>, vector<2x2xf32>, vector<2x2xf32>, vector<2x2xf32>, vector<2x2xf32>, vector<2x2xf32>, vector<2x2xf32>, vector<2x2xf32>, vector<2x2xf32>, vector<2x2xf32>, vector<2x2xf32>, vector<2x2xf32>, vector<2x2xf32>, vector<2x2xf32>, vector<2x2xf32> -> vector<2x30xf32>
    %c0_147 = arith.constant 0 : index
    %c0_148 = arith.constant 0 : index
    %565 = vector.load %arg18[%c0_147, %c0_148] : memref<30x30xf32, #tpu.memory_space<vmem>>, vector<30x30xf32>
    %cst_149 = arith.constant dense<0.000000e+00> : vector<2x30xf32>
    %566 = tpu.matmul %23, %565, %cst_149 {dimension_numbers = #tpu.dot_dimension_numbers<[1], [0], [0], [1], [0, 0, 1, 1], [], []>} : vector<2x30xf32>, vector<30x30xf32>, vector<2x30xf32> -> vector<2x30xf32>
    %c0_150 = arith.constant 0 : index
    %c0_151 = arith.constant 0 : index
    %567 = vector.load %arg19[%c0_150, %c0_151] : memref<1x30xf32, #tpu.memory_space<vmem>>, vector<1x30xf32>
    %568 = vector.broadcast %567 : vector<1x30xf32> to vector<2x30xf32>
    %569 = arith.addf %566, %568 : vector<2x30xf32>
    %c0_152 = arith.constant 0 : index
    %c0_153 = arith.constant 0 : index
    %570 = vector.load %arg20[%c0_152, %c0_153] : memref<30x30xf32, #tpu.memory_space<vmem>>, vector<30x30xf32>
    %cst_154 = arith.constant dense<0.000000e+00> : vector<2x30xf32>
    %571 = tpu.matmul %564, %570, %cst_154 {dimension_numbers = #tpu.dot_dimension_numbers<[1], [0], [0], [1], [0, 0, 1, 1], [], []>} : vector<2x30xf32>, vector<30x30xf32>, vector<2x30xf32> -> vector<2x30xf32>
    %572 = arith.addf %569, %571 : vector<2x30xf32>
    %c0_155 = arith.constant 0 : index
    %c0_156 = arith.constant 0 : index
    %573 = vector.load %arg21[%c0_155, %c0_156] : memref<1x30xf32, #tpu.memory_space<vmem>>, vector<1x30xf32>
    %574 = vector.broadcast %573 : vector<1x30xf32> to vector<2x30xf32>
    %575 = arith.addf %572, %574 : vector<2x30xf32>
    %c0_157 = arith.constant 0 : index
    %c0_158 = arith.constant 0 : index
    %576 = vector.load %arg28[%c0_157, %c0_158] : memref<2x30xf32, #tpu.memory_space<vmem>>, vector<2x30xf32>
    tpu.vector_store %arg28[%c0_157, %c0_158], %575 {strides = array<i32>} : memref<2x30xf32, #tpu.memory_space<vmem>>, vector<2x30xf32>,
    %c0_159 = arith.constant 0 : index
    %c0_160 = arith.constant 0 : index
    %577 = vector.load %arg22[%c0_159, %c0_160] : memref<30x3xf32, #tpu.memory_space<vmem>>, vector<30x3xf32>
    %cst_161 = arith.constant dense<0.000000e+00> : vector<2x3xf32>
    %578 = tpu.matmul %575, %577, %cst_161 {dimension_numbers = #tpu.dot_dimension_numbers<[1], [0], [0], [1], [0, 0, 1, 1], [], []>} : vector<2x30xf32>, vector<30x3xf32>, vector<2x3xf32> -> vector<2x3xf32>
    %c0_162 = arith.constant 0 : index
    %c0_163 = arith.constant 0 : index
    %579 = vector.load %arg23[%c0_162, %c0_163] : memref<1x3xf32, #tpu.memory_space<vmem>>, vector<1x3xf32>
    %580 = vector.broadcast %579 : vector<1x3xf32> to vector<2x3xf32>
    %581 = arith.addf %578, %580 : vector<2x3xf32>
    %cst_164 = arith.constant dense<0xFF800000> : vector<2xf32>
    %582 = vector.multi_reduction <maximumf>, %581, %cst_164 [1] : vector<2x3xf32> to vector<2xf32>
    %583 = vector.shape_cast %582 : vector<2xf32> to vector<2x1xf32>
    %584 = vector.broadcast %583 : vector<2x1xf32> to vector<2x3xf32>
    %585 = arith.subf %581, %584 : vector<2x3xf32>
    %586 = math.exp %585 : vector<2x3xf32>
    %cst_165 = arith.constant dense<0.000000e+00> : vector<2xf32>
    %587 = vector.multi_reduction <add>, %586, %cst_165 [1] : vector<2x3xf32> to vector<2xf32>
    %588 = vector.shape_cast %587 : vector<2xf32> to vector<2x1xf32>
    %589 = tpu.reciprocal %588 {approx = true} : vector<2x1xf32> -> vector<2x1xf32>
    %590 = vector.broadcast %589 : vector<2x1xf32> to vector<2x3xf32>
    %591 = arith.mulf %586, %590 : vector<2x3xf32>
    %c0_166 = arith.constant 0 : index
    %c0_167 = arith.constant 0 : index
    %592 = vector.load %arg24[%c0_166, %c0_167] : memref<3x3xf32, #tpu.memory_space<vmem>>, vector<3x3xf32>
    %cst_168 = arith.constant dense<0.000000e+00> : vector<2x3xf32>
    %593 = tpu.matmul %28, %592, %cst_168 {dimension_numbers = #tpu.dot_dimension_numbers<[1], [0], [0], [1], [0, 0, 1, 1], [], []>} : vector<2x3xf32>, vector<3x3xf32>, vector<2x3xf32> -> vector<2x3xf32>
    %c0_169 = arith.constant 0 : index
    %c0_170 = arith.constant 0 : index
    %594 = vector.load %arg25[%c0_169, %c0_170] : memref<1x3xf32, #tpu.memory_space<vmem>>, vector<1x3xf32>
    %595 = vector.broadcast %594 : vector<1x3xf32> to vector<2x3xf32>
    %596 = arith.addf %593, %595 : vector<2x3xf32>
    %c0_171 = arith.constant 0 : index
    %c0_172 = arith.constant 0 : index
    %597 = vector.load %arg26[%c0_171, %c0_172] : memref<3x3xf32, #tpu.memory_space<vmem>>, vector<3x3xf32>
    %cst_173 = arith.constant dense<0.000000e+00> : vector<2x3xf32>
    %598 = tpu.matmul %591, %597, %cst_173 {dimension_numbers = #tpu.dot_dimension_numbers<[1], [0], [0], [1], [0, 0, 1, 1], [], []>} : vector<2x3xf32>, vector<3x3xf32>, vector<2x3xf32> -> vector<2x3xf32>
    %599 = arith.addf %596, %598 : vector<2x3xf32>
    %c0_174 = arith.constant 0 : index
    %c0_175 = arith.constant 0 : index
    %600 = vector.load %arg27[%c0_174, %c0_175] : memref<1x3xf32, #tpu.memory_space<vmem>>, vector<1x3xf32>
    %601 = vector.broadcast %600 : vector<1x3xf32> to vector<2x3xf32>
    %602 = arith.addf %599, %601 : vector<2x3xf32>
    %cst_176 = arith.constant dense<0xFF800000> : vector<2xf32>
    %603 = vector.multi_reduction <maximumf>, %602, %cst_176 [1] : vector<2x3xf32> to vector<2xf32>
    %604 = vector.shape_cast %603 : vector<2xf32> to vector<2x1xf32>
    %605 = vector.broadcast %604 : vector<2x1xf32> to vector<2x3xf32>
    %606 = arith.subf %602, %605 : vector<2x3xf32>
    %607 = math.exp %606 : vector<2x3xf32>
    %cst_177 = arith.constant dense<0.000000e+00> : vector<2xf32>
    %608 = vector.multi_reduction <add>, %607, %cst_177 [1] : vector<2x3xf32> to vector<2xf32>
    %609 = vector.shape_cast %608 : vector<2xf32> to vector<2x1xf32>
    %610 = tpu.reciprocal %609 {approx = true} : vector<2x1xf32> -> vector<2x1xf32>
    %611 = vector.broadcast %610 : vector<2x1xf32> to vector<2x3xf32>
    %612 = arith.mulf %607, %611 : vector<2x3xf32>
    %c0_178 = arith.constant 0 : index
    %c0_179 = arith.constant 0 : index
    %613 = vector.load %arg29[%c0_178, %c0_179] : memref<2x3xf32, #tpu.memory_space<vmem>>, vector<2x3xf32>
    tpu.vector_store %arg29[%c0_178, %c0_179], %612 {strides = array<i32>} : memref<2x3xf32, #tpu.memory_space<vmem>>, vector<2x3xf32>,
    return
  }
}

</mosaic_0001>

<llo_original>
// kernel: csp_forward.3
$region0: #{csp_forward.3}
  #allocation0 [shape = 'u32[]', space=smem, size = 0x4, offset = 0x4, fixed_abs, tag = 'smem constant byte address 0x4 - core index']
  #allocation1 [shape = 'u32[72,128]{1,0:T(1,128)}', space=vmem, size = 0x9000, scoped, tag = 'internal scratch']
  %s0 = inlined_call_operand.vmem [shape: f32[10,10,2], index: 0, kind: input, shape index: {}]
  %s1 = inlined_call_operand.vmem [shape: f32[2,64], index: 1, kind: input, shape index: {}]
  %s2 = inlined_call_operand.vmem [shape: f32[16,64], index: 2, kind: input, shape index: {}]
  %s3 = inlined_call_operand.vmem [shape: f32[1,64], index: 3, kind: input, shape index: {}]
  %s4 = inlined_call_operand.vmem [shape: f32[10,16], index: 4, kind: output, shape index: {}]
  %s5 = sld [smem:[#allocation0]]
  $region26: #{csp_forward.3} parent=0
    _
  %s7 = ssub.s32 1, %s5
  %s8 = scalar_select 0, %s7, %s5
  // Predicated region
  $region2: #{csp_forward.3} parent=0 // pred_check
    _
  $region3: #{csp_forward.3} parent=0 // pred_check_branch
    %10 = sbr.rel (0) target = $region5
  $region4: #{csp_forward.3} parent=0 // pred_region
    _
  $region5: #{csp_forward.3} parent=0 // pred_fallthru
    _
  // Predicated region
  $region6: #{csp_forward.3} parent=0 // pred_check
    _
  $region7: #{csp_forward.3} parent=0 // pred_check_branch
    %12 = sbr.rel (0) target = $region9
  $region8: #{csp_forward.3} parent=0 // pred_region
    _
  $region9: #{csp_forward.3} parent=0 // pred_fallthru
    _
  // Predicated region
  $region10: #{csp_forward.3} parent=0 // pred_check
    _
  $region11: #{csp_forward.3} parent=0 // pred_check_branch
    %14 = sbr.rel (0) target = $region13
  $region12: #{csp_forward.3} parent=0 // pred_region
    _
  $region13: #{csp_forward.3} parent=0 // pred_fallthru
    _
  // Predicated region
  $region14: #{csp_forward.3} parent=0 // pred_check
    _
  $region15: #{csp_forward.3} parent=0 // pred_check_branch
    %16 = sbr.rel (0) target = $region17
  $region16: #{csp_forward.3} parent=0 // pred_region
    _
  $region17: #{csp_forward.3} parent=0 // pred_fallthru
    _
  %v17 = vld [vmem:[%s1] sm:$0x3]
  %v18 = vld [vmem:[%s2] sm:$0xff]
  %v19 = vld [vmem:[%s2 + $0x8] sm:$0xff]
  %v20 = vld [vmem:[%s3] sm:$0x1]
  %v21 = vld [vmem:[%s0] sm:$0xff]
  %v22 = vld [vmem:[%s0 + $0x8] sm:$0x3]
  %vm23 = vcmask 130048
  %v25 = vsel %vm23, 0.0, 0
  %27 = vmatpush.msra.mxu0 0.0
  %28 = vmatpush.msra.mxu0 0.0
  %29 = vmatpush.msra.mxu0 0.0
  %30 = vmatpush.msra.mxu0 0.0
  %31 = vmatpush.msra.mxu0 0.0
  %32 = vmatpush.msra.mxu0 0.0
  %33 = vmatpush.msra.mxu0 0.0
  %34 = vmatpush.msra.mxu0 0.0
  %35 = vmatpush.msra.mxu0 0.0
  %36 = vmatpush.msra.mxu0 0.0
  %37 = vmatpush.msra.mxu0 0.0
  %38 = vmatpush.msra.mxu0 0.0
  %39 = vmatpush.msra.mxu0 0.0
  %40 = vmatpush.msra.mxu0 0.0
  %41 = vmatpush.msra.mxu0 %v19
  %42 = vmatpush.msra.mxu0 %v18
  %43 = vmatmul.f32.gmra.mxu0 %v25
  %v44 = vpop.f32.mrf.mxu0
  %v45 = vadd.f32 0.0, %v44
  %46 = vmatmul.f32.gmra.mxu0 %v25
  %v47 = vpop.f32.mrf.mxu0
  %v48 = vadd.f32 0.0, %v47
  %49 = vdwg.mxu0
  %vm50 = vcmask 15360
  %v52 = vsel %vm50, %v21, 0
  %v55 = vsel %vm50, %v22, 0
  %vm57 = vcmask 1041408
  %v59 = vsel %vm57, %v17, 0
  %61 = vmatpush.msra.mxu0 0.0
  %62 = vmatpush.msra.mxu0 0.0
  %63 = vmatpush.msra.mxu0 0.0
  %64 = vmatpush.msra.mxu0 0.0
  %65 = vmatpush.msra.mxu0 0.0
  %66 = vmatpush.msra.mxu0 0.0
  %67 = vmatpush.msra.mxu0 0.0
  %68 = vmatpush.msra.mxu0 0.0
  %69 = vmatpush.msra.mxu0 0.0
  %70 = vmatpush.msra.mxu0 0.0
  %71 = vmatpush.msra.mxu0 0.0
  %72 = vmatpush.msra.mxu0 0.0
  %73 = vmatpush.msra.mxu0 0.0
  %74 = vmatpush.msra.mxu0 0.0
  %75 = vmatpush.msra.mxu0 0.0
  %76 = vmatpush.msra.mxu0 %v59
  %77 = vmatmul.f32.gmra.mxu0 %v52
  %v78 = vpop.f32.mrf.mxu0
  %v79 = vadd.f32 %v45, %v78
  %80 = vmatmul.f32.gmra.mxu0 %v55
  %v81 = vpop.f32.mrf.mxu0
  %v82 = vadd.f32 %v48, %v81
  %83 = vdwg.mxu0
  %v85 = vperm.slane %v20, 0
  %v87 = vadd.f32 %v79, %v85
  %v88 = vadd.f32 %v82, %v85
  %v89 = vxor.u32 %v87, 2147483648
  %v90 = vxor.u32 %v88, 2147483648
  %v91 = vmul.f32 %v89, 1.442695
  %v92 = vpow.pop %v91
  %v93 = vmul.f32 %v90, 1.442695
  %v94 = vpow.pop %v93
  %v95 = vadd.f32 %v92, 1.0
  %v96 = vadd.f32 %v94, 1.0
  %v97 = vrcp.pop %v95
  %v98 = vmul.f32 %v95, %v97
  %v99 = vsub.f32 1.0, %v98
  %v100 = vmul.f32 %v97, %v99
  %v101 = vadd.f32 %v97, %v100
  %vm102 = vweird.f32 %v95
  %vm103 = vweird.f32 %v97
  %vm104 = vmor %vm102, %vm103
  %v105 = vsel %vm104, %v97, %v101
  %v106 = vand.u32 2147483647, %v95
  %vm107 = vcmp.eq.f32.partialorder %v106, 8.507059e+37
  %v108 = vand.u32 %v95, 2147483648
  %v109 = vor.u32 1.1754944e-38, %v108
  %v110 = vsel %vm107, %v109, %v105
  %v111 = vmul.f32 1.0, %v110
  %v112 = vrcp.pop %v96
  %v113 = vmul.f32 %v96, %v112
  %v114 = vsub.f32 1.0, %v113
  %v115 = vmul.f32 %v112, %v114
  %v116 = vadd.f32 %v112, %v115
  %vm117 = vweird.f32 %v96
  %vm118 = vweird.f32 %v112
  %vm119 = vmor %vm117, %vm118
  %v120 = vsel %vm119, %v112, %v116
  %v121 = vand.u32 2147483647, %v96
  %vm122 = vcmp.eq.f32.partialorder %v121, 8.507059e+37
  %v123 = vand.u32 %v96, 2147483648
  %v124 = vor.u32 1.1754944e-38, %v123
  %v125 = vsel %vm122, %v124, %v120
  %v126 = vmul.f32 1.0, %v125
  %v127 = vtanh.pop %v87
  %v128 = vtanh.pop %v88
  %v129 = vmul.f32 %v111, 0.0
  %v130 = vmul.f32 %v126, 0.0
  %133 = vrot.lane.b32.xlu0 %v127, 96
  %v134 = vpop.permute.xlu0 %133
  %135 = vrot.lane.b32.xlu0 %v128, 96
  %v136 = vpop.permute.xlu0 %135
  %v139 = vmul.f32 %v111, %v134
  %v140 = vmul.f32 %v126, %v136
  %143 = vrot.lane.b32.xlu0 %v139, 16
  %v144 = vpop.permute.xlu0 %143
  %145 = vrot.lane.b32.xlu0 %v140, 16
  %v146 = vpop.permute.xlu0 %145
  %v149 = vadd.f32 %v129, %v144
  %v150 = vadd.f32 %v130, %v146
  %v151 = vtanh.pop %v149
  %v152 = vtanh.pop %v150
  %155 = vrot.lane.b32.xlu0 %v151, 32
  %v156 = vpop.permute.xlu0 %155
  %157 = vrot.lane.b32.xlu0 %v152, 32
  %v158 = vpop.permute.xlu0 %157
  %v161 = vmul.f32 %v111, %v156
  %v162 = vmul.f32 %v126, %v158
  %s163 = scalar_lea.vmem %s0, 16
  %v164 = vld [vmem:[%s163] sm:$0xff]
  %v165 = vld [vmem:[%s163 + $0x8] sm:$0x3]
  %168 = vrot.lane.b32.xlu0 %v161, 80
  %v169 = vpop.permute.xlu0 %168
  %170 = vrot.lane.b32.xlu0 %v162, 80
  %v171 = vpop.permute.xlu0 %170
  %v172 = vsel %vm23, %v169, 0
  %v174 = vsel %vm23, %v171, 0
  %176 = vmatpush.msra.mxu0 0.0
  %177 = vmatpush.msra.mxu0 0.0
  %178 = vmatpush.msra.mxu0 0.0
  %179 = vmatpush.msra.mxu0 0.0
  %180 = vmatpush.msra.mxu0 0.0
  %181 = vmatpush.msra.mxu0 0.0
  %182 = vmatpush.msra.mxu0 0.0
  %183 = vmatpush.msra.mxu0 0.0
  %184 = vmatpush.msra.mxu0 0.0
  %185 = vmatpush.msra.mxu0 0.0
  %186 = vmatpush.msra.mxu0 0.0
  %187 = vmatpush.msra.mxu0 0.0
  %188 = vmatpush.msra.mxu0 0.0
  %189 = vmatpush.msra.mxu0 0.0
  %190 = vmatpush.msra.mxu0 %v19
  %191 = vmatpush.msra.mxu0 %v18
  %192 = vmatmul.f32.gmra.mxu0 %v172
  %v193 = vpop.f32.mrf.mxu0
  %v194 = vadd.f32 0.0, %v193
  %195 = vmatmul.f32.gmra.mxu0 %v174
  %v196 = vpop.f32.mrf.mxu0
  %v197 = vadd.f32 0.0, %v196
  %198 = vdwg.mxu0
  %v200 = vsel %vm50, %v164, 0
  %v203 = vsel %vm50, %v165, 0
  %205 = vmatpush.msra.mxu0 0.0
  %206 = vmatpush.msra.mxu0 0.0
  %207 = vmatpush.msra.mxu0 0.0
  %208 = vmatpush.msra.mxu0 0.0
  %209 = vmatpush.msra.mxu0 0.0
  %210 = vmatpush.msra.mxu0 0.0
  %211 = vmatpush.msra.mxu0 0.0
  %212 = vmatpush.msra.mxu0 0.0
  %213 = vmatpush.msra.mxu0 0.0
  %214 = vmatpush.msra.mxu0 0.0
  %215 = vmatpush.msra.mxu0 0.0
  %216 = vmatpush.msra.mxu0 0.0
  %217 = vmatpush.msra.mxu0 0.0
  %218 = vmatpush.msra.mxu0 0.0
  %219 = vmatpush.msra.mxu0 0.0
  %220 = vmatpush.msra.mxu0 %v59
  %221 = vmatmul.f32.gmra.mxu0 %v200
  %v222 = vpop.f32.mrf.mxu0
  %v223 = vadd.f32 %v194, %v222
  %224 = vmatmul.f32.gmra.mxu0 %v203
  %v225 = vpop.f32.mrf.mxu0
  %v226 = vadd.f32 %v197, %v225
  %227 = vdwg.mxu0
  %v228 = vadd.f32 %v223, %v85
  %v229 = vadd.f32 %v226, %v85
  %v230 = vxor.u32 %v228, 2147483648
  %v231 = vxor.u32 %v229, 2147483648
  %v232 = vmul.f32 %v230, 1.442695
  %v233 = vpow.pop %v232
  %v234 = vmul.f32 %v231, 1.442695
  %v235 = vpow.pop %v234
  %v236 = vadd.f32 %v233, 1.0
  %v237 = vadd.f32 %v235, 1.0
  %v238 = vrcp.pop %v236
  %v239 = vmul.f32 %v236, %v238
  %v240 = vsub.f32 1.0, %v239
  %v241 = vmul.f32 %v238, %v240
  %v242 = vadd.f32 %v238, %v241
  %vm243 = vweird.f32 %v236
  %vm244 = vweird.f32 %v238
  %vm245 = vmor %vm243, %vm244
  %v246 = vsel %vm245, %v238, %v242
  %v247 = vand.u32 2147483647, %v236
  %vm248 = vcmp.eq.f32.partialorder %v247, 8.507059e+37
  %v249 = vand.u32 %v236, 2147483648
  %v250 = vor.u32 1.1754944e-38, %v249
  %v251 = vsel %vm248, %v250, %v246
  %v252 = vmul.f32 1.0, %v251
  %v253 = vrcp.pop %v237
  %v254 = vmul.f32 %v237, %v253
  %v255 = vsub.f32 1.0, %v254
  %v256 = vmul.f32 %v253, %v255
  %v257 = vadd.f32 %v253, %v256
  %vm258 = vweird.f32 %v237
  %vm259 = vweird.f32 %v253
  %vm260 = vmor %vm258, %vm259
  %v261 = vsel %vm260, %v253, %v257
  %v262 = vand.u32 2147483647, %v237
  %vm263 = vcmp.eq.f32.partialorder %v262, 8.507059e+37
  %v264 = vand.u32 %v237, 2147483648
  %v265 = vor.u32 1.1754944e-38, %v264
  %v266 = vsel %vm263, %v265, %v261
  %v267 = vmul.f32 1.0, %v266
  %v268 = vtanh.pop %v228
  %v269 = vtanh.pop %v229
  %v270 = vmul.f32 %v252, %v149
  %v271 = vmul.f32 %v267, %v150
  %274 = vrot.lane.b32.xlu0 %v268, 96
  %v275 = vpop.permute.xlu0 %274
  %276 = vrot.lane.b32.xlu0 %v269, 96
  %v277 = vpop.permute.xlu0 %276
  %v280 = vmul.f32 %v252, %v275
  %v281 = vmul.f32 %v267, %v277
  %284 = vrot.lane.b32.xlu0 %v280, 16
  %v285 = vpop.permute.xlu0 %284
  %286 = vrot.lane.b32.xlu0 %v281, 16
  %v287 = vpop.permute.xlu0 %286
  %v290 = vadd.f32 %v270, %v285
  %v291 = vadd.f32 %v271, %v287
  %v292 = vtanh.pop %v290
  %v293 = vtanh.pop %v291
  %296 = vrot.lane.b32.xlu0 %v292, 32
  %v297 = vpop.permute.xlu0 %296
  %298 = vrot.lane.b32.xlu0 %v293, 32
  %v299 = vpop.permute.xlu0 %298
  %v302 = vmul.f32 %v252, %v297
  %v303 = vmul.f32 %v267, %v299
  %s304 = scalar_lea.vmem %s0, 32
  %v305 = vld [vmem:[%s304] sm:$0xff]
  %v306 = vld [vmem:[%s304 + $0x8] sm:$0x3]
  %309 = vrot.lane.b32.xlu0 %v302, 80
  %v310 = vpop.permute.xlu0 %309
  %311 = vrot.lane.b32.xlu0 %v303, 80
  %v312 = vpop.permute.xlu0 %311
  %v313 = vsel %vm23, %v310, 0
  %v315 = vsel %vm23, %v312, 0
  %317 = vmatpush.msra.mxu0 0.0
  %318 = vmatpush.msra.mxu0 0.0
  %319 = vmatpush.msra.mxu0 0.0
  %320 = vmatpush.msra.mxu0 0.0
  %321 = vmatpush.msra.mxu0 0.0
  %322 = vmatpush.msra.mxu0 0.0
  %323 = vmatpush.msra.mxu0 0.0
  %324 = vmatpush.msra.mxu0 0.0
  %325 = vmatpush.msra.mxu0 0.0
  %326 = vmatpush.msra.mxu0 0.0
  %327 = vmatpush.msra.mxu0 0.0
  %328 = vmatpush.msra.mxu0 0.0
  %329 = vmatpush.msra.mxu0 0.0
  %330 = vmatpush.msra.mxu0 0.0
  %331 = vmatpush.msra.mxu0 %v19
  %332 = vmatpush.msra.mxu0 %v18
  %333 = vmatmul.f32.gmra.mxu0 %v313
  %v334 = vpop.f32.mrf.mxu0
  %v335 = vadd.f32 0.0, %v334
  %336 = vmatmul.f32.gmra.mxu0 %v315
  %v337 = vpop.f32.mrf.mxu0
  %v338 = vadd.f32 0.0, %v337
  %339 = vdwg.mxu0
  %v341 = vsel %vm50, %v305, 0
  %v344 = vsel %vm50, %v306, 0
  %346 = vmatpush.msra.mxu0 0.0
  %347 = vmatpush.msra.mxu0 0.0
  %348 = vmatpush.msra.mxu0 0.0
  %349 = vmatpush.msra.mxu0 0.0
  %350 = vmatpush.msra.mxu0 0.0
  %351 = vmatpush.msra.mxu0 0.0
  %352 = vmatpush.msra.mxu0 0.0
  %353 = vmatpush.msra.mxu0 0.0
  %354 = vmatpush.msra.mxu0 0.0
  %355 = vmatpush.msra.mxu0 0.0
  %356 = vmatpush.msra.mxu0 0.0
  %357 = vmatpush.msra.mxu0 0.0
  %358 = vmatpush.msra.mxu0 0.0
  %359 = vmatpush.msra.mxu0 0.0
  %360 = vmatpush.msra.mxu0 0.0
  %361 = vmatpush.msra.mxu0 %v59
  %362 = vmatmul.f32.gmra.mxu0 %v341
  %v363 = vpop.f32.mrf.mxu0
  %v364 = vadd.f32 %v335, %v363
  %365 = vmatmul.f32.gmra.mxu0 %v344
  %v366 = vpop.f32.mrf.mxu0
  %v367 = vadd.f32 %v338, %v366
  %368 = vdwg.mxu0
  %v369 = vadd.f32 %v364, %v85
  %v370 = vadd.f32 %v367, %v85
  %v371 = vxor.u32 %v369, 2147483648
  %v372 = vxor.u32 %v370, 2147483648
  %v373 = vmul.f32 %v371, 1.442695
  %v374 = vpow.pop %v373
  %v375 = vmul.f32 %v372, 1.442695
  %v376 = vpow.pop %v375
  %v377 = vadd.f32 %v374, 1.0
  %v378 = vadd.f32 %v376, 1.0
  %v379 = vrcp.pop %v377
  %v380 = vmul.f32 %v377, %v379
  %v381 = vsub.f32 1.0, %v380
  %v382 = vmul.f32 %v379, %v381
  %v383 = vadd.f32 %v379, %v382
  %vm384 = vweird.f32 %v377
  %vm385 = vweird.f32 %v379
  %vm386 = vmor %vm384, %vm385
  %v387 = vsel %vm386, %v379, %v383
  %v388 = vand.u32 2147483647, %v377
  %vm389 = vcmp.eq.f32.partialorder %v388, 8.507059e+37
  %v390 = vand.u32 %v377, 2147483648
  %v391 = vor.u32 1.1754944e-38, %v390
  %v392 = vsel %vm389, %v391, %v387
  %v393 = vmul.f32 1.0, %v392
  %v394 = vrcp.pop %v378
  %v395 = vmul.f32 %v378, %v394
  %v396 = vsub.f32 1.0, %v395
  %v397 = vmul.f32 %v394, %v396
  %v398 = vadd.f32 %v394, %v397
  %vm399 = vweird.f32 %v378
  %vm400 = vweird.f32 %v394
  %vm401 = vmor %vm399, %vm400
  %v402 = vsel %vm401, %v394, %v398
  %v403 = vand.u32 2147483647, %v378
  %vm404 = vcmp.eq.f32.partialorder %v403, 8.507059e+37
  %v405 = vand.u32 %v378, 2147483648
  %v406 = vor.u32 1.1754944e-38, %v405
  %v407 = vsel %vm404, %v406, %v402
  %v408 = vmul.f32 1.0, %v407
  %v409 = vtanh.pop %v369
  %v410 = vtanh.pop %v370
  %v411 = vmul.f32 %v393, %v290
  %v412 = vmul.f32 %v408, %v291
  %415 = vrot.lane.b32.xlu0 %v409, 96
  %v416 = vpop.permute.xlu0 %415
  %417 = vrot.lane.b32.xlu0 %v410, 96
  %v418 = vpop.permute.xlu0 %417
  %v421 = vmul.f32 %v393, %v416
  %v422 = vmul.f32 %v408, %v418
  %425 = vrot.lane.b32.xlu0 %v421, 16
  %v426 = vpop.permute.xlu0 %425
  %427 = vrot.lane.b32.xlu0 %v422, 16
  %v428 = vpop.permute.xlu0 %427
  %v431 = vadd.f32 %v411, %v426
  %v432 = vadd.f32 %v412, %v428
  %v433 = vtanh.pop %v431
  %v434 = vtanh.pop %v432
  %437 = vrot.lane.b32.xlu0 %v433, 32
  %v438 = vpop.permute.xlu0 %437
  %439 = vrot.lane.b32.xlu0 %v434, 32
  %v440 = vpop.permute.xlu0 %439
  %v443 = vmul.f32 %v393, %v438
  %v444 = vmul.f32 %v408, %v440
  %s445 = scalar_lea.vmem %s0, 48
  %v446 = vld [vmem:[%s445] sm:$0xff]
  %v447 = vld [vmem:[%s445 + $0x8] sm:$0x3]
  %450 = vrot.lane.b32.xlu0 %v443, 80
  %v451 = vpop.permute.xlu0 %450
  %452 = vrot.lane.b32.xlu0 %v444, 80
  %v453 = vpop.permute.xlu0 %452
  %v454 = vsel %vm23, %v451, 0
  %v456 = vsel %vm23, %v453, 0
  %458 = vmatpush.msra.mxu0 0.0
  %459 = vmatpush.msra.mxu0 0.0
  %460 = vmatpush.msra.mxu0 0.0
  %461 = vmatpush.msra.mxu0 0.0
  %462 = vmatpush.msra.mxu0 0.0
  %463 = vmatpush.msra.mxu0 0.0
  %464 = vmatpush.msra.mxu0 0.0
  %465 = vmatpush.msra.mxu0 0.0
  %466 = vmatpush.msra.mxu0 0.0
  %467 = vmatpush.msra.mxu0 0.0
  %468 = vmatpush.msra.mxu0 0.0
  %469 = vmatpush.msra.mxu0 0.0
  %470 = vmatpush.msra.mxu0 0.0
  %471 = vmatpush.msra.mxu0 0.0
  %472 = vmatpush.msra.mxu0 %v19
  %473 = vmatpush.msra.mxu0 %v18
  %474 = vmatmul.f32.gmra.mxu0 %v454
  %v475 = vpop.f32.mrf.mxu0
  %v476 = vadd.f32 0.0, %v475
  %477 = vmatmul.f32.gmra.mxu0 %v456
  %v478 = vpop.f32.mrf.mxu0
  %v479 = vadd.f32 0.0, %v478
  %480 = vdwg.mxu0
  %v482 = vsel %vm50, %v446, 0
  %v485 = vsel %vm50, %v447, 0
  %487 = vmatpush.msra.mxu0 0.0
  %488 = vmatpush.msra.mxu0 0.0
  %489 = vmatpush.msra.mxu0 0.0
  %490 = vmatpush.msra.mxu0 0.0
  %491 = vmatpush.msra.mxu0 0.0
  %492 = vmatpush.msra.mxu0 0.0
  %493 = vmatpush.msra.mxu0 0.0
  %494 = vmatpush.msra.mxu0 0.0
  %495 = vmatpush.msra.mxu0 0.0
  %496 = vmatpush.msra.mxu0 0.0
  %497 = vmatpush.msra.mxu0 0.0
  %498 = vmatpush.msra.mxu0 0.0
  %499 = vmatpush.msra.mxu0 0.0
  %500 = vmatpush.msra.mxu0 0.0
  %501 = vmatpush.msra.mxu0 0.0
  %502 = vmatpush.msra.mxu0 %v59
  %503 = vmatmul.f32.gmra.mxu0 %v482
  %v504 = vpop.f32.mrf.mxu0
  %v505 = vadd.f32 %v476, %v504
  %506 = vmatmul.f32.gmra.mxu0 %v485
  %v507 = vpop.f32.mrf.mxu0
  %v508 = vadd.f32 %v479, %v507
  %509 = vdwg.mxu0
  %v510 = vadd.f32 %v505, %v85
  %v511 = vadd.f32 %v508, %v85
  %v512 = vxor.u32 %v510, 2147483648
  %v513 = vxor.u32 %v511, 2147483648
  %v514 = vmul.f32 %v512, 1.442695
  %v515 = vpow.pop %v514
  %v516 = vmul.f32 %v513, 1.442695
  %v517 = vpow.pop %v516
  %v518 = vadd.f32 %v515, 1.0
  %v519 = vadd.f32 %v517, 1.0
  %v520 = vrcp.pop %v518
  %v521 = vmul.f32 %v518, %v520
  %v522 = vsub.f32 1.0, %v521
  %v523 = vmul.f32 %v520, %v522
  %v524 = vadd.f32 %v520, %v523
  %vm525 = vweird.f32 %v518
  %vm526 = vweird.f32 %v520
  %vm527 = vmor %vm525, %vm526
  %v528 = vsel %vm527, %v520, %v524
  %v529 = vand.u32 2147483647, %v518
  %vm530 = vcmp.eq.f32.partialorder %v529, 8.507059e+37
  %v531 = vand.u32 %v518, 2147483648
  %v532 = vor.u32 1.1754944e-38, %v531
  %v533 = vsel %vm530, %v532, %v528
  %v534 = vmul.f32 1.0, %v533
  %v535 = vrcp.pop %v519
  %v536 = vmul.f32 %v519, %v535
  %v537 = vsub.f32 1.0, %v536
  %v538 = vmul.f32 %v535, %v537
  %v539 = vadd.f32 %v535, %v538
  %vm540 = vweird.f32 %v519
  %vm541 = vweird.f32 %v535
  %vm542 = vmor %vm540, %vm541
  %v543 = vsel %vm542, %v535, %v539
  %v544 = vand.u32 2147483647, %v519
  %vm545 = vcmp.eq.f32.partialorder %v544, 8.507059e+37
  %v546 = vand.u32 %v519, 2147483648
  %v547 = vor.u32 1.1754944e-38, %v546
  %v548 = vsel %vm545, %v547, %v543
  %v549 = vmul.f32 1.0, %v548
  %v550 = vtanh.pop %v510
  %v551 = vtanh.pop %v511
  %v552 = vmul.f32 %v534, %v431
  %v553 = vmul.f32 %v549, %v432
  %556 = vrot.lane.b32.xlu0 %v550, 96
  %v557 = vpop.permute.xlu0 %556
  %558 = vrot.lane.b32.xlu0 %v551, 96
  %v559 = vpop.permute.xlu0 %558
  %v562 = vmul.f32 %v534, %v557
  %v563 = vmul.f32 %v549, %v559
  %566 = vrot.lane.b32.xlu0 %v562, 16
  %v567 = vpop.permute.xlu0 %566
  %568 = vrot.lane.b32.xlu0 %v563, 16
  %v569 = vpop.permute.xlu0 %568
  %v572 = vadd.f32 %v552, %v567
  %v573 = vadd.f32 %v553, %v569
  %v574 = vtanh.pop %v572
  %v575 = vtanh.pop %v573
  %578 = vrot.lane.b32.xlu0 %v574, 32
  %v579 = vpop.permute.xlu0 %578
  %580 = vrot.lane.b32.xlu0 %v575, 32
  %v581 = vpop.permute.xlu0 %580
  %v584 = vmul.f32 %v534, %v579
  %v585 = vmul.f32 %v549, %v581
  %s586 = scalar_lea.vmem %s0, 64
  %v587 = vld [vmem:[%s586] sm:$0xff]
  %v588 = vld [vmem:[%s586 + $0x8] sm:$0x3]
  %591 = vrot.lane.b32.xlu0 %v584, 80
  %v592 = vpop.permute.xlu0 %591
  %593 = vrot.lane.b32.xlu0 %v585, 80
  %v594 = vpop.permute.xlu0 %593
  %v595 = vsel %vm23, %v592, 0
  %v597 = vsel %vm23, %v594, 0
  %599 = vmatpush.msra.mxu0 0.0
  %600 = vmatpush.msra.mxu0 0.0
  %601 = vmatpush.msra.mxu0 0.0
  %602 = vmatpush.msra.mxu0 0.0
  %603 = vmatpush.msra.mxu0 0.0
  %604 = vmatpush.msra.mxu0 0.0
  %605 = vmatpush.msra.mxu0 0.0
  %606 = vmatpush.msra.mxu0 0.0
  %607 = vmatpush.msra.mxu0 0.0
  %608 = vmatpush.msra.mxu0 0.0
  %609 = vmatpush.msra.mxu0 0.0
  %610 = vmatpush.msra.mxu0 0.0
  %611 = vmatpush.msra.mxu0 0.0
  %612 = vmatpush.msra.mxu0 0.0
  %613 = vmatpush.msra.mxu0 %v19
  %614 = vmatpush.msra.mxu0 %v18
  %615 = vmatmul.f32.gmra.mxu0 %v595
  %v616 = vpop.f32.mrf.mxu0
  %v617 = vadd.f32 0.0, %v616
  %618 = vmatmul.f32.gmra.mxu0 %v597
  %v619 = vpop.f32.mrf.mxu0
  %v620 = vadd.f32 0.0, %v619
  %621 = vdwg.mxu0
  %v623 = vsel %vm50, %v587, 0
  %v626 = vsel %vm50, %v588, 0
  %628 = vmatpush.msra.mxu0 0.0
  %629 = vmatpush.msra.mxu0 0.0
  %630 = vmatpush.msra.mxu0 0.0
  %631 = vmatpush.msra.mxu0 0.0
  %632 = vmatpush.msra.mxu0 0.0
  %633 = vmatpush.msra.mxu0 0.0
  %634 = vmatpush.msra.mxu0 0.0
  %635 = vmatpush.msra.mxu0 0.0
  %636 = vmatpush.msra.mxu0 0.0
  %637 = vmatpush.msra.mxu0 0.0
  %638 = vmatpush.msra.mxu0 0.0
  %639 = vmatpush.msra.mxu0 0.0
  %640 = vmatpush.msra.mxu0 0.0
  %641 = vmatpush.msra.mxu0 0.0
  %642 = vmatpush.msra.mxu0 0.0
  %643 = vmatpush.msra.mxu0 %v59
  %644 = vmatmul.f32.gmra.mxu0 %v623
  %v645 = vpop.f32.mrf.mxu0
  %v646 = vadd.f32 %v617, %v645
  %647 = vmatmul.f32.gmra.mxu0 %v626
  %v648 = vpop.f32.mrf.mxu0
  %v649 = vadd.f32 %v620, %v648
  %650 = vdwg.mxu0
  %v651 = vadd.f32 %v646, %v85
  %v652 = vadd.f32 %v649, %v85
  %v653 = vxor.u32 %v651, 2147483648
  %v654 = vxor.u32 %v652, 2147483648
  %v655 = vmul.f32 %v653, 1.442695
  %v656 = vpow.pop %v655
  %v657 = vmul.f32 %v654, 1.442695
  %v658 = vpow.pop %v657
  %v659 = vadd.f32 %v656, 1.0
  %v660 = vadd.f32 %v658, 1.0
  %v661 = vrcp.pop %v659
  %v662 = vmul.f32 %v659, %v661
  %v663 = vsub.f32 1.0, %v662
  %v664 = vmul.f32 %v661, %v663
  %v665 = vadd.f32 %v661, %v664
  %vm666 = vweird.f32 %v659
  %vm667 = vweird.f32 %v661
  %vm668 = vmor %vm666, %vm667
  %v669 = vsel %vm668, %v661, %v665
  %v670 = vand.u32 2147483647, %v659
  %vm671 = vcmp.eq.f32.partialorder %v670, 8.507059e+37
  %v672 = vand.u32 %v659, 2147483648
  %v673 = vor.u32 1.1754944e-38, %v672
  %v674 = vsel %vm671, %v673, %v669
  %v675 = vmul.f32 1.0, %v674
  %v676 = vrcp.pop %v660
  %v677 = vmul.f32 %v660, %v676
  %v678 = vsub.f32 1.0, %v677
  %v679 = vmul.f32 %v676, %v678
  %v680 = vadd.f32 %v676, %v679
  %vm681 = vweird.f32 %v660
  %vm682 = vweird.f32 %v676
  %vm683 = vmor %vm681, %vm682
  %v684 = vsel %vm683, %v676, %v680
  %v685 = vand.u32 2147483647, %v660
  %vm686 = vcmp.eq.f32.partialorder %v685, 8.507059e+37
  %v687 = vand.u32 %v660, 2147483648
  %v688 = vor.u32 1.1754944e-38, %v687
  %v689 = vsel %vm686, %v688, %v684
  %v690 = vmul.f32 1.0, %v689
  %v691 = vtanh.pop %v651
  %v692 = vtanh.pop %v652
  %v693 = vmul.f32 %v675, %v572
  %v694 = vmul.f32 %v690, %v573
  %697 = vrot.lane.b32.xlu0 %v691, 96
  %v698 = vpop.permute.xlu0 %697
  %699 = vrot.lane.b32.xlu0 %v692, 96
  %v700 = vpop.permute.xlu0 %699
  %v703 = vmul.f32 %v675, %v698
  %v704 = vmul.f32 %v690, %v700
  %707 = vrot.lane.b32.xlu0 %v703, 16
  %v708 = vpop.permute.xlu0 %707
  %709 = vrot.lane.b32.xlu0 %v704, 16
  %v710 = vpop.permute.xlu0 %709
  %v713 = vadd.f32 %v693, %v708
  %v714 = vadd.f32 %v694, %v710
  %v715 = vtanh.pop %v713
  %v716 = vtanh.pop %v714
  %719 = vrot.lane.b32.xlu0 %v715, 32
  %v720 = vpop.permute.xlu0 %719
  %721 = vrot.lane.b32.xlu0 %v716, 32
  %v722 = vpop.permute.xlu0 %721
  %v725 = vmul.f32 %v675, %v720
  %v726 = vmul.f32 %v690, %v722
  %s727 = scalar_lea.vmem %s0, 80
  %v728 = vld [vmem:[%s727] sm:$0xff]
  %v729 = vld [vmem:[%s727 + $0x8] sm:$0x3]
  %732 = vrot.lane.b32.xlu0 %v725, 80
  %v733 = vpop.permute.xlu0 %732
  %734 = vrot.lane.b32.xlu0 %v726, 80
  %v735 = vpop.permute.xlu0 %734
  %v736 = vsel %vm23, %v733, 0
  %v738 = vsel %vm23, %v735, 0
  %740 = vmatpush.msra.mxu0 0.0
  %741 = vmatpush.msra.mxu0 0.0
  %742 = vmatpush.msra.mxu0 0.0
  %743 = vmatpush.msra.mxu0 0.0
  %744 = vmatpush.msra.mxu0 0.0
  %745 = vmatpush.msra.mxu0 0.0
  %746 = vmatpush.msra.mxu0 0.0
  %747 = vmatpush.msra.mxu0 0.0
  %748 = vmatpush.msra.mxu0 0.0
  %749 = vmatpush.msra.mxu0 0.0
  %750 = vmatpush.msra.mxu0 0.0
  %751 = vmatpush.msra.mxu0 0.0
  %752 = vmatpush.msra.mxu0 0.0
  %753 = vmatpush.msra.mxu0 0.0
  %754 = vmatpush.msra.mxu0 %v19
  %755 = vmatpush.msra.mxu0 %v18
  %756 = vmatmul.f32.gmra.mxu0 %v736
  %v757 = vpop.f32.mrf.mxu0
  %v758 = vadd.f32 0.0, %v757
  %759 = vmatmul.f32.gmra.mxu0 %v738
  %v760 = vpop.f32.mrf.mxu0
  %v761 = vadd.f32 0.0, %v760
  %762 = vdwg.mxu0
  %v764 = vsel %vm50, %v728, 0
  %v767 = vsel %vm50, %v729, 0
  %769 = vmatpush.msra.mxu0 0.0
  %770 = vmatpush.msra.mxu0 0.0
  %771 = vmatpush.msra.mxu0 0.0
  %772 = vmatpush.msra.mxu0 0.0
  %773 = vmatpush.msra.mxu0 0.0
  %774 = vmatpush.msra.mxu0 0.0
  %775 = vmatpush.msra.mxu0 0.0
  %776 = vmatpush.msra.mxu0 0.0
  %777 = vmatpush.msra.mxu0 0.0
  %778 = vmatpush.msra.mxu0 0.0
  %779 = vmatpush.msra.mxu0 0.0
  %780 = vmatpush.msra.mxu0 0.0
  %781 = vmatpush.msra.mxu0 0.0
  %782 = vmatpush.msra.mxu0 0.0
  %783 = vmatpush.msra.mxu0 0.0
  %784 = vmatpush.msra.mxu0 %v59
  %785 = vmatmul.f32.gmra.mxu0 %v764
  %v786 = vpop.f32.mrf.mxu0
  %v787 = vadd.f32 %v758, %v786
  %788 = vmatmul.f32.gmra.mxu0 %v767
  %v789 = vpop.f32.mrf.mxu0
  %v790 = vadd.f32 %v761, %v789
  %791 = vdwg.mxu0
  %v792 = vadd.f32 %v787, %v85
  %v793 = vadd.f32 %v790, %v85
  %v794 = vxor.u32 %v792, 2147483648
  %v795 = vxor.u32 %v793, 2147483648
  %v796 = vmul.f32 %v794, 1.442695
  %v797 = vpow.pop %v796
  %v798 = vmul.f32 %v795, 1.442695
  %v799 = vpow.pop %v798
  %v800 = vadd.f32 %v797, 1.0
  %v801 = vadd.f32 %v799, 1.0
  %v802 = vrcp.pop %v800
  %v803 = vmul.f32 %v800, %v802
  %v804 = vsub.f32 1.0, %v803
  %v805 = vmul.f32 %v802, %v804
  %v806 = vadd.f32 %v802, %v805
  %vm807 = vweird.f32 %v800
  %vm808 = vweird.f32 %v802
  %vm809 = vmor %vm807, %vm808
  %v810 = vsel %vm809, %v802, %v806
  %v811 = vand.u32 2147483647, %v800
  %vm812 = vcmp.eq.f32.partialorder %v811, 8.507059e+37
  %v813 = vand.u32 %v800, 2147483648
  %v814 = vor.u32 1.1754944e-38, %v813
  %v815 = vsel %vm812, %v814, %v810
  %v816 = vmul.f32 1.0, %v815
  %v817 = vrcp.pop %v801
  %v818 = vmul.f32 %v801, %v817
  %v819 = vsub.f32 1.0, %v818
  %v820 = vmul.f32 %v817, %v819
  %v821 = vadd.f32 %v817, %v820
  %vm822 = vweird.f32 %v801
  %vm823 = vweird.f32 %v817
  %vm824 = vmor %vm822, %vm823
  %v825 = vsel %vm824, %v817, %v821
  %v826 = vand.u32 2147483647, %v801
  %vm827 = vcmp.eq.f32.partialorder %v826, 8.507059e+37
  %v828 = vand.u32 %v801, 2147483648
  %v829 = vor.u32 1.1754944e-38, %v828
  %v830 = vsel %vm827, %v829, %v825
  %v831 = vmul.f32 1.0, %v830
  %v832 = vtanh.pop %v792
  %v833 = vtanh.pop %v793
  %v834 = vmul.f32 %v816, %v713
  %v835 = vmul.f32 %v831, %v714
  %838 = vrot.lane.b32.xlu0 %v832, 96
  %v839 = vpop.permute.xlu0 %838
  %840 = vrot.lane.b32.xlu0 %v833, 96
  %v841 = vpop.permute.xlu0 %840
  %v844 = vmul.f32 %v816, %v839
  %v845 = vmul.f32 %v831, %v841
  %848 = vrot.lane.b32.xlu0 %v844, 16
  %v849 = vpop.permute.xlu0 %848
  %850 = vrot.lane.b32.xlu0 %v845, 16
  %v851 = vpop.permute.xlu0 %850
  %v854 = vadd.f32 %v834, %v849
  %v855 = vadd.f32 %v835, %v851
  %v856 = vtanh.pop %v854
  %v857 = vtanh.pop %v855
  %860 = vrot.lane.b32.xlu0 %v856, 32
  %v861 = vpop.permute.xlu0 %860
  %862 = vrot.lane.b32.xlu0 %v857, 32
  %v863 = vpop.permute.xlu0 %862
  %v866 = vmul.f32 %v816, %v861
  %v867 = vmul.f32 %v831, %v863
  %s868 = scalar_lea.vmem %s0, 96
  %v869 = vld [vmem:[%s868] sm:$0xff]
  %v870 = vld [vmem:[%s868 + $0x8] sm:$0x3]
  %873 = vrot.lane.b32.xlu0 %v866, 80
  %v874 = vpop.permute.xlu0 %873
  %875 = vrot.lane.b32.xlu0 %v867, 80
  %v876 = vpop.permute.xlu0 %875
  %v877 = vsel %vm23, %v874, 0
  %v879 = vsel %vm23, %v876, 0
  %881 = vmatpush.msra.mxu0 0.0
  %882 = vmatpush.msra.mxu0 0.0
  %883 = vmatpush.msra.mxu0 0.0
  %884 = vmatpush.msra.mxu0 0.0
  %885 = vmatpush.msra.mxu0 0.0
  %886 = vmatpush.msra.mxu0 0.0
  %887 = vmatpush.msra.mxu0 0.0
  %888 = vmatpush.msra.mxu0 0.0
  %889 = vmatpush.msra.mxu0 0.0
  %890 = vmatpush.msra.mxu0 0.0
  %891 = vmatpush.msra.mxu0 0.0
  %892 = vmatpush.msra.mxu0 0.0
  %893 = vmatpush.msra.mxu0 0.0
  %894 = vmatpush.msra.mxu0 0.0
  %895 = vmatpush.msra.mxu0 %v19
  %896 = vmatpush.msra.mxu0 %v18
  %897 = vmatmul.f32.gmra.mxu0 %v877
  %v898 = vpop.f32.mrf.mxu0
  %v899 = vadd.f32 0.0, %v898
  %900 = vmatmul.f32.gmra.mxu0 %v879
  %v901 = vpop.f32.mrf.mxu0
  %v902 = vadd.f32 0.0, %v901
  %903 = vdwg.mxu0
  %v905 = vsel %vm50, %v869, 0
  %v908 = vsel %vm50, %v870, 0
  %910 = vmatpush.msra.mxu0 0.0
  %911 = vmatpush.msra.mxu0 0.0
  %912 = vmatpush.msra.mxu0 0.0
  %913 = vmatpush.msra.mxu0 0.0
  %914 = vmatpush.msra.mxu0 0.0
  %915 = vmatpush.msra.mxu0 0.0
  %916 = vmatpush.msra.mxu0 0.0
  %917 = vmatpush.msra.mxu0 0.0
  %918 = vmatpush.msra.mxu0 0.0
  %919 = vmatpush.msra.mxu0 0.0
  %920 = vmatpush.msra.mxu0 0.0
  %921 = vmatpush.msra.mxu0 0.0
  %922 = vmatpush.msra.mxu0 0.0
  %923 = vmatpush.msra.mxu0 0.0
  %924 = vmatpush.msra.mxu0 0.0
  %925 = vmatpush.msra.mxu0 %v59
  %926 = vmatmul.f32.gmra.mxu0 %v905
  %v927 = vpop.f32.mrf.mxu0
  %v928 = vadd.f32 %v899, %v927
  %929 = vmatmul.f32.gmra.mxu0 %v908
  %v930 = vpop.f32.mrf.mxu0
  %v931 = vadd.f32 %v902, %v930
  %932 = vdwg.mxu0
  %v933 = vadd.f32 %v928, %v85
  %v934 = vadd.f32 %v931, %v85
  %v935 = vxor.u32 %v933, 2147483648
  %v936 = vxor.u32 %v934, 2147483648
  %v937 = vmul.f32 %v935, 1.442695
  %v938 = vpow.pop %v937
  %v939 = vmul.f32 %v936, 1.442695
  %v940 = vpow.pop %v939
  %v941 = vadd.f32 %v938, 1.0
  %v942 = vadd.f32 %v940, 1.0
  %v943 = vrcp.pop %v941
  %v944 = vmul.f32 %v941, %v943
  %v945 = vsub.f32 1.0, %v944
  %v946 = vmul.f32 %v943, %v945
  %v947 = vadd.f32 %v943, %v946
  %vm948 = vweird.f32 %v941
  %vm949 = vweird.f32 %v943
  %vm950 = vmor %vm948, %vm949
  %v951 = vsel %vm950, %v943, %v947
  %v952 = vand.u32 2147483647, %v941
  %vm953 = vcmp.eq.f32.partialorder %v952, 8.507059e+37
  %v954 = vand.u32 %v941, 2147483648
  %v955 = vor.u32 1.1754944e-38, %v954
  %v956 = vsel %vm953, %v955, %v951
  %v957 = vmul.f32 1.0, %v956
  %v958 = vrcp.pop %v942
  %v959 = vmul.f32 %v942, %v958
  %v960 = vsub.f32 1.0, %v959
  %v961 = vmul.f32 %v958, %v960
  %v962 = vadd.f32 %v958, %v961
  %vm963 = vweird.f32 %v942
  %vm964 = vweird.f32 %v958
  %vm965 = vmor %vm963, %vm964
  %v966 = vsel %vm965, %v958, %v962
  %v967 = vand.u32 2147483647, %v942
  %vm968 = vcmp.eq.f32.partialorder %v967, 8.507059e+37
  %v969 = vand.u32 %v942, 2147483648
  %v970 = vor.u32 1.1754944e-38, %v969
  %v971 = vsel %vm968, %v970, %v966
  %v972 = vmul.f32 1.0, %v971
  %v973 = vtanh.pop %v933
  %v974 = vtanh.pop %v934
  %v975 = vmul.f32 %v957, %v854
  %v976 = vmul.f32 %v972, %v855
  %979 = vrot.lane.b32.xlu0 %v973, 96
  %v980 = vpop.permute.xlu0 %979
  %981 = vrot.lane.b32.xlu0 %v974, 96
  %v982 = vpop.permute.xlu0 %981
  %v985 = vmul.f32 %v957, %v980
  %v986 = vmul.f32 %v972, %v982
  %989 = vrot.lane.b32.xlu0 %v985, 16
  %v990 = vpop.permute.xlu0 %989
  %991 = vrot.lane.b32.xlu0 %v986, 16
  %v992 = vpop.permute.xlu0 %991
  %v995 = vadd.f32 %v975, %v990
  %v996 = vadd.f32 %v976, %v992
  %v997 = vtanh.pop %v995
  %v998 = vtanh.pop %v996
  %1001 = vrot.lane.b32.xlu0 %v997, 32
  %v1002 = vpop.permute.xlu0 %1001
  %1003 = vrot.lane.b32.xlu0 %v998, 32
  %v1004 = vpop.permute.xlu0 %1003
  %v1007 = vmul.f32 %v957, %v1002
  %v1008 = vmul.f32 %v972, %v1004
  %s1009 = scalar_lea.vmem %s0, 112
  %v1010 = vld [vmem:[%s1009] sm:$0xff]
  %v1011 = vld [vmem:[%s1009 + $0x8] sm:$0x3]
  %1014 = vrot.lane.b32.xlu0 %v1007, 80
  %v1015 = vpop.permute.xlu0 %1014
  %1016 = vrot.lane.b32.xlu0 %v1008, 80
  %v1017 = vpop.permute.xlu0 %1016
  %v1018 = vsel %vm23, %v1015, 0
  %v1020 = vsel %vm23, %v1017, 0
  %1022 = vmatpush.msra.mxu0 0.0
  %1023 = vmatpush.msra.mxu0 0.0
  %1024 = vmatpush.msra.mxu0 0.0
  %1025 = vmatpush.msra.mxu0 0.0
  %1026 = vmatpush.msra.mxu0 0.0
  %1027 = vmatpush.msra.mxu0 0.0
  %1028 = vmatpush.msra.mxu0 0.0
  %1029 = vmatpush.msra.mxu0 0.0
  %1030 = vmatpush.msra.mxu0 0.0
  %1031 = vmatpush.msra.mxu0 0.0
  %1032 = vmatpush.msra.mxu0 0.0
  %1033 = vmatpush.msra.mxu0 0.0
  %1034 = vmatpush.msra.mxu0 0.0
  %1035 = vmatpush.msra.mxu0 0.0
  %1036 = vmatpush.msra.mxu0 %v19
  %1037 = vmatpush.msra.mxu0 %v18
  %1038 = vmatmul.f32.gmra.mxu0 %v1018
  %v1039 = vpop.f32.mrf.mxu0
  %v1040 = vadd.f32 0.0, %v1039
  %1041 = vmatmul.f32.gmra.mxu0 %v1020
  %v1042 = vpop.f32.mrf.mxu0
  %v1043 = vadd.f32 0.0, %v1042
  %1044 = vdwg.mxu0
  %v1046 = vsel %vm50, %v1010, 0
  %v1049 = vsel %vm50, %v1011, 0
  %1051 = vmatpush.msra.mxu0 0.0
  %1052 = vmatpush.msra.mxu0 0.0
  %1053 = vmatpush.msra.mxu0 0.0
  %1054 = vmatpush.msra.mxu0 0.0
  %1055 = vmatpush.msra.mxu0 0.0
  %1056 = vmatpush.msra.mxu0 0.0
  %1057 = vmatpush.msra.mxu0 0.0
  %1058 = vmatpush.msra.mxu0 0.0
  %1059 = vmatpush.msra.mxu0 0.0
  %1060 = vmatpush.msra.mxu0 0.0
  %1061 = vmatpush.msra.mxu0 0.0
  %1062 = vmatpush.msra.mxu0 0.0
  %1063 = vmatpush.msra.mxu0 0.0
  %1064 = vmatpush.msra.mxu0 0.0
  %1065 = vmatpush.msra.mxu0 0.0
  %1066 = vmatpush.msra.mxu0 %v59
  %1067 = vmatmul.f32.gmra.mxu0 %v1046
  %v1068 = vpop.f32.mrf.mxu0
  %v1069 = vadd.f32 %v1040, %v1068
  %1070 = vmatmul.f32.gmra.mxu0 %v1049
  %v1071 = vpop.f32.mrf.mxu0
  %v1072 = vadd.f32 %v1043, %v1071
  %1073 = vdwg.mxu0
  %v1074 = vadd.f32 %v1069, %v85
  %v1075 = vadd.f32 %v1072, %v85
  %v1076 = vxor.u32 %v1074, 2147483648
  %v1077 = vxor.u32 %v1075, 2147483648
  %v1078 = vmul.f32 %v1076, 1.442695
  %v1079 = vpow.pop %v1078
  %v1080 = vmul.f32 %v1077, 1.442695
  %v1081 = vpow.pop %v1080
  %v1082 = vadd.f32 %v1079, 1.0
  %v1083 = vadd.f32 %v1081, 1.0
  %v1084 = vrcp.pop %v1082
  %v1085 = vmul.f32 %v1082, %v1084
  %v1086 = vsub.f32 1.0, %v1085
  %v1087 = vmul.f32 %v1084, %v1086
  %v1088 = vadd.f32 %v1084, %v1087
  %vm1089 = vweird.f32 %v1082
  %vm1090 = vweird.f32 %v1084
  %vm1091 = vmor %vm1089, %vm1090
  %v1092 = vsel %vm1091, %v1084, %v1088
  %v1093 = vand.u32 2147483647, %v1082
  %vm1094 = vcmp.eq.f32.partialorder %v1093, 8.507059e+37
  %v1095 = vand.u32 %v1082, 2147483648
  %v1096 = vor.u32 1.1754944e-38, %v1095
  %v1097 = vsel %vm1094, %v1096, %v1092
  %v1098 = vmul.f32 1.0, %v1097
  %v1099 = vrcp.pop %v1083
  %v1100 = vmul.f32 %v1083, %v1099
  %v1101 = vsub.f32 1.0, %v1100
  %v1102 = vmul.f32 %v1099, %v1101
  %v1103 = vadd.f32 %v1099, %v1102
  %vm1104 = vweird.f32 %v1083
  %vm1105 = vweird.f32 %v1099
  %vm1106 = vmor %vm1104, %vm1105
  %v1107 = vsel %vm1106, %v1099, %v1103
  %v1108 = vand.u32 2147483647, %v1083
  %vm1109 = vcmp.eq.f32.partialorder %v1108, 8.507059e+37
  %v1110 = vand.u32 %v1083, 2147483648
  %v1111 = vor.u32 1.1754944e-38, %v1110
  %v1112 = vsel %vm1109, %v1111, %v1107
  %v1113 = vmul.f32 1.0, %v1112
  %v1114 = vtanh.pop %v1074
  %v1115 = vtanh.pop %v1075
  %v1116 = vmul.f32 %v1098, %v995
  %v1117 = vmul.f32 %v1113, %v996
  %1120 = vrot.lane.b32.xlu0 %v1114, 96
  %v1121 = vpop.permute.xlu0 %1120
  %1122 = vrot.lane.b32.xlu0 %v1115, 96
  %v1123 = vpop.permute.xlu0 %1122
  %v1126 = vmul.f32 %v1098, %v1121
  %v1127 = vmul.f32 %v1113, %v1123
  %1130 = vrot.lane.b32.xlu0 %v1126, 16
  %v1131 = vpop.permute.xlu0 %1130
  %1132 = vrot.lane.b32.xlu0 %v1127, 16
  %v1133 = vpop.permute.xlu0 %1132
  %v1136 = vadd.f32 %v1116, %v1131
  %v1137 = vadd.f32 %v1117, %v1133
  %v1138 = vtanh.pop %v1136
  %v1139 = vtanh.pop %v1137
  %1142 = vrot.lane.b32.xlu0 %v1138, 32
  %v1143 = vpop.permute.xlu0 %1142
  %1144 = vrot.lane.b32.xlu0 %v1139, 32
  %v1145 = vpop.permute.xlu0 %1144
  %v1148 = vmul.f32 %v1098, %v1143
  %v1149 = vmul.f32 %v1113, %v1145
  %s1150 = scalar_lea.vmem %s0, 128
  %v1151 = vld [vmem:[%s1150] sm:$0xff]
  %v1152 = vld [vmem:[%s1150 + $0x8] sm:$0x3]
  %1155 = vrot.lane.b32.xlu0 %v1148, 80
  %v1156 = vpop.permute.xlu0 %1155
  %1157 = vrot.lane.b32.xlu0 %v1149, 80
  %v1158 = vpop.permute.xlu0 %1157
  %v1159 = vsel %vm23, %v1156, 0
  %v1161 = vsel %vm23, %v1158, 0
  %1163 = vmatpush.msra.mxu0 0.0
  %1164 = vmatpush.msra.mxu0 0.0
  %1165 = vmatpush.msra.mxu0 0.0
  %1166 = vmatpush.msra.mxu0 0.0
  %1167 = vmatpush.msra.mxu0 0.0
  %1168 = vmatpush.msra.mxu0 0.0
  %1169 = vmatpush.msra.mxu0 0.0
  %1170 = vmatpush.msra.mxu0 0.0
  %1171 = vmatpush.msra.mxu0 0.0
  %1172 = vmatpush.msra.mxu0 0.0
  %1173 = vmatpush.msra.mxu0 0.0
  %1174 = vmatpush.msra.mxu0 0.0
  %1175 = vmatpush.msra.mxu0 0.0
  %1176 = vmatpush.msra.mxu0 0.0
  %1177 = vmatpush.msra.mxu0 %v19
  %1178 = vmatpush.msra.mxu0 %v18
  %1179 = vmatmul.f32.gmra.mxu0 %v1159
  %v1180 = vpop.f32.mrf.mxu0
  %v1181 = vadd.f32 0.0, %v1180
  %1182 = vmatmul.f32.gmra.mxu0 %v1161
  %v1183 = vpop.f32.mrf.mxu0
  %v1184 = vadd.f32 0.0, %v1183
  %1185 = vdwg.mxu0
  %v1187 = vsel %vm50, %v1151, 0
  %v1190 = vsel %vm50, %v1152, 0
  %1192 = vmatpush.msra.mxu0 0.0
  %1193 = vmatpush.msra.mxu0 0.0
  %1194 = vmatpush.msra.mxu0 0.0
  %1195 = vmatpush.msra.mxu0 0.0
  %1196 = vmatpush.msra.mxu0 0.0
  %1197 = vmatpush.msra.mxu0 0.0
  %1198 = vmatpush.msra.mxu0 0.0
  %1199 = vmatpush.msra.mxu0 0.0
  %1200 = vmatpush.msra.mxu0 0.0
  %1201 = vmatpush.msra.mxu0 0.0
  %1202 = vmatpush.msra.mxu0 0.0
  %1203 = vmatpush.msra.mxu0 0.0
  %1204 = vmatpush.msra.mxu0 0.0
  %1205 = vmatpush.msra.mxu0 0.0
  %1206 = vmatpush.msra.mxu0 0.0
  %1207 = vmatpush.msra.mxu0 %v59
  %1208 = vmatmul.f32.gmra.mxu0 %v1187
  %v1209 = vpop.f32.mrf.mxu0
  %v1210 = vadd.f32 %v1181, %v1209
  %1211 = vmatmul.f32.gmra.mxu0 %v1190
  %v1212 = vpop.f32.mrf.mxu0
  %v1213 = vadd.f32 %v1184, %v1212
  %1214 = vdwg.mxu0
  %v1215 = vadd.f32 %v1210, %v85
  %v1216 = vadd.f32 %v1213, %v85
  %v1217 = vxor.u32 %v1215, 2147483648
  %v1218 = vxor.u32 %v1216, 2147483648
  %v1219 = vmul.f32 %v1217, 1.442695
  %v1220 = vpow.pop %v1219
  %v1221 = vmul.f32 %v1218, 1.442695
  %v1222 = vpow.pop %v1221
  %v1223 = vadd.f32 %v1220, 1.0
  %v1224 = vadd.f32 %v1222, 1.0
  %v1225 = vrcp.pop %v1223
  %v1226 = vmul.f32 %v1223, %v1225
  %v1227 = vsub.f32 1.0, %v1226
  %v1228 = vmul.f32 %v1225, %v1227
  %v1229 = vadd.f32 %v1225, %v1228
  %vm1230 = vweird.f32 %v1223
  %vm1231 = vweird.f32 %v1225
  %vm1232 = vmor %vm1230, %vm1231
  %v1233 = vsel %vm1232, %v1225, %v1229
  %v1234 = vand.u32 2147483647, %v1223
  %vm1235 = vcmp.eq.f32.partialorder %v1234, 8.507059e+37
  %v1236 = vand.u32 %v1223, 2147483648
  %v1237 = vor.u32 1.1754944e-38, %v1236
  %v1238 = vsel %vm1235, %v1237, %v1233
  %v1239 = vmul.f32 1.0, %v1238
  %v1240 = vrcp.pop %v1224
  %v1241 = vmul.f32 %v1224, %v1240
  %v1242 = vsub.f32 1.0, %v1241
  %v1243 = vmul.f32 %v1240, %v1242
  %v1244 = vadd.f32 %v1240, %v1243
  %vm1245 = vweird.f32 %v1224
  %vm1246 = vweird.f32 %v1240
  %vm1247 = vmor %vm1245, %vm1246
  %v1248 = vsel %vm1247, %v1240, %v1244
  %v1249 = vand.u32 2147483647, %v1224
  %vm1250 = vcmp.eq.f32.partialorder %v1249, 8.507059e+37
  %v1251 = vand.u32 %v1224, 2147483648
  %v1252 = vor.u32 1.1754944e-38, %v1251
  %v1253 = vsel %vm1250, %v1252, %v1248
  %v1254 = vmul.f32 1.0, %v1253
  %v1255 = vtanh.pop %v1215
  %v1256 = vtanh.pop %v1216
  %v1257 = vmul.f32 %v1239, %v1136
  %v1258 = vmul.f32 %v1254, %v1137
  %1261 = vrot.lane.b32.xlu0 %v1255, 96
  %v1262 = vpop.permute.xlu0 %1261
  %1263 = vrot.lane.b32.xlu0 %v1256, 96
  %v1264 = vpop.permute.xlu0 %1263
  %v1267 = vmul.f32 %v1239, %v1262
  %v1268 = vmul.f32 %v1254, %v1264
  %1271 = vrot.lane.b32.xlu0 %v1267, 16
  %v1272 = vpop.permute.xlu0 %1271
  %1273 = vrot.lane.b32.xlu0 %v1268, 16
  %v1274 = vpop.permute.xlu0 %1273
  %v1277 = vadd.f32 %v1257, %v1272
  %v1278 = vadd.f32 %v1258, %v1274
  %v1279 = vtanh.pop %v1277
  %v1280 = vtanh.pop %v1278
  %1283 = vrot.lane.b32.xlu0 %v1279, 32
  %v1284 = vpop.permute.xlu0 %1283
  %1285 = vrot.lane.b32.xlu0 %v1280, 32
  %v1286 = vpop.permute.xlu0 %1285
  %v1289 = vmul.f32 %v1239, %v1284
  %v1290 = vmul.f32 %v1254, %v1286
  %s1291 = scalar_lea.vmem %s0, 144
  %v1292 = vld [vmem:[%s1291] sm:$0xff]
  %v1293 = vld [vmem:[%s1291 + $0x8] sm:$0x3]
  %1296 = vrot.lane.b32.xlu0 %v1289, 80
  %v1297 = vpop.permute.xlu0 %1296
  %1298 = vrot.lane.b32.xlu0 %v1290, 80
  %v1299 = vpop.permute.xlu0 %1298
  %v1300 = vsel %vm23, %v1297, 0
  %v1302 = vsel %vm23, %v1299, 0
  %1304 = vmatpush.msra.mxu0 0.0
  %1305 = vmatpush.msra.mxu0 0.0
  %1306 = vmatpush.msra.mxu0 0.0
  %1307 = vmatpush.msra.mxu0 0.0
  %1308 = vmatpush.msra.mxu0 0.0
  %1309 = vmatpush.msra.mxu0 0.0
  %1310 = vmatpush.msra.mxu0 0.0
  %1311 = vmatpush.msra.mxu0 0.0
  %1312 = vmatpush.msra.mxu0 0.0
  %1313 = vmatpush.msra.mxu0 0.0
  %1314 = vmatpush.msra.mxu0 0.0
  %1315 = vmatpush.msra.mxu0 0.0
  %1316 = vmatpush.msra.mxu0 0.0
  %1317 = vmatpush.msra.mxu0 0.0
  %1318 = vmatpush.msra.mxu0 %v19
  %1319 = vmatpush.msra.mxu0 %v18
  %1320 = vmatmul.f32.gmra.mxu0 %v1300
  %v1321 = vpop.f32.mrf.mxu0
  %v1322 = vadd.f32 0.0, %v1321
  %1323 = vmatmul.f32.gmra.mxu0 %v1302
  %v1324 = vpop.f32.mrf.mxu0
  %v1325 = vadd.f32 0.0, %v1324
  %1326 = vdwg.mxu0
  %v1328 = vsel %vm50, %v1292, 0
  %v1331 = vsel %vm50, %v1293, 0
  %1333 = vmatpush.msra.mxu0 0.0
  %1334 = vmatpush.msra.mxu0 0.0
  %1335 = vmatpush.msra.mxu0 0.0
  %1336 = vmatpush.msra.mxu0 0.0
  %1337 = vmatpush.msra.mxu0 0.0
  %1338 = vmatpush.msra.mxu0 0.0
  %1339 = vmatpush.msra.mxu0 0.0
  %1340 = vmatpush.msra.mxu0 0.0
  %1341 = vmatpush.msra.mxu0 0.0
  %1342 = vmatpush.msra.mxu0 0.0
  %1343 = vmatpush.msra.mxu0 0.0
  %1344 = vmatpush.msra.mxu0 0.0
  %1345 = vmatpush.msra.mxu0 0.0
  %1346 = vmatpush.msra.mxu0 0.0
  %1347 = vmatpush.msra.mxu0 0.0
  %1348 = vmatpush.msra.mxu0 %v59
  %1349 = vmatmul.f32.gmra.mxu0 %v1328
  %v1350 = vpop.f32.mrf.mxu0
  %v1351 = vadd.f32 %v1322, %v1350
  %1352 = vmatmul.f32.gmra.mxu0 %v1331
  %v1353 = vpop.f32.mrf.mxu0
  %v1354 = vadd.f32 %v1325, %v1353
  %1355 = vdwg.mxu0
  %v1356 = vadd.f32 %v1351, %v85
  %v1357 = vadd.f32 %v1354, %v85
  %v1358 = vxor.u32 %v1356, 2147483648
  %v1359 = vxor.u32 %v1357, 2147483648
  %v1360 = vmul.f32 %v1358, 1.442695
  %v1361 = vpow.pop %v1360
  %v1362 = vmul.f32 %v1359, 1.442695
  %v1363 = vpow.pop %v1362
  %v1364 = vadd.f32 %v1361, 1.0
  %v1365 = vadd.f32 %v1363, 1.0
  %v1366 = vrcp.pop %v1364
  %v1367 = vmul.f32 %v1364, %v1366
  %v1368 = vsub.f32 1.0, %v1367
  %v1369 = vmul.f32 %v1366, %v1368
  %v1370 = vadd.f32 %v1366, %v1369
  %vm1371 = vweird.f32 %v1364
  %vm1372 = vweird.f32 %v1366
  %vm1373 = vmor %vm1371, %vm1372
  %v1374 = vsel %vm1373, %v1366, %v1370
  %v1375 = vand.u32 2147483647, %v1364
  %vm1376 = vcmp.eq.f32.partialorder %v1375, 8.507059e+37
  %v1377 = vand.u32 %v1364, 2147483648
  %v1378 = vor.u32 1.1754944e-38, %v1377
  %v1379 = vsel %vm1376, %v1378, %v1374
  %v1380 = vmul.f32 1.0, %v1379
  %v1381 = vrcp.pop %v1365
  %v1382 = vmul.f32 %v1365, %v1381
  %v1383 = vsub.f32 1.0, %v1382
  %v1384 = vmul.f32 %v1381, %v1383
  %v1385 = vadd.f32 %v1381, %v1384
  %vm1386 = vweird.f32 %v1365
  %vm1387 = vweird.f32 %v1381
  %vm1388 = vmor %vm1386, %vm1387
  %v1389 = vsel %vm1388, %v1381, %v1385
  %v1390 = vand.u32 2147483647, %v1365
  %vm1391 = vcmp.eq.f32.partialorder %v1390, 8.507059e+37
  %v1392 = vand.u32 %v1365, 2147483648
  %v1393 = vor.u32 1.1754944e-38, %v1392
  %v1394 = vsel %vm1391, %v1393, %v1389
  %v1395 = vmul.f32 1.0, %v1394
  %v1396 = vtanh.pop %v1356
  %v1397 = vtanh.pop %v1357
  %v1398 = vmul.f32 %v1380, %v1277
  %v1399 = vmul.f32 %v1395, %v1278
  %1402 = vrot.lane.b32.xlu0 %v1396, 96
  %v1403 = vpop.permute.xlu0 %1402
  %1404 = vrot.lane.b32.xlu0 %v1397, 96
  %v1405 = vpop.permute.xlu0 %1404
  %v1408 = vmul.f32 %v1380, %v1403
  %v1409 = vmul.f32 %v1395, %v1405
  %1412 = vrot.lane.b32.xlu0 %v1408, 16
  %v1413 = vpop.permute.xlu0 %1412
  %1414 = vrot.lane.b32.xlu0 %v1409, 16
  %v1415 = vpop.permute.xlu0 %1414
  %v1418 = vadd.f32 %v1398, %v1413
  %v1419 = vadd.f32 %v1399, %v1415
  %v1420 = vtanh.pop %v1418
  %v1421 = vtanh.pop %v1419
  %1424 = vrot.lane.b32.xlu0 %v1420, 32
  %v1425 = vpop.permute.xlu0 %1424
  %1426 = vrot.lane.b32.xlu0 %v1421, 32
  %v1427 = vpop.permute.xlu0 %1426
  %v1430 = vmul.f32 %v1380, %v1425
  %v1431 = vmul.f32 %v1395, %v1427
  %vm1432 = vcmp.ge.f32.partialorder %v1430, 0.0
  %vm1433 = vcmp.ge.f32.partialorder %v1431, 0.0
  %v1434 = vmul.f32 %v1430, 0.1
  %v1435 = vmul.f32 %v1431, 0.1
  %v1436 = vsel %vm1432, %v1430, %v1434
  %v1437 = vsel %vm1433, %v1431, %v1435
  %1440 = vrot.lane.b32.xlu0 %v1436, 80
  %v1441 = vpop.permute.xlu0 %1440
  %1442 = vrot.lane.b32.xlu0 %v1437, 80
  %v1443 = vpop.permute.xlu0 %1442
  %1446 = vst.msk [vmem:[%s4] sm:$0xff] %vm23, %v1441
  %vm1447 = vcmask 123904
  %1448 = vst.msk [vmem:[%s4 + $0x8] sm:$0x3] %vm1447, %v1443
  // Predicated region
  $region18: #{csp_forward.3} parent=0 // pred_check
    _
  $region19: #{csp_forward.3} parent=0 // pred_check_branch
    %1450 = sbr.rel (0) target = $region21
  $region20: #{csp_forward.3} parent=0 // pred_region
    _
  $region21: #{csp_forward.3} parent=0 // pred_fallthru
    _
  // Predicated region
  $region22: #{csp_forward.3} parent=0 // pred_check
    _
  $region23: #{csp_forward.3} parent=0 // pred_check_branch
    %1452 = sbr.rel (0) target = $region25
  $region24: #{csp_forward.3} parent=0 // pred_region
    _
  $region25: #{csp_forward.3} parent=0 // pred_fallthru
    _

// kernel: csp_forward.4
$region0: #{csp_forward.4}
  #allocation0 [shape = 'u32[]', space=smem, size = 0x4, offset = 0x4, fixed_abs, tag = 'smem constant byte address 0x4 - core index']
  #allocation1 [shape = 'u32[72,128]{1,0:T(1,128)}', space=vmem, size = 0x9000, scoped, tag = 'internal scratch']
  %s0 = inlined_call_operand.vmem [shape: f32[286,48], index: 0, kind: input, shape index: {}]
  %s1 = inlined_call_operand.vmem [shape: f32[448,9], index: 1, kind: input, shape index: {}]
  %s2 = inlined_call_operand.vmem [shape: f32[3,48,64], index: 2, kind: input, shape index: {}]
  %s3 = inlined_call_operand.vmem [shape: f32[1,64], index: 3, kind: input, shape index: {}]
  %s4 = inlined_call_operand.vmem [shape: f32[3,64,16], index: 4, kind: input, shape index: {}]
  %s5 = inlined_call_operand.vmem [shape: f32[1,16], index: 5, kind: input, shape index: {}]
  %s6 = inlined_call_operand.vmem [shape: f32[3,9,8], index: 6, kind: input, shape index: {}]
  %s7 = inlined_call_operand.vmem [shape: f32[1,8], index: 7, kind: input, shape index: {}]
  %s8 = inlined_call_operand.vmem [shape: f32[88,16], index: 8, kind: output, shape index: {0}]
  %s9 = inlined_call_operand.vmem [shape: f32[2,8], index: 9, kind: output, shape index: {1}]
  %10 = xla_tuple %s8, %s9
  %s11 = sld [smem:[#allocation0]]
  $region50: #{csp_forward.4} parent=0
    _
  %s13 = ssub.s32 1, %s11
  %s14 = scalar_select 0, %s13, %s11
  // Predicated region
  $region2: #{csp_forward.4} parent=0 // pred_check
    _
  $region3: #{csp_forward.4} parent=0 // pred_check_branch
    %16 = sbr.rel (0) target = $region5
  $region4: #{csp_forward.4} parent=0 // pred_region
    _
  $region5: #{csp_forward.4} parent=0 // pred_fallthru
    _
  // Predicated region
  $region6: #{csp_forward.4} parent=0 // pred_check
    _
  $region7: #{csp_forward.4} parent=0 // pred_check_branch
    %18 = sbr.rel (0) target = $region9
  $region8: #{csp_forward.4} parent=0 // pred_region
    _
  $region9: #{csp_forward.4} parent=0 // pred_fallthru
    _
  // Predicated region
  $region10: #{csp_forward.4} parent=0 // pred_check
    _
  $region11: #{csp_forward.4} parent=0 // pred_check_branch
    %20 = sbr.rel (0) target = $region13
  $region12: #{csp_forward.4} parent=0 // pred_region
    _
  $region13: #{csp_forward.4} parent=0 // pred_fallthru
    _
  // Predicated region
  $region14: #{csp_forward.4} parent=0 // pred_check
    _
  $region15: #{csp_forward.4} parent=0 // pred_check_branch
    %22 = sbr.rel (0) target = $region17
  $region16: #{csp_forward.4} parent=0 // pred_region
    _
  $region17: #{csp_forward.4} parent=0 // pred_fallthru
    _
  // Predicated region
  $region18: #{csp_forward.4} parent=0 // pred_check
    _
  $region19: #{csp_forward.4} parent=0 // pred_check_branch
    %24 = sbr.rel (0) target = $region21
  $region20: #{csp_forward.4} parent=0 // pred_region
    _
  $region21: #{csp_forward.4} parent=0 // pred_fallthru
    _
  // Predicated region
  $region22: #{csp_forward.4} parent=0 // pred_check
    _
  $region23: #{csp_forward.4} parent=0 // pred_check_branch
    %26 = sbr.rel (0) target = $region25
  $region24: #{csp_forward.4} parent=0 // pred_region
    _
  $region25: #{csp_forward.4} parent=0 // pred_fallthru
    _
  // Predicated region
  $region26: #{csp_forward.4} parent=0 // pred_check
    _
  $region27: #{csp_forward.4} parent=0 // pred_check_branch
    %28 = sbr.rel (0) target = $region29
  $region28: #{csp_forward.4} parent=0 // pred_region
    _
  $region29: #{csp_forward.4} parent=0 // pred_fallthru
    _
  // Predicated region
  $region30: #{csp_forward.4} parent=0 // pred_check
    _
  $region31: #{csp_forward.4} parent=0 // pred_check_branch
    %30 = sbr.rel (0) target = $region33
  $region32: #{csp_forward.4} parent=0 // pred_region
    _
  $region33: #{csp_forward.4} parent=0 // pred_fallthru
    _
  %v31 = vld [vmem:[%s3] sm:$0x1]
  %v32 = vld [vmem:[%s5] sm:$0x1]
  %v33 = vld [vmem:[%s7] sm:$0x1]
  %v34 = vld [vmem:[%s0] sm:$0xff]
  %v35 = vld [vmem:[%s0 + $0x8] sm:$0xff]
  %v36 = vld [vmem:[%s0 + $0x10] sm:$0xff]
  %v37 = vld [vmem:[%s0 + $0x18] sm:$0xff]
  %v38 = vld [vmem:[%s0 + $0x20] sm:$0xff]
  %v39 = vld [vmem:[%s0 + $0x28] sm:$0xff]
  %v40 = vld [vmem:[%s0 + $0x30] sm:$0xff]
  %v41 = vld [vmem:[%s0 + $0x38] sm:$0xff]
  %v42 = vld [vmem:[%s0 + $0x40] sm:$0xff]
  %v43 = vld [vmem:[%s0 + $0x48] sm:$0xff]
  %v44 = vld [vmem:[%s0 + $0x50] sm:$0xff]
  %v45 = vld [vmem:[%s0 + $0x58] sm:$0xff]
  %v46 = vld [vmem:[%s0 + $0x60] sm:$0xff]
  %v47 = vld [vmem:[%s0 + $0x68] sm:$0xff]
  %v48 = vld [vmem:[%s0 + $0x70] sm:$0xff]
  %v49 = vld [vmem:[%s0 + $0x78] sm:$0x1]
  %v50 = vld [vmem:[%s2] sm:$0xff]
  %v51 = vld [vmem:[%s2 + $0x8] sm:$0xff]
  %v52 = vld [vmem:[%s2 + $0x10] sm:$0xff]
  %v53 = vld [vmem:[%s2 + $0x18] sm:$0xff]
  %v54 = vld [vmem:[%s2 + $0x20] sm:$0xff]
  %v55 = vld [vmem:[%s2 + $0x28] sm:$0xff]
  %v56 = vld [vmem:[%s0 + $0xb] sm:$0xff]
  %v57 = vld [vmem:[%s0 + $0x13] sm:$0xff]
  %v58 = vld [vmem:[%s0 + $0x1b] sm:$0xff]
  %v59 = vld [vmem:[%s0 + $0x23] sm:$0xff]
  %v60 = vld [vmem:[%s0 + $0x2b] sm:$0xff]
  %v61 = vld [vmem:[%s0 + $0x33] sm:$0xff]
  %v62 = vld [vmem:[%s0 + $0x3b] sm:$0xff]
  %v63 = vld [vmem:[%s0 + $0x43] sm:$0xff]
  %v64 = vld [vmem:[%s0 + $0x4b] sm:$0xff]
  %v65 = vld [vmem:[%s0 + $0x53] sm:$0xff]
  %v66 = vld [vmem:[%s0 + $0x5b] sm:$0xff]
  %v67 = vld [vmem:[%s0 + $0x63] sm:$0xff]
  %v68 = vld [vmem:[%s0 + $0x6b] sm:$0xff]
  %v69 = vld [vmem:[%s0 + $0x73] sm:$0xff]
  %v70 = vld [vmem:[%s0 + $0x7b] sm:$0xff]
  %v71 = vld [vmem:[%s0 + $0x83] sm:$0x1]
  %s72 = scalar_lea.vmem %s2, 48
  %v73 = vld [vmem:[%s72] sm:$0xff]
  %v74 = vld [vmem:[%s72 + $0x8] sm:$0xff]
  %v75 = vld [vmem:[%s72 + $0x10] sm:$0xff]
  %v76 = vld [vmem:[%s72 + $0x18] sm:$0xff]
  %v77 = vld [vmem:[%s72 + $0x20] sm:$0xff]
  %v78 = vld [vmem:[%s72 + $0x28] sm:$0xff]
  %vm79 = vcmask 392192
  %v81 = vsel %vm79, %v56, 0
  %v84 = vsel %vm79, %v57, 0
  %v87 = vsel %vm79, %v58, 0
  %v90 = vsel %vm79, %v59, 0
  %v93 = vsel %vm79, %v60, 0
  %v96 = vsel %vm79, %v61, 0
  %v99 = vsel %vm79, %v62, 0
  %v102 = vsel %vm79, %v63, 0
  %v105 = vsel %vm79, %v64, 0
  %v108 = vsel %vm79, %v65, 0
  %v111 = vsel %vm79, %v66, 0
  %v114 = vsel %vm79, %v67, 0
  %v117 = vsel %vm79, %v68, 0
  %v120 = vsel %vm79, %v69, 0
  %v123 = vsel %vm79, %v70, 0
  %v126 = vsel %vm79, %v71, 0
  %128 = vmatpush.msra.mxu0 0.0
  %129 = vmatpush.msra.mxu0 0.0
  %130 = vmatpush.msra.mxu0 0.0
  %131 = vmatpush.msra.mxu0 0.0
  %132 = vmatpush.msra.mxu0 0.0
  %133 = vmatpush.msra.mxu0 0.0
  %134 = vmatpush.msra.mxu0 0.0
  %135 = vmatpush.msra.mxu0 0.0
  %136 = vmatpush.msra.mxu0 0.0
  %137 = vmatpush.msra.mxu0 0.0
  %138 = vmatpush.msra.mxu0 %v78
  %139 = vmatpush.msra.mxu0 %v77
  %140 = vmatpush.msra.mxu0 %v76
  %141 = vmatpush.msra.mxu0 %v75
  %142 = vmatpush.msra.mxu0 %v74
  %143 = vmatpush.msra.mxu0 %v73
  %144 = vmatmul.f32.gmra.mxu0 %v81
  %v145 = vpop.f32.mrf.mxu0
  %v146 = vadd.f32 0.0, %v145
  %147 = vmatmul.f32.gmra.mxu0 %v84
  %v148 = vpop.f32.mrf.mxu0
  %v149 = vadd.f32 0.0, %v148
  %150 = vmatmul.f32.gmra.mxu0 %v87
  %v151 = vpop.f32.mrf.mxu0
  %v152 = vadd.f32 0.0, %v151
  %153 = vmatmul.f32.gmra.mxu0 %v90
  %v154 = vpop.f32.mrf.mxu0
  %v155 = vadd.f32 0.0, %v154
  %156 = vmatmul.f32.gmra.mxu0 %v93
  %v157 = vpop.f32.mrf.mxu0
  %v158 = vadd.f32 0.0, %v157
  %159 = vmatmul.f32.gmra.mxu0 %v96
  %v160 = vpop.f32.mrf.mxu0
  %v161 = vadd.f32 0.0, %v160
  %162 = vmatmul.f32.gmra.mxu0 %v99
  %v163 = vpop.f32.mrf.mxu0
  %v164 = vadd.f32 0.0, %v163
  %165 = vmatmul.f32.gmra.mxu0 %v102
  %v166 = vpop.f32.mrf.mxu0
  %v167 = vadd.f32 0.0, %v166
  %168 = vmatmul.f32.gmra.mxu0 %v105
  %v169 = vpop.f32.mrf.mxu0
  %v170 = vadd.f32 0.0, %v169
  %171 = vmatmul.f32.gmra.mxu0 %v108
  %v172 = vpop.f32.mrf.mxu0
  %v173 = vadd.f32 0.0, %v172
  %174 = vmatmul.f32.gmra.mxu0 %v111
  %v175 = vpop.f32.mrf.mxu0
  %v176 = vadd.f32 0.0, %v175
  %177 = vmatmul.f32.gmra.mxu0 %v114
  %v178 = vpop.f32.mrf.mxu0
  %v179 = vadd.f32 0.0, %v178
  %180 = vmatmul.f32.gmra.mxu0 %v117
  %v181 = vpop.f32.mrf.mxu0
  %v182 = vadd.f32 0.0, %v181
  %183 = vmatmul.f32.gmra.mxu0 %v120
  %v184 = vpop.f32.mrf.mxu0
  %v185 = vadd.f32 0.0, %v184
  %186 = vmatmul.f32.gmra.mxu0 %v123
  %v187 = vpop.f32.mrf.mxu0
  %v188 = vadd.f32 0.0, %v187
  %189 = vmatmul.f32.gmra.mxu0 %v126
  %v190 = vpop.f32.mrf.mxu0
  %v191 = vadd.f32 0.0, %v190
  %192 = vdwg.mxu0
  %v194 = vsel %vm79, %v34, 0
  %v197 = vsel %vm79, %v35, 0
  %v200 = vsel %vm79, %v36, 0
  %v203 = vsel %vm79, %v37, 0
  %v206 = vsel %vm79, %v38, 0
  %v209 = vsel %vm79, %v39, 0
  %v212 = vsel %vm79, %v40, 0
  %v215 = vsel %vm79, %v41, 0
  %v218 = vsel %vm79, %v42, 0
  %v221 = vsel %vm79, %v43, 0
  %v224 = vsel %vm79, %v44, 0
  %v227 = vsel %vm79, %v45, 0
  %v230 = vsel %vm79, %v46, 0
  %v233 = vsel %vm79, %v47, 0
  %v236 = vsel %vm79, %v48, 0
  %v239 = vsel %vm79, %v49, 0
  %241 = vmatpush.msra.mxu0 0.0
  %242 = vmatpush.msra.mxu0 0.0
  %243 = vmatpush.msra.mxu0 0.0
  %244 = vmatpush.msra.mxu0 0.0
  %245 = vmatpush.msra.mxu0 0.0
  %246 = vmatpush.msra.mxu0 0.0
  %247 = vmatpush.msra.mxu0 0.0
  %248 = vmatpush.msra.mxu0 0.0
  %249 = vmatpush.msra.mxu0 0.0
  %250 = vmatpush.msra.mxu0 0.0
  %251 = vmatpush.msra.mxu0 %v55
  %252 = vmatpush.msra.mxu0 %v54
  %253 = vmatpush.msra.mxu0 %v53
  %254 = vmatpush.msra.mxu0 %v52
  %255 = vmatpush.msra.mxu0 %v51
  %256 = vmatpush.msra.mxu0 %v50
  %257 = vmatmul.f32.gmra.mxu0 %v194
  %v258 = vpop.f32.mrf.mxu0
  %v259 = vadd.f32 %v146, %v258
  %260 = vmatmul.f32.gmra.mxu0 %v197
  %v261 = vpop.f32.mrf.mxu0
  %v262 = vadd.f32 %v149, %v261
  %263 = vmatmul.f32.gmra.mxu0 %v200
  %v264 = vpop.f32.mrf.mxu0
  %v265 = vadd.f32 %v152, %v264
  %266 = vmatmul.f32.gmra.mxu0 %v203
  %v267 = vpop.f32.mrf.mxu0
  %v268 = vadd.f32 %v155, %v267
  %269 = vmatmul.f32.gmra.mxu0 %v206
  %v270 = vpop.f32.mrf.mxu0
  %v271 = vadd.f32 %v158, %v270
  %272 = vmatmul.f32.gmra.mxu0 %v209
  %v273 = vpop.f32.mrf.mxu0
  %v274 = vadd.f32 %v161, %v273
  %275 = vmatmul.f32.gmra.mxu0 %v212
  %v276 = vpop.f32.mrf.mxu0
  %v277 = vadd.f32 %v164, %v276
  %278 = vmatmul.f32.gmra.mxu0 %v215
  %v279 = vpop.f32.mrf.mxu0
  %v280 = vadd.f32 %v167, %v279
  %281 = vmatmul.f32.gmra.mxu0 %v218
  %v282 = vpop.f32.mrf.mxu0
  %v283 = vadd.f32 %v170, %v282
  %284 = vmatmul.f32.gmra.mxu0 %v221
  %v285 = vpop.f32.mrf.mxu0
  %v286 = vadd.f32 %v173, %v285
  %287 = vmatmul.f32.gmra.mxu0 %v224
  %v288 = vpop.f32.mrf.mxu0
  %v289 = vadd.f32 %v176, %v288
  %290 = vmatmul.f32.gmra.mxu0 %v227
  %v291 = vpop.f32.mrf.mxu0
  %v292 = vadd.f32 %v179, %v291
  %293 = vmatmul.f32.gmra.mxu0 %v230
  %v294 = vpop.f32.mrf.mxu0
  %v295 = vadd.f32 %v182, %v294
  %296 = vmatmul.f32.gmra.mxu0 %v233
  %v297 = vpop.f32.mrf.mxu0
  %v298 = vadd.f32 %v185, %v297
  %299 = vmatmul.f32.gmra.mxu0 %v236
  %v300 = vpop.f32.mrf.mxu0
  %v301 = vadd.f32 %v188, %v300
  %302 = vmatmul.f32.gmra.mxu0 %v239
  %v303 = vpop.f32.mrf.mxu0
  %v304 = vadd.f32 %v191, %v303
  %305 = vdwg.mxu0
  %v306 = vld [vmem:[%s0 + $0x16] sm:$0xff]
  %v307 = vld [vmem:[%s0 + $0x1e] sm:$0xff]
  %v308 = vld [vmem:[%s0 + $0x26] sm:$0xff]
  %v309 = vld [vmem:[%s0 + $0x2e] sm:$0xff]
  %v310 = vld [vmem:[%s0 + $0x36] sm:$0xff]
  %v311 = vld [vmem:[%s0 + $0x3e] sm:$0xff]
  %v312 = vld [vmem:[%s0 + $0x46] sm:$0xff]
  %v313 = vld [vmem:[%s0 + $0x4e] sm:$0xff]
  %v314 = vld [vmem:[%s0 + $0x56] sm:$0xff]
  %v315 = vld [vmem:[%s0 + $0x5e] sm:$0xff]
  %v316 = vld [vmem:[%s0 + $0x66] sm:$0xff]
  %v317 = vld [vmem:[%s0 + $0x6e] sm:$0xff]
  %v318 = vld [vmem:[%s0 + $0x76] sm:$0xff]
  %v319 = vld [vmem:[%s0 + $0x7e] sm:$0xff]
  %v320 = vld [vmem:[%s0 + $0x86] sm:$0xff]
  %v321 = vld [vmem:[%s0 + $0x8e] sm:$0x1]
  %s322 = scalar_lea.vmem %s2, 96
  %v323 = vld [vmem:[%s322] sm:$0xff]
  %v324 = vld [vmem:[%s322 + $0x8] sm:$0xff]
  %v325 = vld [vmem:[%s322 + $0x10] sm:$0xff]
  %v326 = vld [vmem:[%s322 + $0x18] sm:$0xff]
  %v327 = vld [vmem:[%s322 + $0x20] sm:$0xff]
  %v328 = vld [vmem:[%s322 + $0x28] sm:$0xff]
  %v330 = vsel %vm79, %v306, 0
  %v333 = vsel %vm79, %v307, 0
  %v336 = vsel %vm79, %v308, 0
  %v339 = vsel %vm79, %v309, 0
  %v342 = vsel %vm79, %v310, 0
  %v345 = vsel %vm79, %v311, 0
  %v348 = vsel %vm79, %v312, 0
  %v351 = vsel %vm79, %v313, 0
  %v354 = vsel %vm79, %v314, 0
  %v357 = vsel %vm79, %v315, 0
  %v360 = vsel %vm79, %v316, 0
  %v363 = vsel %vm79, %v317, 0
  %v366 = vsel %vm79, %v318, 0
  %v369 = vsel %vm79, %v319, 0
  %v372 = vsel %vm79, %v320, 0
  %v375 = vsel %vm79, %v321, 0
  %377 = vmatpush.msra.mxu0 0.0
  %378 = vmatpush.msra.mxu0 0.0
  %379 = vmatpush.msra.mxu0 0.0
  %380 = vmatpush.msra.mxu0 0.0
  %381 = vmatpush.msra.mxu0 0.0
  %382 = vmatpush.msra.mxu0 0.0
  %383 = vmatpush.msra.mxu0 0.0
  %384 = vmatpush.msra.mxu0 0.0
  %385 = vmatpush.msra.mxu0 0.0
  %386 = vmatpush.msra.mxu0 0.0
  %387 = vmatpush.msra.mxu0 %v328
  %388 = vmatpush.msra.mxu0 %v327
  %389 = vmatpush.msra.mxu0 %v326
  %390 = vmatpush.msra.mxu0 %v325
  %391 = vmatpush.msra.mxu0 %v324
  %392 = vmatpush.msra.mxu0 %v323
  %393 = vmatmul.f32.gmra.mxu0 %v330
  %v394 = vpop.f32.mrf.mxu0
  %v395 = vadd.f32 0.0, %v394
  %396 = vmatmul.f32.gmra.mxu0 %v333
  %v397 = vpop.f32.mrf.mxu0
  %v398 = vadd.f32 0.0, %v397
  %399 = vmatmul.f32.gmra.mxu0 %v336
  %v400 = vpop.f32.mrf.mxu0
  %v401 = vadd.f32 0.0, %v400
  %402 = vmatmul.f32.gmra.mxu0 %v339
  %v403 = vpop.f32.mrf.mxu0
  %v404 = vadd.f32 0.0, %v403
  %405 = vmatmul.f32.gmra.mxu0 %v342
  %v406 = vpop.f32.mrf.mxu0
  %v407 = vadd.f32 0.0, %v406
  %408 = vmatmul.f32.gmra.mxu0 %v345
  %v409 = vpop.f32.mrf.mxu0
  %v410 = vadd.f32 0.0, %v409
  %411 = vmatmul.f32.gmra.mxu0 %v348
  %v412 = vpop.f32.mrf.mxu0
  %v413 = vadd.f32 0.0, %v412
  %414 = vmatmul.f32.gmra.mxu0 %v351
  %v415 = vpop.f32.mrf.mxu0
  %v416 = vadd.f32 0.0, %v415
  %417 = vmatmul.f32.gmra.mxu0 %v354
  %v418 = vpop.f32.mrf.mxu0
  %v419 = vadd.f32 0.0, %v418
  %420 = vmatmul.f32.gmra.mxu0 %v357
  %v421 = vpop.f32.mrf.mxu0
  %v422 = vadd.f32 0.0, %v421
  %423 = vmatmul.f32.gmra.mxu0 %v360
  %v424 = vpop.f32.mrf.mxu0
  %v425 = vadd.f32 0.0, %v424
  %426 = vmatmul.f32.gmra.mxu0 %v363
  %v427 = vpop.f32.mrf.mxu0
  %v428 = vadd.f32 0.0, %v427
  %429 = vmatmul.f32.gmra.mxu0 %v366
  %v430 = vpop.f32.mrf.mxu0
  %v431 = vadd.f32 0.0, %v430
  %432 = vmatmul.f32.gmra.mxu0 %v369
  %v433 = vpop.f32.mrf.mxu0
  %v434 = vadd.f32 0.0, %v433
  %435 = vmatmul.f32.gmra.mxu0 %v372
  %v436 = vpop.f32.mrf.mxu0
  %v437 = vadd.f32 0.0, %v436
  %438 = vmatmul.f32.gmra.mxu0 %v375
  %v439 = vpop.f32.mrf.mxu0
  %v440 = vadd.f32 0.0, %v439
  %441 = vdwg.mxu0
  %v442 = vadd.f32 %v259, %v395
  %v443 = vadd.f32 %v262, %v398
  %v444 = vadd.f32 %v265, %v401
  %v445 = vadd.f32 %v268, %v404
  %v446 = vadd.f32 %v271, %v407
  %v447 = vadd.f32 %v274, %v410
  %v448 = vadd.f32 %v277, %v413
  %v449 = vadd.f32 %v280, %v416
  %v450 = vadd.f32 %v283, %v419
  %v451 = vadd.f32 %v286, %v422
  %v452 = vadd.f32 %v289, %v425
  %v453 = vadd.f32 %v292, %v428
  %v454 = vadd.f32 %v295, %v431
  %v455 = vadd.f32 %v298, %v434
  %v456 = vadd.f32 %v301, %v437
  %v457 = vadd.f32 %v304, %v440
  %v459 = vperm.slane %v31, 0
  %v461 = vadd.f32 %v442, %v459
  %v462 = vadd.f32 %v443, %v459
  %v463 = vadd.f32 %v444, %v459
  %v464 = vadd.f32 %v445, %v459
  %v465 = vadd.f32 %v446, %v459
  %v466 = vadd.f32 %v447, %v459
  %v467 = vadd.f32 %v448, %v459
  %v468 = vadd.f32 %v449, %v459
  %v469 = vadd.f32 %v450, %v459
  %v470 = vadd.f32 %v451, %v459
  %v471 = vadd.f32 %v452, %v459
  %v472 = vadd.f32 %v453, %v459
  %v473 = vadd.f32 %v454, %v459
  %v474 = vadd.f32 %v455, %v459
  %v475 = vadd.f32 %v456, %v459
  %v476 = vadd.f32 %v457, %v459
  %vm477 = vcmp.ge.f32.partialorder %v461, 0.0
  %vm478 = vcmp.ge.f32.partialorder %v462, 0.0
  %vm479 = vcmp.ge.f32.partialorder %v463, 0.0
  %vm480 = vcmp.ge.f32.partialorder %v464, 0.0
  %vm481 = vcmp.ge.f32.partialorder %v465, 0.0
  %vm482 = vcmp.ge.f32.partialorder %v466, 0.0
  %vm483 = vcmp.ge.f32.partialorder %v467, 0.0
  %vm484 = vcmp.ge.f32.partialorder %v468, 0.0
  %vm485 = vcmp.ge.f32.partialorder %v469, 0.0
  %vm486 = vcmp.ge.f32.partialorder %v470, 0.0
  %vm487 = vcmp.ge.f32.partialorder %v471, 0.0
  %vm488 = vcmp.ge.f32.partialorder %v472, 0.0
  %vm489 = vcmp.ge.f32.partialorder %v473, 0.0
  %vm490 = vcmp.ge.f32.partialorder %v474, 0.0
  %vm491 = vcmp.ge.f32.partialorder %v475, 0.0
  %vm492 = vcmp.ge.f32.partialorder %v476, 0.0
  %v493 = vmul.f32 %v461, 0.1
  %v494 = vmul.f32 %v462, 0.1
  %v495 = vmul.f32 %v463, 0.1
  %v496 = vmul.f32 %v464, 0.1
  %v497 = vmul.f32 %v465, 0.1
  %v498 = vmul.f32 %v466, 0.1
  %v499 = vmul.f32 %v467, 0.1
  %v500 = vmul.f32 %v468, 0.1
  %v501 = vmul.f32 %v469, 0.1
  %v502 = vmul.f32 %v470, 0.1
  %v503 = vmul.f32 %v471, 0.1
  %v504 = vmul.f32 %v472, 0.1
  %v505 = vmul.f32 %v473, 0.1
  %v506 = vmul.f32 %v474, 0.1
  %v507 = vmul.f32 %v475, 0.1
  %v508 = vmul.f32 %v476, 0.1
  %v509 = vsel %vm477, %v461, %v493
  %v510 = vsel %vm478, %v462, %v494
  %v511 = vsel %vm479, %v463, %v495
  %v512 = vsel %vm480, %v464, %v496
  %v513 = vsel %vm481, %v465, %v497
  %v514 = vsel %vm482, %v466, %v498
  %v515 = vsel %vm483, %v467, %v499
  %v516 = vsel %vm484, %v468, %v500
  %v517 = vsel %vm485, %v469, %v501
  %v518 = vsel %vm486, %v470, %v502
  %v519 = vsel %vm487, %v471, %v503
  %v520 = vsel %vm488, %v472, %v504
  %v521 = vsel %vm489, %v473, %v505
  %v522 = vsel %vm490, %v474, %v506
  %v523 = vsel %vm491, %v475, %v507
  %v524 = vsel %vm492, %v476, %v508
  %v525 = vld [vmem:[%s4] sm:$0xff]
  %v526 = vld [vmem:[%s4 + $0x8] sm:$0xff]
  %v527 = vld [vmem:[%s4 + $0x10] sm:$0xff]
  %v528 = vld [vmem:[%s4 + $0x18] sm:$0xff]
  %v529 = vld [vmem:[%s4 + $0x20] sm:$0xff]
  %v530 = vld [vmem:[%s4 + $0x28] sm:$0xff]
  %v531 = vld [vmem:[%s4 + $0x30] sm:$0xff]
  %v532 = vld [vmem:[%s4 + $0x38] sm:$0xff]
  %s533 = scalar_lea.vmem %s4, 64
  %v534 = vld [vmem:[%s533] sm:$0xff]
  %v535 = vld [vmem:[%s533 + $0x8] sm:$0xff]
  %v536 = vld [vmem:[%s533 + $0x10] sm:$0xff]
  %v537 = vld [vmem:[%s533 + $0x18] sm:$0xff]
  %v538 = vld [vmem:[%s533 + $0x20] sm:$0xff]
  %v539 = vld [vmem:[%s533 + $0x28] sm:$0xff]
  %v540 = vld [vmem:[%s533 + $0x30] sm:$0xff]
  %v541 = vld [vmem:[%s533 + $0x38] sm:$0xff]
  %vm555 = vcmask 1044480
  %v556 = vrot.slane %v510, 3
  %v557 = vrot.slane %v511, 3
  %v558 = vsel %vm555, %v556, %v557
  %v559 = vrot.slane %v512, 3
  %v560 = vsel %vm555, %v557, %v559
  %v561 = vrot.slane %v513, 3
  %v562 = vsel %vm555, %v559, %v561
  %v563 = vrot.slane %v514, 3
  %v564 = vsel %vm555, %v561, %v563
  %v565 = vrot.slane %v515, 3
  %v566 = vsel %vm555, %v563, %v565
  %v567 = vrot.slane %v516, 3
  %v568 = vsel %vm555, %v565, %v567
  %v569 = vrot.slane %v517, 3
  %v570 = vsel %vm555, %v567, %v569
  %v571 = vrot.slane %v518, 3
  %v572 = vsel %vm555, %v569, %v571
  %v573 = vrot.slane %v519, 3
  %v574 = vsel %vm555, %v571, %v573
  %v575 = vrot.slane %v520, 3
  %v576 = vsel %vm555, %v573, %v575
  %v577 = vrot.slane %v521, 3
  %v578 = vsel %vm555, %v575, %v577
  %v579 = vrot.slane %v522, 3
  %v580 = vsel %vm555, %v577, %v579
  %vm581 = vcmask 523264
  %v582 = vsel %vm581, %v558, 0
  %v584 = vsel %vm581, %v560, 0
  %v586 = vsel %vm581, %v562, 0
  %v588 = vsel %vm581, %v564, 0
  %v590 = vsel %vm581, %v566, 0
  %v592 = vsel %vm581, %v568, 0
  %v594 = vsel %vm581, %v570, 0
  %v596 = vsel %vm581, %v572, 0
  %v598 = vsel %vm581, %v574, 0
  %v600 = vsel %vm581, %v576, 0
  %v602 = vsel %vm581, %v578, 0
  %v604 = vsel %vm581, %v580, 0
  %v606 = vsel %vm581, %v579, 0
  %608 = vmatpush.msra.mxu0 0.0
  %609 = vmatpush.msra.mxu0 0.0
  %610 = vmatpush.msra.mxu0 0.0
  %611 = vmatpush.msra.mxu0 0.0
  %612 = vmatpush.msra.mxu0 0.0
  %613 = vmatpush.msra.mxu0 0.0
  %614 = vmatpush.msra.mxu0 0.0
  %615 = vmatpush.msra.mxu0 0.0
  %616 = vmatpush.msra.mxu0 %v541
  %617 = vmatpush.msra.mxu0 %v540
  %618 = vmatpush.msra.mxu0 %v539
  %619 = vmatpush.msra.mxu0 %v538
  %620 = vmatpush.msra.mxu0 %v537
  %621 = vmatpush.msra.mxu0 %v536
  %622 = vmatpush.msra.mxu0 %v535
  %623 = vmatpush.msra.mxu0 %v534
  %624 = vmatmul.f32.gmra.mxu0 %v582
  %v625 = vpop.f32.mrf.mxu0
  %v626 = vadd.f32 0.0, %v625
  %627 = vmatmul.f32.gmra.mxu0 %v584
  %v628 = vpop.f32.mrf.mxu0
  %v629 = vadd.f32 0.0, %v628
  %630 = vmatmul.f32.gmra.mxu0 %v586
  %v631 = vpop.f32.mrf.mxu0
  %v632 = vadd.f32 0.0, %v631
  %633 = vmatmul.f32.gmra.mxu0 %v588
  %v634 = vpop.f32.mrf.mxu0
  %v635 = vadd.f32 0.0, %v634
  %636 = vmatmul.f32.gmra.mxu0 %v590
  %v637 = vpop.f32.mrf.mxu0
  %v638 = vadd.f32 0.0, %v637
  %639 = vmatmul.f32.gmra.mxu0 %v592
  %v640 = vpop.f32.mrf.mxu0
  %v641 = vadd.f32 0.0, %v640
  %642 = vmatmul.f32.gmra.mxu0 %v594
  %v643 = vpop.f32.mrf.mxu0
  %v644 = vadd.f32 0.0, %v643
  %645 = vmatmul.f32.gmra.mxu0 %v596
  %v646 = vpop.f32.mrf.mxu0
  %v647 = vadd.f32 0.0, %v646
  %648 = vmatmul.f32.gmra.mxu0 %v598
  %v649 = vpop.f32.mrf.mxu0
  %v650 = vadd.f32 0.0, %v649
  %651 = vmatmul.f32.gmra.mxu0 %v600
  %v652 = vpop.f32.mrf.mxu0
  %v653 = vadd.f32 0.0, %v652
  %654 = vmatmul.f32.gmra.mxu0 %v602
  %v655 = vpop.f32.mrf.mxu0
  %v656 = vadd.f32 0.0, %v655
  %657 = vmatmul.f32.gmra.mxu0 %v604
  %v658 = vpop.f32.mrf.mxu0
  %659 = vmatmul.f32.gmra.mxu0 %v606
  %v660 = vpop.f32.mrf.mxu0
  %661 = vdwg.mxu0
  %v663 = vsel %vm581, %v509, 0
  %v665 = vsel %vm581, %v510, 0
  %v667 = vsel %vm581, %v511, 0
  %v669 = vsel %vm581, %v512, 0
  %v671 = vsel %vm581, %v513, 0
  %v673 = vsel %vm581, %v514, 0
  %v675 = vsel %vm581, %v515, 0
  %v677 = vsel %vm581, %v516, 0
  %v679 = vsel %vm581, %v517, 0
  %v681 = vsel %vm581, %v518, 0
  %v683 = vsel %vm581, %v519, 0
  %v685 = vsel %vm581, %v520, 0
  %v687 = vsel %vm581, %v521, 0
  %689 = vmatpush.msra.mxu0 0.0
  %690 = vmatpush.msra.mxu0 0.0
  %691 = vmatpush.msra.mxu0 0.0
  %692 = vmatpush.msra.mxu0 0.0
  %693 = vmatpush.msra.mxu0 0.0
  %694 = vmatpush.msra.mxu0 0.0
  %695 = vmatpush.msra.mxu0 0.0
  %696 = vmatpush.msra.mxu0 0.0
  %697 = vmatpush.msra.mxu0 %v532
  %698 = vmatpush.msra.mxu0 %v531
  %699 = vmatpush.msra.mxu0 %v530
  %700 = vmatpush.msra.mxu0 %v529
  %701 = vmatpush.msra.mxu0 %v528
  %702 = vmatpush.msra.mxu0 %v527
  %703 = vmatpush.msra.mxu0 %v526
  %704 = vmatpush.msra.mxu0 %v525
  %705 = vmatmul.f32.gmra.mxu0 %v663
  %v706 = vpop.f32.mrf.mxu0
  %v707 = vadd.f32 %v626, %v706
  %708 = vmatmul.f32.gmra.mxu0 %v665
  %v709 = vpop.f32.mrf.mxu0
  %v710 = vadd.f32 %v629, %v709
  %711 = vmatmul.f32.gmra.mxu0 %v667
  %v712 = vpop.f32.mrf.mxu0
  %v713 = vadd.f32 %v632, %v712
  %714 = vmatmul.f32.gmra.mxu0 %v669
  %v715 = vpop.f32.mrf.mxu0
  %v716 = vadd.f32 %v635, %v715
  %717 = vmatmul.f32.gmra.mxu0 %v671
  %v718 = vpop.f32.mrf.mxu0
  %v719 = vadd.f32 %v638, %v718
  %720 = vmatmul.f32.gmra.mxu0 %v673
  %v721 = vpop.f32.mrf.mxu0
  %v722 = vadd.f32 %v641, %v721
  %723 = vmatmul.f32.gmra.mxu0 %v675
  %v724 = vpop.f32.mrf.mxu0
  %v725 = vadd.f32 %v644, %v724
  %726 = vmatmul.f32.gmra.mxu0 %v677
  %v727 = vpop.f32.mrf.mxu0
  %v728 = vadd.f32 %v647, %v727
  %729 = vmatmul.f32.gmra.mxu0 %v679
  %v730 = vpop.f32.mrf.mxu0
  %v731 = vadd.f32 %v650, %v730
  %732 = vmatmul.f32.gmra.mxu0 %v681
  %v733 = vpop.f32.mrf.mxu0
  %v734 = vadd.f32 %v653, %v733
  %735 = vmatmul.f32.gmra.mxu0 %v683
  %v736 = vpop.f32.mrf.mxu0
  %v737 = vadd.f32 %v656, %v736
  %738 = vmatmul.f32.gmra.mxu0 %v685
  %v739 = vpop.f32.mrf.mxu0
  %740 = vmatmul.f32.gmra.mxu0 %v687
  %v741 = vpop.f32.mrf.mxu0
  %742 = vdwg.mxu0
  %s743 = scalar_lea.vmem %s4, 128
  %v744 = vld [vmem:[%s743] sm:$0xff]
  %v745 = vld [vmem:[%s743 + $0x8] sm:$0xff]
  %v746 = vld [vmem:[%s743 + $0x10] sm:$0xff]
  %v747 = vld [vmem:[%s743 + $0x18] sm:$0xff]
  %v748 = vld [vmem:[%s743 + $0x20] sm:$0xff]
  %v749 = vld [vmem:[%s743 + $0x28] sm:$0xff]
  %v750 = vld [vmem:[%s743 + $0x30] sm:$0xff]
  %v751 = vld [vmem:[%s743 + $0x38] sm:$0xff]
  %vm754 = vcmask 1041408
  %v755 = vrot.slane %v511, 6
  %v756 = vrot.slane %v512, 6
  %v757 = vsel %vm754, %v755, %v756
  %v758 = vrot.slane %v513, 6
  %v759 = vsel %vm754, %v756, %v758
  %v760 = vrot.slane %v514, 6
  %v761 = vsel %vm754, %v758, %v760
  %v762 = vrot.slane %v515, 6
  %v763 = vsel %vm754, %v760, %v762
  %v764 = vrot.slane %v516, 6
  %v765 = vsel %vm754, %v762, %v764
  %v766 = vrot.slane %v517, 6
  %v767 = vsel %vm754, %v764, %v766
  %v768 = vrot.slane %v518, 6
  %v769 = vsel %vm754, %v766, %v768
  %v770 = vrot.slane %v519, 6
  %v771 = vsel %vm754, %v768, %v770
  %v772 = vrot.slane %v520, 6
  %v773 = vsel %vm754, %v770, %v772
  %v774 = vrot.slane %v521, 6
  %v775 = vsel %vm754, %v772, %v774
  %v776 = vrot.slane %v522, 6
  %v777 = vsel %vm754, %v774, %v776
  %v778 = vrot.slane %v523, 6
  %v779 = vsel %vm754, %v776, %v778
  %v780 = vrot.slane %v524, 6
  %v781 = vsel %vm754, %v778, %v780
  %v782 = vsel %vm581, %v757, 0
  %v784 = vsel %vm581, %v759, 0
  %v786 = vsel %vm581, %v761, 0
  %v788 = vsel %vm581, %v763, 0
  %v790 = vsel %vm581, %v765, 0
  %v792 = vsel %vm581, %v767, 0
  %v794 = vsel %vm581, %v769, 0
  %v796 = vsel %vm581, %v771, 0
  %v798 = vsel %vm581, %v773, 0
  %v800 = vsel %vm581, %v775, 0
  %v802 = vsel %vm581, %v777, 0
  %v804 = vsel %vm581, %v779, 0
  %v806 = vsel %vm581, %v781, 0
  %808 = vmatpush.msra.mxu0 0.0
  %809 = vmatpush.msra.mxu0 0.0
  %810 = vmatpush.msra.mxu0 0.0
  %811 = vmatpush.msra.mxu0 0.0
  %812 = vmatpush.msra.mxu0 0.0
  %813 = vmatpush.msra.mxu0 0.0
  %814 = vmatpush.msra.mxu0 0.0
  %815 = vmatpush.msra.mxu0 0.0
  %816 = vmatpush.msra.mxu0 %v751
  %817 = vmatpush.msra.mxu0 %v750
  %818 = vmatpush.msra.mxu0 %v749
  %819 = vmatpush.msra.mxu0 %v748
  %820 = vmatpush.msra.mxu0 %v747
  %821 = vmatpush.msra.mxu0 %v746
  %822 = vmatpush.msra.mxu0 %v745
  %823 = vmatpush.msra.mxu0 %v744
  %824 = vmatmul.f32.gmra.mxu0 %v782
  %v825 = vpop.f32.mrf.mxu0
  %v826 = vadd.f32 0.0, %v825
  %827 = vmatmul.f32.gmra.mxu0 %v784
  %v828 = vpop.f32.mrf.mxu0
  %v829 = vadd.f32 0.0, %v828
  %830 = vmatmul.f32.gmra.mxu0 %v786
  %v831 = vpop.f32.mrf.mxu0
  %v832 = vadd.f32 0.0, %v831
  %833 = vmatmul.f32.gmra.mxu0 %v788
  %v834 = vpop.f32.mrf.mxu0
  %v835 = vadd.f32 0.0, %v834
  %836 = vmatmul.f32.gmra.mxu0 %v790
  %v837 = vpop.f32.mrf.mxu0
  %v838 = vadd.f32 0.0, %v837
  %839 = vmatmul.f32.gmra.mxu0 %v792
  %v840 = vpop.f32.mrf.mxu0
  %v841 = vadd.f32 0.0, %v840
  %842 = vmatmul.f32.gmra.mxu0 %v794
  %v843 = vpop.f32.mrf.mxu0
  %v844 = vadd.f32 0.0, %v843
  %845 = vmatmul.f32.gmra.mxu0 %v796
  %v846 = vpop.f32.mrf.mxu0
  %v847 = vadd.f32 0.0, %v846
  %848 = vmatmul.f32.gmra.mxu0 %v798
  %v849 = vpop.f32.mrf.mxu0
  %v850 = vadd.f32 0.0, %v849
  %851 = vmatmul.f32.gmra.mxu0 %v800
  %v852 = vpop.f32.mrf.mxu0
  %v853 = vadd.f32 0.0, %v852
  %854 = vmatmul.f32.gmra.mxu0 %v802
  %v855 = vpop.f32.mrf.mxu0
  %v856 = vadd.f32 0.0, %v855
  %857 = vmatmul.f32.gmra.mxu0 %v804
  %v858 = vpop.f32.mrf.mxu0
  %859 = vmatmul.f32.gmra.mxu0 %v806
  %v860 = vpop.f32.mrf.mxu0
  %861 = vdwg.mxu0
  %v862 = vadd.f32 %v707, %v826
  %v863 = vadd.f32 %v710, %v829
  %v864 = vadd.f32 %v713, %v832
  %v865 = vadd.f32 %v716, %v835
  %v866 = vadd.f32 %v719, %v838
  %v867 = vadd.f32 %v722, %v841
  %v868 = vadd.f32 %v725, %v844
  %v869 = vadd.f32 %v728, %v847
  %v870 = vadd.f32 %v731, %v850
  %v871 = vadd.f32 %v734, %v853
  %v872 = vadd.f32 %v737, %v856
  %v874 = vperm.slane %v32, 0
  %v876 = vadd.f32 %v862, %v874
  %v877 = vadd.f32 %v863, %v874
  %v878 = vadd.f32 %v864, %v874
  %v879 = vadd.f32 %v865, %v874
  %v880 = vadd.f32 %v866, %v874
  %v881 = vadd.f32 %v867, %v874
  %v882 = vadd.f32 %v868, %v874
  %v883 = vadd.f32 %v869, %v874
  %v884 = vadd.f32 %v870, %v874
  %v885 = vadd.f32 %v871, %v874
  %v886 = vadd.f32 %v872, %v874
  %vm887 = vcmp.ge.f32.partialorder %v876, 0.0
  %vm888 = vcmp.ge.f32.partialorder %v877, 0.0
  %vm889 = vcmp.ge.f32.partialorder %v878, 0.0
  %vm890 = vcmp.ge.f32.partialorder %v879, 0.0
  %vm891 = vcmp.ge.f32.partialorder %v880, 0.0
  %vm892 = vcmp.ge.f32.partialorder %v881, 0.0
  %vm893 = vcmp.ge.f32.partialorder %v882, 0.0
  %vm894 = vcmp.ge.f32.partialorder %v883, 0.0
  %vm895 = vcmp.ge.f32.partialorder %v884, 0.0
  %vm896 = vcmp.ge.f32.partialorder %v885, 0.0
  %vm897 = vcmp.ge.f32.partialorder %v886, 0.0
  %v898 = vmul.f32 %v876, 0.1
  %v899 = vmul.f32 %v877, 0.1
  %v900 = vmul.f32 %v878, 0.1
  %v901 = vmul.f32 %v879, 0.1
  %v902 = vmul.f32 %v880, 0.1
  %v903 = vmul.f32 %v881, 0.1
  %v904 = vmul.f32 %v882, 0.1
  %v905 = vmul.f32 %v883, 0.1
  %v906 = vmul.f32 %v884, 0.1
  %v907 = vmul.f32 %v885, 0.1
  %v908 = vmul.f32 %v886, 0.1
  %v909 = vsel %vm887, %v876, %v898
  %v910 = vsel %vm888, %v877, %v899
  %v911 = vsel %vm889, %v878, %v900
  %v912 = vsel %vm890, %v879, %v901
  %v913 = vsel %vm891, %v880, %v902
  %v914 = vsel %vm892, %v881, %v903
  %v915 = vsel %vm893, %v882, %v904
  %v916 = vsel %vm894, %v883, %v905
  %v917 = vsel %vm895, %v884, %v906
  %v918 = vsel %vm896, %v885, %v907
  %v919 = vsel %vm897, %v886, %v908
  %v922 = vrot.slane %v910, 3
  %v923 = vrot.slane %v911, 3
  %v924 = vsel %vm555, %v922, %v923
  %v927 = vmax.f32 %v909, %v924
  %v928 = vmax.f32 %v910, %v923
  %vm929 = vcmask 130048
  %930 = vst.msk [vmem:[%s8] sm:$0xff] %vm929, %v927
  %vm931 = vcmask 124928
  %932 = vst.msk [vmem:[%s8 + $0x8] sm:$0x7] %vm931, %v928
  %v935 = vrot.slane %v913, 3
  %v936 = vrot.slane %v914, 3
  %v937 = vsel %vm555, %v935, %v936
  %v941 = vmax.f32 %v911, %v935
  %v942 = vmax.f32 %v912, %v937
  %v943 = vmax.f32 %v913, %v936
  %vm944 = vcmask 130054
  %945 = vst.msk [vmem:[%s8 + $0x5] sm:$0xc0] %vm944, %v941
  %946 = vst.msk [vmem:[%s8 + $0xd] sm:$0xff] %vm929, %v942
  %vm947 = vcmask 122880
  %948 = vst.msk [vmem:[%s8 + $0x15] sm:$0x1] %vm947, %v943
  %v952 = vrot.slane %v915, 3
  %v953 = vrot.slane %v916, 3
  %v954 = vsel %vm555, %v952, %v953
  %v955 = vrot.slane %v917, 3
  %v956 = vsel %vm555, %v953, %v955
  %v959 = vmax.f32 %v914, %v954
  %v960 = vmax.f32 %v915, %v956
  %vm961 = vcmask 130052
  %962 = vst.msk [vmem:[%s8 + $0x12] sm:$0xf0] %vm961, %v959
  %vm963 = vcmask 129024
  %964 = vst.msk [vmem:[%s8 + $0x1a] sm:$0x7f] %vm963, %v960
  %v967 = vrot.slane %v918, 3
  %v968 = vrot.slane %v919, 3
  %v969 = vsel %vm555, %v967, %v968
  %v972 = vmax.f32 %v917, %v969
  %v973 = vmax.f32 %v918, %v968
  %vm974 = vcmask 130050
  %975 = vst.msk [vmem:[%s8 + $0x1f] sm:$0xfc] %vm974, %v972
  %vm976 = vcmask 126976
  %977 = vst.msk [vmem:[%s8 + $0x27] sm:$0x1f] %vm976, %v973
  %v978 = vld [vmem:[%s1] sm:$0xff]
  %v979 = vld [vmem:[%s1 + $0x8] sm:$0xff]
  %v980 = vld [vmem:[%s1 + $0x10] sm:$0xff]
  %v981 = vld [vmem:[%s1 + $0x18] sm:$0xff]
  %v982 = vld [vmem:[%s1 + $0x20] sm:$0xff]
  %v983 = vld [vmem:[%s1 + $0x28] sm:$0xff]
  %v984 = vld [vmem:[%s1 + $0x30] sm:$0xff]
  %v985 = vld [vmem:[%s1 + $0x38] sm:$0xff]
  %v986 = vld [vmem:[%s1 + $0x40] sm:$0xff]
  %v987 = vld [vmem:[%s1 + $0x48] sm:$0xff]
  %v988 = vld [vmem:[%s1 + $0x50] sm:$0xff]
  %v989 = vld [vmem:[%s1 + $0x58] sm:$0xff]
  %v990 = vld [vmem:[%s1 + $0x60] sm:$0xff]
  %v991 = vld [vmem:[%s1 + $0x68] sm:$0xff]
  %v992 = vld [vmem:[%s1 + $0x70] sm:$0xff]
  %v993 = vld [vmem:[%s1 + $0x78] sm:$0xff]
  %v994 = vld [vmem:[%s1 + $0x80] sm:$0xff]
  %v995 = vld [vmem:[%s1 + $0x88] sm:$0xff]
  %v996 = vld [vmem:[%s1 + $0x90] sm:$0xff]
  %v997 = vld [vmem:[%s1 + $0x98] sm:$0xff]
  %v998 = vld [vmem:[%s1 + $0xa0] sm:$0xff]
  %v999 = vld [vmem:[%s1 + $0xa8] sm:$0xff]
  %v1000 = vld [vmem:[%s1 + $0xb0] sm:$0xff]
  %v1001 = vld [vmem:[%s1 + $0xb8] sm:$0xff]
  %v1002 = vld [vmem:[%s1 + $0xc0] sm:$0xf]
  %v1003 = vld [vmem:[%s6] sm:$0xff]
  %v1004 = vld [vmem:[%s6 + $0x8] sm:$0x1]
  %v1005 = vld [vmem:[%s1 + $0xe] sm:$0xff]
  %v1006 = vld [vmem:[%s1 + $0x16] sm:$0xff]
  %v1007 = vld [vmem:[%s1 + $0x1e] sm:$0xff]
  %v1008 = vld [vmem:[%s1 + $0x26] sm:$0xff]
  %v1009 = vld [vmem:[%s1 + $0x2e] sm:$0xff]
  %v1010 = vld [vmem:[%s1 + $0x36] sm:$0xff]
  %v1011 = vld [vmem:[%s1 + $0x3e] sm:$0xff]
  %v1012 = vld [vmem:[%s1 + $0x46] sm:$0xff]
  %v1013 = vld [vmem:[%s1 + $0x4e] sm:$0xff]
  %v1014 = vld [vmem:[%s1 + $0x56] sm:$0xff]
  %v1015 = vld [vmem:[%s1 + $0x5e] sm:$0xff]
  %v1016 = vld [vmem:[%s1 + $0x66] sm:$0xff]
  %v1017 = vld [vmem:[%s1 + $0x6e] sm:$0xff]
  %v1018 = vld [vmem:[%s1 + $0x76] sm:$0xff]
  %v1019 = vld [vmem:[%s1 + $0x7e] sm:$0xff]
  %v1020 = vld [vmem:[%s1 + $0x86] sm:$0xff]
  %v1021 = vld [vmem:[%s1 + $0x8e] sm:$0xff]
  %v1022 = vld [vmem:[%s1 + $0x96] sm:$0xff]
  %v1023 = vld [vmem:[%s1 + $0x9e] sm:$0xff]
  %v1024 = vld [vmem:[%s1 + $0xa6] sm:$0xff]
  %v1025 = vld [vmem:[%s1 + $0xae] sm:$0xff]
  %v1026 = vld [vmem:[%s1 + $0xb6] sm:$0xff]
  %v1027 = vld [vmem:[%s1 + $0xbe] sm:$0xff]
  %v1028 = vld [vmem:[%s1 + $0xc6] sm:$0xff]
  %v1029 = vld [vmem:[%s1 + $0xce] sm:$0xf]
  %s1030 = scalar_lea.vmem %s6, 16
  %v1031 = vld [vmem:[%s1030] sm:$0xff]
  %v1032 = vld [vmem:[%s1030 + $0x8] sm:$0x1]
  %vm1033 = vcmask 72704
  %v1035 = vsel %vm1033, %v1005, 0
  %v1038 = vsel %vm1033, %v1006, 0
  %v1041 = vsel %vm1033, %v1007, 0
  %v1044 = vsel %vm1033, %v1008, 0
  %v1047 = vsel %vm1033, %v1009, 0
  %v1050 = vsel %vm1033, %v1010, 0
  %v1053 = vsel %vm1033, %v1011, 0
  %v1056 = vsel %vm1033, %v1012, 0
  %v1059 = vsel %vm1033, %v1013, 0
  %v1062 = vsel %vm1033, %v1014, 0
  %v1065 = vsel %vm1033, %v1015, 0
  %v1068 = vsel %vm1033, %v1016, 0
  %v1071 = vsel %vm1033, %v1017, 0
  %v1074 = vsel %vm1033, %v1018, 0
  %v1077 = vsel %vm1033, %v1019, 0
  %v1080 = vsel %vm1033, %v1020, 0
  %v1083 = vsel %vm1033, %v1021, 0
  %v1086 = vsel %vm1033, %v1022, 0
  %v1089 = vsel %vm1033, %v1023, 0
  %v1092 = vsel %vm1033, %v1024, 0
  %v1095 = vsel %vm1033, %v1025, 0
  %v1098 = vsel %vm1033, %v1026, 0
  %v1101 = vsel %vm1033, %v1027, 0
  %v1104 = vsel %vm1033, %v1028, 0
  %v1107 = vsel %vm1033, %v1029, 0
  %vm1109 = vcmask 1040384
  %v1111 = vsel %vm1109, %v1032, 0
  %1113 = vmatpush.msra.mxu0 0.0
  %1114 = vmatpush.msra.mxu0 0.0
  %1115 = vmatpush.msra.mxu0 0.0
  %1116 = vmatpush.msra.mxu0 0.0
  %1117 = vmatpush.msra.mxu0 0.0
  %1118 = vmatpush.msra.mxu0 0.0
  %1119 = vmatpush.msra.mxu0 0.0
  %1120 = vmatpush.msra.mxu0 0.0
  %1121 = vmatpush.msra.mxu0 0.0
  %1122 = vmatpush.msra.mxu0 0.0
  %1123 = vmatpush.msra.mxu0 0.0
  %1124 = vmatpush.msra.mxu0 0.0
  %1125 = vmatpush.msra.mxu0 0.0
  %1126 = vmatpush.msra.mxu0 0.0
  %1127 = vmatpush.msra.mxu0 %v1111
  %1128 = vmatpush.msra.mxu0 %v1031
  %1129 = vmatmul.f32.gmra.mxu0 %v1035
  %v1130 = vpop.f32.mrf.mxu0
  %v1131 = vadd.f32 0.0, %v1130
  %1132 = vmatmul.f32.gmra.mxu0 %v1038
  %v1133 = vpop.f32.mrf.mxu0
  %v1134 = vadd.f32 0.0, %v1133
  %1135 = vmatmul.f32.gmra.mxu0 %v1041
  %v1136 = vpop.f32.mrf.mxu0
  %v1137 = vadd.f32 0.0, %v1136
  %1138 = vmatmul.f32.gmra.mxu0 %v1044
  %v1139 = vpop.f32.mrf.mxu0
  %v1140 = vadd.f32 0.0, %v1139
  %1141 = vmatmul.f32.gmra.mxu0 %v1047
  %v1142 = vpop.f32.mrf.mxu0
  %v1143 = vadd.f32 0.0, %v1142
  %1144 = vmatmul.f32.gmra.mxu0 %v1050
  %v1145 = vpop.f32.mrf.mxu0
  %v1146 = vadd.f32 0.0, %v1145
  %1147 = vmatmul.f32.gmra.mxu0 %v1053
  %v1148 = vpop.f32.mrf.mxu0
  %v1149 = vadd.f32 0.0, %v1148
  %1150 = vmatmul.f32.gmra.mxu0 %v1056
  %v1151 = vpop.f32.mrf.mxu0
  %v1152 = vadd.f32 0.0, %v1151
  %1153 = vmatmul.f32.gmra.mxu0 %v1059
  %v1154 = vpop.f32.mrf.mxu0
  %v1155 = vadd.f32 0.0, %v1154
  %1156 = vmatmul.f32.gmra.mxu0 %v1062
  %v1157 = vpop.f32.mrf.mxu0
  %v1158 = vadd.f32 0.0, %v1157
  %1159 = vmatmul.f32.gmra.mxu0 %v1065
  %v1160 = vpop.f32.mrf.mxu0
  %v1161 = vadd.f32 0.0, %v1160
  %1162 = vmatmul.f32.gmra.mxu0 %v1068
  %v1163 = vpop.f32.mrf.mxu0
  %v1164 = vadd.f32 0.0, %v1163
  %1165 = vmatmul.f32.gmra.mxu0 %v1071
  %v1166 = vpop.f32.mrf.mxu0
  %v1167 = vadd.f32 0.0, %v1166
  %1168 = vmatmul.f32.gmra.mxu0 %v1074
  %v1169 = vpop.f32.mrf.mxu0
  %v1170 = vadd.f32 0.0, %v1169
  %1171 = vmatmul.f32.gmra.mxu0 %v1077
  %v1172 = vpop.f32.mrf.mxu0
  %v1173 = vadd.f32 0.0, %v1172
  %1174 = vmatmul.f32.gmra.mxu0 %v1080
  %v1175 = vpop.f32.mrf.mxu0
  %v1176 = vadd.f32 0.0, %v1175
  %1177 = vmatmul.f32.gmra.mxu0 %v1083
  %v1178 = vpop.f32.mrf.mxu0
  %v1179 = vadd.f32 0.0, %v1178
  %1180 = vmatmul.f32.gmra.mxu0 %v1086
  %v1181 = vpop.f32.mrf.mxu0
  %v1182 = vadd.f32 0.0, %v1181
  %1183 = vmatmul.f32.gmra.mxu0 %v1089
  %v1184 = vpop.f32.mrf.mxu0
  %v1185 = vadd.f32 0.0, %v1184
  %1186 = vmatmul.f32.gmra.mxu0 %v1092
  %v1187 = vpop.f32.mrf.mxu0
  %v1188 = vadd.f32 0.0, %v1187
  %1189 = vmatmul.f32.gmra.mxu0 %v1095
  %v1190 = vpop.f32.mrf.mxu0
  %v1191 = vadd.f32 0.0, %v1190
  %1192 = vmatmul.f32.gmra.mxu0 %v1098
  %v1193 = vpop.f32.mrf.mxu0
  %v1194 = vadd.f32 0.0, %v1193
  %1195 = vmatmul.f32.gmra.mxu0 %v1101
  %v1196 = vpop.f32.mrf.mxu0
  %v1197 = vadd.f32 0.0, %v1196
  %1198 = vmatmul.f32.gmra.mxu0 %v1104
  %v1199 = vpop.f32.mrf.mxu0
  %v1200 = vadd.f32 0.0, %v1199
  %1201 = vmatmul.f32.gmra.mxu0 %v1107
  %v1202 = vpop.f32.mrf.mxu0
  %v1203 = vadd.f32 0.0, %v1202
  %1204 = vdwg.mxu0
  %v1206 = vsel %vm1033, %v978, 0
  %v1209 = vsel %vm1033, %v979, 0
  %v1212 = vsel %vm1033, %v980, 0
  %v1215 = vsel %vm1033, %v981, 0
  %v1218 = vsel %vm1033, %v982, 0
  %v1221 = vsel %vm1033, %v983, 0
  %v1224 = vsel %vm1033, %v984, 0
  %v1227 = vsel %vm1033, %v985, 0
  %v1230 = vsel %vm1033, %v986, 0
  %v1233 = vsel %vm1033, %v987, 0
  %v1236 = vsel %vm1033, %v988, 0
  %v1239 = vsel %vm1033, %v989, 0
  %v1242 = vsel %vm1033, %v990, 0
  %v1245 = vsel %vm1033, %v991, 0
  %v1248 = vsel %vm1033, %v992, 0
  %v1251 = vsel %vm1033, %v993, 0
  %v1254 = vsel %vm1033, %v994, 0
  %v1257 = vsel %vm1033, %v995, 0
  %v1260 = vsel %vm1033, %v996, 0
  %v1263 = vsel %vm1033, %v997, 0
  %v1266 = vsel %vm1033, %v998, 0
  %v1269 = vsel %vm1033, %v999, 0
  %v1272 = vsel %vm1033, %v1000, 0
  %v1275 = vsel %vm1033, %v1001, 0
  %v1278 = vsel %vm1033, %v1002, 0
  %v1281 = vsel %vm1109, %v1004, 0
  %1283 = vmatpush.msra.mxu0 0.0
  %1284 = vmatpush.msra.mxu0 0.0
  %1285 = vmatpush.msra.mxu0 0.0
  %1286 = vmatpush.msra.mxu0 0.0
  %1287 = vmatpush.msra.mxu0 0.0
  %1288 = vmatpush.msra.mxu0 0.0
  %1289 = vmatpush.msra.mxu0 0.0
  %1290 = vmatpush.msra.mxu0 0.0
  %1291 = vmatpush.msra.mxu0 0.0
  %1292 = vmatpush.msra.mxu0 0.0
  %1293 = vmatpush.msra.mxu0 0.0
  %1294 = vmatpush.msra.mxu0 0.0
  %1295 = vmatpush.msra.mxu0 0.0
  %1296 = vmatpush.msra.mxu0 0.0
  %1297 = vmatpush.msra.mxu0 %v1281
  %1298 = vmatpush.msra.mxu0 %v1003
  %1299 = vmatmul.f32.gmra.mxu0 %v1206
  %v1300 = vpop.f32.mrf.mxu0
  %v1301 = vadd.f32 %v1131, %v1300
  %1302 = vmatmul.f32.gmra.mxu0 %v1209
  %v1303 = vpop.f32.mrf.mxu0
  %v1304 = vadd.f32 %v1134, %v1303
  %1305 = vmatmul.f32.gmra.mxu0 %v1212
  %v1306 = vpop.f32.mrf.mxu0
  %v1307 = vadd.f32 %v1137, %v1306
  %1308 = vmatmul.f32.gmra.mxu0 %v1215
  %v1309 = vpop.f32.mrf.mxu0
  %v1310 = vadd.f32 %v1140, %v1309
  %1311 = vmatmul.f32.gmra.mxu0 %v1218
  %v1312 = vpop.f32.mrf.mxu0
  %v1313 = vadd.f32 %v1143, %v1312
  %1314 = vmatmul.f32.gmra.mxu0 %v1221
  %v1315 = vpop.f32.mrf.mxu0
  %v1316 = vadd.f32 %v1146, %v1315
  %1317 = vmatmul.f32.gmra.mxu0 %v1224
  %v1318 = vpop.f32.mrf.mxu0
  %v1319 = vadd.f32 %v1149, %v1318
  %1320 = vmatmul.f32.gmra.mxu0 %v1227
  %v1321 = vpop.f32.mrf.mxu0
  %v1322 = vadd.f32 %v1152, %v1321
  %1323 = vmatmul.f32.gmra.mxu0 %v1230
  %v1324 = vpop.f32.mrf.mxu0
  %v1325 = vadd.f32 %v1155, %v1324
  %1326 = vmatmul.f32.gmra.mxu0 %v1233
  %v1327 = vpop.f32.mrf.mxu0
  %v1328 = vadd.f32 %v1158, %v1327
  %1329 = vmatmul.f32.gmra.mxu0 %v1236
  %v1330 = vpop.f32.mrf.mxu0
  %v1331 = vadd.f32 %v1161, %v1330
  %1332 = vmatmul.f32.gmra.mxu0 %v1239
  %v1333 = vpop.f32.mrf.mxu0
  %v1334 = vadd.f32 %v1164, %v1333
  %1335 = vmatmul.f32.gmra.mxu0 %v1242
  %v1336 = vpop.f32.mrf.mxu0
  %v1337 = vadd.f32 %v1167, %v1336
  %1338 = vmatmul.f32.gmra.mxu0 %v1245
  %v1339 = vpop.f32.mrf.mxu0
  %v1340 = vadd.f32 %v1170, %v1339
  %1341 = vmatmul.f32.gmra.mxu0 %v1248
  %v1342 = vpop.f32.mrf.mxu0
  %v1343 = vadd.f32 %v1173, %v1342
  %1344 = vmatmul.f32.gmra.mxu0 %v1251
  %v1345 = vpop.f32.mrf.mxu0
  %v1346 = vadd.f32 %v1176, %v1345
  %1347 = vmatmul.f32.gmra.mxu0 %v1254
  %v1348 = vpop.f32.mrf.mxu0
  %v1349 = vadd.f32 %v1179, %v1348
  %1350 = vmatmul.f32.gmra.mxu0 %v1257
  %v1351 = vpop.f32.mrf.mxu0
  %v1352 = vadd.f32 %v1182, %v1351
  %1353 = vmatmul.f32.gmra.mxu0 %v1260
  %v1354 = vpop.f32.mrf.mxu0
  %v1355 = vadd.f32 %v1185, %v1354
  %1356 = vmatmul.f32.gmra.mxu0 %v1263
  %v1357 = vpop.f32.mrf.mxu0
  %v1358 = vadd.f32 %v1188, %v1357
  %1359 = vmatmul.f32.gmra.mxu0 %v1266
  %v1360 = vpop.f32.mrf.mxu0
  %v1361 = vadd.f32 %v1191, %v1360
  %1362 = vmatmul.f32.gmra.mxu0 %v1269
  %v1363 = vpop.f32.mrf.mxu0
  %v1364 = vadd.f32 %v1194, %v1363
  %1365 = vmatmul.f32.gmra.mxu0 %v1272
  %v1366 = vpop.f32.mrf.mxu0
  %v1367 = vadd.f32 %v1197, %v1366
  %1368 = vmatmul.f32.gmra.mxu0 %v1275
  %v1369 = vpop.f32.mrf.mxu0
  %v1370 = vadd.f32 %v1200, %v1369
  %1371 = vmatmul.f32.gmra.mxu0 %v1278
  %v1372 = vpop.f32.mrf.mxu0
  %v1373 = vadd.f32 %v1203, %v1372
  %1374 = vdwg.mxu0
  %v1375 = vld [vmem:[%s1 + $0x1c] sm:$0xff]
  %v1376 = vld [vmem:[%s1 + $0x24] sm:$0xff]
  %v1377 = vld [vmem:[%s1 + $0x2c] sm:$0xff]
  %v1378 = vld [vmem:[%s1 + $0x34] sm:$0xff]
  %v1379 = vld [vmem:[%s1 + $0x3c] sm:$0xff]
  %v1380 = vld [vmem:[%s1 + $0x44] sm:$0xff]
  %v1381 = vld [vmem:[%s1 + $0x4c] sm:$0xff]
  %v1382 = vld [vmem:[%s1 + $0x54] sm:$0xff]
  %v1383 = vld [vmem:[%s1 + $0x5c] sm:$0xff]
  %v1384 = vld [vmem:[%s1 + $0x64] sm:$0xff]
  %v1385 = vld [vmem:[%s1 + $0x6c] sm:$0xff]
  %v1386 = vld [vmem:[%s1 + $0x74] sm:$0xff]
  %v1387 = vld [vmem:[%s1 + $0x7c] sm:$0xff]
  %v1388 = vld [vmem:[%s1 + $0x84] sm:$0xff]
  %v1389 = vld [vmem:[%s1 + $0x8c] sm:$0xff]
  %v1390 = vld [vmem:[%s1 + $0x94] sm:$0xff]
  %v1391 = vld [vmem:[%s1 + $0x9c] sm:$0xff]
  %v1392 = vld [vmem:[%s1 + $0xa4] sm:$0xff]
  %v1393 = vld [vmem:[%s1 + $0xac] sm:$0xff]
  %v1394 = vld [vmem:[%s1 + $0xb4] sm:$0xff]
  %v1395 = vld [vmem:[%s1 + $0xbc] sm:$0xff]
  %v1396 = vld [vmem:[%s1 + $0xc4] sm:$0xff]
  %v1397 = vld [vmem:[%s1 + $0xcc] sm:$0xff]
  %v1398 = vld [vmem:[%s1 + $0xd4] sm:$0xff]
  %v1399 = vld [vmem:[%s1 + $0xdc] sm:$0xf]
  %s1400 = scalar_lea.vmem %s6, 32
  %v1401 = vld [vmem:[%s1400] sm:$0xff]
  %v1402 = vld [vmem:[%s1400 + $0x8] sm:$0x1]
  %v1404 = vsel %vm1033, %v1375, 0
  %v1407 = vsel %vm1033, %v1376, 0
  %v1410 = vsel %vm1033, %v1377, 0
  %v1413 = vsel %vm1033, %v1378, 0
  %v1416 = vsel %vm1033, %v1379, 0
  %v1419 = vsel %vm1033, %v1380, 0
  %v1422 = vsel %vm1033, %v1381, 0
  %v1425 = vsel %vm1033, %v1382, 0
  %v1428 = vsel %vm1033, %v1383, 0
  %v1431 = vsel %vm1033, %v1384, 0
  %v1434 = vsel %vm1033, %v1385, 0
  %v1437 = vsel %vm1033, %v1386, 0
  %v1440 = vsel %vm1033, %v1387, 0
  %v1443 = vsel %vm1033, %v1388, 0
  %v1446 = vsel %vm1033, %v1389, 0
  %v1449 = vsel %vm1033, %v1390, 0
  %v1452 = vsel %vm1033, %v1391, 0
  %v1455 = vsel %vm1033, %v1392, 0
  %v1458 = vsel %vm1033, %v1393, 0
  %v1461 = vsel %vm1033, %v1394, 0
  %v1464 = vsel %vm1033, %v1395, 0
  %v1467 = vsel %vm1033, %v1396, 0
  %v1470 = vsel %vm1033, %v1397, 0
  %v1473 = vsel %vm1033, %v1398, 0
  %v1476 = vsel %vm1033, %v1399, 0
  %v1479 = vsel %vm1109, %v1402, 0
  %1481 = vmatpush.msra.mxu0 0.0
  %1482 = vmatpush.msra.mxu0 0.0
  %1483 = vmatpush.msra.mxu0 0.0
  %1484 = vmatpush.msra.mxu0 0.0
  %1485 = vmatpush.msra.mxu0 0.0
  %1486 = vmatpush.msra.mxu0 0.0
  %1487 = vmatpush.msra.mxu0 0.0
  %1488 = vmatpush.msra.mxu0 0.0
  %1489 = vmatpush.msra.mxu0 0.0
  %1490 = vmatpush.msra.mxu0 0.0
  %1491 = vmatpush.msra.mxu0 0.0
  %1492 = vmatpush.msra.mxu0 0.0
  %1493 = vmatpush.msra.mxu0 0.0
  %1494 = vmatpush.msra.mxu0 0.0
  %1495 = vmatpush.msra.mxu0 %v1479
  %1496 = vmatpush.msra.mxu0 %v1401
  %1497 = vmatmul.f32.gmra.mxu0 %v1404
  %v1498 = vpop.f32.mrf.mxu0
  %v1499 = vadd.f32 0.0, %v1498
  %1500 = vmatmul.f32.gmra.mxu0 %v1407
  %v1501 = vpop.f32.mrf.mxu0
  %v1502 = vadd.f32 0.0, %v1501
  %1503 = vmatmul.f32.gmra.mxu0 %v1410
  %v1504 = vpop.f32.mrf.mxu0
  %v1505 = vadd.f32 0.0, %v1504
  %1506 = vmatmul.f32.gmra.mxu0 %v1413
  %v1507 = vpop.f32.mrf.mxu0
  %v1508 = vadd.f32 0.0, %v1507
  %1509 = vmatmul.f32.gmra.mxu0 %v1416
  %v1510 = vpop.f32.mrf.mxu0
  %v1511 = vadd.f32 0.0, %v1510
  %1512 = vmatmul.f32.gmra.mxu0 %v1419
  %v1513 = vpop.f32.mrf.mxu0
  %v1514 = vadd.f32 0.0, %v1513
  %1515 = vmatmul.f32.gmra.mxu0 %v1422
  %v1516 = vpop.f32.mrf.mxu0
  %v1517 = vadd.f32 0.0, %v1516
  %1518 = vmatmul.f32.gmra.mxu0 %v1425
  %v1519 = vpop.f32.mrf.mxu0
  %v1520 = vadd.f32 0.0, %v1519
  %1521 = vmatmul.f32.gmra.mxu0 %v1428
  %v1522 = vpop.f32.mrf.mxu0
  %v1523 = vadd.f32 0.0, %v1522
  %1524 = vmatmul.f32.gmra.mxu0 %v1431
  %v1525 = vpop.f32.mrf.mxu0
  %v1526 = vadd.f32 0.0, %v1525
  %1527 = vmatmul.f32.gmra.mxu0 %v1434
  %v1528 = vpop.f32.mrf.mxu0
  %v1529 = vadd.f32 0.0, %v1528
  %1530 = vmatmul.f32.gmra.mxu0 %v1437
  %v1531 = vpop.f32.mrf.mxu0
  %v1532 = vadd.f32 0.0, %v1531
  %1533 = vmatmul.f32.gmra.mxu0 %v1440
  %v1534 = vpop.f32.mrf.mxu0
  %v1535 = vadd.f32 0.0, %v1534
  %1536 = vmatmul.f32.gmra.mxu0 %v1443
  %v1537 = vpop.f32.mrf.mxu0
  %v1538 = vadd.f32 0.0, %v1537
  %1539 = vmatmul.f32.gmra.mxu0 %v1446
  %v1540 = vpop.f32.mrf.mxu0
  %v1541 = vadd.f32 0.0, %v1540
  %1542 = vmatmul.f32.gmra.mxu0 %v1449
  %v1543 = vpop.f32.mrf.mxu0
  %v1544 = vadd.f32 0.0, %v1543
  %1545 = vmatmul.f32.gmra.mxu0 %v1452
  %v1546 = vpop.f32.mrf.mxu0
  %v1547 = vadd.f32 0.0, %v1546
  %1548 = vmatmul.f32.gmra.mxu0 %v1455
  %v1549 = vpop.f32.mrf.mxu0
  %v1550 = vadd.f32 0.0, %v1549
  %1551 = vmatmul.f32.gmra.mxu0 %v1458
  %v1552 = vpop.f32.mrf.mxu0
  %v1553 = vadd.f32 0.0, %v1552
  %1554 = vmatmul.f32.gmra.mxu0 %v1461
  %v1555 = vpop.f32.mrf.mxu0
  %v1556 = vadd.f32 0.0, %v1555
  %1557 = vmatmul.f32.gmra.mxu0 %v1464
  %v1558 = vpop.f32.mrf.mxu0
  %v1559 = vadd.f32 0.0, %v1558
  %1560 = vmatmul.f32.gmra.mxu0 %v1467
  %v1561 = vpop.f32.mrf.mxu0
  %v1562 = vadd.f32 0.0, %v1561
  %1563 = vmatmul.f32.gmra.mxu0 %v1470
  %v1564 = vpop.f32.mrf.mxu0
  %v1565 = vadd.f32 0.0, %v1564
  %1566 = vmatmul.f32.gmra.mxu0 %v1473
  %v1567 = vpop.f32.mrf.mxu0
  %v1568 = vadd.f32 0.0, %v1567
  %1569 = vmatmul.f32.gmra.mxu0 %v1476
  %v1570 = vpop.f32.mrf.mxu0
  %v1571 = vadd.f32 0.0, %v1570
  %1572 = vdwg.mxu0
  %v1573 = vadd.f32 %v1301, %v1499
  %v1574 = vadd.f32 %v1304, %v1502
  %v1575 = vadd.f32 %v1307, %v1505
  %v1576 = vadd.f32 %v1310, %v1508
  %v1577 = vadd.f32 %v1313, %v1511
  %v1578 = vadd.f32 %v1316, %v1514
  %v1579 = vadd.f32 %v1319, %v1517
  %v1580 = vadd.f32 %v1322, %v1520
  %v1581 = vadd.f32 %v1325, %v1523
  %v1582 = vadd.f32 %v1328, %v1526
  %v1583 = vadd.f32 %v1331, %v1529
  %v1584 = vadd.f32 %v1334, %v1532
  %v1585 = vadd.f32 %v1337, %v1535
  %v1586 = vadd.f32 %v1340, %v1538
  %v1587 = vadd.f32 %v1343, %v1541
  %v1588 = vadd.f32 %v1346, %v1544
  %v1589 = vadd.f32 %v1349, %v1547
  %v1590 = vadd.f32 %v1352, %v1550
  %v1591 = vadd.f32 %v1355, %v1553
  %v1592 = vadd.f32 %v1358, %v1556
  %v1593 = vadd.f32 %v1361, %v1559
  %v1594 = vadd.f32 %v1364, %v1562
  %v1595 = vadd.f32 %v1367, %v1565
  %v1596 = vadd.f32 %v1370, %v1568
  %v1597 = vadd.f32 %v1373, %v1571
  %v1599 = vperm.slane %v33, 0
  %v1601 = vadd.f32 %v1573, %v1599
  %v1602 = vadd.f32 %v1574, %v1599
  %v1603 = vadd.f32 %v1575, %v1599
  %v1604 = vadd.f32 %v1576, %v1599
  %v1605 = vadd.f32 %v1577, %v1599
  %v1606 = vadd.f32 %v1578, %v1599
  %v1607 = vadd.f32 %v1579, %v1599
  %v1608 = vadd.f32 %v1580, %v1599
  %v1609 = vadd.f32 %v1581, %v1599
  %v1610 = vadd.f32 %v1582, %v1599
  %v1611 = vadd.f32 %v1583, %v1599
  %v1612 = vadd.f32 %v1584, %v1599
  %v1613 = vadd.f32 %v1585, %v1599
  %v1614 = vadd.f32 %v1586, %v1599
  %v1615 = vadd.f32 %v1587, %v1599
  %v1616 = vadd.f32 %v1588, %v1599
  %v1617 = vadd.f32 %v1589, %v1599
  %v1618 = vadd.f32 %v1590, %v1599
  %v1619 = vadd.f32 %v1591, %v1599
  %v1620 = vadd.f32 %v1592, %v1599
  %v1621 = vadd.f32 %v1593, %v1599
  %v1622 = vadd.f32 %v1594, %v1599
  %v1623 = vadd.f32 %v1595, %v1599
  %v1624 = vadd.f32 %v1596, %v1599
  %v1625 = vadd.f32 %v1597, %v1599
  %vm1626 = vcmp.ge.f32.partialorder %v1601, 0.0
  %vm1627 = vcmp.ge.f32.partialorder %v1602, 0.0
  %vm1628 = vcmp.ge.f32.partialorder %v1603, 0.0
  %vm1629 = vcmp.ge.f32.partialorder %v1604, 0.0
  %vm1630 = vcmp.ge.f32.partialorder %v1605, 0.0
  %vm1631 = vcmp.ge.f32.partialorder %v1606, 0.0
  %vm1632 = vcmp.ge.f32.partialorder %v1607, 0.0
  %vm1633 = vcmp.ge.f32.partialorder %v1608, 0.0
  %vm1634 = vcmp.ge.f32.partialorder %v1609, 0.0
  %vm1635 = vcmp.ge.f32.partialorder %v1610, 0.0
  %vm1636 = vcmp.ge.f32.partialorder %v1611, 0.0
  %vm1637 = vcmp.ge.f32.partialorder %v1612, 0.0
  %vm1638 = vcmp.ge.f32.partialorder %v1613, 0.0
  %vm1639 = vcmp.ge.f32.partialorder %v1614, 0.0
  %vm1640 = vcmp.ge.f32.partialorder %v1615, 0.0
  %vm1641 = vcmp.ge.f32.partialorder %v1616, 0.0
  %vm1642 = vcmp.ge.f32.partialorder %v1617, 0.0
  %vm1643 = vcmp.ge.f32.partialorder %v1618, 0.0
  %vm1644 = vcmp.ge.f32.partialorder %v1619, 0.0
  %vm1645 = vcmp.ge.f32.partialorder %v1620, 0.0
  %vm1646 = vcmp.ge.f32.partialorder %v1621, 0.0
  %vm1647 = vcmp.ge.f32.partialorder %v1622, 0.0
  %vm1648 = vcmp.ge.f32.partialorder %v1623, 0.0
  %vm1649 = vcmp.ge.f32.partialorder %v1624, 0.0
  %vm1650 = vcmp.ge.f32.partialorder %v1625, 0.0
  %v1651 = vmul.f32 %v1601, 0.1
  %v1652 = vmul.f32 %v1602, 0.1
  %v1653 = vmul.f32 %v1603, 0.1
  %v1654 = vmul.f32 %v1604, 0.1
  %v1655 = vmul.f32 %v1605, 0.1
  %v1656 = vmul.f32 %v1606, 0.1
  %v1657 = vmul.f32 %v1607, 0.1
  %v1658 = vmul.f32 %v1608, 0.1
  %v1659 = vmul.f32 %v1609, 0.1
  %v1660 = vmul.f32 %v1610, 0.1
  %v1661 = vmul.f32 %v1611, 0.1
  %v1662 = vmul.f32 %v1612, 0.1
  %v1663 = vmul.f32 %v1613, 0.1
  %v1664 = vmul.f32 %v1614, 0.1
  %v1665 = vmul.f32 %v1615, 0.1
  %v1666 = vmul.f32 %v1616, 0.1
  %v1667 = vmul.f32 %v1617, 0.1
  %v1668 = vmul.f32 %v1618, 0.1
  %v1669 = vmul.f32 %v1619, 0.1
  %v1670 = vmul.f32 %v1620, 0.1
  %v1671 = vmul.f32 %v1621, 0.1
  %v1672 = vmul.f32 %v1622, 0.1
  %v1673 = vmul.f32 %v1623, 0.1
  %v1674 = vmul.f32 %v1624, 0.1
  %v1675 = vmul.f32 %v1625, 0.1
  %v1676 = vsel %vm1626, %v1601, %v1651
  %v1677 = vsel %vm1627, %v1602, %v1652
  %v1678 = vsel %vm1628, %v1603, %v1653
  %v1679 = vsel %vm1629, %v1604, %v1654
  %v1680 = vsel %vm1630, %v1605, %v1655
  %v1681 = vsel %vm1631, %v1606, %v1656
  %v1682 = vsel %vm1632, %v1607, %v1657
  %v1683 = vsel %vm1633, %v1608, %v1658
  %v1684 = vsel %vm1634, %v1609, %v1659
  %v1685 = vsel %vm1635, %v1610, %v1660
  %v1686 = vsel %vm1636, %v1611, %v1661
  %v1687 = vsel %vm1637, %v1612, %v1662
  %v1688 = vsel %vm1638, %v1613, %v1663
  %v1689 = vsel %vm1639, %v1614, %v1664
  %v1690 = vsel %vm1640, %v1615, %v1665
  %v1691 = vsel %vm1641, %v1616, %v1666
  %v1692 = vsel %vm1642, %v1617, %v1667
  %v1693 = vsel %vm1643, %v1618, %v1668
  %v1694 = vsel %vm1644, %v1619, %v1669
  %v1695 = vsel %vm1645, %v1620, %v1670
  %v1696 = vsel %vm1646, %v1621, %v1671
  %v1697 = vsel %vm1647, %v1622, %v1672
  %v1698 = vsel %vm1648, %v1623, %v1673
  %v1699 = vsel %vm1649, %v1624, %v1674
  %v1700 = vsel %vm1650, %v1625, %v1675
  %vm1701 = vcmask 64512
  %v1702 = vsel %vm1701, %v1676, 0.0
  %v1703 = vsel %vm1701, %v1677, 0.0
  %v1704 = vadd.f32 %v1702, %v1703
  %v1705 = vsel %vm1701, %v1678, 0.0
  %v1706 = vadd.f32 %v1704, %v1705
  %v1707 = vsel %vm1701, %v1679, 0.0
  %v1708 = vadd.f32 %v1706, %v1707
  %v1709 = vsel %vm1701, %v1680, 0.0
  %v1710 = vadd.f32 %v1708, %v1709
  %v1711 = vsel %vm1701, %v1681, 0.0
  %v1712 = vadd.f32 %v1710, %v1711
  %v1713 = vsel %vm1701, %v1682, 0.0
  %v1714 = vadd.f32 %v1712, %v1713
  %v1715 = vsel %vm1701, %v1683, 0.0
  %v1716 = vadd.f32 %v1714, %v1715
  %v1717 = vsel %vm1701, %v1684, 0.0
  %v1718 = vadd.f32 %v1716, %v1717
  %v1719 = vsel %vm1701, %v1685, 0.0
  %v1720 = vadd.f32 %v1718, %v1719
  %v1721 = vsel %vm1701, %v1686, 0.0
  %v1722 = vadd.f32 %v1720, %v1721
  %v1723 = vsel %vm1701, %v1687, 0.0
  %v1724 = vadd.f32 %v1722, %v1723
  %v1725 = vsel %vm1701, %v1688, 0.0
  %v1726 = vadd.f32 %v1724, %v1725
  %v1727 = vsel %vm1701, %v1689, 0.0
  %v1728 = vadd.f32 %v1726, %v1727
  %v1729 = vsel %vm1701, %v1690, 0.0
  %v1730 = vadd.f32 %v1728, %v1729
  %v1731 = vsel %vm1701, %v1691, 0.0
  %v1732 = vadd.f32 %v1730, %v1731
  %v1733 = vsel %vm1701, %v1692, 0.0
  %v1734 = vadd.f32 %v1732, %v1733
  %v1735 = vsel %vm1701, %v1693, 0.0
  %v1736 = vadd.f32 %v1734, %v1735
  %v1737 = vsel %vm1701, %v1694, 0.0
  %v1738 = vadd.f32 %v1736, %v1737
  %v1739 = vsel %vm1701, %v1695, 0.0
  %v1740 = vadd.f32 %v1738, %v1739
  %v1741 = vsel %vm1701, %v1696, 0.0
  %v1742 = vadd.f32 %v1740, %v1741
  %v1743 = vsel %vm1701, %v1697, 0.0
  %v1744 = vadd.f32 %v1742, %v1743
  %v1745 = vsel %vm1701, %v1698, 0.0
  %v1746 = vadd.f32 %v1744, %v1745
  %v1747 = vsel %vm1701, %v1699, 0.0
  %v1748 = vadd.f32 %v1746, %v1747
  %vm1749 = vcmask 60416
  %v1750 = vsel %vm1749, %v1700, 0.0
  %v1751 = vadd.f32 %v1748, %v1750
  %v1752 = vrot.slane %v1751, 4
  %v1753 = vadd.f32 %v1751, %v1752
  %v1754 = vrot.slane %v1753, 2
  %v1755 = vadd.f32 %v1753, %v1754
  %v1756 = vrot.slane %v1755, 1
  %v1757 = vadd.f32 %v1755, %v1756
  %v1758 = vrcp.pop 196.0
  %v1759 = vmul.f32 196.0, %v1758
  %v1760 = vsub.f32 1.0, %v1759
  %v1761 = vmul.f32 %v1758, %v1760
  %v1762 = vadd.f32 %v1758, %v1761
  %vm1763 = vweird.f32 %v1758
  %v1764 = vsel %vm1763, %v1758, %v1762
  %v1765 = vmul.f32 %v1757, %v1764
  %vm1766 = vcmask 57344
  %1767 = vst.msk [vmem:[%s9] sm:$0x1] %vm1766, %v1765
  %v1768 = vld [vmem:[%s0 + $0x8f] sm:$0xff]
  %v1769 = vld [vmem:[%s0 + $0x97] sm:$0xff]
  %v1770 = vld [vmem:[%s0 + $0x9f] sm:$0xff]
  %v1771 = vld [vmem:[%s0 + $0xa7] sm:$0xff]
  %v1772 = vld [vmem:[%s0 + $0xaf] sm:$0xff]
  %v1773 = vld [vmem:[%s0 + $0xb7] sm:$0xff]
  %v1774 = vld [vmem:[%s0 + $0xbf] sm:$0xff]
  %v1775 = vld [vmem:[%s0 + $0xc7] sm:$0xff]
  %v1776 = vld [vmem:[%s0 + $0xcf] sm:$0xff]
  %v1777 = vld [vmem:[%s0 + $0xd7] sm:$0xff]
  %v1778 = vld [vmem:[%s0 + $0xdf] sm:$0xff]
  %v1779 = vld [vmem:[%s0 + $0xe7] sm:$0xff]
  %v1780 = vld [vmem:[%s0 + $0xef] sm:$0xff]
  %v1781 = vld [vmem:[%s0 + $0xf7] sm:$0xff]
  %v1782 = vld [vmem:[%s0 + $0xff] sm:$0xff]
  %v1783 = vld [vmem:[%s0 + $0x107] sm:$0x1]
  %v1784 = vld [vmem:[%s2] sm:$0xff]
  %v1785 = vld [vmem:[%s2 + $0x8] sm:$0xff]
  %v1786 = vld [vmem:[%s2 + $0x10] sm:$0xff]
  %v1787 = vld [vmem:[%s2 + $0x18] sm:$0xff]
  %v1788 = vld [vmem:[%s2 + $0x20] sm:$0xff]
  %v1789 = vld [vmem:[%s2 + $0x28] sm:$0xff]
  %v1790 = vld [vmem:[%s0 + $0x9a] sm:$0xff]
  %v1791 = vld [vmem:[%s0 + $0xa2] sm:$0xff]
  %v1792 = vld [vmem:[%s0 + $0xaa] sm:$0xff]
  %v1793 = vld [vmem:[%s0 + $0xb2] sm:$0xff]
  %v1794 = vld [vmem:[%s0 + $0xba] sm:$0xff]
  %v1795 = vld [vmem:[%s0 + $0xc2] sm:$0xff]
  %v1796 = vld [vmem:[%s0 + $0xca] sm:$0xff]
  %v1797 = vld [vmem:[%s0 + $0xd2] sm:$0xff]
  %v1798 = vld [vmem:[%s0 + $0xda] sm:$0xff]
  %v1799 = vld [vmem:[%s0 + $0xe2] sm:$0xff]
  %v1800 = vld [vmem:[%s0 + $0xea] sm:$0xff]
  %v1801 = vld [vmem:[%s0 + $0xf2] sm:$0xff]
  %v1802 = vld [vmem:[%s0 + $0xfa] sm:$0xff]
  %v1803 = vld [vmem:[%s0 + $0x102] sm:$0xff]
  %v1804 = vld [vmem:[%s0 + $0x10a] sm:$0xff]
  %v1805 = vld [vmem:[%s0 + $0x112] sm:$0x1]
  %v1806 = vld [vmem:[%s72] sm:$0xff]
  %v1807 = vld [vmem:[%s72 + $0x8] sm:$0xff]
  %v1808 = vld [vmem:[%s72 + $0x10] sm:$0xff]
  %v1809 = vld [vmem:[%s72 + $0x18] sm:$0xff]
  %v1810 = vld [vmem:[%s72 + $0x20] sm:$0xff]
  %v1811 = vld [vmem:[%s72 + $0x28] sm:$0xff]
  %v1813 = vsel %vm79, %v1790, 0
  %v1816 = vsel %vm79, %v1791, 0
  %v1819 = vsel %vm79, %v1792, 0
  %v1822 = vsel %vm79, %v1793, 0
  %v1825 = vsel %vm79, %v1794, 0
  %v1828 = vsel %vm79, %v1795, 0
  %v1831 = vsel %vm79, %v1796, 0
  %v1834 = vsel %vm79, %v1797, 0
  %v1837 = vsel %vm79, %v1798, 0
  %v1840 = vsel %vm79, %v1799, 0
  %v1843 = vsel %vm79, %v1800, 0
  %v1846 = vsel %vm79, %v1801, 0
  %v1849 = vsel %vm79, %v1802, 0
  %v1852 = vsel %vm79, %v1803, 0
  %v1855 = vsel %vm79, %v1804, 0
  %v1858 = vsel %vm79, %v1805, 0
  %1860 = vmatpush.msra.mxu0 0.0
  %1861 = vmatpush.msra.mxu0 0.0
  %1862 = vmatpush.msra.mxu0 0.0
  %1863 = vmatpush.msra.mxu0 0.0
  %1864 = vmatpush.msra.mxu0 0.0
  %1865 = vmatpush.msra.mxu0 0.0
  %1866 = vmatpush.msra.mxu0 0.0
  %1867 = vmatpush.msra.mxu0 0.0
  %1868 = vmatpush.msra.mxu0 0.0
  %1869 = vmatpush.msra.mxu0 0.0
  %1870 = vmatpush.msra.mxu0 %v1811
  %1871 = vmatpush.msra.mxu0 %v1810
  %1872 = vmatpush.msra.mxu0 %v1809
  %1873 = vmatpush.msra.mxu0 %v1808
  %1874 = vmatpush.msra.mxu0 %v1807
  %1875 = vmatpush.msra.mxu0 %v1806
  %1876 = vmatmul.f32.gmra.mxu0 %v1813
  %v1877 = vpop.f32.mrf.mxu0
  %v1878 = vadd.f32 0.0, %v1877
  %1879 = vmatmul.f32.gmra.mxu0 %v1816
  %v1880 = vpop.f32.mrf.mxu0
  %v1881 = vadd.f32 0.0, %v1880
  %1882 = vmatmul.f32.gmra.mxu0 %v1819
  %v1883 = vpop.f32.mrf.mxu0
  %v1884 = vadd.f32 0.0, %v1883
  %1885 = vmatmul.f32.gmra.mxu0 %v1822
  %v1886 = vpop.f32.mrf.mxu0
  %v1887 = vadd.f32 0.0, %v1886
  %1888 = vmatmul.f32.gmra.mxu0 %v1825
  %v1889 = vpop.f32.mrf.mxu0
  %v1890 = vadd.f32 0.0, %v1889
  %1891 = vmatmul.f32.gmra.mxu0 %v1828
  %v1892 = vpop.f32.mrf.mxu0
  %v1893 = vadd.f32 0.0, %v1892
  %1894 = vmatmul.f32.gmra.mxu0 %v1831
  %v1895 = vpop.f32.mrf.mxu0
  %v1896 = vadd.f32 0.0, %v1895
  %1897 = vmatmul.f32.gmra.mxu0 %v1834
  %v1898 = vpop.f32.mrf.mxu0
  %v1899 = vadd.f32 0.0, %v1898
  %1900 = vmatmul.f32.gmra.mxu0 %v1837
  %v1901 = vpop.f32.mrf.mxu0
  %v1902 = vadd.f32 0.0, %v1901
  %1903 = vmatmul.f32.gmra.mxu0 %v1840
  %v1904 = vpop.f32.mrf.mxu0
  %v1905 = vadd.f32 0.0, %v1904
  %1906 = vmatmul.f32.gmra.mxu0 %v1843
  %v1907 = vpop.f32.mrf.mxu0
  %v1908 = vadd.f32 0.0, %v1907
  %1909 = vmatmul.f32.gmra.mxu0 %v1846
  %v1910 = vpop.f32.mrf.mxu0
  %v1911 = vadd.f32 0.0, %v1910
  %1912 = vmatmul.f32.gmra.mxu0 %v1849
  %v1913 = vpop.f32.mrf.mxu0
  %v1914 = vadd.f32 0.0, %v1913
  %1915 = vmatmul.f32.gmra.mxu0 %v1852
  %v1916 = vpop.f32.mrf.mxu0
  %v1917 = vadd.f32 0.0, %v1916
  %1918 = vmatmul.f32.gmra.mxu0 %v1855
  %v1919 = vpop.f32.mrf.mxu0
  %v1920 = vadd.f32 0.0, %v1919
  %1921 = vmatmul.f32.gmra.mxu0 %v1858
  %v1922 = vpop.f32.mrf.mxu0
  %v1923 = vadd.f32 0.0, %v1922
  %1924 = vdwg.mxu0
  %v1926 = vsel %vm79, %v1768, 0
  %v1929 = vsel %vm79, %v1769, 0
  %v1932 = vsel %vm79, %v1770, 0
  %v1935 = vsel %vm79, %v1771, 0
  %v1938 = vsel %vm79, %v1772, 0
  %v1941 = vsel %vm79, %v1773, 0
  %v1944 = vsel %vm79, %v1774, 0
  %v1947 = vsel %vm79, %v1775, 0
  %v1950 = vsel %vm79, %v1776, 0
  %v1953 = vsel %vm79, %v1777, 0
  %v1956 = vsel %vm79, %v1778, 0
  %v1959 = vsel %vm79, %v1779, 0
  %v1962 = vsel %vm79, %v1780, 0
  %v1965 = vsel %vm79, %v1781, 0
  %v1968 = vsel %vm79, %v1782, 0
  %v1971 = vsel %vm79, %v1783, 0
  %1973 = vmatpush.msra.mxu0 0.0
  %1974 = vmatpush.msra.mxu0 0.0
  %1975 = vmatpush.msra.mxu0 0.0
  %1976 = vmatpush.msra.mxu0 0.0
  %1977 = vmatpush.msra.mxu0 0.0
  %1978 = vmatpush.msra.mxu0 0.0
  %1979 = vmatpush.msra.mxu0 0.0
  %1980 = vmatpush.msra.mxu0 0.0
  %1981 = vmatpush.msra.mxu0 0.0
  %1982 = vmatpush.msra.mxu0 0.0
  %1983 = vmatpush.msra.mxu0 %v1789
  %1984 = vmatpush.msra.mxu0 %v1788
  %1985 = vmatpush.msra.mxu0 %v1787
  %1986 = vmatpush.msra.mxu0 %v1786
  %1987 = vmatpush.msra.mxu0 %v1785
  %1988 = vmatpush.msra.mxu0 %v1784
  %1989 = vmatmul.f32.gmra.mxu0 %v1926
  %v1990 = vpop.f32.mrf.mxu0
  %v1991 = vadd.f32 %v1878, %v1990
  %1992 = vmatmul.f32.gmra.mxu0 %v1929
  %v1993 = vpop.f32.mrf.mxu0
  %v1994 = vadd.f32 %v1881, %v1993
  %1995 = vmatmul.f32.gmra.mxu0 %v1932
  %v1996 = vpop.f32.mrf.mxu0
  %v1997 = vadd.f32 %v1884, %v1996
  %1998 = vmatmul.f32.gmra.mxu0 %v1935
  %v1999 = vpop.f32.mrf.mxu0
  %v2000 = vadd.f32 %v1887, %v1999
  %2001 = vmatmul.f32.gmra.mxu0 %v1938
  %v2002 = vpop.f32.mrf.mxu0
  %v2003 = vadd.f32 %v1890, %v2002
  %2004 = vmatmul.f32.gmra.mxu0 %v1941
  %v2005 = vpop.f32.mrf.mxu0
  %v2006 = vadd.f32 %v1893, %v2005
  %2007 = vmatmul.f32.gmra.mxu0 %v1944
  %v2008 = vpop.f32.mrf.mxu0
  %v2009 = vadd.f32 %v1896, %v2008
  %2010 = vmatmul.f32.gmra.mxu0 %v1947
  %v2011 = vpop.f32.mrf.mxu0
  %v2012 = vadd.f32 %v1899, %v2011
  %2013 = vmatmul.f32.gmra.mxu0 %v1950
  %v2014 = vpop.f32.mrf.mxu0
  %v2015 = vadd.f32 %v1902, %v2014
  %2016 = vmatmul.f32.gmra.mxu0 %v1953
  %v2017 = vpop.f32.mrf.mxu0
  %v2018 = vadd.f32 %v1905, %v2017
  %2019 = vmatmul.f32.gmra.mxu0 %v1956
  %v2020 = vpop.f32.mrf.mxu0
  %v2021 = vadd.f32 %v1908, %v2020
  %2022 = vmatmul.f32.gmra.mxu0 %v1959
  %v2023 = vpop.f32.mrf.mxu0
  %v2024 = vadd.f32 %v1911, %v2023
  %2025 = vmatmul.f32.gmra.mxu0 %v1962
  %v2026 = vpop.f32.mrf.mxu0
  %v2027 = vadd.f32 %v1914, %v2026
  %2028 = vmatmul.f32.gmra.mxu0 %v1965
  %v2029 = vpop.f32.mrf.mxu0
  %v2030 = vadd.f32 %v1917, %v2029
  %2031 = vmatmul.f32.gmra.mxu0 %v1968
  %v2032 = vpop.f32.mrf.mxu0
  %v2033 = vadd.f32 %v1920, %v2032
  %2034 = vmatmul.f32.gmra.mxu0 %v1971
  %v2035 = vpop.f32.mrf.mxu0
  %v2036 = vadd.f32 %v1923, %v2035
  %2037 = vdwg.mxu0
  %v2038 = vld [vmem:[%s0 + $0xa5] sm:$0xff]
  %v2039 = vld [vmem:[%s0 + $0xad] sm:$0xff]
  %v2040 = vld [vmem:[%s0 + $0xb5] sm:$0xff]
  %v2041 = vld [vmem:[%s0 + $0xbd] sm:$0xff]
  %v2042 = vld [vmem:[%s0 + $0xc5] sm:$0xff]
  %v2043 = vld [vmem:[%s0 + $0xcd] sm:$0xff]
  %v2044 = vld [vmem:[%s0 + $0xd5] sm:$0xff]
  %v2045 = vld [vmem:[%s0 + $0xdd] sm:$0xff]
  %v2046 = vld [vmem:[%s0 + $0xe5] sm:$0xff]
  %v2047 = vld [vmem:[%s0 + $0xed] sm:$0xff]
  %v2048 = vld [vmem:[%s0 + $0xf5] sm:$0xff]
  %v2049 = vld [vmem:[%s0 + $0xfd] sm:$0xff]
  %v2050 = vld [vmem:[%s0 + $0x105] sm:$0xff]
  %v2051 = vld [vmem:[%s0 + $0x10d] sm:$0xff]
  %v2052 = vld [vmem:[%s0 + $0x115] sm:$0xff]
  %v2053 = vld [vmem:[%s0 + $0x11d] sm:$0x1]
  %v2054 = vld [vmem:[%s322] sm:$0xff]
  %v2055 = vld [vmem:[%s322 + $0x8] sm:$0xff]
  %v2056 = vld [vmem:[%s322 + $0x10] sm:$0xff]
  %v2057 = vld [vmem:[%s322 + $0x18] sm:$0xff]
  %v2058 = vld [vmem:[%s322 + $0x20] sm:$0xff]
  %v2059 = vld [vmem:[%s322 + $0x28] sm:$0xff]
  %v2061 = vsel %vm79, %v2038, 0
  %v2064 = vsel %vm79, %v2039, 0
  %v2067 = vsel %vm79, %v2040, 0
  %v2070 = vsel %vm79, %v2041, 0
  %v2073 = vsel %vm79, %v2042, 0
  %v2076 = vsel %vm79, %v2043, 0
  %v2079 = vsel %vm79, %v2044, 0
  %v2082 = vsel %vm79, %v2045, 0
  %v2085 = vsel %vm79, %v2046, 0
  %v2088 = vsel %vm79, %v2047, 0
  %v2091 = vsel %vm79, %v2048, 0
  %v2094 = vsel %vm79, %v2049, 0
  %v2097 = vsel %vm79, %v2050, 0
  %v2100 = vsel %vm79, %v2051, 0
  %v2103 = vsel %vm79, %v2052, 0
  %v2106 = vsel %vm79, %v2053, 0
  %2108 = vmatpush.msra.mxu0 0.0
  %2109 = vmatpush.msra.mxu0 0.0
  %2110 = vmatpush.msra.mxu0 0.0
  %2111 = vmatpush.msra.mxu0 0.0
  %2112 = vmatpush.msra.mxu0 0.0
  %2113 = vmatpush.msra.mxu0 0.0
  %2114 = vmatpush.msra.mxu0 0.0
  %2115 = vmatpush.msra.mxu0 0.0
  %2116 = vmatpush.msra.mxu0 0.0
  %2117 = vmatpush.msra.mxu0 0.0
  %2118 = vmatpush.msra.mxu0 %v2059
  %2119 = vmatpush.msra.mxu0 %v2058
  %2120 = vmatpush.msra.mxu0 %v2057
  %2121 = vmatpush.msra.mxu0 %v2056
  %2122 = vmatpush.msra.mxu0 %v2055
  %2123 = vmatpush.msra.mxu0 %v2054
  %2124 = vmatmul.f32.gmra.mxu0 %v2061
  %v2125 = vpop.f32.mrf.mxu0
  %v2126 = vadd.f32 0.0, %v2125
  %2127 = vmatmul.f32.gmra.mxu0 %v2064
  %v2128 = vpop.f32.mrf.mxu0
  %v2129 = vadd.f32 0.0, %v2128
  %2130 = vmatmul.f32.gmra.mxu0 %v2067
  %v2131 = vpop.f32.mrf.mxu0
  %v2132 = vadd.f32 0.0, %v2131
  %2133 = vmatmul.f32.gmra.mxu0 %v2070
  %v2134 = vpop.f32.mrf.mxu0
  %v2135 = vadd.f32 0.0, %v2134
  %2136 = vmatmul.f32.gmra.mxu0 %v2073
  %v2137 = vpop.f32.mrf.mxu0
  %v2138 = vadd.f32 0.0, %v2137
  %2139 = vmatmul.f32.gmra.mxu0 %v2076
  %v2140 = vpop.f32.mrf.mxu0
  %v2141 = vadd.f32 0.0, %v2140
  %2142 = vmatmul.f32.gmra.mxu0 %v2079
  %v2143 = vpop.f32.mrf.mxu0
  %v2144 = vadd.f32 0.0, %v2143
  %2145 = vmatmul.f32.gmra.mxu0 %v2082
  %v2146 = vpop.f32.mrf.mxu0
  %v2147 = vadd.f32 0.0, %v2146
  %2148 = vmatmul.f32.gmra.mxu0 %v2085
  %v2149 = vpop.f32.mrf.mxu0
  %v2150 = vadd.f32 0.0, %v2149
  %2151 = vmatmul.f32.gmra.mxu0 %v2088
  %v2152 = vpop.f32.mrf.mxu0
  %v2153 = vadd.f32 0.0, %v2152
  %2154 = vmatmul.f32.gmra.mxu0 %v2091
  %v2155 = vpop.f32.mrf.mxu0
  %v2156 = vadd.f32 0.0, %v2155
  %2157 = vmatmul.f32.gmra.mxu0 %v2094
  %v2158 = vpop.f32.mrf.mxu0
  %v2159 = vadd.f32 0.0, %v2158
  %2160 = vmatmul.f32.gmra.mxu0 %v2097
  %v2161 = vpop.f32.mrf.mxu0
  %v2162 = vadd.f32 0.0, %v2161
  %2163 = vmatmul.f32.gmra.mxu0 %v2100
  %v2164 = vpop.f32.mrf.mxu0
  %v2165 = vadd.f32 0.0, %v2164
  %2166 = vmatmul.f32.gmra.mxu0 %v2103
  %v2167 = vpop.f32.mrf.mxu0
  %v2168 = vadd.f32 0.0, %v2167
  %2169 = vmatmul.f32.gmra.mxu0 %v2106
  %v2170 = vpop.f32.mrf.mxu0
  %v2171 = vadd.f32 0.0, %v2170
  %2172 = vdwg.mxu0
  %v2173 = vadd.f32 %v1991, %v2126
  %v2174 = vadd.f32 %v1994, %v2129
  %v2175 = vadd.f32 %v1997, %v2132
  %v2176 = vadd.f32 %v2000, %v2135
  %v2177 = vadd.f32 %v2003, %v2138
  %v2178 = vadd.f32 %v2006, %v2141
  %v2179 = vadd.f32 %v2009, %v2144
  %v2180 = vadd.f32 %v2012, %v2147
  %v2181 = vadd.f32 %v2015, %v2150
  %v2182 = vadd.f32 %v2018, %v2153
  %v2183 = vadd.f32 %v2021, %v2156
  %v2184 = vadd.f32 %v2024, %v2159
  %v2185 = vadd.f32 %v2027, %v2162
  %v2186 = vadd.f32 %v2030, %v2165
  %v2187 = vadd.f32 %v2033, %v2168
  %v2188 = vadd.f32 %v2036, %v2171
  %v2189 = vadd.f32 %v2173, %v459
  %v2190 = vadd.f32 %v2174, %v459
  %v2191 = vadd.f32 %v2175, %v459
  %v2192 = vadd.f32 %v2176, %v459
  %v2193 = vadd.f32 %v2177, %v459
  %v2194 = vadd.f32 %v2178, %v459
  %v2195 = vadd.f32 %v2179, %v459
  %v2196 = vadd.f32 %v2180, %v459
  %v2197 = vadd.f32 %v2181, %v459
  %v2198 = vadd.f32 %v2182, %v459
  %v2199 = vadd.f32 %v2183, %v459
  %v2200 = vadd.f32 %v2184, %v459
  %v2201 = vadd.f32 %v2185, %v459
  %v2202 = vadd.f32 %v2186, %v459
  %v2203 = vadd.f32 %v2187, %v459
  %v2204 = vadd.f32 %v2188, %v459
  %vm2205 = vcmp.ge.f32.partialorder %v2189, 0.0
  %vm2206 = vcmp.ge.f32.partialorder %v2190, 0.0
  %vm2207 = vcmp.ge.f32.partialorder %v2191, 0.0
  %vm2208 = vcmp.ge.f32.partialorder %v2192, 0.0
  %vm2209 = vcmp.ge.f32.partialorder %v2193, 0.0
  %vm2210 = vcmp.ge.f32.partialorder %v2194, 0.0
  %vm2211 = vcmp.ge.f32.partialorder %v2195, 0.0
  %vm2212 = vcmp.ge.f32.partialorder %v2196, 0.0
  %vm2213 = vcmp.ge.f32.partialorder %v2197, 0.0
  %vm2214 = vcmp.ge.f32.partialorder %v2198, 0.0
  %vm2215 = vcmp.ge.f32.partialorder %v2199, 0.0
  %vm2216 = vcmp.ge.f32.partialorder %v2200, 0.0
  %vm2217 = vcmp.ge.f32.partialorder %v2201, 0.0
  %vm2218 = vcmp.ge.f32.partialorder %v2202, 0.0
  %vm2219 = vcmp.ge.f32.partialorder %v2203, 0.0
  %vm2220 = vcmp.ge.f32.partialorder %v2204, 0.0
  %v2221 = vmul.f32 %v2189, 0.1
  %v2222 = vmul.f32 %v2190, 0.1
  %v2223 = vmul.f32 %v2191, 0.1
  %v2224 = vmul.f32 %v2192, 0.1
  %v2225 = vmul.f32 %v2193, 0.1
  %v2226 = vmul.f32 %v2194, 0.1
  %v2227 = vmul.f32 %v2195, 0.1
  %v2228 = vmul.f32 %v2196, 0.1
  %v2229 = vmul.f32 %v2197, 0.1
  %v2230 = vmul.f32 %v2198, 0.1
  %v2231 = vmul.f32 %v2199, 0.1
  %v2232 = vmul.f32 %v2200, 0.1
  %v2233 = vmul.f32 %v2201, 0.1
  %v2234 = vmul.f32 %v2202, 0.1
  %v2235 = vmul.f32 %v2203, 0.1
  %v2236 = vmul.f32 %v2204, 0.1
  %v2237 = vsel %vm2205, %v2189, %v2221
  %v2238 = vsel %vm2206, %v2190, %v2222
  %v2239 = vsel %vm2207, %v2191, %v2223
  %v2240 = vsel %vm2208, %v2192, %v2224
  %v2241 = vsel %vm2209, %v2193, %v2225
  %v2242 = vsel %vm2210, %v2194, %v2226
  %v2243 = vsel %vm2211, %v2195, %v2227
  %v2244 = vsel %vm2212, %v2196, %v2228
  %v2245 = vsel %vm2213, %v2197, %v2229
  %v2246 = vsel %vm2214, %v2198, %v2230
  %v2247 = vsel %vm2215, %v2199, %v2231
  %v2248 = vsel %vm2216, %v2200, %v2232
  %v2249 = vsel %vm2217, %v2201, %v2233
  %v2250 = vsel %vm2218, %v2202, %v2234
  %v2251 = vsel %vm2219, %v2203, %v2235
  %v2252 = vsel %vm2220, %v2204, %v2236
  %v2253 = vld [vmem:[%s4] sm:$0xff]
  %v2254 = vld [vmem:[%s4 + $0x8] sm:$0xff]
  %v2255 = vld [vmem:[%s4 + $0x10] sm:$0xff]
  %v2256 = vld [vmem:[%s4 + $0x18] sm:$0xff]
  %v2257 = vld [vmem:[%s4 + $0x20] sm:$0xff]
  %v2258 = vld [vmem:[%s4 + $0x28] sm:$0xff]
  %v2259 = vld [vmem:[%s4 + $0x30] sm:$0xff]
  %v2260 = vld [vmem:[%s4 + $0x38] sm:$0xff]
  %v2261 = vld [vmem:[%s533] sm:$0xff]
  %v2262 = vld [vmem:[%s533 + $0x8] sm:$0xff]
  %v2263 = vld [vmem:[%s533 + $0x10] sm:$0xff]
  %v2264 = vld [vmem:[%s533 + $0x18] sm:$0xff]
  %v2265 = vld [vmem:[%s533 + $0x20] sm:$0xff]
  %v2266 = vld [vmem:[%s533 + $0x28] sm:$0xff]
  %v2267 = vld [vmem:[%s533 + $0x30] sm:$0xff]
  %v2268 = vld [vmem:[%s533 + $0x38] sm:$0xff]
  %v2282 = vrot.slane %v2238, 3
  %v2283 = vrot.slane %v2239, 3
  %v2284 = vsel %vm555, %v2282, %v2283
  %v2285 = vrot.slane %v2240, 3
  %v2286 = vsel %vm555, %v2283, %v2285
  %v2287 = vrot.slane %v2241, 3
  %v2288 = vsel %vm555, %v2285, %v2287
  %v2289 = vrot.slane %v2242, 3
  %v2290 = vsel %vm555, %v2287, %v2289
  %v2291 = vrot.slane %v2243, 3
  %v2292 = vsel %vm555, %v2289, %v2291
  %v2293 = vrot.slane %v2244, 3
  %v2294 = vsel %vm555, %v2291, %v2293
  %v2295 = vrot.slane %v2245, 3
  %v2296 = vsel %vm555, %v2293, %v2295
  %v2297 = vrot.slane %v2246, 3
  %v2298 = vsel %vm555, %v2295, %v2297
  %v2299 = vrot.slane %v2247, 3
  %v2300 = vsel %vm555, %v2297, %v2299
  %v2301 = vrot.slane %v2248, 3
  %v2302 = vsel %vm555, %v2299, %v2301
  %v2303 = vrot.slane %v2249, 3
  %v2304 = vsel %vm555, %v2301, %v2303
  %v2305 = vrot.slane %v2250, 3
  %v2306 = vsel %vm555, %v2303, %v2305
  %v2307 = vsel %vm581, %v2284, 0
  %v2309 = vsel %vm581, %v2286, 0
  %v2311 = vsel %vm581, %v2288, 0
  %v2313 = vsel %vm581, %v2290, 0
  %v2315 = vsel %vm581, %v2292, 0
  %v2317 = vsel %vm581, %v2294, 0
  %v2319 = vsel %vm581, %v2296, 0
  %v2321 = vsel %vm581, %v2298, 0
  %v2323 = vsel %vm581, %v2300, 0
  %v2325 = vsel %vm581, %v2302, 0
  %v2327 = vsel %vm581, %v2304, 0
  %v2329 = vsel %vm581, %v2306, 0
  %v2331 = vsel %vm581, %v2305, 0
  %2333 = vmatpush.msra.mxu0 0.0
  %2334 = vmatpush.msra.mxu0 0.0
  %2335 = vmatpush.msra.mxu0 0.0
  %2336 = vmatpush.msra.mxu0 0.0
  %2337 = vmatpush.msra.mxu0 0.0
  %2338 = vmatpush.msra.mxu0 0.0
  %2339 = vmatpush.msra.mxu0 0.0
  %2340 = vmatpush.msra.mxu0 0.0
  %2341 = vmatpush.msra.mxu0 %v2268
  %2342 = vmatpush.msra.mxu0 %v2267
  %2343 = vmatpush.msra.mxu0 %v2266
  %2344 = vmatpush.msra.mxu0 %v2265
  %2345 = vmatpush.msra.mxu0 %v2264
  %2346 = vmatpush.msra.mxu0 %v2263
  %2347 = vmatpush.msra.mxu0 %v2262
  %2348 = vmatpush.msra.mxu0 %v2261
  %2349 = vmatmul.f32.gmra.mxu0 %v2307
  %v2350 = vpop.f32.mrf.mxu0
  %v2351 = vadd.f32 0.0, %v2350
  %2352 = vmatmul.f32.gmra.mxu0 %v2309
  %v2353 = vpop.f32.mrf.mxu0
  %v2354 = vadd.f32 0.0, %v2353
  %2355 = vmatmul.f32.gmra.mxu0 %v2311
  %v2356 = vpop.f32.mrf.mxu0
  %v2357 = vadd.f32 0.0, %v2356
  %2358 = vmatmul.f32.gmra.mxu0 %v2313
  %v2359 = vpop.f32.mrf.mxu0
  %v2360 = vadd.f32 0.0, %v2359
  %2361 = vmatmul.f32.gmra.mxu0 %v2315
  %v2362 = vpop.f32.mrf.mxu0
  %v2363 = vadd.f32 0.0, %v2362
  %2364 = vmatmul.f32.gmra.mxu0 %v2317
  %v2365 = vpop.f32.mrf.mxu0
  %v2366 = vadd.f32 0.0, %v2365
  %2367 = vmatmul.f32.gmra.mxu0 %v2319
  %v2368 = vpop.f32.mrf.mxu0
  %v2369 = vadd.f32 0.0, %v2368
  %2370 = vmatmul.f32.gmra.mxu0 %v2321
  %v2371 = vpop.f32.mrf.mxu0
  %v2372 = vadd.f32 0.0, %v2371
  %2373 = vmatmul.f32.gmra.mxu0 %v2323
  %v2374 = vpop.f32.mrf.mxu0
  %v2375 = vadd.f32 0.0, %v2374
  %2376 = vmatmul.f32.gmra.mxu0 %v2325
  %v2377 = vpop.f32.mrf.mxu0
  %v2378 = vadd.f32 0.0, %v2377
  %2379 = vmatmul.f32.gmra.mxu0 %v2327
  %v2380 = vpop.f32.mrf.mxu0
  %v2381 = vadd.f32 0.0, %v2380
  %2382 = vmatmul.f32.gmra.mxu0 %v2329
  %v2383 = vpop.f32.mrf.mxu0
  %2384 = vmatmul.f32.gmra.mxu0 %v2331
  %v2385 = vpop.f32.mrf.mxu0
  %2386 = vdwg.mxu0
  %v2388 = vsel %vm581, %v2237, 0
  %v2390 = vsel %vm581, %v2238, 0
  %v2392 = vsel %vm581, %v2239, 0
  %v2394 = vsel %vm581, %v2240, 0
  %v2396 = vsel %vm581, %v2241, 0
  %v2398 = vsel %vm581, %v2242, 0
  %v2400 = vsel %vm581, %v2243, 0
  %v2402 = vsel %vm581, %v2244, 0
  %v2404 = vsel %vm581, %v2245, 0
  %v2406 = vsel %vm581, %v2246, 0
  %v2408 = vsel %vm581, %v2247, 0
  %v2410 = vsel %vm581, %v2248, 0
  %v2412 = vsel %vm581, %v2249, 0
  %2414 = vmatpush.msra.mxu0 0.0
  %2415 = vmatpush.msra.mxu0 0.0
  %2416 = vmatpush.msra.mxu0 0.0
  %2417 = vmatpush.msra.mxu0 0.0
  %2418 = vmatpush.msra.mxu0 0.0
  %2419 = vmatpush.msra.mxu0 0.0
  %2420 = vmatpush.msra.mxu0 0.0
  %2421 = vmatpush.msra.mxu0 0.0
  %2422 = vmatpush.msra.mxu0 %v2260
  %2423 = vmatpush.msra.mxu0 %v2259
  %2424 = vmatpush.msra.mxu0 %v2258
  %2425 = vmatpush.msra.mxu0 %v2257
  %2426 = vmatpush.msra.mxu0 %v2256
  %2427 = vmatpush.msra.mxu0 %v2255
  %2428 = vmatpush.msra.mxu0 %v2254
  %2429 = vmatpush.msra.mxu0 %v2253
  %2430 = vmatmul.f32.gmra.mxu0 %v2388
  %v2431 = vpop.f32.mrf.mxu0
  %v2432 = vadd.f32 %v2351, %v2431
  %2433 = vmatmul.f32.gmra.mxu0 %v2390
  %v2434 = vpop.f32.mrf.mxu0
  %v2435 = vadd.f32 %v2354, %v2434
  %2436 = vmatmul.f32.gmra.mxu0 %v2392
  %v2437 = vpop.f32.mrf.mxu0
  %v2438 = vadd.f32 %v2357, %v2437
  %2439 = vmatmul.f32.gmra.mxu0 %v2394
  %v2440 = vpop.f32.mrf.mxu0
  %v2441 = vadd.f32 %v2360, %v2440
  %2442 = vmatmul.f32.gmra.mxu0 %v2396
  %v2443 = vpop.f32.mrf.mxu0
  %v2444 = vadd.f32 %v2363, %v2443
  %2445 = vmatmul.f32.gmra.mxu0 %v2398
  %v2446 = vpop.f32.mrf.mxu0
  %v2447 = vadd.f32 %v2366, %v2446
  %2448 = vmatmul.f32.gmra.mxu0 %v2400
  %v2449 = vpop.f32.mrf.mxu0
  %v2450 = vadd.f32 %v2369, %v2449
  %2451 = vmatmul.f32.gmra.mxu0 %v2402
  %v2452 = vpop.f32.mrf.mxu0
  %v2453 = vadd.f32 %v2372, %v2452
  %2454 = vmatmul.f32.gmra.mxu0 %v2404
  %v2455 = vpop.f32.mrf.mxu0
  %v2456 = vadd.f32 %v2375, %v2455
  %2457 = vmatmul.f32.gmra.mxu0 %v2406
  %v2458 = vpop.f32.mrf.mxu0
  %v2459 = vadd.f32 %v2378, %v2458
  %2460 = vmatmul.f32.gmra.mxu0 %v2408
  %v2461 = vpop.f32.mrf.mxu0
  %v2462 = vadd.f32 %v2381, %v2461
  %2463 = vmatmul.f32.gmra.mxu0 %v2410
  %v2464 = vpop.f32.mrf.mxu0
  %2465 = vmatmul.f32.gmra.mxu0 %v2412
  %v2466 = vpop.f32.mrf.mxu0
  %2467 = vdwg.mxu0
  %v2468 = vld [vmem:[%s743] sm:$0xff]
  %v2469 = vld [vmem:[%s743 + $0x8] sm:$0xff]
  %v2470 = vld [vmem:[%s743 + $0x10] sm:$0xff]
  %v2471 = vld [vmem:[%s743 + $0x18] sm:$0xff]
  %v2472 = vld [vmem:[%s743 + $0x20] sm:$0xff]
  %v2473 = vld [vmem:[%s743 + $0x28] sm:$0xff]
  %v2474 = vld [vmem:[%s743 + $0x30] sm:$0xff]
  %v2475 = vld [vmem:[%s743 + $0x38] sm:$0xff]
  %v2478 = vrot.slane %v2239, 6
  %v2479 = vrot.slane %v2240, 6
  %v2480 = vsel %vm754, %v2478, %v2479
  %v2481 = vrot.slane %v2241, 6
  %v2482 = vsel %vm754, %v2479, %v2481
  %v2483 = vrot.slane %v2242, 6
  %v2484 = vsel %vm754, %v2481, %v2483
  %v2485 = vrot.slane %v2243, 6
  %v2486 = vsel %vm754, %v2483, %v2485
  %v2487 = vrot.slane %v2244, 6
  %v2488 = vsel %vm754, %v2485, %v2487
  %v2489 = vrot.slane %v2245, 6
  %v2490 = vsel %vm754, %v2487, %v2489
  %v2491 = vrot.slane %v2246, 6
  %v2492 = vsel %vm754, %v2489, %v2491
  %v2493 = vrot.slane %v2247, 6
  %v2494 = vsel %vm754, %v2491, %v2493
  %v2495 = vrot.slane %v2248, 6
  %v2496 = vsel %vm754, %v2493, %v2495
  %v2497 = vrot.slane %v2249, 6
  %v2498 = vsel %vm754, %v2495, %v2497
  %v2499 = vrot.slane %v2250, 6
  %v2500 = vsel %vm754, %v2497, %v2499
  %v2501 = vrot.slane %v2251, 6
  %v2502 = vsel %vm754, %v2499, %v2501
  %v2503 = vrot.slane %v2252, 6
  %v2504 = vsel %vm754, %v2501, %v2503
  %v2505 = vsel %vm581, %v2480, 0
  %v2507 = vsel %vm581, %v2482, 0
  %v2509 = vsel %vm581, %v2484, 0
  %v2511 = vsel %vm581, %v2486, 0
  %v2513 = vsel %vm581, %v2488, 0
  %v2515 = vsel %vm581, %v2490, 0
  %v2517 = vsel %vm581, %v2492, 0
  %v2519 = vsel %vm581, %v2494, 0
  %v2521 = vsel %vm581, %v2496, 0
  %v2523 = vsel %vm581, %v2498, 0
  %v2525 = vsel %vm581, %v2500, 0
  %v2527 = vsel %vm581, %v2502, 0
  %v2529 = vsel %vm581, %v2504, 0
  %2531 = vmatpush.msra.mxu0 0.0
  %2532 = vmatpush.msra.mxu0 0.0
  %2533 = vmatpush.msra.mxu0 0.0
  %2534 = vmatpush.msra.mxu0 0.0
  %2535 = vmatpush.msra.mxu0 0.0
  %2536 = vmatpush.msra.mxu0 0.0
  %2537 = vmatpush.msra.mxu0 0.0
  %2538 = vmatpush.msra.mxu0 0.0
  %2539 = vmatpush.msra.mxu0 %v2475
  %2540 = vmatpush.msra.mxu0 %v2474
  %2541 = vmatpush.msra.mxu0 %v2473
  %2542 = vmatpush.msra.mxu0 %v2472
  %2543 = vmatpush.msra.mxu0 %v2471
  %2544 = vmatpush.msra.mxu0 %v2470
  %2545 = vmatpush.msra.mxu0 %v2469
  %2546 = vmatpush.msra.mxu0 %v2468
  %2547 = vmatmul.f32.gmra.mxu0 %v2505
  %v2548 = vpop.f32.mrf.mxu0
  %v2549 = vadd.f32 0.0, %v2548
  %2550 = vmatmul.f32.gmra.mxu0 %v2507
  %v2551 = vpop.f32.mrf.mxu0
  %v2552 = vadd.f32 0.0, %v2551
  %2553 = vmatmul.f32.gmra.mxu0 %v2509
  %v2554 = vpop.f32.mrf.mxu0
  %v2555 = vadd.f32 0.0, %v2554
  %2556 = vmatmul.f32.gmra.mxu0 %v2511
  %v2557 = vpop.f32.mrf.mxu0
  %v2558 = vadd.f32 0.0, %v2557
  %2559 = vmatmul.f32.gmra.mxu0 %v2513
  %v2560 = vpop.f32.mrf.mxu0
  %v2561 = vadd.f32 0.0, %v2560
  %2562 = vmatmul.f32.gmra.mxu0 %v2515
  %v2563 = vpop.f32.mrf.mxu0
  %v2564 = vadd.f32 0.0, %v2563
  %2565 = vmatmul.f32.gmra.mxu0 %v2517
  %v2566 = vpop.f32.mrf.mxu0
  %v2567 = vadd.f32 0.0, %v2566
  %2568 = vmatmul.f32.gmra.mxu0 %v2519
  %v2569 = vpop.f32.mrf.mxu0
  %v2570 = vadd.f32 0.0, %v2569
  %2571 = vmatmul.f32.gmra.mxu0 %v2521
  %v2572 = vpop.f32.mrf.mxu0
  %v2573 = vadd.f32 0.0, %v2572
  %2574 = vmatmul.f32.gmra.mxu0 %v2523
  %v2575 = vpop.f32.mrf.mxu0
  %v2576 = vadd.f32 0.0, %v2575
  %2577 = vmatmul.f32.gmra.mxu0 %v2525
  %v2578 = vpop.f32.mrf.mxu0
  %v2579 = vadd.f32 0.0, %v2578
  %2580 = vmatmul.f32.gmra.mxu0 %v2527
  %v2581 = vpop.f32.mrf.mxu0
  %2582 = vmatmul.f32.gmra.mxu0 %v2529
  %v2583 = vpop.f32.mrf.mxu0
  %2584 = vdwg.mxu0
  %v2585 = vadd.f32 %v2432, %v2549
  %v2586 = vadd.f32 %v2435, %v2552
  %v2587 = vadd.f32 %v2438, %v2555
  %v2588 = vadd.f32 %v2441, %v2558
  %v2589 = vadd.f32 %v2444, %v2561
  %v2590 = vadd.f32 %v2447, %v2564
  %v2591 = vadd.f32 %v2450, %v2567
  %v2592 = vadd.f32 %v2453, %v2570
  %v2593 = vadd.f32 %v2456, %v2573
  %v2594 = vadd.f32 %v2459, %v2576
  %v2595 = vadd.f32 %v2462, %v2579
  %v2596 = vadd.f32 %v2585, %v874
  %v2597 = vadd.f32 %v2586, %v874
  %v2598 = vadd.f32 %v2587, %v874
  %v2599 = vadd.f32 %v2588, %v874
  %v2600 = vadd.f32 %v2589, %v874
  %v2601 = vadd.f32 %v2590, %v874
  %v2602 = vadd.f32 %v2591, %v874
  %v2603 = vadd.f32 %v2592, %v874
  %v2604 = vadd.f32 %v2593, %v874
  %v2605 = vadd.f32 %v2594, %v874
  %v2606 = vadd.f32 %v2595, %v874
  %vm2607 = vcmp.ge.f32.partialorder %v2596, 0.0
  %vm2608 = vcmp.ge.f32.partialorder %v2597, 0.0
  %vm2609 = vcmp.ge.f32.partialorder %v2598, 0.0
  %vm2610 = vcmp.ge.f32.partialorder %v2599, 0.0
  %vm2611 = vcmp.ge.f32.partialorder %v2600, 0.0
  %vm2612 = vcmp.ge.f32.partialorder %v2601, 0.0
  %vm2613 = vcmp.ge.f32.partialorder %v2602, 0.0
  %vm2614 = vcmp.ge.f32.partialorder %v2603, 0.0
  %vm2615 = vcmp.ge.f32.partialorder %v2604, 0.0
  %vm2616 = vcmp.ge.f32.partialorder %v2605, 0.0
  %vm2617 = vcmp.ge.f32.partialorder %v2606, 0.0
  %v2618 = vmul.f32 %v2596, 0.1
  %v2619 = vmul.f32 %v2597, 0.1
  %v2620 = vmul.f32 %v2598, 0.1
  %v2621 = vmul.f32 %v2599, 0.1
  %v2622 = vmul.f32 %v2600, 0.1
  %v2623 = vmul.f32 %v2601, 0.1
  %v2624 = vmul.f32 %v2602, 0.1
  %v2625 = vmul.f32 %v2603, 0.1
  %v2626 = vmul.f32 %v2604, 0.1
  %v2627 = vmul.f32 %v2605, 0.1
  %v2628 = vmul.f32 %v2606, 0.1
  %v2629 = vsel %vm2607, %v2596, %v2618
  %v2630 = vsel %vm2608, %v2597, %v2619
  %v2631 = vsel %vm2609, %v2598, %v2620
  %v2632 = vsel %vm2610, %v2599, %v2621
  %v2633 = vsel %vm2611, %v2600, %v2622
  %v2634 = vsel %vm2612, %v2601, %v2623
  %v2635 = vsel %vm2613, %v2602, %v2624
  %v2636 = vsel %vm2614, %v2603, %v2625
  %v2637 = vsel %vm2615, %v2604, %v2626
  %v2638 = vsel %vm2616, %v2605, %v2627
  %v2639 = vsel %vm2617, %v2606, %v2628
  %v2642 = vrot.slane %v2630, 3
  %v2643 = vrot.slane %v2631, 3
  %v2644 = vsel %vm555, %v2642, %v2643
  %v2647 = vmax.f32 %v2629, %v2644
  %v2648 = vmax.f32 %v2630, %v2643
  %2649 = vst.msk [vmem:[%s8 + $0x2c] sm:$0xff] %vm929, %v2647
  %2650 = vst.msk [vmem:[%s8 + $0x34] sm:$0x7] %vm931, %v2648
  %v2653 = vrot.slane %v2633, 3
  %v2654 = vrot.slane %v2634, 3
  %v2655 = vsel %vm555, %v2653, %v2654
  %v2659 = vmax.f32 %v2631, %v2653
  %v2660 = vmax.f32 %v2632, %v2655
  %v2661 = vmax.f32 %v2633, %v2654
  %2662 = vst.msk [vmem:[%s8 + $0x31] sm:$0xc0] %vm944, %v2659
  %2663 = vst.msk [vmem:[%s8 + $0x39] sm:$0xff] %vm929, %v2660
  %2664 = vst.msk [vmem:[%s8 + $0x41] sm:$0x1] %vm947, %v2661
  %v2668 = vrot.slane %v2635, 3
  %v2669 = vrot.slane %v2636, 3
  %v2670 = vsel %vm555, %v2668, %v2669
  %v2671 = vrot.slane %v2637, 3
  %v2672 = vsel %vm555, %v2669, %v2671
  %v2675 = vmax.f32 %v2634, %v2670
  %v2676 = vmax.f32 %v2635, %v2672
  %2677 = vst.msk [vmem:[%s8 + $0x3e] sm:$0xf0] %vm961, %v2675
  %2678 = vst.msk [vmem:[%s8 + $0x46] sm:$0x7f] %vm963, %v2676
  %v2681 = vrot.slane %v2638, 3
  %v2682 = vrot.slane %v2639, 3
  %v2683 = vsel %vm555, %v2681, %v2682
  %v2686 = vmax.f32 %v2637, %v2683
  %v2687 = vmax.f32 %v2638, %v2682
  %2688 = vst.msk [vmem:[%s8 + $0x4b] sm:$0xfc] %vm974, %v2686
  %2689 = vst.msk [vmem:[%s8 + $0x53] sm:$0x1f] %vm976, %v2687
  %v2690 = vld [vmem:[%s1 + $0xe0] sm:$0xff]
  %v2691 = vld [vmem:[%s1 + $0xe8] sm:$0xff]
  %v2692 = vld [vmem:[%s1 + $0xf0] sm:$0xff]
  %v2693 = vld [vmem:[%s1 + $0xf8] sm:$0xff]
  %v2694 = vld [vmem:[%s1 + $0x100] sm:$0xff]
  %v2695 = vld [vmem:[%s1 + $0x108] sm:$0xff]
  %v2696 = vld [vmem:[%s1 + $0x110] sm:$0xff]
  %v2697 = vld [vmem:[%s1 + $0x118] sm:$0xff]
  %v2698 = vld [vmem:[%s1 + $0x120] sm:$0xff]
  %v2699 = vld [vmem:[%s1 + $0x128] sm:$0xff]
  %v2700 = vld [vmem:[%s1 + $0x130] sm:$0xff]
  %v2701 = vld [vmem:[%s1 + $0x138] sm:$0xff]
  %v2702 = vld [vmem:[%s1 + $0x140] sm:$0xff]
  %v2703 = vld [vmem:[%s1 + $0x148] sm:$0xff]
  %v2704 = vld [vmem:[%s1 + $0x150] sm:$0xff]
  %v2705 = vld [vmem:[%s1 + $0x158] sm:$0xff]
  %v2706 = vld [vmem:[%s1 + $0x160] sm:$0xff]
  %v2707 = vld [vmem:[%s1 + $0x168] sm:$0xff]
  %v2708 = vld [vmem:[%s1 + $0x170] sm:$0xff]
  %v2709 = vld [vmem:[%s1 + $0x178] sm:$0xff]
  %v2710 = vld [vmem:[%s1 + $0x180] sm:$0xff]
  %v2711 = vld [vmem:[%s1 + $0x188] sm:$0xff]
  %v2712 = vld [vmem:[%s1 + $0x190] sm:$0xff]
  %v2713 = vld [vmem:[%s1 + $0x198] sm:$0xff]
  %v2714 = vld [vmem:[%s1 + $0x1a0] sm:$0xf]
  %v2715 = vld [vmem:[%s6] sm:$0xff]
  %v2716 = vld [vmem:[%s6 + $0x8] sm:$0x1]
  %v2717 = vld [vmem:[%s1 + $0xee] sm:$0xff]
  %v2718 = vld [vmem:[%s1 + $0xf6] sm:$0xff]
  %v2719 = vld [vmem:[%s1 + $0xfe] sm:$0xff]
  %v2720 = vld [vmem:[%s1 + $0x106] sm:$0xff]
  %v2721 = vld [vmem:[%s1 + $0x10e] sm:$0xff]
  %v2722 = vld [vmem:[%s1 + $0x116] sm:$0xff]
  %v2723 = vld [vmem:[%s1 + $0x11e] sm:$0xff]
  %v2724 = vld [vmem:[%s1 + $0x126] sm:$0xff]
  %v2725 = vld [vmem:[%s1 + $0x12e] sm:$0xff]
  %v2726 = vld [vmem:[%s1 + $0x136] sm:$0xff]
  %v2727 = vld [vmem:[%s1 + $0x13e] sm:$0xff]
  %v2728 = vld [vmem:[%s1 + $0x146] sm:$0xff]
  %v2729 = vld [vmem:[%s1 + $0x14e] sm:$0xff]
  %v2730 = vld [vmem:[%s1 + $0x156] sm:$0xff]
  %v2731 = vld [vmem:[%s1 + $0x15e] sm:$0xff]
  %v2732 = vld [vmem:[%s1 + $0x166] sm:$0xff]
  %v2733 = vld [vmem:[%s1 + $0x16e] sm:$0xff]
  %v2734 = vld [vmem:[%s1 + $0x176] sm:$0xff]
  %v2735 = vld [vmem:[%s1 + $0x17e] sm:$0xff]
  %v2736 = vld [vmem:[%s1 + $0x186] sm:$0xff]
  %v2737 = vld [vmem:[%s1 + $0x18e] sm:$0xff]
  %v2738 = vld [vmem:[%s1 + $0x196] sm:$0xff]
  %v2739 = vld [vmem:[%s1 + $0x19e] sm:$0xff]
  %v2740 = vld [vmem:[%s1 + $0x1a6] sm:$0xff]
  %v2741 = vld [vmem:[%s1 + $0x1ae] sm:$0xf]
  %v2742 = vld [vmem:[%s1030] sm:$0xff]
  %v2743 = vld [vmem:[%s1030 + $0x8] sm:$0x1]
  %v2745 = vsel %vm1033, %v2717, 0
  %v2748 = vsel %vm1033, %v2718, 0
  %v2751 = vsel %vm1033, %v2719, 0
  %v2754 = vsel %vm1033, %v2720, 0
  %v2757 = vsel %vm1033, %v2721, 0
  %v2760 = vsel %vm1033, %v2722, 0
  %v2763 = vsel %vm1033, %v2723, 0
  %v2766 = vsel %vm1033, %v2724, 0
  %v2769 = vsel %vm1033, %v2725, 0
  %v2772 = vsel %vm1033, %v2726, 0
  %v2775 = vsel %vm1033, %v2727, 0
  %v2778 = vsel %vm1033, %v2728, 0
  %v2781 = vsel %vm1033, %v2729, 0
  %v2784 = vsel %vm1033, %v2730, 0
  %v2787 = vsel %vm1033, %v2731, 0
  %v2790 = vsel %vm1033, %v2732, 0
  %v2793 = vsel %vm1033, %v2733, 0
  %v2796 = vsel %vm1033, %v2734, 0
  %v2799 = vsel %vm1033, %v2735, 0
  %v2802 = vsel %vm1033, %v2736, 0
  %v2805 = vsel %vm1033, %v2737, 0
  %v2808 = vsel %vm1033, %v2738, 0
  %v2811 = vsel %vm1033, %v2739, 0
  %v2814 = vsel %vm1033, %v2740, 0
  %v2817 = vsel %vm1033, %v2741, 0
  %v2820 = vsel %vm1109, %v2743, 0
  %2822 = vmatpush.msra.mxu0 0.0
  %2823 = vmatpush.msra.mxu0 0.0
  %2824 = vmatpush.msra.mxu0 0.0
  %2825 = vmatpush.msra.mxu0 0.0
  %2826 = vmatpush.msra.mxu0 0.0
  %2827 = vmatpush.msra.mxu0 0.0
  %2828 = vmatpush.msra.mxu0 0.0
  %2829 = vmatpush.msra.mxu0 0.0
  %2830 = vmatpush.msra.mxu0 0.0
  %2831 = vmatpush.msra.mxu0 0.0
  %2832 = vmatpush.msra.mxu0 0.0
  %2833 = vmatpush.msra.mxu0 0.0
  %2834 = vmatpush.msra.mxu0 0.0
  %2835 = vmatpush.msra.mxu0 0.0
  %2836 = vmatpush.msra.mxu0 %v2820
  %2837 = vmatpush.msra.mxu0 %v2742
  %2838 = vmatmul.f32.gmra.mxu0 %v2745
  %v2839 = vpop.f32.mrf.mxu0
  %v2840 = vadd.f32 0.0, %v2839
  %2841 = vmatmul.f32.gmra.mxu0 %v2748
  %v2842 = vpop.f32.mrf.mxu0
  %v2843 = vadd.f32 0.0, %v2842
  %2844 = vmatmul.f32.gmra.mxu0 %v2751
  %v2845 = vpop.f32.mrf.mxu0
  %v2846 = vadd.f32 0.0, %v2845
  %2847 = vmatmul.f32.gmra.mxu0 %v2754
  %v2848 = vpop.f32.mrf.mxu0
  %v2849 = vadd.f32 0.0, %v2848
  %2850 = vmatmul.f32.gmra.mxu0 %v2757
  %v2851 = vpop.f32.mrf.mxu0
  %v2852 = vadd.f32 0.0, %v2851
  %2853 = vmatmul.f32.gmra.mxu0 %v2760
  %v2854 = vpop.f32.mrf.mxu0
  %v2855 = vadd.f32 0.0, %v2854
  %2856 = vmatmul.f32.gmra.mxu0 %v2763
  %v2857 = vpop.f32.mrf.mxu0
  %v2858 = vadd.f32 0.0, %v2857
  %2859 = vmatmul.f32.gmra.mxu0 %v2766
  %v2860 = vpop.f32.mrf.mxu0
  %v2861 = vadd.f32 0.0, %v2860
  %2862 = vmatmul.f32.gmra.mxu0 %v2769
  %v2863 = vpop.f32.mrf.mxu0
  %v2864 = vadd.f32 0.0, %v2863
  %2865 = vmatmul.f32.gmra.mxu0 %v2772
  %v2866 = vpop.f32.mrf.mxu0
  %v2867 = vadd.f32 0.0, %v2866
  %2868 = vmatmul.f32.gmra.mxu0 %v2775
  %v2869 = vpop.f32.mrf.mxu0
  %v2870 = vadd.f32 0.0, %v2869
  %2871 = vmatmul.f32.gmra.mxu0 %v2778
  %v2872 = vpop.f32.mrf.mxu0
  %v2873 = vadd.f32 0.0, %v2872
  %2874 = vmatmul.f32.gmra.mxu0 %v2781
  %v2875 = vpop.f32.mrf.mxu0
  %v2876 = vadd.f32 0.0, %v2875
  %2877 = vmatmul.f32.gmra.mxu0 %v2784
  %v2878 = vpop.f32.mrf.mxu0
  %v2879 = vadd.f32 0.0, %v2878
  %2880 = vmatmul.f32.gmra.mxu0 %v2787
  %v2881 = vpop.f32.mrf.mxu0
  %v2882 = vadd.f32 0.0, %v2881
  %2883 = vmatmul.f32.gmra.mxu0 %v2790
  %v2884 = vpop.f32.mrf.mxu0
  %v2885 = vadd.f32 0.0, %v2884
  %2886 = vmatmul.f32.gmra.mxu0 %v2793
  %v2887 = vpop.f32.mrf.mxu0
  %v2888 = vadd.f32 0.0, %v2887
  %2889 = vmatmul.f32.gmra.mxu0 %v2796
  %v2890 = vpop.f32.mrf.mxu0
  %v2891 = vadd.f32 0.0, %v2890
  %2892 = vmatmul.f32.gmra.mxu0 %v2799
  %v2893 = vpop.f32.mrf.mxu0
  %v2894 = vadd.f32 0.0, %v2893
  %2895 = vmatmul.f32.gmra.mxu0 %v2802
  %v2896 = vpop.f32.mrf.mxu0
  %v2897 = vadd.f32 0.0, %v2896
  %2898 = vmatmul.f32.gmra.mxu0 %v2805
  %v2899 = vpop.f32.mrf.mxu0
  %v2900 = vadd.f32 0.0, %v2899
  %2901 = vmatmul.f32.gmra.mxu0 %v2808
  %v2902 = vpop.f32.mrf.mxu0
  %v2903 = vadd.f32 0.0, %v2902
  %2904 = vmatmul.f32.gmra.mxu0 %v2811
  %v2905 = vpop.f32.mrf.mxu0
  %v2906 = vadd.f32 0.0, %v2905
  %2907 = vmatmul.f32.gmra.mxu0 %v2814
  %v2908 = vpop.f32.mrf.mxu0
  %v2909 = vadd.f32 0.0, %v2908
  %2910 = vmatmul.f32.gmra.mxu0 %v2817
  %v2911 = vpop.f32.mrf.mxu0
  %v2912 = vadd.f32 0.0, %v2911
  %2913 = vdwg.mxu0
  %v2915 = vsel %vm1033, %v2690, 0
  %v2918 = vsel %vm1033, %v2691, 0
  %v2921 = vsel %vm1033, %v2692, 0
  %v2924 = vsel %vm1033, %v2693, 0
  %v2927 = vsel %vm1033, %v2694, 0
  %v2930 = vsel %vm1033, %v2695, 0
  %v2933 = vsel %vm1033, %v2696, 0
  %v2936 = vsel %vm1033, %v2697, 0
  %v2939 = vsel %vm1033, %v2698, 0
  %v2942 = vsel %vm1033, %v2699, 0
  %v2945 = vsel %vm1033, %v2700, 0
  %v2948 = vsel %vm1033, %v2701, 0
  %v2951 = vsel %vm1033, %v2702, 0
  %v2954 = vsel %vm1033, %v2703, 0
  %v2957 = vsel %vm1033, %v2704, 0
  %v2960 = vsel %vm1033, %v2705, 0
  %v2963 = vsel %vm1033, %v2706, 0
  %v2966 = vsel %vm1033, %v2707, 0
  %v2969 = vsel %vm1033, %v2708, 0
  %v2972 = vsel %vm1033, %v2709, 0
  %v2975 = vsel %vm1033, %v2710, 0
  %v2978 = vsel %vm1033, %v2711, 0
  %v2981 = vsel %vm1033, %v2712, 0
  %v2984 = vsel %vm1033, %v2713, 0
  %v2987 = vsel %vm1033, %v2714, 0
  %v2990 = vsel %vm1109, %v2716, 0
  %2992 = vmatpush.msra.mxu0 0.0
  %2993 = vmatpush.msra.mxu0 0.0
  %2994 = vmatpush.msra.mxu0 0.0
  %2995 = vmatpush.msra.mxu0 0.0
  %2996 = vmatpush.msra.mxu0 0.0
  %2997 = vmatpush.msra.mxu0 0.0
  %2998 = vmatpush.msra.mxu0 0.0
  %2999 = vmatpush.msra.mxu0 0.0
  %3000 = vmatpush.msra.mxu0 0.0
  %3001 = vmatpush.msra.mxu0 0.0
  %3002 = vmatpush.msra.mxu0 0.0
  %3003 = vmatpush.msra.mxu0 0.0
  %3004 = vmatpush.msra.mxu0 0.0
  %3005 = vmatpush.msra.mxu0 0.0
  %3006 = vmatpush.msra.mxu0 %v2990
  %3007 = vmatpush.msra.mxu0 %v2715
  %3008 = vmatmul.f32.gmra.mxu0 %v2915
  %v3009 = vpop.f32.mrf.mxu0
  %v3010 = vadd.f32 %v2840, %v3009
  %3011 = vmatmul.f32.gmra.mxu0 %v2918
  %v3012 = vpop.f32.mrf.mxu0
  %v3013 = vadd.f32 %v2843, %v3012
  %3014 = vmatmul.f32.gmra.mxu0 %v2921
  %v3015 = vpop.f32.mrf.mxu0
  %v3016 = vadd.f32 %v2846, %v3015
  %3017 = vmatmul.f32.gmra.mxu0 %v2924
  %v3018 = vpop.f32.mrf.mxu0
  %v3019 = vadd.f32 %v2849, %v3018
  %3020 = vmatmul.f32.gmra.mxu0 %v2927
  %v3021 = vpop.f32.mrf.mxu0
  %v3022 = vadd.f32 %v2852, %v3021
  %3023 = vmatmul.f32.gmra.mxu0 %v2930
  %v3024 = vpop.f32.mrf.mxu0
  %v3025 = vadd.f32 %v2855, %v3024
  %3026 = vmatmul.f32.gmra.mxu0 %v2933
  %v3027 = vpop.f32.mrf.mxu0
  %v3028 = vadd.f32 %v2858, %v3027
  %3029 = vmatmul.f32.gmra.mxu0 %v2936
  %v3030 = vpop.f32.mrf.mxu0
  %v3031 = vadd.f32 %v2861, %v3030
  %3032 = vmatmul.f32.gmra.mxu0 %v2939
  %v3033 = vpop.f32.mrf.mxu0
  %v3034 = vadd.f32 %v2864, %v3033
  %3035 = vmatmul.f32.gmra.mxu0 %v2942
  %v3036 = vpop.f32.mrf.mxu0
  %v3037 = vadd.f32 %v2867, %v3036
  %3038 = vmatmul.f32.gmra.mxu0 %v2945
  %v3039 = vpop.f32.mrf.mxu0
  %v3040 = vadd.f32 %v2870, %v3039
  %3041 = vmatmul.f32.gmra.mxu0 %v2948
  %v3042 = vpop.f32.mrf.mxu0
  %v3043 = vadd.f32 %v2873, %v3042
  %3044 = vmatmul.f32.gmra.mxu0 %v2951
  %v3045 = vpop.f32.mrf.mxu0
  %v3046 = vadd.f32 %v2876, %v3045
  %3047 = vmatmul.f32.gmra.mxu0 %v2954
  %v3048 = vpop.f32.mrf.mxu0
  %v3049 = vadd.f32 %v2879, %v3048
  %3050 = vmatmul.f32.gmra.mxu0 %v2957
  %v3051 = vpop.f32.mrf.mxu0
  %v3052 = vadd.f32 %v2882, %v3051
  %3053 = vmatmul.f32.gmra.mxu0 %v2960
  %v3054 = vpop.f32.mrf.mxu0
  %v3055 = vadd.f32 %v2885, %v3054
  %3056 = vmatmul.f32.gmra.mxu0 %v2963
  %v3057 = vpop.f32.mrf.mxu0
  %v3058 = vadd.f32 %v2888, %v3057
  %3059 = vmatmul.f32.gmra.mxu0 %v2966
  %v3060 = vpop.f32.mrf.mxu0
  %v3061 = vadd.f32 %v2891, %v3060
  %3062 = vmatmul.f32.gmra.mxu0 %v2969
  %v3063 = vpop.f32.mrf.mxu0
  %v3064 = vadd.f32 %v2894, %v3063
  %3065 = vmatmul.f32.gmra.mxu0 %v2972
  %v3066 = vpop.f32.mrf.mxu0
  %v3067 = vadd.f32 %v2897, %v3066
  %3068 = vmatmul.f32.gmra.mxu0 %v2975
  %v3069 = vpop.f32.mrf.mxu0
  %v3070 = vadd.f32 %v2900, %v3069
  %3071 = vmatmul.f32.gmra.mxu0 %v2978
  %v3072 = vpop.f32.mrf.mxu0
  %v3073 = vadd.f32 %v2903, %v3072
  %3074 = vmatmul.f32.gmra.mxu0 %v2981
  %v3075 = vpop.f32.mrf.mxu0
  %v3076 = vadd.f32 %v2906, %v3075
  %3077 = vmatmul.f32.gmra.mxu0 %v2984
  %v3078 = vpop.f32.mrf.mxu0
  %v3079 = vadd.f32 %v2909, %v3078
  %3080 = vmatmul.f32.gmra.mxu0 %v2987
  %v3081 = vpop.f32.mrf.mxu0
  %v3082 = vadd.f32 %v2912, %v3081
  %3083 = vdwg.mxu0
  %v3084 = vld [vmem:[%s1 + $0xfc] sm:$0xff]
  %v3085 = vld [vmem:[%s1 + $0x104] sm:$0xff]
  %v3086 = vld [vmem:[%s1 + $0x10c] sm:$0xff]
  %v3087 = vld [vmem:[%s1 + $0x114] sm:$0xff]
  %v3088 = vld [vmem:[%s1 + $0x11c] sm:$0xff]
  %v3089 = vld [vmem:[%s1 + $0x124] sm:$0xff]
  %v3090 = vld [vmem:[%s1 + $0x12c] sm:$0xff]
  %v3091 = vld [vmem:[%s1 + $0x134] sm:$0xff]
  %v3092 = vld [vmem:[%s1 + $0x13c] sm:$0xff]
  %v3093 = vld [vmem:[%s1 + $0x144] sm:$0xff]
  %v3094 = vld [vmem:[%s1 + $0x14c] sm:$0xff]
  %v3095 = vld [vmem:[%s1 + $0x154] sm:$0xff]
  %v3096 = vld [vmem:[%s1 + $0x15c] sm:$0xff]
  %v3097 = vld [vmem:[%s1 + $0x164] sm:$0xff]
  %v3098 = vld [vmem:[%s1 + $0x16c] sm:$0xff]
  %v3099 = vld [vmem:[%s1 + $0x174] sm:$0xff]
  %v3100 = vld [vmem:[%s1 + $0x17c] sm:$0xff]
  %v3101 = vld [vmem:[%s1 + $0x184] sm:$0xff]
  %v3102 = vld [vmem:[%s1 + $0x18c] sm:$0xff]
  %v3103 = vld [vmem:[%s1 + $0x194] sm:$0xff]
  %v3104 = vld [vmem:[%s1 + $0x19c] sm:$0xff]
  %v3105 = vld [vmem:[%s1 + $0x1a4] sm:$0xff]
  %v3106 = vld [vmem:[%s1 + $0x1ac] sm:$0xff]
  %v3107 = vld [vmem:[%s1 + $0x1b4] sm:$0xff]
  %v3108 = vld [vmem:[%s1 + $0x1bc] sm:$0xf]
  %v3109 = vld [vmem:[%s1400] sm:$0xff]
  %v3110 = vld [vmem:[%s1400 + $0x8] sm:$0x1]
  %v3112 = vsel %vm1033, %v3084, 0
  %v3115 = vsel %vm1033, %v3085, 0
  %v3118 = vsel %vm1033, %v3086, 0
  %v3121 = vsel %vm1033, %v3087, 0
  %v3124 = vsel %vm1033, %v3088, 0
  %v3127 = vsel %vm1033, %v3089, 0
  %v3130 = vsel %vm1033, %v3090, 0
  %v3133 = vsel %vm1033, %v3091, 0
  %v3136 = vsel %vm1033, %v3092, 0
  %v3139 = vsel %vm1033, %v3093, 0
  %v3142 = vsel %vm1033, %v3094, 0
  %v3145 = vsel %vm1033, %v3095, 0
  %v3148 = vsel %vm1033, %v3096, 0
  %v3151 = vsel %vm1033, %v3097, 0
  %v3154 = vsel %vm1033, %v3098, 0
  %v3157 = vsel %vm1033, %v3099, 0
  %v3160 = vsel %vm1033, %v3100, 0
  %v3163 = vsel %vm1033, %v3101, 0
  %v3166 = vsel %vm1033, %v3102, 0
  %v3169 = vsel %vm1033, %v3103, 0
  %v3172 = vsel %vm1033, %v3104, 0
  %v3175 = vsel %vm1033, %v3105, 0
  %v3178 = vsel %vm1033, %v3106, 0
  %v3181 = vsel %vm1033, %v3107, 0
  %v3184 = vsel %vm1033, %v3108, 0
  %v3187 = vsel %vm1109, %v3110, 0
  %3189 = vmatpush.msra.mxu0 0.0
  %3190 = vmatpush.msra.mxu0 0.0
  %3191 = vmatpush.msra.mxu0 0.0
  %3192 = vmatpush.msra.mxu0 0.0
  %3193 = vmatpush.msra.mxu0 0.0
  %3194 = vmatpush.msra.mxu0 0.0
  %3195 = vmatpush.msra.mxu0 0.0
  %3196 = vmatpush.msra.mxu0 0.0
  %3197 = vmatpush.msra.mxu0 0.0
  %3198 = vmatpush.msra.mxu0 0.0
  %3199 = vmatpush.msra.mxu0 0.0
  %3200 = vmatpush.msra.mxu0 0.0
  %3201 = vmatpush.msra.mxu0 0.0
  %3202 = vmatpush.msra.mxu0 0.0
  %3203 = vmatpush.msra.mxu0 %v3187
  %3204 = vmatpush.msra.mxu0 %v3109
  %3205 = vmatmul.f32.gmra.mxu0 %v3112
  %v3206 = vpop.f32.mrf.mxu0
  %v3207 = vadd.f32 0.0, %v3206
  %3208 = vmatmul.f32.gmra.mxu0 %v3115
  %v3209 = vpop.f32.mrf.mxu0
  %v3210 = vadd.f32 0.0, %v3209
  %3211 = vmatmul.f32.gmra.mxu0 %v3118
  %v3212 = vpop.f32.mrf.mxu0
  %v3213 = vadd.f32 0.0, %v3212
  %3214 = vmatmul.f32.gmra.mxu0 %v3121
  %v3215 = vpop.f32.mrf.mxu0
  %v3216 = vadd.f32 0.0, %v3215
  %3217 = vmatmul.f32.gmra.mxu0 %v3124
  %v3218 = vpop.f32.mrf.mxu0
  %v3219 = vadd.f32 0.0, %v3218
  %3220 = vmatmul.f32.gmra.mxu0 %v3127
  %v3221 = vpop.f32.mrf.mxu0
  %v3222 = vadd.f32 0.0, %v3221
  %3223 = vmatmul.f32.gmra.mxu0 %v3130
  %v3224 = vpop.f32.mrf.mxu0
  %v3225 = vadd.f32 0.0, %v3224
  %3226 = vmatmul.f32.gmra.mxu0 %v3133
  %v3227 = vpop.f32.mrf.mxu0
  %v3228 = vadd.f32 0.0, %v3227
  %3229 = vmatmul.f32.gmra.mxu0 %v3136
  %v3230 = vpop.f32.mrf.mxu0
  %v3231 = vadd.f32 0.0, %v3230
  %3232 = vmatmul.f32.gmra.mxu0 %v3139
  %v3233 = vpop.f32.mrf.mxu0
  %v3234 = vadd.f32 0.0, %v3233
  %3235 = vmatmul.f32.gmra.mxu0 %v3142
  %v3236 = vpop.f32.mrf.mxu0
  %v3237 = vadd.f32 0.0, %v3236
  %3238 = vmatmul.f32.gmra.mxu0 %v3145
  %v3239 = vpop.f32.mrf.mxu0
  %v3240 = vadd.f32 0.0, %v3239
  %3241 = vmatmul.f32.gmra.mxu0 %v3148
  %v3242 = vpop.f32.mrf.mxu0
  %v3243 = vadd.f32 0.0, %v3242
  %3244 = vmatmul.f32.gmra.mxu0 %v3151
  %v3245 = vpop.f32.mrf.mxu0
  %v3246 = vadd.f32 0.0, %v3245
  %3247 = vmatmul.f32.gmra.mxu0 %v3154
  %v3248 = vpop.f32.mrf.mxu0
  %v3249 = vadd.f32 0.0, %v3248
  %3250 = vmatmul.f32.gmra.mxu0 %v3157
  %v3251 = vpop.f32.mrf.mxu0
  %v3252 = vadd.f32 0.0, %v3251
  %3253 = vmatmul.f32.gmra.mxu0 %v3160
  %v3254 = vpop.f32.mrf.mxu0
  %v3255 = vadd.f32 0.0, %v3254
  %3256 = vmatmul.f32.gmra.mxu0 %v3163
  %v3257 = vpop.f32.mrf.mxu0
  %v3258 = vadd.f32 0.0, %v3257
  %3259 = vmatmul.f32.gmra.mxu0 %v3166
  %v3260 = vpop.f32.mrf.mxu0
  %v3261 = vadd.f32 0.0, %v3260
  %3262 = vmatmul.f32.gmra.mxu0 %v3169
  %v3263 = vpop.f32.mrf.mxu0
  %v3264 = vadd.f32 0.0, %v3263
  %3265 = vmatmul.f32.gmra.mxu0 %v3172
  %v3266 = vpop.f32.mrf.mxu0
  %v3267 = vadd.f32 0.0, %v3266
  %3268 = vmatmul.f32.gmra.mxu0 %v3175
  %v3269 = vpop.f32.mrf.mxu0
  %v3270 = vadd.f32 0.0, %v3269
  %3271 = vmatmul.f32.gmra.mxu0 %v3178
  %v3272 = vpop.f32.mrf.mxu0
  %v3273 = vadd.f32 0.0, %v3272
  %3274 = vmatmul.f32.gmra.mxu0 %v3181
  %v3275 = vpop.f32.mrf.mxu0
  %v3276 = vadd.f32 0.0, %v3275
  %3277 = vmatmul.f32.gmra.mxu0 %v3184
  %v3278 = vpop.f32.mrf.mxu0
  %v3279 = vadd.f32 0.0, %v3278
  %3280 = vdwg.mxu0
  %v3281 = vadd.f32 %v3010, %v3207
  %v3282 = vadd.f32 %v3013, %v3210
  %v3283 = vadd.f32 %v3016, %v3213
  %v3284 = vadd.f32 %v3019, %v3216
  %v3285 = vadd.f32 %v3022, %v3219
  %v3286 = vadd.f32 %v3025, %v3222
  %v3287 = vadd.f32 %v3028, %v3225
  %v3288 = vadd.f32 %v3031, %v3228
  %v3289 = vadd.f32 %v3034, %v3231
  %v3290 = vadd.f32 %v3037, %v3234
  %v3291 = vadd.f32 %v3040, %v3237
  %v3292 = vadd.f32 %v3043, %v3240
  %v3293 = vadd.f32 %v3046, %v3243
  %v3294 = vadd.f32 %v3049, %v3246
  %v3295 = vadd.f32 %v3052, %v3249
  %v3296 = vadd.f32 %v3055, %v3252
  %v3297 = vadd.f32 %v3058, %v3255
  %v3298 = vadd.f32 %v3061, %v3258
  %v3299 = vadd.f32 %v3064, %v3261
  %v3300 = vadd.f32 %v3067, %v3264
  %v3301 = vadd.f32 %v3070, %v3267
  %v3302 = vadd.f32 %v3073, %v3270
  %v3303 = vadd.f32 %v3076, %v3273
  %v3304 = vadd.f32 %v3079, %v3276
  %v3305 = vadd.f32 %v3082, %v3279
  %v3306 = vadd.f32 %v3281, %v1599
  %v3307 = vadd.f32 %v3282, %v1599
  %v3308 = vadd.f32 %v3283, %v1599
  %v3309 = vadd.f32 %v3284, %v1599
  %v3310 = vadd.f32 %v3285, %v1599
  %v3311 = vadd.f32 %v3286, %v1599
  %v3312 = vadd.f32 %v3287, %v1599
  %v3313 = vadd.f32 %v3288, %v1599
  %v3314 = vadd.f32 %v3289, %v1599
  %v3315 = vadd.f32 %v3290, %v1599
  %v3316 = vadd.f32 %v3291, %v1599
  %v3317 = vadd.f32 %v3292, %v1599
  %v3318 = vadd.f32 %v3293, %v1599
  %v3319 = vadd.f32 %v3294, %v1599
  %v3320 = vadd.f32 %v3295, %v1599
  %v3321 = vadd.f32 %v3296, %v1599
  %v3322 = vadd.f32 %v3297, %v1599
  %v3323 = vadd.f32 %v3298, %v1599
  %v3324 = vadd.f32 %v3299, %v1599
  %v3325 = vadd.f32 %v3300, %v1599
  %v3326 = vadd.f32 %v3301, %v1599
  %v3327 = vadd.f32 %v3302, %v1599
  %v3328 = vadd.f32 %v3303, %v1599
  %v3329 = vadd.f32 %v3304, %v1599
  %v3330 = vadd.f32 %v3305, %v1599
  %vm3331 = vcmp.ge.f32.partialorder %v3306, 0.0
  %vm3332 = vcmp.ge.f32.partialorder %v3307, 0.0
  %vm3333 = vcmp.ge.f32.partialorder %v3308, 0.0
  %vm3334 = vcmp.ge.f32.partialorder %v3309, 0.0
  %vm3335 = vcmp.ge.f32.partialorder %v3310, 0.0
  %vm3336 = vcmp.ge.f32.partialorder %v3311, 0.0
  %vm3337 = vcmp.ge.f32.partialorder %v3312, 0.0
  %vm3338 = vcmp.ge.f32.partialorder %v3313, 0.0
  %vm3339 = vcmp.ge.f32.partialorder %v3314, 0.0
  %vm3340 = vcmp.ge.f32.partialorder %v3315, 0.0
  %vm3341 = vcmp.ge.f32.partialorder %v3316, 0.0
  %vm3342 = vcmp.ge.f32.partialorder %v3317, 0.0
  %vm3343 = vcmp.ge.f32.partialorder %v3318, 0.0
  %vm3344 = vcmp.ge.f32.partialorder %v3319, 0.0
  %vm3345 = vcmp.ge.f32.partialorder %v3320, 0.0
  %vm3346 = vcmp.ge.f32.partialorder %v3321, 0.0
  %vm3347 = vcmp.ge.f32.partialorder %v3322, 0.0
  %vm3348 = vcmp.ge.f32.partialorder %v3323, 0.0
  %vm3349 = vcmp.ge.f32.partialorder %v3324, 0.0
  %vm3350 = vcmp.ge.f32.partialorder %v3325, 0.0
  %vm3351 = vcmp.ge.f32.partialorder %v3326, 0.0
  %vm3352 = vcmp.ge.f32.partialorder %v3327, 0.0
  %vm3353 = vcmp.ge.f32.partialorder %v3328, 0.0
  %vm3354 = vcmp.ge.f32.partialorder %v3329, 0.0
  %vm3355 = vcmp.ge.f32.partialorder %v3330, 0.0
  %v3356 = vmul.f32 %v3306, 0.1
  %v3357 = vmul.f32 %v3307, 0.1
  %v3358 = vmul.f32 %v3308, 0.1
  %v3359 = vmul.f32 %v3309, 0.1
  %v3360 = vmul.f32 %v3310, 0.1
  %v3361 = vmul.f32 %v3311, 0.1
  %v3362 = vmul.f32 %v3312, 0.1
  %v3363 = vmul.f32 %v3313, 0.1
  %v3364 = vmul.f32 %v3314, 0.1
  %v3365 = vmul.f32 %v3315, 0.1
  %v3366 = vmul.f32 %v3316, 0.1
  %v3367 = vmul.f32 %v3317, 0.1
  %v3368 = vmul.f32 %v3318, 0.1
  %v3369 = vmul.f32 %v3319, 0.1
  %v3370 = vmul.f32 %v3320, 0.1
  %v3371 = vmul.f32 %v3321, 0.1
  %v3372 = vmul.f32 %v3322, 0.1
  %v3373 = vmul.f32 %v3323, 0.1
  %v3374 = vmul.f32 %v3324, 0.1
  %v3375 = vmul.f32 %v3325, 0.1
  %v3376 = vmul.f32 %v3326, 0.1
  %v3377 = vmul.f32 %v3327, 0.1
  %v3378 = vmul.f32 %v3328, 0.1
  %v3379 = vmul.f32 %v3329, 0.1
  %v3380 = vmul.f32 %v3330, 0.1
  %v3381 = vsel %vm3331, %v3306, %v3356
  %v3382 = vsel %vm3332, %v3307, %v3357
  %v3383 = vsel %vm3333, %v3308, %v3358
  %v3384 = vsel %vm3334, %v3309, %v3359
  %v3385 = vsel %vm3335, %v3310, %v3360
  %v3386 = vsel %vm3336, %v3311, %v3361
  %v3387 = vsel %vm3337, %v3312, %v3362
  %v3388 = vsel %vm3338, %v3313, %v3363
  %v3389 = vsel %vm3339, %v3314, %v3364
  %v3390 = vsel %vm3340, %v3315, %v3365
  %v3391 = vsel %vm3341, %v3316, %v3366
  %v3392 = vsel %vm3342, %v3317, %v3367
  %v3393 = vsel %vm3343, %v3318, %v3368
  %v3394 = vsel %vm3344, %v3319, %v3369
  %v3395 = vsel %vm3345, %v3320, %v3370
  %v3396 = vsel %vm3346, %v3321, %v3371
  %v3397 = vsel %vm3347, %v3322, %v3372
  %v3398 = vsel %vm3348, %v3323, %v3373
  %v3399 = vsel %vm3349, %v3324, %v3374
  %v3400 = vsel %vm3350, %v3325, %v3375
  %v3401 = vsel %vm3351, %v3326, %v3376
  %v3402 = vsel %vm3352, %v3327, %v3377
  %v3403 = vsel %vm3353, %v3328, %v3378
  %v3404 = vsel %vm3354, %v3329, %v3379
  %v3405 = vsel %vm3355, %v3330, %v3380
  %v3406 = vsel %vm1701, %v3381, 0.0
  %v3407 = vsel %vm1701, %v3382, 0.0
  %v3408 = vadd.f32 %v3406, %v3407
  %v3409 = vsel %vm1701, %v3383, 0.0
  %v3410 = vadd.f32 %v3408, %v3409
  %v3411 = vsel %vm1701, %v3384, 0.0
  %v3412 = vadd.f32 %v3410, %v3411
  %v3413 = vsel %vm1701, %v3385, 0.0
  %v3414 = vadd.f32 %v3412, %v3413
  %v3415 = vsel %vm1701, %v3386, 0.0
  %v3416 = vadd.f32 %v3414, %v3415
  %v3417 = vsel %vm1701, %v3387, 0.0
  %v3418 = vadd.f32 %v3416, %v3417
  %v3419 = vsel %vm1701, %v3388, 0.0
  %v3420 = vadd.f32 %v3418, %v3419
  %v3421 = vsel %vm1701, %v3389, 0.0
  %v3422 = vadd.f32 %v3420, %v3421
  %v3423 = vsel %vm1701, %v3390, 0.0
  %v3424 = vadd.f32 %v3422, %v3423
  %v3425 = vsel %vm1701, %v3391, 0.0
  %v3426 = vadd.f32 %v3424, %v3425
  %v3427 = vsel %vm1701, %v3392, 0.0
  %v3428 = vadd.f32 %v3426, %v3427
  %v3429 = vsel %vm1701, %v3393, 0.0
  %v3430 = vadd.f32 %v3428, %v3429
  %v3431 = vsel %vm1701, %v3394, 0.0
  %v3432 = vadd.f32 %v3430, %v3431
  %v3433 = vsel %vm1701, %v3395, 0.0
  %v3434 = vadd.f32 %v3432, %v3433
  %v3435 = vsel %vm1701, %v3396, 0.0
  %v3436 = vadd.f32 %v3434, %v3435
  %v3437 = vsel %vm1701, %v3397, 0.0
  %v3438 = vadd.f32 %v3436, %v3437
  %v3439 = vsel %vm1701, %v3398, 0.0
  %v3440 = vadd.f32 %v3438, %v3439
  %v3441 = vsel %vm1701, %v3399, 0.0
  %v3442 = vadd.f32 %v3440, %v3441
  %v3443 = vsel %vm1701, %v3400, 0.0
  %v3444 = vadd.f32 %v3442, %v3443
  %v3445 = vsel %vm1701, %v3401, 0.0
  %v3446 = vadd.f32 %v3444, %v3445
  %v3447 = vsel %vm1701, %v3402, 0.0
  %v3448 = vadd.f32 %v3446, %v3447
  %v3449 = vsel %vm1701, %v3403, 0.0
  %v3450 = vadd.f32 %v3448, %v3449
  %v3451 = vsel %vm1701, %v3404, 0.0
  %v3452 = vadd.f32 %v3450, %v3451
  %v3453 = vsel %vm1749, %v3405, 0.0
  %v3454 = vadd.f32 %v3452, %v3453
  %v3455 = vrot.slane %v3454, 4
  %v3456 = vadd.f32 %v3454, %v3455
  %v3457 = vrot.slane %v3456, 2
  %v3458 = vadd.f32 %v3456, %v3457
  %v3459 = vrot.slane %v3458, 1
  %v3460 = vadd.f32 %v3458, %v3459
  %v3461 = vmul.f32 %v3460, %v1764
  %3462 = vst.msk [vmem:[%s9 + $0x1] sm:$0x1] %vm1766, %v3461
  // Predicated region
  $region34: #{csp_forward.4} parent=0 // pred_check
    _
  $region35: #{csp_forward.4} parent=0 // pred_check_branch
    %3464 = sbr.rel (0) target = $region37
  $region36: #{csp_forward.4} parent=0 // pred_region
    _
  $region37: #{csp_forward.4} parent=0 // pred_fallthru
    _
  // Predicated region
  $region38: #{csp_forward.4} parent=0 // pred_check
    _
  $region39: #{csp_forward.4} parent=0 // pred_check_branch
    %3466 = sbr.rel (0) target = $region41
  $region40: #{csp_forward.4} parent=0 // pred_region
    _
  $region41: #{csp_forward.4} parent=0 // pred_fallthru
    _
  // Predicated region
  $region42: #{csp_forward.4} parent=0 // pred_check
    _
  $region43: #{csp_forward.4} parent=0 // pred_check_branch
    %3468 = sbr.rel (0) target = $region45
  $region44: #{csp_forward.4} parent=0 // pred_region
    _
  $region45: #{csp_forward.4} parent=0 // pred_fallthru
    _
  // Predicated region
  $region46: #{csp_forward.4} parent=0 // pred_check
    _
  $region47: #{csp_forward.4} parent=0 // pred_check_branch
    %3470 = sbr.rel (0) target = $region49
  $region48: #{csp_forward.4} parent=0 // pred_region
    _
  $region49: #{csp_forward.4} parent=0 // pred_fallthru
    _

// kernel: csp_forward.5
$region0: #{csp_forward.5}
  #allocation0 [shape = 'u32[]', space=smem, size = 0x4, offset = 0x4, fixed_abs, tag = 'smem constant byte address 0x4 - core index']
  #allocation1 [shape = 'u32[72,128]{1,0:T(1,128)}', space=vmem, size = 0x9000, scoped, tag = 'internal scratch']
  %s0 = inlined_call_operand.smem [shape: u32[30], index: -1, kind: input, shape index: {}]
  %s1 = sld [smem:[%s0]]
  %s2 = scalar_lea.smem %s0, 1
  %s3 = sld [smem:[%s2]]
  %s4 = scalar_lea.smem %s0, 2
  %s5 = sld [smem:[%s4]]
  %s6 = scalar_lea.smem %s0, 3
  %s7 = sld [smem:[%s6]]
  %s8 = scalar_lea.smem %s0, 4
  %s9 = sld [smem:[%s8]]
  %s10 = scalar_lea.smem %s0, 5
  %s11 = sld [smem:[%s10]]
  %s12 = scalar_lea.smem %s0, 6
  %s13 = sld [smem:[%s12]]
  %s14 = scalar_lea.smem %s0, 7
  %s15 = sld [smem:[%s14]]
  %s16 = scalar_lea.smem %s0, 8
  %s17 = sld [smem:[%s16]]
  %s18 = scalar_lea.smem %s0, 9
  %s19 = sld [smem:[%s18]]
  %s20 = scalar_lea.smem %s0, 10
  %s21 = sld [smem:[%s20]]
  %s22 = scalar_lea.smem %s0, 11
  %s23 = sld [smem:[%s22]]
  %s24 = scalar_lea.smem %s0, 12
  %s25 = sld [smem:[%s24]]
  %s26 = scalar_lea.smem %s0, 13
  %s27 = sld [smem:[%s26]]
  %s28 = scalar_lea.smem %s0, 14
  %s29 = sld [smem:[%s28]]
  %s30 = scalar_lea.smem %s0, 15
  %s31 = sld [smem:[%s30]]
  %s32 = scalar_lea.smem %s0, 16
  %s33 = sld [smem:[%s32]]
  %s34 = scalar_lea.smem %s0, 17
  %s35 = sld [smem:[%s34]]
  %s36 = scalar_lea.smem %s0, 18
  %s37 = sld [smem:[%s36]]
  %s38 = scalar_lea.smem %s0, 19
  %s39 = sld [smem:[%s38]]
  %s40 = scalar_lea.smem %s0, 20
  %s41 = sld [smem:[%s40]]
  %s42 = scalar_lea.smem %s0, 21
  %s43 = sld [smem:[%s42]]
  %s44 = scalar_lea.smem %s0, 22
  %s45 = sld [smem:[%s44]]
  %s46 = scalar_lea.smem %s0, 23
  %s47 = sld [smem:[%s46]]
  %s48 = scalar_lea.smem %s0, 24
  %s49 = sld [smem:[%s48]]
  %s50 = scalar_lea.smem %s0, 25
  %s51 = sld [smem:[%s50]]
  %s52 = scalar_lea.smem %s0, 26
  %s53 = sld [smem:[%s52]]
  %s54 = scalar_lea.smem %s0, 27
  %s55 = sld [smem:[%s54]]
  %s56 = scalar_lea.smem %s0, 28
  %s57 = sld [smem:[%s56]]
  %s58 = scalar_lea.smem %s0, 29
  %s59 = sld [smem:[%s58]]
  %60 = xla_tuple %s57, %s59
  %s61 = sld [smem:[#allocation0]]
  $region130: #{csp_forward.5} parent=0
    _
  %s63 = ssub.s32 1, %s61
  %s64 = scalar_select 0, %s63, %s61
  $region1: #{csp_forward.5} parent=0
    #allocation2 [shape = 'u8[1024]{0}', space=vmem, size = 0x400, scoped, tag = 'output window, operand 1, single buffered']
    #allocation3 [shape = 's32[1]{0}', space=sflag, size = 0x4, scoped, tag = 'scoped memory for csp_forward.5']
    %65 = vsyncpa [#allocation3], 0
    // Predicated region
    $region2: #{csp_forward.5} parent=1 // pred_check
      _
    $region3: #{csp_forward.5} parent=1 // pred_check_branch
      %67 = sbr.rel (0) target = $region5
    $region4: #{csp_forward.5} parent=1 // pred_region
      _
    $region5: #{csp_forward.5} parent=1 // pred_fallthru
      _
    // Predicated region
    $region6: #{csp_forward.5} parent=1 // pred_check
      _
    $region7: #{csp_forward.5} parent=1 // pred_check_branch
      %69 = sbr.rel (0) target = $region9
    $region8: #{csp_forward.5} parent=1 // pred_region
      _
    $region9: #{csp_forward.5} parent=1 // pred_fallthru
      _
    // Predicated region
    $region10: #{csp_forward.5} parent=1 // pred_check
      _
    $region11: #{csp_forward.5} parent=1 // pred_check_branch
      %71 = sbr.rel (0) target = $region13
    $region12: #{csp_forward.5} parent=1 // pred_region
      _
    $region13: #{csp_forward.5} parent=1 // pred_fallthru
      _
    // Predicated region
    $region14: #{csp_forward.5} parent=1 // pred_check
      _
    $region15: #{csp_forward.5} parent=1 // pred_check_branch
      %73 = sbr.rel (0) target = $region17
    $region16: #{csp_forward.5} parent=1 // pred_region
      _
    $region17: #{csp_forward.5} parent=1 // pred_fallthru
      _
    // Predicated region
    $region18: #{csp_forward.5} parent=1 // pred_check
      _
    $region19: #{csp_forward.5} parent=1 // pred_check_branch
      %75 = sbr.rel (0) target = $region21
    $region20: #{csp_forward.5} parent=1 // pred_region
      _
    $region21: #{csp_forward.5} parent=1 // pred_fallthru
      _
    // Predicated region
    $region22: #{csp_forward.5} parent=1 // pred_check
      _
    $region23: #{csp_forward.5} parent=1 // pred_check_branch
      %77 = sbr.rel (0) target = $region25
    $region24: #{csp_forward.5} parent=1 // pred_region
      _
    $region25: #{csp_forward.5} parent=1 // pred_fallthru
      _
    // Predicated region
    $region26: #{csp_forward.5} parent=1 // pred_check
      _
    $region27: #{csp_forward.5} parent=1 // pred_check_branch
      %79 = sbr.rel (0) target = $region29
    $region28: #{csp_forward.5} parent=1 // pred_region
      _
    $region29: #{csp_forward.5} parent=1 // pred_fallthru
      _
    // Predicated region
    $region30: #{csp_forward.5} parent=1 // pred_check
      _
    $region31: #{csp_forward.5} parent=1 // pred_check_branch
      %81 = sbr.rel (0) target = $region33
    $region32: #{csp_forward.5} parent=1 // pred_region
      _
    $region33: #{csp_forward.5} parent=1 // pred_fallthru
      _
    // Predicated region
    $region34: #{csp_forward.5} parent=1 // pred_check
      _
    $region35: #{csp_forward.5} parent=1 // pred_check_branch
      %83 = sbr.rel (0) target = $region37
    $region36: #{csp_forward.5} parent=1 // pred_region
      _
    $region37: #{csp_forward.5} parent=1 // pred_fallthru
      _
    // Predicated region
    $region38: #{csp_forward.5} parent=1 // pred_check
      _
    $region39: #{csp_forward.5} parent=1 // pred_check_branch
      %85 = sbr.rel (0) target = $region41
    $region40: #{csp_forward.5} parent=1 // pred_region
      _
    $region41: #{csp_forward.5} parent=1 // pred_fallthru
      _
    // Predicated region
    $region42: #{csp_forward.5} parent=1 // pred_check
      _
    $region43: #{csp_forward.5} parent=1 // pred_check_branch
      %87 = sbr.rel (0) target = $region45
    $region44: #{csp_forward.5} parent=1 // pred_region
      _
    $region45: #{csp_forward.5} parent=1 // pred_fallthru
      _
    // Predicated region
    $region46: #{csp_forward.5} parent=1 // pred_check
      _
    $region47: #{csp_forward.5} parent=1 // pred_check_branch
      %89 = sbr.rel (0) target = $region49
    $region48: #{csp_forward.5} parent=1 // pred_region
      _
    $region49: #{csp_forward.5} parent=1 // pred_fallthru
      _
    // Predicated region
    $region50: #{csp_forward.5} parent=1 // pred_check
      _
    $region51: #{csp_forward.5} parent=1 // pred_check_branch
      %91 = sbr.rel (0) target = $region53
    $region52: #{csp_forward.5} parent=1 // pred_region
      _
    $region53: #{csp_forward.5} parent=1 // pred_fallthru
      _
    // Predicated region
    $region54: #{csp_forward.5} parent=1 // pred_check
      _
    $region55: #{csp_forward.5} parent=1 // pred_check_branch
      %93 = sbr.rel (0) target = $region57
    $region56: #{csp_forward.5} parent=1 // pred_region
      _
    $region57: #{csp_forward.5} parent=1 // pred_fallthru
      _
    // Predicated region
    $region58: #{csp_forward.5} parent=1 // pred_check
      _
    $region59: #{csp_forward.5} parent=1 // pred_check_branch
      %95 = sbr.rel (0) target = $region61
    $region60: #{csp_forward.5} parent=1 // pred_region
      _
    $region61: #{csp_forward.5} parent=1 // pred_fallthru
      _
    // Predicated region
    $region62: #{csp_forward.5} parent=1 // pred_check
      _
    $region63: #{csp_forward.5} parent=1 // pred_check_branch
      %97 = sbr.rel (0) target = $region65
    $region64: #{csp_forward.5} parent=1 // pred_region
      _
    $region65: #{csp_forward.5} parent=1 // pred_fallthru
      _
    // Predicated region
    $region66: #{csp_forward.5} parent=1 // pred_check
      _
    $region67: #{csp_forward.5} parent=1 // pred_check_branch
      %99 = sbr.rel (0) target = $region69
    $region68: #{csp_forward.5} parent=1 // pred_region
      _
    $region69: #{csp_forward.5} parent=1 // pred_fallthru
      _
    // Predicated region
    $region70: #{csp_forward.5} parent=1 // pred_check
      _
    $region71: #{csp_forward.5} parent=1 // pred_check_branch
      %101 = sbr.rel (0) target = $region73
    $region72: #{csp_forward.5} parent=1 // pred_region
      _
    $region73: #{csp_forward.5} parent=1 // pred_fallthru
      _
    // Predicated region
    $region74: #{csp_forward.5} parent=1 // pred_check
      _
    $region75: #{csp_forward.5} parent=1 // pred_check_branch
      %103 = sbr.rel (0) target = $region77
    $region76: #{csp_forward.5} parent=1 // pred_region
      _
    $region77: #{csp_forward.5} parent=1 // pred_fallthru
      _
    // Predicated region
    $region78: #{csp_forward.5} parent=1 // pred_check
      _
    $region79: #{csp_forward.5} parent=1 // pred_check_branch
      %105 = sbr.rel (0) target = $region81
    $region80: #{csp_forward.5} parent=1 // pred_region
      _
    $region81: #{csp_forward.5} parent=1 // pred_fallthru
      _
    // Predicated region
    $region82: #{csp_forward.5} parent=1 // pred_check
      _
    $region83: #{csp_forward.5} parent=1 // pred_check_branch
      %107 = sbr.rel (0) target = $region85
    $region84: #{csp_forward.5} parent=1 // pred_region
      _
    $region85: #{csp_forward.5} parent=1 // pred_fallthru
      _
    // Predicated region
    $region86: #{csp_forward.5} parent=1 // pred_check
      _
    $region87: #{csp_forward.5} parent=1 // pred_check_branch
      %109 = sbr.rel (0) target = $region89
    $region88: #{csp_forward.5} parent=1 // pred_region
      _
    $region89: #{csp_forward.5} parent=1 // pred_fallthru
      _
    // Predicated region
    $region90: #{csp_forward.5} parent=1 // pred_check
      _
    $region91: #{csp_forward.5} parent=1 // pred_check_branch
      %111 = sbr.rel (0) target = $region93
    $region92: #{csp_forward.5} parent=1 // pred_region
      _
    $region93: #{csp_forward.5} parent=1 // pred_fallthru
      _
    // Predicated region
    $region94: #{csp_forward.5} parent=1 // pred_check
      _
    $region95: #{csp_forward.5} parent=1 // pred_check_branch
      %113 = sbr.rel (0) target = $region97
    $region96: #{csp_forward.5} parent=1 // pred_region
      _
    $region97: #{csp_forward.5} parent=1 // pred_fallthru
      _
    // Predicated region
    $region98: #{csp_forward.5} parent=1 // pred_check
      _
    $region99: #{csp_forward.5} parent=1 // pred_check_branch
      %115 = sbr.rel (0) target = $region101
    $region100: #{csp_forward.5} parent=1 // pred_region
      _
    $region101: #{csp_forward.5} parent=1 // pred_fallthru
      _
    // Predicated region
    $region102: #{csp_forward.5} parent=1 // pred_check
      _
    $region103: #{csp_forward.5} parent=1 // pred_check_branch
      %117 = sbr.rel (0) target = $region105
    $region104: #{csp_forward.5} parent=1 // pred_region
      _
    $region105: #{csp_forward.5} parent=1 // pred_fallthru
      _
    // Predicated region
    $region106: #{csp_forward.5} parent=1 // pred_check
      _
    $region107: #{csp_forward.5} parent=1 // pred_check_branch
      %119 = sbr.rel (0) target = $region109
    $region108: #{csp_forward.5} parent=1 // pred_region
      _
    $region109: #{csp_forward.5} parent=1 // pred_fallthru
      _
    // Predicated region
    $region110: #{csp_forward.5} parent=1 // pred_check
      _
    $region111: #{csp_forward.5} parent=1 // pred_check_branch
      %121 = sbr.rel (0) target = $region113
    $region112: #{csp_forward.5} parent=1 // pred_region
      _
    $region113: #{csp_forward.5} parent=1 // pred_fallthru
      _
    %v122 = vld [vmem:[%s1] sm:$0xff]
    %v123 = vld [vmem:[%s1 + $0x8] sm:$0xf]
    %v124 = vld [vmem:[%s7] sm:$0xff]
    %v125 = vld [vmem:[%s7 + $0x8] sm:$0xff]
    %v126 = vld [vmem:[%s7 + $0x10] sm:$0xff]
    %v127 = vld [vmem:[%s7 + $0x18] sm:$0xff]
    %v128 = vld [vmem:[%s7 + $0x20] sm:$0xff]
    %v129 = vld [vmem:[%s7 + $0x28] sm:$0xff]
    %v130 = vld [vmem:[%s7 + $0x30] sm:$0xff]
    %v131 = vld [vmem:[%s7 + $0x38] sm:$0xff]
    %v132 = vld [vmem:[%s7 + $0x40] sm:$0xff]
    %v133 = vld [vmem:[%s7 + $0x48] sm:$0xff]
    %v134 = vld [vmem:[%s7 + $0x50] sm:$0xff]
    %v135 = vld [vmem:[%s7 + $0x58] sm:$0xff]
    %v136 = vld [vmem:[%s7 + $0x60] sm:$0xff]
    %v137 = vld [vmem:[%s7 + $0x68] sm:$0xff]
    %v138 = vld [vmem:[%s7 + $0x70] sm:$0xff]
    %v139 = vld [vmem:[%s7 + $0x78] sm:$0xff]
    %v140 = vld [vmem:[%s7 + $0x80] sm:$0xff]
    %v141 = vld [vmem:[%s7 + $0x88] sm:$0xff]
    %v142 = vld [vmem:[%s7 + $0x90] sm:$0xff]
    %v143 = vld [vmem:[%s7 + $0x98] sm:$0xff]
    %v144 = vld [vmem:[%s7 + $0xa0] sm:$0xff]
    %v145 = vld [vmem:[%s7 + $0xa8] sm:$0xff]
    %v146 = vld [vmem:[%s7 + $0xb0] sm:$0xff]
    %v147 = vld [vmem:[%s7 + $0xb8] sm:$0xff]
    %v148 = vld [vmem:[%s7 + $0xc0] sm:$0xff]
    %v149 = vld [vmem:[%s7 + $0xc8] sm:$0xff]
    %v150 = vld [vmem:[%s7 + $0xd0] sm:$0xff]
    %v151 = vld [vmem:[%s7 + $0xd8] sm:$0xff]
    %v152 = vld [vmem:[%s7 + $0xe0] sm:$0xff]
    %v153 = vld [vmem:[%s7 + $0xe8] sm:$0xff]
    %v154 = vld [vmem:[%s7 + $0xf0] sm:$0xff]
    %v155 = vld [vmem:[%s7 + $0xf8] sm:$0xff]
    %v156 = vld [vmem:[%s7 + $0x100] sm:$0xff]
    %v157 = vld [vmem:[%s7 + $0x108] sm:$0xff]
    %v158 = vld [vmem:[%s7 + $0x110] sm:$0xff]
    %v159 = vld [vmem:[%s7 + $0x118] sm:$0xff]
    %v160 = vld [vmem:[%s7 + $0x120] sm:$0xff]
    %v161 = vld [vmem:[%s7 + $0x128] sm:$0xff]
    %v162 = vld [vmem:[%s7 + $0x130] sm:$0xff]
    %v163 = vld [vmem:[%s7 + $0x138] sm:$0xff]
    %v164 = vld [vmem:[%s7 + $0x140] sm:$0xff]
    %v165 = vld [vmem:[%s7 + $0x148] sm:$0xff]
    %v166 = vld [vmem:[%s7 + $0x150] sm:$0xff]
    %v167 = vld [vmem:[%s7 + $0x158] sm:$0xff]
    %v168 = vld [vmem:[%s7 + $0x160] sm:$0xff]
    %v169 = vld [vmem:[%s7 + $0x168] sm:$0xff]
    %v170 = vld [vmem:[%s7 + $0x170] sm:$0xff]
    %v171 = vld [vmem:[%s7 + $0x178] sm:$0xff]
    %v172 = vld [vmem:[%s7 + $0x180] sm:$0xff]
    %v173 = vld [vmem:[%s7 + $0x188] sm:$0xff]
    %v174 = vld [vmem:[%s7 + $0x190] sm:$0xff]
    %v175 = vld [vmem:[%s7 + $0x198] sm:$0xff]
    %v176 = vld [vmem:[%s7 + $0x1a0] sm:$0xff]
    %v177 = vld [vmem:[%s7 + $0x1a8] sm:$0xff]
    %v178 = vld [vmem:[%s7 + $0x1b0] sm:$0xff]
    %v179 = vld [vmem:[%s7 + $0x1b8] sm:$0xff]
    %v180 = vld [vmem:[%s7 + $0x1c0] sm:$0xff]
    %v181 = vld [vmem:[%s7 + $0x1c8] sm:$0xff]
    %v182 = vld [vmem:[%s7 + $0x1d0] sm:$0xff]
    %v183 = vld [vmem:[%s7 + $0x1d8] sm:$0xff]
    %v184 = vld [vmem:[%s7 + $0x1e0] sm:$0xff]
    %v185 = vld [vmem:[%s7 + $0x1e8] sm:$0xff]
    %v186 = vld [vmem:[%s7 + $0x1f0] sm:$0xff]
    %v187 = vld [vmem:[%s7 + $0x1f8] sm:$0xff]
    %v188 = vld [vmem:[%s7 + $0x200] sm:$0xff]
    %v189 = vld [vmem:[%s7 + $0x208] sm:$0xff]
    %v190 = vld [vmem:[%s7 + $0x210] sm:$0xff]
    %v191 = vld [vmem:[%s7 + $0x218] sm:$0xff]
    %v192 = vld [vmem:[%s7 + $0x220] sm:$0xff]
    %v193 = vld [vmem:[%s7 + $0x228] sm:$0xff]
    %v194 = vld [vmem:[%s7 + $0x230] sm:$0xff]
    %v195 = vld [vmem:[%s7 + $0x238] sm:$0xff]
    %v196 = vld [vmem:[%s7 + $0x240] sm:$0xff]
    %v197 = vld [vmem:[%s7 + $0x248] sm:$0xff]
    %v198 = vld [vmem:[%s7 + $0x250] sm:$0xff]
    %v199 = vld [vmem:[%s7 + $0x258] sm:$0xff]
    %v200 = vld [vmem:[%s7 + $0x260] sm:$0xff]
    %v201 = vld [vmem:[%s7 + $0x268] sm:$0xff]
    %v202 = vld [vmem:[%s7 + $0x270] sm:$0xff]
    %v203 = vld [vmem:[%s7 + $0x278] sm:$0xff]
    %v204 = vld [vmem:[%s7 + $0x280] sm:$0xff]
    %v205 = vld [vmem:[%s7 + $0x288] sm:$0xff]
    %v206 = vld [vmem:[%s7 + $0x290] sm:$0xff]
    %v207 = vld [vmem:[%s7 + $0x298] sm:$0xff]
    %v208 = vld [vmem:[%s7 + $0x2a0] sm:$0xff]
    %v209 = vld [vmem:[%s7 + $0x2a8] sm:$0xff]
    %v210 = vld [vmem:[%s7 + $0x2b0] sm:$0xff]
    %v211 = vld [vmem:[%s7 + $0x2b8] sm:$0xff]
    %v212 = vld [vmem:[%s9] sm:$0x1]
    %v214 = vperm.slane %v212, 0
    %218 = vst [vmem:[#allocation1] ss:$4 sm:$0xff] %v122
    %s219 = scalar_lea.vmem [#allocation1], 32
    %220 = vst [vmem:[%s219] ss:$4 sm:$0xff] %v123
    %v221 = vld.sshfl [vmem:[#allocation1] sm:$0xff pattern:$0x73625140]
    %v222 = vld.sshfl [vmem:[#allocation1 + $0x8] sm:$0xff pattern:$0x73625140]
    %v223 = vld.sshfl [vmem:[#allocation1 + $0x10] sm:$0xff pattern:$0x73625140]
    %v224 = vld.sshfl [vmem:[#allocation1 + $0x18] sm:$0xff pattern:$0x73625140]
    %v225 = vld.sshfl [vmem:[#allocation1 + $0x20] sm:$0xff pattern:$0x73625140]
    %v226 = vld.sshfl [vmem:[#allocation1 + $0x28] sm:$0xff pattern:$0x73625140]
    %vm232 = vcmask 523264
    %v233 = vsel %vm232, %v226, 0
    %235 = vmatpush.msra.mxu0 %v139
    %236 = vmatpush.msra.mxu0 %v138
    %237 = vmatpush.msra.mxu0 %v137
    %238 = vmatpush.msra.mxu0 %v136
    %239 = vmatpush.msra.mxu0 %v135
    %240 = vmatpush.msra.mxu0 %v134
    %241 = vmatpush.msra.mxu0 %v133
    %242 = vmatpush.msra.mxu0 %v132
    %243 = vmatpush.msra.mxu0 %v131
    %244 = vmatpush.msra.mxu0 %v130
    %245 = vmatpush.msra.mxu0 %v129
    %246 = vmatpush.msra.mxu0 %v128
    %247 = vmatpush.msra.mxu0 %v127
    %248 = vmatpush.msra.mxu0 %v126
    %249 = vmatpush.msra.mxu0 %v125
    %250 = vmatpush.msra.mxu0 %v124
    %251 = vmatmul.f32.gmra.mxu0 %v221
    %v252 = vpop.f32.mrf.mxu0
    %v253 = vadd.f32 %v214, %v252
    %254 = vdwg.mxu0
    %255 = vmatpush.msra.mxu0 %v155
    %256 = vmatpush.msra.mxu0 %v154
    %257 = vmatpush.msra.mxu0 %v153
    %258 = vmatpush.msra.mxu0 %v152
    %259 = vmatpush.msra.mxu0 %v151
    %260 = vmatpush.msra.mxu0 %v150
    %261 = vmatpush.msra.mxu0 %v149
    %262 = vmatpush.msra.mxu0 %v148
    %263 = vmatpush.msra.mxu0 %v147
    %264 = vmatpush.msra.mxu0 %v146
    %265 = vmatpush.msra.mxu0 %v145
    %266 = vmatpush.msra.mxu0 %v144
    %267 = vmatpush.msra.mxu0 %v143
    %268 = vmatpush.msra.mxu0 %v142
    %269 = vmatpush.msra.mxu0 %v141
    %270 = vmatpush.msra.mxu0 %v140
    %271 = vmatmul.f32.gmra.mxu0 %v222
    %v272 = vpop.f32.mrf.mxu0
    %v273 = vadd.f32 %v253, %v272
    %274 = vdwg.mxu0
    %275 = vmatpush.msra.mxu0 %v171
    %276 = vmatpush.msra.mxu0 %v170
    %277 = vmatpush.msra.mxu0 %v169
    %278 = vmatpush.msra.mxu0 %v168
    %279 = vmatpush.msra.mxu0 %v167
    %280 = vmatpush.msra.mxu0 %v166
    %281 = vmatpush.msra.mxu0 %v165
    %282 = vmatpush.msra.mxu0 %v164
    %283 = vmatpush.msra.mxu0 %v163
    %284 = vmatpush.msra.mxu0 %v162
    %285 = vmatpush.msra.mxu0 %v161
    %286 = vmatpush.msra.mxu0 %v160
    %287 = vmatpush.msra.mxu0 %v159
    %288 = vmatpush.msra.mxu0 %v158
    %289 = vmatpush.msra.mxu0 %v157
    %290 = vmatpush.msra.mxu0 %v156
    %291 = vmatmul.f32.gmra.mxu0 %v223
    %v292 = vpop.f32.mrf.mxu0
    %v293 = vadd.f32 %v273, %v292
    %294 = vdwg.mxu0
    %295 = vmatpush.msra.mxu0 %v187
    %296 = vmatpush.msra.mxu0 %v186
    %297 = vmatpush.msra.mxu0 %v185
    %298 = vmatpush.msra.mxu0 %v184
    %299 = vmatpush.msra.mxu0 %v183
    %300 = vmatpush.msra.mxu0 %v182
    %301 = vmatpush.msra.mxu0 %v181
    %302 = vmatpush.msra.mxu0 %v180
    %303 = vmatpush.msra.mxu0 %v179
    %304 = vmatpush.msra.mxu0 %v178
    %305 = vmatpush.msra.mxu0 %v177
    %306 = vmatpush.msra.mxu0 %v176
    %307 = vmatpush.msra.mxu0 %v175
    %308 = vmatpush.msra.mxu0 %v174
    %309 = vmatpush.msra.mxu0 %v173
    %310 = vmatpush.msra.mxu0 %v172
    %311 = vmatmul.f32.gmra.mxu0 %v224
    %v312 = vpop.f32.mrf.mxu0
    %v313 = vadd.f32 %v293, %v312
    %314 = vdwg.mxu0
    %315 = vmatpush.msra.mxu0 %v203
    %316 = vmatpush.msra.mxu0 %v202
    %317 = vmatpush.msra.mxu0 %v201
    %318 = vmatpush.msra.mxu0 %v200
    %319 = vmatpush.msra.mxu0 %v199
    %320 = vmatpush.msra.mxu0 %v198
    %321 = vmatpush.msra.mxu0 %v197
    %322 = vmatpush.msra.mxu0 %v196
    %323 = vmatpush.msra.mxu0 %v195
    %324 = vmatpush.msra.mxu0 %v194
    %325 = vmatpush.msra.mxu0 %v193
    %326 = vmatpush.msra.mxu0 %v192
    %327 = vmatpush.msra.mxu0 %v191
    %328 = vmatpush.msra.mxu0 %v190
    %329 = vmatpush.msra.mxu0 %v189
    %330 = vmatpush.msra.mxu0 %v188
    %331 = vmatmul.f32.gmra.mxu0 %v225
    %v332 = vpop.f32.mrf.mxu0
    %v333 = vadd.f32 %v313, %v332
    %334 = vdwg.mxu0
    %335 = vmatpush.msra.mxu0 0.0
    %336 = vmatpush.msra.mxu0 0.0
    %337 = vmatpush.msra.mxu0 0.0
    %338 = vmatpush.msra.mxu0 0.0
    %339 = vmatpush.msra.mxu0 0.0
    %340 = vmatpush.msra.mxu0 0.0
    %341 = vmatpush.msra.mxu0 0.0
    %342 = vmatpush.msra.mxu0 0.0
    %343 = vmatpush.msra.mxu0 %v211
    %344 = vmatpush.msra.mxu0 %v210
    %345 = vmatpush.msra.mxu0 %v209
    %346 = vmatpush.msra.mxu0 %v208
    %347 = vmatpush.msra.mxu0 %v207
    %348 = vmatpush.msra.mxu0 %v206
    %349 = vmatpush.msra.mxu0 %v205
    %350 = vmatpush.msra.mxu0 %v204
    %351 = vmatmul.f32.gmra.mxu0 %v233
    %v352 = vpop.f32.mrf.mxu0
    %v353 = vadd.f32 %v333, %v352
    %354 = vdwg.mxu0
    %v355 = vld [vmem:[%s3] sm:$0x3]
    %v356 = vld [vmem:[%s11] sm:$0xff]
    %v357 = vld [vmem:[%s11 + $0x8] sm:$0xff]
    %v358 = vld [vmem:[%s13] sm:$0x1]
    %v360 = vperm.slane %v358, 0
    %vm362 = vcmask 130048
    %v364 = vsel %vm362, %v355, 0
    %366 = vmatpush.msra.mxu0 0.0
    %367 = vmatpush.msra.mxu0 0.0
    %368 = vmatpush.msra.mxu0 0.0
    %369 = vmatpush.msra.mxu0 0.0
    %370 = vmatpush.msra.mxu0 0.0
    %371 = vmatpush.msra.mxu0 0.0
    %372 = vmatpush.msra.mxu0 0.0
    %373 = vmatpush.msra.mxu0 0.0
    %374 = vmatpush.msra.mxu0 0.0
    %375 = vmatpush.msra.mxu0 0.0
    %376 = vmatpush.msra.mxu0 0.0
    %377 = vmatpush.msra.mxu0 0.0
    %378 = vmatpush.msra.mxu0 0.0
    %379 = vmatpush.msra.mxu0 0.0
    %380 = vmatpush.msra.mxu0 %v357
    %381 = vmatpush.msra.mxu0 %v356
    %382 = vmatmul.f32.gmra.mxu0 %v364
    %v383 = vpop.f32.mrf.mxu0
    %v384 = vadd.f32 %v360, %v383
    %385 = vdwg.mxu0
    %387 = vrot.lane.b32.xlu0 %v384, 32
    %v388 = vpop.permute.xlu0 %387
    %vm390 = vcmask 261120
    %v391 = vsel %vm390, %v353, %v388
    %v392 = vld [vmem:[%s15] sm:$0xff]
    %v393 = vld [vmem:[%s15 + $0x8] sm:$0xff]
    %v394 = vld [vmem:[%s15 + $0x10] sm:$0xff]
    %v395 = vld [vmem:[%s15 + $0x18] sm:$0xff]
    %v396 = vld [vmem:[%s15 + $0x20] sm:$0xff]
    %v397 = vld [vmem:[%s15 + $0x28] sm:$0xff]
    %v398 = vld [vmem:[%s15 + $0x30] sm:$0xff]
    %v399 = vld [vmem:[%s15 + $0x38] sm:$0xff]
    %v400 = vld [vmem:[%s17] sm:$0x1]
    %v402 = vperm.slane %v400, 0
    %v405 = vsel %vm232, %v391, 0
    %407 = vmatpush.msra.mxu0 0.0
    %408 = vmatpush.msra.mxu0 0.0
    %409 = vmatpush.msra.mxu0 0.0
    %410 = vmatpush.msra.mxu0 0.0
    %411 = vmatpush.msra.mxu0 0.0
    %412 = vmatpush.msra.mxu0 0.0
    %413 = vmatpush.msra.mxu0 0.0
    %414 = vmatpush.msra.mxu0 0.0
    %415 = vmatpush.msra.mxu0 %v399
    %416 = vmatpush.msra.mxu0 %v398
    %417 = vmatpush.msra.mxu0 %v397
    %418 = vmatpush.msra.mxu0 %v396
    %419 = vmatpush.msra.mxu0 %v395
    %420 = vmatpush.msra.mxu0 %v394
    %421 = vmatpush.msra.mxu0 %v393
    %422 = vmatpush.msra.mxu0 %v392
    %423 = vmatmul.f32.gmra.mxu0 %v405
    %v424 = vpop.f32.mrf.mxu0
    %v425 = vadd.f32 %v402, %v424
    %426 = vdwg.mxu0
    %v427 = vld [vmem:[%s5] sm:$0x3]
    %v428 = vld [vmem:[%s19] sm:$0xff]
    %v429 = vld [vmem:[%s21] sm:$0x1]
    %v431 = vperm.slane %v429, 0
    %vm433 = vcmask 64512
    %v435 = vsel %vm433, %v427, 0
    %437 = vmatpush.msra.mxu0 0.0
    %438 = vmatpush.msra.mxu0 0.0
    %439 = vmatpush.msra.mxu0 0.0
    %440 = vmatpush.msra.mxu0 0.0
    %441 = vmatpush.msra.mxu0 0.0
    %442 = vmatpush.msra.mxu0 0.0
    %443 = vmatpush.msra.mxu0 0.0
    %444 = vmatpush.msra.mxu0 0.0
    %445 = vmatpush.msra.mxu0 0.0
    %446 = vmatpush.msra.mxu0 0.0
    %447 = vmatpush.msra.mxu0 0.0
    %448 = vmatpush.msra.mxu0 0.0
    %449 = vmatpush.msra.mxu0 0.0
    %450 = vmatpush.msra.mxu0 0.0
    %451 = vmatpush.msra.mxu0 0.0
    %452 = vmatpush.msra.mxu0 %v428
    %453 = vmatmul.f32.gmra.mxu0 %v435
    %v454 = vpop.f32.mrf.mxu0
    %v455 = vadd.f32 %v431, %v454
    %456 = vdwg.mxu0
    %v457 = vld [vmem:[%s23] sm:$0xff]
    %v458 = vld [vmem:[%s25] sm:$0x1]
    %v460 = vperm.slane %v458, 0
    %462 = vmatpush.msra.mxu0 0.0
    %463 = vmatpush.msra.mxu0 0.0
    %464 = vmatpush.msra.mxu0 0.0
    %465 = vmatpush.msra.mxu0 0.0
    %466 = vmatpush.msra.mxu0 0.0
    %467 = vmatpush.msra.mxu0 0.0
    %468 = vmatpush.msra.mxu0 0.0
    %469 = vmatpush.msra.mxu0 0.0
    %470 = vmatpush.msra.mxu0 0.0
    %471 = vmatpush.msra.mxu0 0.0
    %472 = vmatpush.msra.mxu0 0.0
    %473 = vmatpush.msra.mxu0 0.0
    %474 = vmatpush.msra.mxu0 0.0
    %475 = vmatpush.msra.mxu0 0.0
    %476 = vmatpush.msra.mxu0 0.0
    %477 = vmatpush.msra.mxu0 %v457
    %478 = vmatmul.f32.gmra.mxu0 %v435
    %v479 = vpop.f32.mrf.mxu0
    %v480 = vadd.f32 %v460, %v479
    %481 = vdwg.mxu0
    %v482 = vld [vmem:[%s27] sm:$0xff]
    %v483 = vld [vmem:[%s27 + $0x8] sm:$0xff]
    %v484 = vld [vmem:[%s27 + $0x10] sm:$0xff]
    %v485 = vld [vmem:[%s27 + $0x18] sm:$0xff]
    %v486 = vld [vmem:[%s27 + $0x20] sm:$0xff]
    %v487 = vld [vmem:[%s27 + $0x28] sm:$0xff]
    %v488 = vld [vmem:[%s27 + $0x30] sm:$0xff]
    %v489 = vld [vmem:[%s27 + $0x38] sm:$0xff]
    %v490 = vld [vmem:[%s31] sm:$0x1]
    %v492 = vperm.slane %v490, 0
    %v495 = vsel %vm232, %v425, 0
    %497 = vmatpush.msra.mxu0 0.0
    %498 = vmatpush.msra.mxu0 0.0
    %499 = vmatpush.msra.mxu0 0.0
    %500 = vmatpush.msra.mxu0 0.0
    %501 = vmatpush.msra.mxu0 0.0
    %502 = vmatpush.msra.mxu0 0.0
    %503 = vmatpush.msra.mxu0 0.0
    %504 = vmatpush.msra.mxu0 0.0
    %505 = vmatpush.msra.mxu0 %v489
    %506 = vmatpush.msra.mxu0 %v488
    %507 = vmatpush.msra.mxu0 %v487
    %508 = vmatpush.msra.mxu0 %v486
    %509 = vmatpush.msra.mxu0 %v485
    %510 = vmatpush.msra.mxu0 %v484
    %511 = vmatpush.msra.mxu0 %v483
    %512 = vmatpush.msra.mxu0 %v482
    %513 = vmatmul.f32.gmra.mxu0 %v495
    %v514 = vpop.f32.mrf.mxu0
    %v515 = vadd.f32 %v492, %v514
    %516 = vdwg.mxu0
    %v517 = vld [vmem:[%s29] sm:$0xff]
    %v518 = vld [vmem:[%s29 + $0x8] sm:$0xff]
    %v519 = vld [vmem:[%s29 + $0x10] sm:$0xff]
    %v520 = vld [vmem:[%s29 + $0x18] sm:$0x3f]
    %v521 = vld [vmem:[%s33] sm:$0xff]
    %v522 = vld [vmem:[%s33 + $0x8] sm:$0xff]
    %v523 = vld [vmem:[%s33 + $0x10] sm:$0xff]
    %v524 = vld [vmem:[%s33 + $0x18] sm:$0x3f]
    %v525 = vld [vmem:[%s35] sm:$0x1]
    %vm526 = vcmask 244736
    %v528 = vsel %vm526, 0.0, 0
    %vm530 = vcmask 1045504
    %v532 = vsel %vm530, %v520, 0
    %534 = vmatpush.msra.mxu0 0.0
    %535 = vmatpush.msra.mxu0 0.0
    %536 = vmatpush.msra.mxu0 0.0
    %537 = vmatpush.msra.mxu0 0.0
    %538 = vmatpush.msra.mxu0 0.0
    %539 = vmatpush.msra.mxu0 0.0
    %540 = vmatpush.msra.mxu0 0.0
    %541 = vmatpush.msra.mxu0 0.0
    %542 = vmatpush.msra.mxu0 0.0
    %543 = vmatpush.msra.mxu0 0.0
    %544 = vmatpush.msra.mxu0 0.0
    %545 = vmatpush.msra.mxu0 0.0
    %546 = vmatpush.msra.mxu0 %v532
    %547 = vmatpush.msra.mxu0 %v519
    %548 = vmatpush.msra.mxu0 %v518
    %549 = vmatpush.msra.mxu0 %v517
    %550 = vmatmul.f32.gmra.mxu0 %v528
    %v551 = vpop.f32.mrf.mxu0
    %v552 = vadd.f32 0.0, %v551
    %553 = vdwg.mxu0
    %v554 = vadd.f32 %v515, %v552
    %v555 = vxor.u32 %v554, 2147483648
    %v556 = vmul.f32 %v555, 1.442695
    %v557 = vpow.pop %v556
    %v558 = vadd.f32 %v557, 1.0
    %v559 = vrcp.pop %v558
    %v560 = vmul.f32 %v558, %v559
    %v561 = vsub.f32 1.0, %v560
    %v562 = vmul.f32 %v559, %v561
    %v563 = vadd.f32 %v559, %v562
    %vm564 = vweird.f32 %v558
    %vm565 = vweird.f32 %v559
    %vm566 = vmor %vm564, %vm565
    %v567 = vsel %vm566, %v559, %v563
    %v568 = vand.u32 2147483647, %v558
    %vm569 = vcmp.eq.f32.partialorder %v568, 8.507059e+37
    %v570 = vand.u32 %v558, 2147483648
    %v571 = vor.u32 1.1754944e-38, %v570
    %v572 = vsel %vm569, %v571, %v567
    %v573 = vmul.f32 1.0, %v572
    %v574 = vtanh.pop %v554
    %v575 = vmul.f32 %v573, 0.0
    %577 = vrot.lane.b32.xlu0 %v574, 68
    %v578 = vpop.permute.xlu0 %577
    %v580 = vmul.f32 %v573, %v578
    %582 = vrot.lane.b32.xlu0 %v580, 30
    %v583 = vpop.permute.xlu0 %582
    %v585 = vadd.f32 %v575, %v583
    %v586 = vtanh.pop %v585
    %588 = vrot.lane.b32.xlu0 %v586, 60
    %v589 = vpop.permute.xlu0 %588
    %v591 = vmul.f32 %v573, %v589
    %vm592 = vcmp.ge.f32.partialorder %v591, 0.0
    %v593 = vmul.f32 %v591, 0.1
    %v594 = vsel %vm592, %v591, %v593
    %v596 = vperm.slane %v525, 0
    %599 = vrot.lane.b32.xlu0 %v594, 38
    %v600 = vpop.permute.xlu0 %599
    %v601 = vsel %vm526, %v600, 0
    %v604 = vsel %vm530, %v524, 0
    %606 = vmatpush.msra.mxu0 0.0
    %607 = vmatpush.msra.mxu0 0.0
    %608 = vmatpush.msra.mxu0 0.0
    %609 = vmatpush.msra.mxu0 0.0
    %610 = vmatpush.msra.mxu0 0.0
    %611 = vmatpush.msra.mxu0 0.0
    %612 = vmatpush.msra.mxu0 0.0
    %613 = vmatpush.msra.mxu0 0.0
    %614 = vmatpush.msra.mxu0 0.0
    %615 = vmatpush.msra.mxu0 0.0
    %616 = vmatpush.msra.mxu0 0.0
    %617 = vmatpush.msra.mxu0 0.0
    %618 = vmatpush.msra.mxu0 %v604
    %619 = vmatpush.msra.mxu0 %v523
    %620 = vmatpush.msra.mxu0 %v522
    %621 = vmatpush.msra.mxu0 %v521
    %622 = vmatmul.f32.gmra.mxu0 %v601
    %v623 = vpop.f32.mrf.mxu0
    %v624 = vadd.f32 %v596, %v623
    %625 = vdwg.mxu0
    %627 = vrot.lane.b32.xlu0 %v591, 38
    %v628 = vpop.permute.xlu0 %627
    %v629 = vsel %vm526, %v628, 0
    %631 = vmatpush.msra.mxu0 0.0
    %632 = vmatpush.msra.mxu0 0.0
    %633 = vmatpush.msra.mxu0 0.0
    %634 = vmatpush.msra.mxu0 0.0
    %635 = vmatpush.msra.mxu0 0.0
    %636 = vmatpush.msra.mxu0 0.0
    %637 = vmatpush.msra.mxu0 0.0
    %638 = vmatpush.msra.mxu0 0.0
    %639 = vmatpush.msra.mxu0 0.0
    %640 = vmatpush.msra.mxu0 0.0
    %641 = vmatpush.msra.mxu0 0.0
    %642 = vmatpush.msra.mxu0 0.0
    %643 = vmatpush.msra.mxu0 %v532
    %644 = vmatpush.msra.mxu0 %v519
    %645 = vmatpush.msra.mxu0 %v518
    %646 = vmatpush.msra.mxu0 %v517
    %647 = vmatmul.f32.gmra.mxu0 %v629
    %v648 = vpop.f32.mrf.mxu0
    %v649 = vadd.f32 0.0, %v648
    %650 = vdwg.mxu0
    %v651 = vadd.f32 %v515, %v649
    %v652 = vxor.u32 %v651, 2147483648
    %v653 = vmul.f32 %v652, 1.442695
    %v654 = vpow.pop %v653
    %v655 = vadd.f32 %v654, 1.0
    %v656 = vrcp.pop %v655
    %v657 = vmul.f32 %v655, %v656
    %v658 = vsub.f32 1.0, %v657
    %v659 = vmul.f32 %v656, %v658
    %v660 = vadd.f32 %v656, %v659
    %vm661 = vweird.f32 %v655
    %vm662 = vweird.f32 %v656
    %vm663 = vmor %vm661, %vm662
    %v664 = vsel %vm663, %v656, %v660
    %v665 = vand.u32 2147483647, %v655
    %vm666 = vcmp.eq.f32.partialorder %v665, 8.507059e+37
    %v667 = vand.u32 %v655, 2147483648
    %v668 = vor.u32 1.1754944e-38, %v667
    %v669 = vsel %vm666, %v668, %v664
    %v670 = vmul.f32 1.0, %v669
    %v671 = vtanh.pop %v651
    %v672 = vmul.f32 %v670, %v585
    %674 = vrot.lane.b32.xlu0 %v671, 68
    %v675 = vpop.permute.xlu0 %674
    %v677 = vmul.f32 %v670, %v675
    %679 = vrot.lane.b32.xlu0 %v677, 30
    %v680 = vpop.permute.xlu0 %679
    %v682 = vadd.f32 %v672, %v680
    %v683 = vtanh.pop %v682
    %685 = vrot.lane.b32.xlu0 %v683, 60
    %v686 = vpop.permute.xlu0 %685
    %v688 = vmul.f32 %v670, %v686
    %vm689 = vcmp.ge.f32.partialorder %v688, 0.0
    %v690 = vmul.f32 %v688, 0.1
    %v691 = vsel %vm689, %v688, %v690
    %693 = vrot.lane.b32.xlu0 %v691, 38
    %v694 = vpop.permute.xlu0 %693
    %v695 = vsel %vm526, %v694, 0
    %697 = vmatpush.msra.mxu0 0.0
    %698 = vmatpush.msra.mxu0 0.0
    %699 = vmatpush.msra.mxu0 0.0
    %700 = vmatpush.msra.mxu0 0.0
    %701 = vmatpush.msra.mxu0 0.0
    %702 = vmatpush.msra.mxu0 0.0
    %703 = vmatpush.msra.mxu0 0.0
    %704 = vmatpush.msra.mxu0 0.0
    %705 = vmatpush.msra.mxu0 0.0
    %706 = vmatpush.msra.mxu0 0.0
    %707 = vmatpush.msra.mxu0 0.0
    %708 = vmatpush.msra.mxu0 0.0
    %709 = vmatpush.msra.mxu0 %v604
    %710 = vmatpush.msra.mxu0 %v523
    %711 = vmatpush.msra.mxu0 %v522
    %712 = vmatpush.msra.mxu0 %v521
    %713 = vmatmul.f32.gmra.mxu0 %v695
    %v714 = vpop.f32.mrf.mxu0
    %v715 = vadd.f32 %v596, %v714
    %716 = vdwg.mxu0
    %718 = vrot.lane.b32.xlu0 %v688, 38
    %v719 = vpop.permute.xlu0 %718
    %v720 = vsel %vm526, %v719, 0
    %722 = vmatpush.msra.mxu0 0.0
    %723 = vmatpush.msra.mxu0 0.0
    %724 = vmatpush.msra.mxu0 0.0
    %725 = vmatpush.msra.mxu0 0.0
    %726 = vmatpush.msra.mxu0 0.0
    %727 = vmatpush.msra.mxu0 0.0
    %728 = vmatpush.msra.mxu0 0.0
    %729 = vmatpush.msra.mxu0 0.0
    %730 = vmatpush.msra.mxu0 0.0
    %731 = vmatpush.msra.mxu0 0.0
    %732 = vmatpush.msra.mxu0 0.0
    %733 = vmatpush.msra.mxu0 0.0
    %734 = vmatpush.msra.mxu0 %v532
    %735 = vmatpush.msra.mxu0 %v519
    %736 = vmatpush.msra.mxu0 %v518
    %737 = vmatpush.msra.mxu0 %v517
    %738 = vmatmul.f32.gmra.mxu0 %v720
    %v739 = vpop.f32.mrf.mxu0
    %v740 = vadd.f32 0.0, %v739
    %741 = vdwg.mxu0
    %v742 = vadd.f32 %v515, %v740
    %v743 = vxor.u32 %v742, 2147483648
    %v744 = vmul.f32 %v743, 1.442695
    %v745 = vpow.pop %v744
    %v746 = vadd.f32 %v745, 1.0
    %v747 = vrcp.pop %v746
    %v748 = vmul.f32 %v746, %v747
    %v749 = vsub.f32 1.0, %v748
    %v750 = vmul.f32 %v747, %v749
    %v751 = vadd.f32 %v747, %v750
    %vm752 = vweird.f32 %v746
    %vm753 = vweird.f32 %v747
    %vm754 = vmor %vm752, %vm753
    %v755 = vsel %vm754, %v747, %v751
    %v756 = vand.u32 2147483647, %v746
    %vm757 = vcmp.eq.f32.partialorder %v756, 8.507059e+37
    %v758 = vand.u32 %v746, 2147483648
    %v759 = vor.u32 1.1754944e-38, %v758
    %v760 = vsel %vm757, %v759, %v755
    %v761 = vmul.f32 1.0, %v760
    %v762 = vtanh.pop %v742
    %v763 = vmul.f32 %v761, %v682
    %765 = vrot.lane.b32.xlu0 %v762, 68
    %v766 = vpop.permute.xlu0 %765
    %v768 = vmul.f32 %v761, %v766
    %770 = vrot.lane.b32.xlu0 %v768, 30
    %v771 = vpop.permute.xlu0 %770
    %v773 = vadd.f32 %v763, %v771
    %v774 = vtanh.pop %v773
    %776 = vrot.lane.b32.xlu0 %v774, 60
    %v777 = vpop.permute.xlu0 %776
    %v779 = vmul.f32 %v761, %v777
    %vm780 = vcmp.ge.f32.partialorder %v779, 0.0
    %v781 = vmul.f32 %v779, 0.1
    %v782 = vsel %vm780, %v779, %v781
    %784 = vrot.lane.b32.xlu0 %v782, 38
    %v785 = vpop.permute.xlu0 %784
    %v786 = vsel %vm526, %v785, 0
    %788 = vmatpush.msra.mxu0 0.0
    %789 = vmatpush.msra.mxu0 0.0
    %790 = vmatpush.msra.mxu0 0.0
    %791 = vmatpush.msra.mxu0 0.0
    %792 = vmatpush.msra.mxu0 0.0
    %793 = vmatpush.msra.mxu0 0.0
    %794 = vmatpush.msra.mxu0 0.0
    %795 = vmatpush.msra.mxu0 0.0
    %796 = vmatpush.msra.mxu0 0.0
    %797 = vmatpush.msra.mxu0 0.0
    %798 = vmatpush.msra.mxu0 0.0
    %799 = vmatpush.msra.mxu0 0.0
    %800 = vmatpush.msra.mxu0 %v604
    %801 = vmatpush.msra.mxu0 %v523
    %802 = vmatpush.msra.mxu0 %v522
    %803 = vmatpush.msra.mxu0 %v521
    %804 = vmatmul.f32.gmra.mxu0 %v786
    %v805 = vpop.f32.mrf.mxu0
    %v806 = vadd.f32 %v596, %v805
    %807 = vdwg.mxu0
    %809 = vrot.lane.b32.xlu0 %v779, 38
    %v810 = vpop.permute.xlu0 %809
    %v811 = vsel %vm526, %v810, 0
    %813 = vmatpush.msra.mxu0 0.0
    %814 = vmatpush.msra.mxu0 0.0
    %815 = vmatpush.msra.mxu0 0.0
    %816 = vmatpush.msra.mxu0 0.0
    %817 = vmatpush.msra.mxu0 0.0
    %818 = vmatpush.msra.mxu0 0.0
    %819 = vmatpush.msra.mxu0 0.0
    %820 = vmatpush.msra.mxu0 0.0
    %821 = vmatpush.msra.mxu0 0.0
    %822 = vmatpush.msra.mxu0 0.0
    %823 = vmatpush.msra.mxu0 0.0
    %824 = vmatpush.msra.mxu0 0.0
    %825 = vmatpush.msra.mxu0 %v532
    %826 = vmatpush.msra.mxu0 %v519
    %827 = vmatpush.msra.mxu0 %v518
    %828 = vmatpush.msra.mxu0 %v517
    %829 = vmatmul.f32.gmra.mxu0 %v811
    %v830 = vpop.f32.mrf.mxu0
    %v831 = vadd.f32 0.0, %v830
    %832 = vdwg.mxu0
    %v833 = vadd.f32 %v515, %v831
    %v834 = vxor.u32 %v833, 2147483648
    %v835 = vmul.f32 %v834, 1.442695
    %v836 = vpow.pop %v835
    %v837 = vadd.f32 %v836, 1.0
    %v838 = vrcp.pop %v837
    %v839 = vmul.f32 %v837, %v838
    %v840 = vsub.f32 1.0, %v839
    %v841 = vmul.f32 %v838, %v840
    %v842 = vadd.f32 %v838, %v841
    %vm843 = vweird.f32 %v837
    %vm844 = vweird.f32 %v838
    %vm845 = vmor %vm843, %vm844
    %v846 = vsel %vm845, %v838, %v842
    %v847 = vand.u32 2147483647, %v837
    %vm848 = vcmp.eq.f32.partialorder %v847, 8.507059e+37
    %v849 = vand.u32 %v837, 2147483648
    %v850 = vor.u32 1.1754944e-38, %v849
    %v851 = vsel %vm848, %v850, %v846
    %v852 = vmul.f32 1.0, %v851
    %v853 = vtanh.pop %v833
    %v854 = vmul.f32 %v852, %v773
    %856 = vrot.lane.b32.xlu0 %v853, 68
    %v857 = vpop.permute.xlu0 %856
    %v859 = vmul.f32 %v852, %v857
    %861 = vrot.lane.b32.xlu0 %v859, 30
    %v862 = vpop.permute.xlu0 %861
    %v864 = vadd.f32 %v854, %v862
    %v865 = vtanh.pop %v864
    %867 = vrot.lane.b32.xlu0 %v865, 60
    %v868 = vpop.permute.xlu0 %867
    %v870 = vmul.f32 %v852, %v868
    %vm871 = vcmp.ge.f32.partialorder %v870, 0.0
    %v872 = vmul.f32 %v870, 0.1
    %v873 = vsel %vm871, %v870, %v872
    %875 = vrot.lane.b32.xlu0 %v873, 38
    %v876 = vpop.permute.xlu0 %875
    %v877 = vsel %vm526, %v876, 0
    %879 = vmatpush.msra.mxu0 0.0
    %880 = vmatpush.msra.mxu0 0.0
    %881 = vmatpush.msra.mxu0 0.0
    %882 = vmatpush.msra.mxu0 0.0
    %883 = vmatpush.msra.mxu0 0.0
    %884 = vmatpush.msra.mxu0 0.0
    %885 = vmatpush.msra.mxu0 0.0
    %886 = vmatpush.msra.mxu0 0.0
    %887 = vmatpush.msra.mxu0 0.0
    %888 = vmatpush.msra.mxu0 0.0
    %889 = vmatpush.msra.mxu0 0.0
    %890 = vmatpush.msra.mxu0 0.0
    %891 = vmatpush.msra.mxu0 %v604
    %892 = vmatpush.msra.mxu0 %v523
    %893 = vmatpush.msra.mxu0 %v522
    %894 = vmatpush.msra.mxu0 %v521
    %895 = vmatmul.f32.gmra.mxu0 %v877
    %v896 = vpop.f32.mrf.mxu0
    %v897 = vadd.f32 %v596, %v896
    %898 = vdwg.mxu0
    %900 = vrot.lane.b32.xlu0 %v870, 38
    %v901 = vpop.permute.xlu0 %900
    %v902 = vsel %vm526, %v901, 0
    %904 = vmatpush.msra.mxu0 0.0
    %905 = vmatpush.msra.mxu0 0.0
    %906 = vmatpush.msra.mxu0 0.0
    %907 = vmatpush.msra.mxu0 0.0
    %908 = vmatpush.msra.mxu0 0.0
    %909 = vmatpush.msra.mxu0 0.0
    %910 = vmatpush.msra.mxu0 0.0
    %911 = vmatpush.msra.mxu0 0.0
    %912 = vmatpush.msra.mxu0 0.0
    %913 = vmatpush.msra.mxu0 0.0
    %914 = vmatpush.msra.mxu0 0.0
    %915 = vmatpush.msra.mxu0 0.0
    %916 = vmatpush.msra.mxu0 %v532
    %917 = vmatpush.msra.mxu0 %v519
    %918 = vmatpush.msra.mxu0 %v518
    %919 = vmatpush.msra.mxu0 %v517
    %920 = vmatmul.f32.gmra.mxu0 %v902
    %v921 = vpop.f32.mrf.mxu0
    %v922 = vadd.f32 0.0, %v921
    %923 = vdwg.mxu0
    %v924 = vadd.f32 %v515, %v922
    %v925 = vxor.u32 %v924, 2147483648
    %v926 = vmul.f32 %v925, 1.442695
    %v927 = vpow.pop %v926
    %v928 = vadd.f32 %v927, 1.0
    %v929 = vrcp.pop %v928
    %v930 = vmul.f32 %v928, %v929
    %v931 = vsub.f32 1.0, %v930
    %v932 = vmul.f32 %v929, %v931
    %v933 = vadd.f32 %v929, %v932
    %vm934 = vweird.f32 %v928
    %vm935 = vweird.f32 %v929
    %vm936 = vmor %vm934, %vm935
    %v937 = vsel %vm936, %v929, %v933
    %v938 = vand.u32 2147483647, %v928
    %vm939 = vcmp.eq.f32.partialorder %v938, 8.507059e+37
    %v940 = vand.u32 %v928, 2147483648
    %v941 = vor.u32 1.1754944e-38, %v940
    %v942 = vsel %vm939, %v941, %v937
    %v943 = vmul.f32 1.0, %v942
    %v944 = vtanh.pop %v924
    %v945 = vmul.f32 %v943, %v864
    %947 = vrot.lane.b32.xlu0 %v944, 68
    %v948 = vpop.permute.xlu0 %947
    %v950 = vmul.f32 %v943, %v948
    %952 = vrot.lane.b32.xlu0 %v950, 30
    %v953 = vpop.permute.xlu0 %952
    %v955 = vadd.f32 %v945, %v953
    %v956 = vtanh.pop %v955
    %958 = vrot.lane.b32.xlu0 %v956, 60
    %v959 = vpop.permute.xlu0 %958
    %v961 = vmul.f32 %v943, %v959
    %vm962 = vcmp.ge.f32.partialorder %v961, 0.0
    %v963 = vmul.f32 %v961, 0.1
    %v964 = vsel %vm962, %v961, %v963
    %966 = vrot.lane.b32.xlu0 %v964, 38
    %v967 = vpop.permute.xlu0 %966
    %v968 = vsel %vm526, %v967, 0
    %970 = vmatpush.msra.mxu0 0.0
    %971 = vmatpush.msra.mxu0 0.0
    %972 = vmatpush.msra.mxu0 0.0
    %973 = vmatpush.msra.mxu0 0.0
    %974 = vmatpush.msra.mxu0 0.0
    %975 = vmatpush.msra.mxu0 0.0
    %976 = vmatpush.msra.mxu0 0.0
    %977 = vmatpush.msra.mxu0 0.0
    %978 = vmatpush.msra.mxu0 0.0
    %979 = vmatpush.msra.mxu0 0.0
    %980 = vmatpush.msra.mxu0 0.0
    %981 = vmatpush.msra.mxu0 0.0
    %982 = vmatpush.msra.mxu0 %v604
    %983 = vmatpush.msra.mxu0 %v523
    %984 = vmatpush.msra.mxu0 %v522
    %985 = vmatpush.msra.mxu0 %v521
    %986 = vmatmul.f32.gmra.mxu0 %v968
    %v987 = vpop.f32.mrf.mxu0
    %v988 = vadd.f32 %v596, %v987
    %989 = vdwg.mxu0
    %991 = vrot.lane.b32.xlu0 %v961, 38
    %v992 = vpop.permute.xlu0 %991
    %v993 = vsel %vm526, %v992, 0
    %995 = vmatpush.msra.mxu0 0.0
    %996 = vmatpush.msra.mxu0 0.0
    %997 = vmatpush.msra.mxu0 0.0
    %998 = vmatpush.msra.mxu0 0.0
    %999 = vmatpush.msra.mxu0 0.0
    %1000 = vmatpush.msra.mxu0 0.0
    %1001 = vmatpush.msra.mxu0 0.0
    %1002 = vmatpush.msra.mxu0 0.0
    %1003 = vmatpush.msra.mxu0 0.0
    %1004 = vmatpush.msra.mxu0 0.0
    %1005 = vmatpush.msra.mxu0 0.0
    %1006 = vmatpush.msra.mxu0 0.0
    %1007 = vmatpush.msra.mxu0 %v532
    %1008 = vmatpush.msra.mxu0 %v519
    %1009 = vmatpush.msra.mxu0 %v518
    %1010 = vmatpush.msra.mxu0 %v517
    %1011 = vmatmul.f32.gmra.mxu0 %v993
    %v1012 = vpop.f32.mrf.mxu0
    %v1013 = vadd.f32 0.0, %v1012
    %1014 = vdwg.mxu0
    %v1015 = vadd.f32 %v515, %v1013
    %v1016 = vxor.u32 %v1015, 2147483648
    %v1017 = vmul.f32 %v1016, 1.442695
    %v1018 = vpow.pop %v1017
    %v1019 = vadd.f32 %v1018, 1.0
    %v1020 = vrcp.pop %v1019
    %v1021 = vmul.f32 %v1019, %v1020
    %v1022 = vsub.f32 1.0, %v1021
    %v1023 = vmul.f32 %v1020, %v1022
    %v1024 = vadd.f32 %v1020, %v1023
    %vm1025 = vweird.f32 %v1019
    %vm1026 = vweird.f32 %v1020
    %vm1027 = vmor %vm1025, %vm1026
    %v1028 = vsel %vm1027, %v1020, %v1024
    %v1029 = vand.u32 2147483647, %v1019
    %vm1030 = vcmp.eq.f32.partialorder %v1029, 8.507059e+37
    %v1031 = vand.u32 %v1019, 2147483648
    %v1032 = vor.u32 1.1754944e-38, %v1031
    %v1033 = vsel %vm1030, %v1032, %v1028
    %v1034 = vmul.f32 1.0, %v1033
    %v1035 = vtanh.pop %v1015
    %v1036 = vmul.f32 %v1034, %v955
    %1038 = vrot.lane.b32.xlu0 %v1035, 68
    %v1039 = vpop.permute.xlu0 %1038
    %v1041 = vmul.f32 %v1034, %v1039
    %1043 = vrot.lane.b32.xlu0 %v1041, 30
    %v1044 = vpop.permute.xlu0 %1043
    %v1046 = vadd.f32 %v1036, %v1044
    %v1047 = vtanh.pop %v1046
    %1049 = vrot.lane.b32.xlu0 %v1047, 60
    %v1050 = vpop.permute.xlu0 %1049
    %v1052 = vmul.f32 %v1034, %v1050
    %vm1053 = vcmp.ge.f32.partialorder %v1052, 0.0
    %v1054 = vmul.f32 %v1052, 0.1
    %v1055 = vsel %vm1053, %v1052, %v1054
    %1057 = vrot.lane.b32.xlu0 %v1055, 38
    %v1058 = vpop.permute.xlu0 %1057
    %v1059 = vsel %vm526, %v1058, 0
    %1061 = vmatpush.msra.mxu0 0.0
    %1062 = vmatpush.msra.mxu0 0.0
    %1063 = vmatpush.msra.mxu0 0.0
    %1064 = vmatpush.msra.mxu0 0.0
    %1065 = vmatpush.msra.mxu0 0.0
    %1066 = vmatpush.msra.mxu0 0.0
    %1067 = vmatpush.msra.mxu0 0.0
    %1068 = vmatpush.msra.mxu0 0.0
    %1069 = vmatpush.msra.mxu0 0.0
    %1070 = vmatpush.msra.mxu0 0.0
    %1071 = vmatpush.msra.mxu0 0.0
    %1072 = vmatpush.msra.mxu0 0.0
    %1073 = vmatpush.msra.mxu0 %v604
    %1074 = vmatpush.msra.mxu0 %v523
    %1075 = vmatpush.msra.mxu0 %v522
    %1076 = vmatpush.msra.mxu0 %v521
    %1077 = vmatmul.f32.gmra.mxu0 %v1059
    %v1078 = vpop.f32.mrf.mxu0
    %v1079 = vadd.f32 %v596, %v1078
    %1080 = vdwg.mxu0
    %1082 = vrot.lane.b32.xlu0 %v1052, 38
    %v1083 = vpop.permute.xlu0 %1082
    %v1084 = vsel %vm526, %v1083, 0
    %1086 = vmatpush.msra.mxu0 0.0
    %1087 = vmatpush.msra.mxu0 0.0
    %1088 = vmatpush.msra.mxu0 0.0
    %1089 = vmatpush.msra.mxu0 0.0
    %1090 = vmatpush.msra.mxu0 0.0
    %1091 = vmatpush.msra.mxu0 0.0
    %1092 = vmatpush.msra.mxu0 0.0
    %1093 = vmatpush.msra.mxu0 0.0
    %1094 = vmatpush.msra.mxu0 0.0
    %1095 = vmatpush.msra.mxu0 0.0
    %1096 = vmatpush.msra.mxu0 0.0
    %1097 = vmatpush.msra.mxu0 0.0
    %1098 = vmatpush.msra.mxu0 %v532
    %1099 = vmatpush.msra.mxu0 %v519
    %1100 = vmatpush.msra.mxu0 %v518
    %1101 = vmatpush.msra.mxu0 %v517
    %1102 = vmatmul.f32.gmra.mxu0 %v1084
    %v1103 = vpop.f32.mrf.mxu0
    %v1104 = vadd.f32 0.0, %v1103
    %1105 = vdwg.mxu0
    %v1106 = vadd.f32 %v515, %v1104
    %v1107 = vxor.u32 %v1106, 2147483648
    %v1108 = vmul.f32 %v1107, 1.442695
    %v1109 = vpow.pop %v1108
    %v1110 = vadd.f32 %v1109, 1.0
    %v1111 = vrcp.pop %v1110
    %v1112 = vmul.f32 %v1110, %v1111
    %v1113 = vsub.f32 1.0, %v1112
    %v1114 = vmul.f32 %v1111, %v1113
    %v1115 = vadd.f32 %v1111, %v1114
    %vm1116 = vweird.f32 %v1110
    %vm1117 = vweird.f32 %v1111
    %vm1118 = vmor %vm1116, %vm1117
    %v1119 = vsel %vm1118, %v1111, %v1115
    %v1120 = vand.u32 2147483647, %v1110
    %vm1121 = vcmp.eq.f32.partialorder %v1120, 8.507059e+37
    %v1122 = vand.u32 %v1110, 2147483648
    %v1123 = vor.u32 1.1754944e-38, %v1122
    %v1124 = vsel %vm1121, %v1123, %v1119
    %v1125 = vmul.f32 1.0, %v1124
    %v1126 = vtanh.pop %v1106
    %v1127 = vmul.f32 %v1125, %v1046
    %1129 = vrot.lane.b32.xlu0 %v1126, 68
    %v1130 = vpop.permute.xlu0 %1129
    %v1132 = vmul.f32 %v1125, %v1130
    %1134 = vrot.lane.b32.xlu0 %v1132, 30
    %v1135 = vpop.permute.xlu0 %1134
    %v1137 = vadd.f32 %v1127, %v1135
    %v1138 = vtanh.pop %v1137
    %1140 = vrot.lane.b32.xlu0 %v1138, 60
    %v1141 = vpop.permute.xlu0 %1140
    %v1143 = vmul.f32 %v1125, %v1141
    %vm1144 = vcmp.ge.f32.partialorder %v1143, 0.0
    %v1145 = vmul.f32 %v1143, 0.1
    %v1146 = vsel %vm1144, %v1143, %v1145
    %1148 = vrot.lane.b32.xlu0 %v1146, 38
    %v1149 = vpop.permute.xlu0 %1148
    %v1150 = vsel %vm526, %v1149, 0
    %1152 = vmatpush.msra.mxu0 0.0
    %1153 = vmatpush.msra.mxu0 0.0
    %1154 = vmatpush.msra.mxu0 0.0
    %1155 = vmatpush.msra.mxu0 0.0
    %1156 = vmatpush.msra.mxu0 0.0
    %1157 = vmatpush.msra.mxu0 0.0
    %1158 = vmatpush.msra.mxu0 0.0
    %1159 = vmatpush.msra.mxu0 0.0
    %1160 = vmatpush.msra.mxu0 0.0
    %1161 = vmatpush.msra.mxu0 0.0
    %1162 = vmatpush.msra.mxu0 0.0
    %1163 = vmatpush.msra.mxu0 0.0
    %1164 = vmatpush.msra.mxu0 %v604
    %1165 = vmatpush.msra.mxu0 %v523
    %1166 = vmatpush.msra.mxu0 %v522
    %1167 = vmatpush.msra.mxu0 %v521
    %1168 = vmatmul.f32.gmra.mxu0 %v1150
    %v1169 = vpop.f32.mrf.mxu0
    %v1170 = vadd.f32 %v596, %v1169
    %1171 = vdwg.mxu0
    %1173 = vrot.lane.b32.xlu0 %v1143, 38
    %v1174 = vpop.permute.xlu0 %1173
    %v1175 = vsel %vm526, %v1174, 0
    %1177 = vmatpush.msra.mxu0 0.0
    %1178 = vmatpush.msra.mxu0 0.0
    %1179 = vmatpush.msra.mxu0 0.0
    %1180 = vmatpush.msra.mxu0 0.0
    %1181 = vmatpush.msra.mxu0 0.0
    %1182 = vmatpush.msra.mxu0 0.0
    %1183 = vmatpush.msra.mxu0 0.0
    %1184 = vmatpush.msra.mxu0 0.0
    %1185 = vmatpush.msra.mxu0 0.0
    %1186 = vmatpush.msra.mxu0 0.0
    %1187 = vmatpush.msra.mxu0 0.0
    %1188 = vmatpush.msra.mxu0 0.0
    %1189 = vmatpush.msra.mxu0 %v532
    %1190 = vmatpush.msra.mxu0 %v519
    %1191 = vmatpush.msra.mxu0 %v518
    %1192 = vmatpush.msra.mxu0 %v517
    %1193 = vmatmul.f32.gmra.mxu0 %v1175
    %v1194 = vpop.f32.mrf.mxu0
    %v1195 = vadd.f32 0.0, %v1194
    %1196 = vdwg.mxu0
    %v1197 = vadd.f32 %v515, %v1195
    %v1198 = vxor.u32 %v1197, 2147483648
    %v1199 = vmul.f32 %v1198, 1.442695
    %v1200 = vpow.pop %v1199
    %v1201 = vadd.f32 %v1200, 1.0
    %v1202 = vrcp.pop %v1201
    %v1203 = vmul.f32 %v1201, %v1202
    %v1204 = vsub.f32 1.0, %v1203
    %v1205 = vmul.f32 %v1202, %v1204
    %v1206 = vadd.f32 %v1202, %v1205
    %vm1207 = vweird.f32 %v1201
    %vm1208 = vweird.f32 %v1202
    %vm1209 = vmor %vm1207, %vm1208
    %v1210 = vsel %vm1209, %v1202, %v1206
    %v1211 = vand.u32 2147483647, %v1201
    %vm1212 = vcmp.eq.f32.partialorder %v1211, 8.507059e+37
    %v1213 = vand.u32 %v1201, 2147483648
    %v1214 = vor.u32 1.1754944e-38, %v1213
    %v1215 = vsel %vm1212, %v1214, %v1210
    %v1216 = vmul.f32 1.0, %v1215
    %v1217 = vtanh.pop %v1197
    %v1218 = vmul.f32 %v1216, %v1137
    %1220 = vrot.lane.b32.xlu0 %v1217, 68
    %v1221 = vpop.permute.xlu0 %1220
    %v1223 = vmul.f32 %v1216, %v1221
    %1225 = vrot.lane.b32.xlu0 %v1223, 30
    %v1226 = vpop.permute.xlu0 %1225
    %v1228 = vadd.f32 %v1218, %v1226
    %v1229 = vtanh.pop %v1228
    %1231 = vrot.lane.b32.xlu0 %v1229, 60
    %v1232 = vpop.permute.xlu0 %1231
    %v1234 = vmul.f32 %v1216, %v1232
    %vm1235 = vcmp.ge.f32.partialorder %v1234, 0.0
    %v1236 = vmul.f32 %v1234, 0.1
    %v1237 = vsel %vm1235, %v1234, %v1236
    %1239 = vrot.lane.b32.xlu0 %v1237, 38
    %v1240 = vpop.permute.xlu0 %1239
    %v1241 = vsel %vm526, %v1240, 0
    %1243 = vmatpush.msra.mxu0 0.0
    %1244 = vmatpush.msra.mxu0 0.0
    %1245 = vmatpush.msra.mxu0 0.0
    %1246 = vmatpush.msra.mxu0 0.0
    %1247 = vmatpush.msra.mxu0 0.0
    %1248 = vmatpush.msra.mxu0 0.0
    %1249 = vmatpush.msra.mxu0 0.0
    %1250 = vmatpush.msra.mxu0 0.0
    %1251 = vmatpush.msra.mxu0 0.0
    %1252 = vmatpush.msra.mxu0 0.0
    %1253 = vmatpush.msra.mxu0 0.0
    %1254 = vmatpush.msra.mxu0 0.0
    %1255 = vmatpush.msra.mxu0 %v604
    %1256 = vmatpush.msra.mxu0 %v523
    %1257 = vmatpush.msra.mxu0 %v522
    %1258 = vmatpush.msra.mxu0 %v521
    %1259 = vmatmul.f32.gmra.mxu0 %v1241
    %v1260 = vpop.f32.mrf.mxu0
    %v1261 = vadd.f32 %v596, %v1260
    %1262 = vdwg.mxu0
    %1264 = vrot.lane.b32.xlu0 %v1234, 38
    %v1265 = vpop.permute.xlu0 %1264
    %v1266 = vsel %vm526, %v1265, 0
    %1268 = vmatpush.msra.mxu0 0.0
    %1269 = vmatpush.msra.mxu0 0.0
    %1270 = vmatpush.msra.mxu0 0.0
    %1271 = vmatpush.msra.mxu0 0.0
    %1272 = vmatpush.msra.mxu0 0.0
    %1273 = vmatpush.msra.mxu0 0.0
    %1274 = vmatpush.msra.mxu0 0.0
    %1275 = vmatpush.msra.mxu0 0.0
    %1276 = vmatpush.msra.mxu0 0.0
    %1277 = vmatpush.msra.mxu0 0.0
    %1278 = vmatpush.msra.mxu0 0.0
    %1279 = vmatpush.msra.mxu0 0.0
    %1280 = vmatpush.msra.mxu0 %v532
    %1281 = vmatpush.msra.mxu0 %v519
    %1282 = vmatpush.msra.mxu0 %v518
    %1283 = vmatpush.msra.mxu0 %v517
    %1284 = vmatmul.f32.gmra.mxu0 %v1266
    %v1285 = vpop.f32.mrf.mxu0
    %v1286 = vadd.f32 0.0, %v1285
    %1287 = vdwg.mxu0
    %v1288 = vadd.f32 %v515, %v1286
    %v1289 = vxor.u32 %v1288, 2147483648
    %v1290 = vmul.f32 %v1289, 1.442695
    %v1291 = vpow.pop %v1290
    %v1292 = vadd.f32 %v1291, 1.0
    %v1293 = vrcp.pop %v1292
    %v1294 = vmul.f32 %v1292, %v1293
    %v1295 = vsub.f32 1.0, %v1294
    %v1296 = vmul.f32 %v1293, %v1295
    %v1297 = vadd.f32 %v1293, %v1296
    %vm1298 = vweird.f32 %v1292
    %vm1299 = vweird.f32 %v1293
    %vm1300 = vmor %vm1298, %vm1299
    %v1301 = vsel %vm1300, %v1293, %v1297
    %v1302 = vand.u32 2147483647, %v1292
    %vm1303 = vcmp.eq.f32.partialorder %v1302, 8.507059e+37
    %v1304 = vand.u32 %v1292, 2147483648
    %v1305 = vor.u32 1.1754944e-38, %v1304
    %v1306 = vsel %vm1303, %v1305, %v1301
    %v1307 = vmul.f32 1.0, %v1306
    %v1308 = vtanh.pop %v1288
    %v1309 = vmul.f32 %v1307, %v1228
    %1311 = vrot.lane.b32.xlu0 %v1308, 68
    %v1312 = vpop.permute.xlu0 %1311
    %v1314 = vmul.f32 %v1307, %v1312
    %1316 = vrot.lane.b32.xlu0 %v1314, 30
    %v1317 = vpop.permute.xlu0 %1316
    %v1319 = vadd.f32 %v1309, %v1317
    %v1320 = vtanh.pop %v1319
    %1322 = vrot.lane.b32.xlu0 %v1320, 60
    %v1323 = vpop.permute.xlu0 %1322
    %v1325 = vmul.f32 %v1307, %v1323
    %vm1326 = vcmp.ge.f32.partialorder %v1325, 0.0
    %v1327 = vmul.f32 %v1325, 0.1
    %v1328 = vsel %vm1326, %v1325, %v1327
    %1330 = vrot.lane.b32.xlu0 %v1328, 38
    %v1331 = vpop.permute.xlu0 %1330
    %v1332 = vsel %vm526, %v1331, 0
    %1334 = vmatpush.msra.mxu0 0.0
    %1335 = vmatpush.msra.mxu0 0.0
    %1336 = vmatpush.msra.mxu0 0.0
    %1337 = vmatpush.msra.mxu0 0.0
    %1338 = vmatpush.msra.mxu0 0.0
    %1339 = vmatpush.msra.mxu0 0.0
    %1340 = vmatpush.msra.mxu0 0.0
    %1341 = vmatpush.msra.mxu0 0.0
    %1342 = vmatpush.msra.mxu0 0.0
    %1343 = vmatpush.msra.mxu0 0.0
    %1344 = vmatpush.msra.mxu0 0.0
    %1345 = vmatpush.msra.mxu0 0.0
    %1346 = vmatpush.msra.mxu0 %v604
    %1347 = vmatpush.msra.mxu0 %v523
    %1348 = vmatpush.msra.mxu0 %v522
    %1349 = vmatpush.msra.mxu0 %v521
    %1350 = vmatmul.f32.gmra.mxu0 %v1332
    %v1351 = vpop.f32.mrf.mxu0
    %v1352 = vadd.f32 %v596, %v1351
    %1353 = vdwg.mxu0
    %1355 = vrot.lane.b32.xlu0 %v1325, 38
    %v1356 = vpop.permute.xlu0 %1355
    %v1357 = vsel %vm526, %v1356, 0
    %1359 = vmatpush.msra.mxu0 0.0
    %1360 = vmatpush.msra.mxu0 0.0
    %1361 = vmatpush.msra.mxu0 0.0
    %1362 = vmatpush.msra.mxu0 0.0
    %1363 = vmatpush.msra.mxu0 0.0
    %1364 = vmatpush.msra.mxu0 0.0
    %1365 = vmatpush.msra.mxu0 0.0
    %1366 = vmatpush.msra.mxu0 0.0
    %1367 = vmatpush.msra.mxu0 0.0
    %1368 = vmatpush.msra.mxu0 0.0
    %1369 = vmatpush.msra.mxu0 0.0
    %1370 = vmatpush.msra.mxu0 0.0
    %1371 = vmatpush.msra.mxu0 %v532
    %1372 = vmatpush.msra.mxu0 %v519
    %1373 = vmatpush.msra.mxu0 %v518
    %1374 = vmatpush.msra.mxu0 %v517
    %1375 = vmatmul.f32.gmra.mxu0 %v1357
    %v1376 = vpop.f32.mrf.mxu0
    %v1377 = vadd.f32 0.0, %v1376
    %1378 = vdwg.mxu0
    %v1379 = vadd.f32 %v515, %v1377
    %v1380 = vxor.u32 %v1379, 2147483648
    %v1381 = vmul.f32 %v1380, 1.442695
    %v1382 = vpow.pop %v1381
    %v1383 = vadd.f32 %v1382, 1.0
    %v1384 = vrcp.pop %v1383
    %v1385 = vmul.f32 %v1383, %v1384
    %v1386 = vsub.f32 1.0, %v1385
    %v1387 = vmul.f32 %v1384, %v1386
    %v1388 = vadd.f32 %v1384, %v1387
    %vm1389 = vweird.f32 %v1383
    %vm1390 = vweird.f32 %v1384
    %vm1391 = vmor %vm1389, %vm1390
    %v1392 = vsel %vm1391, %v1384, %v1388
    %v1393 = vand.u32 2147483647, %v1383
    %vm1394 = vcmp.eq.f32.partialorder %v1393, 8.507059e+37
    %v1395 = vand.u32 %v1383, 2147483648
    %v1396 = vor.u32 1.1754944e-38, %v1395
    %v1397 = vsel %vm1394, %v1396, %v1392
    %v1398 = vmul.f32 1.0, %v1397
    %v1399 = vtanh.pop %v1379
    %v1400 = vmul.f32 %v1398, %v1319
    %1402 = vrot.lane.b32.xlu0 %v1399, 68
    %v1403 = vpop.permute.xlu0 %1402
    %v1405 = vmul.f32 %v1398, %v1403
    %1407 = vrot.lane.b32.xlu0 %v1405, 30
    %v1408 = vpop.permute.xlu0 %1407
    %v1410 = vadd.f32 %v1400, %v1408
    %v1411 = vtanh.pop %v1410
    %1413 = vrot.lane.b32.xlu0 %v1411, 60
    %v1414 = vpop.permute.xlu0 %1413
    %v1416 = vmul.f32 %v1398, %v1414
    %vm1417 = vcmp.ge.f32.partialorder %v1416, 0.0
    %v1418 = vmul.f32 %v1416, 0.1
    %v1419 = vsel %vm1417, %v1416, %v1418
    %1421 = vrot.lane.b32.xlu0 %v1419, 38
    %v1422 = vpop.permute.xlu0 %1421
    %v1423 = vsel %vm526, %v1422, 0
    %1425 = vmatpush.msra.mxu0 0.0
    %1426 = vmatpush.msra.mxu0 0.0
    %1427 = vmatpush.msra.mxu0 0.0
    %1428 = vmatpush.msra.mxu0 0.0
    %1429 = vmatpush.msra.mxu0 0.0
    %1430 = vmatpush.msra.mxu0 0.0
    %1431 = vmatpush.msra.mxu0 0.0
    %1432 = vmatpush.msra.mxu0 0.0
    %1433 = vmatpush.msra.mxu0 0.0
    %1434 = vmatpush.msra.mxu0 0.0
    %1435 = vmatpush.msra.mxu0 0.0
    %1436 = vmatpush.msra.mxu0 0.0
    %1437 = vmatpush.msra.mxu0 %v604
    %1438 = vmatpush.msra.mxu0 %v523
    %1439 = vmatpush.msra.mxu0 %v522
    %1440 = vmatpush.msra.mxu0 %v521
    %1441 = vmatmul.f32.gmra.mxu0 %v1423
    %v1442 = vpop.f32.mrf.mxu0
    %v1443 = vadd.f32 %v596, %v1442
    %1444 = vdwg.mxu0
    %1446 = vrot.lane.b32.xlu0 %v1416, 38
    %v1447 = vpop.permute.xlu0 %1446
    %v1448 = vsel %vm526, %v1447, 0
    %1450 = vmatpush.msra.mxu0 0.0
    %1451 = vmatpush.msra.mxu0 0.0
    %1452 = vmatpush.msra.mxu0 0.0
    %1453 = vmatpush.msra.mxu0 0.0
    %1454 = vmatpush.msra.mxu0 0.0
    %1455 = vmatpush.msra.mxu0 0.0
    %1456 = vmatpush.msra.mxu0 0.0
    %1457 = vmatpush.msra.mxu0 0.0
    %1458 = vmatpush.msra.mxu0 0.0
    %1459 = vmatpush.msra.mxu0 0.0
    %1460 = vmatpush.msra.mxu0 0.0
    %1461 = vmatpush.msra.mxu0 0.0
    %1462 = vmatpush.msra.mxu0 %v532
    %1463 = vmatpush.msra.mxu0 %v519
    %1464 = vmatpush.msra.mxu0 %v518
    %1465 = vmatpush.msra.mxu0 %v517
    %1466 = vmatmul.f32.gmra.mxu0 %v1448
    %v1467 = vpop.f32.mrf.mxu0
    %v1468 = vadd.f32 0.0, %v1467
    %1469 = vdwg.mxu0
    %v1470 = vadd.f32 %v515, %v1468
    %v1471 = vxor.u32 %v1470, 2147483648
    %v1472 = vmul.f32 %v1471, 1.442695
    %v1473 = vpow.pop %v1472
    %v1474 = vadd.f32 %v1473, 1.0
    %v1475 = vrcp.pop %v1474
    %v1476 = vmul.f32 %v1474, %v1475
    %v1477 = vsub.f32 1.0, %v1476
    %v1478 = vmul.f32 %v1475, %v1477
    %v1479 = vadd.f32 %v1475, %v1478
    %vm1480 = vweird.f32 %v1474
    %vm1481 = vweird.f32 %v1475
    %vm1482 = vmor %vm1480, %vm1481
    %v1483 = vsel %vm1482, %v1475, %v1479
    %v1484 = vand.u32 2147483647, %v1474
    %vm1485 = vcmp.eq.f32.partialorder %v1484, 8.507059e+37
    %v1486 = vand.u32 %v1474, 2147483648
    %v1487 = vor.u32 1.1754944e-38, %v1486
    %v1488 = vsel %vm1485, %v1487, %v1483
    %v1489 = vmul.f32 1.0, %v1488
    %v1490 = vtanh.pop %v1470
    %v1491 = vmul.f32 %v1489, %v1410
    %1493 = vrot.lane.b32.xlu0 %v1490, 68
    %v1494 = vpop.permute.xlu0 %1493
    %v1496 = vmul.f32 %v1489, %v1494
    %1498 = vrot.lane.b32.xlu0 %v1496, 30
    %v1499 = vpop.permute.xlu0 %1498
    %v1501 = vadd.f32 %v1491, %v1499
    %v1502 = vtanh.pop %v1501
    %1504 = vrot.lane.b32.xlu0 %v1502, 60
    %v1505 = vpop.permute.xlu0 %1504
    %v1507 = vmul.f32 %v1489, %v1505
    %vm1508 = vcmp.ge.f32.partialorder %v1507, 0.0
    %v1509 = vmul.f32 %v1507, 0.1
    %v1510 = vsel %vm1508, %v1507, %v1509
    %1512 = vrot.lane.b32.xlu0 %v1510, 38
    %v1513 = vpop.permute.xlu0 %1512
    %v1514 = vsel %vm526, %v1513, 0
    %1516 = vmatpush.msra.mxu0 0.0
    %1517 = vmatpush.msra.mxu0 0.0
    %1518 = vmatpush.msra.mxu0 0.0
    %1519 = vmatpush.msra.mxu0 0.0
    %1520 = vmatpush.msra.mxu0 0.0
    %1521 = vmatpush.msra.mxu0 0.0
    %1522 = vmatpush.msra.mxu0 0.0
    %1523 = vmatpush.msra.mxu0 0.0
    %1524 = vmatpush.msra.mxu0 0.0
    %1525 = vmatpush.msra.mxu0 0.0
    %1526 = vmatpush.msra.mxu0 0.0
    %1527 = vmatpush.msra.mxu0 0.0
    %1528 = vmatpush.msra.mxu0 %v604
    %1529 = vmatpush.msra.mxu0 %v523
    %1530 = vmatpush.msra.mxu0 %v522
    %1531 = vmatpush.msra.mxu0 %v521
    %1532 = vmatmul.f32.gmra.mxu0 %v1514
    %v1533 = vpop.f32.mrf.mxu0
    %v1534 = vadd.f32 %v596, %v1533
    %1535 = vdwg.mxu0
    %1537 = vrot.lane.b32.xlu0 %v1507, 38
    %v1538 = vpop.permute.xlu0 %1537
    %v1539 = vsel %vm526, %v1538, 0
    %1541 = vmatpush.msra.mxu0 0.0
    %1542 = vmatpush.msra.mxu0 0.0
    %1543 = vmatpush.msra.mxu0 0.0
    %1544 = vmatpush.msra.mxu0 0.0
    %1545 = vmatpush.msra.mxu0 0.0
    %1546 = vmatpush.msra.mxu0 0.0
    %1547 = vmatpush.msra.mxu0 0.0
    %1548 = vmatpush.msra.mxu0 0.0
    %1549 = vmatpush.msra.mxu0 0.0
    %1550 = vmatpush.msra.mxu0 0.0
    %1551 = vmatpush.msra.mxu0 0.0
    %1552 = vmatpush.msra.mxu0 0.0
    %1553 = vmatpush.msra.mxu0 %v532
    %1554 = vmatpush.msra.mxu0 %v519
    %1555 = vmatpush.msra.mxu0 %v518
    %1556 = vmatpush.msra.mxu0 %v517
    %1557 = vmatmul.f32.gmra.mxu0 %v1539
    %v1558 = vpop.f32.mrf.mxu0
    %v1559 = vadd.f32 0.0, %v1558
    %1560 = vdwg.mxu0
    %v1561 = vadd.f32 %v515, %v1559
    %v1562 = vxor.u32 %v1561, 2147483648
    %v1563 = vmul.f32 %v1562, 1.442695
    %v1564 = vpow.pop %v1563
    %v1565 = vadd.f32 %v1564, 1.0
    %v1566 = vrcp.pop %v1565
    %v1567 = vmul.f32 %v1565, %v1566
    %v1568 = vsub.f32 1.0, %v1567
    %v1569 = vmul.f32 %v1566, %v1568
    %v1570 = vadd.f32 %v1566, %v1569
    %vm1571 = vweird.f32 %v1565
    %vm1572 = vweird.f32 %v1566
    %vm1573 = vmor %vm1571, %vm1572
    %v1574 = vsel %vm1573, %v1566, %v1570
    %v1575 = vand.u32 2147483647, %v1565
    %vm1576 = vcmp.eq.f32.partialorder %v1575, 8.507059e+37
    %v1577 = vand.u32 %v1565, 2147483648
    %v1578 = vor.u32 1.1754944e-38, %v1577
    %v1579 = vsel %vm1576, %v1578, %v1574
    %v1580 = vmul.f32 1.0, %v1579
    %v1581 = vtanh.pop %v1561
    %v1582 = vmul.f32 %v1580, %v1501
    %1584 = vrot.lane.b32.xlu0 %v1581, 68
    %v1585 = vpop.permute.xlu0 %1584
    %v1587 = vmul.f32 %v1580, %v1585
    %1589 = vrot.lane.b32.xlu0 %v1587, 30
    %v1590 = vpop.permute.xlu0 %1589
    %v1592 = vadd.f32 %v1582, %v1590
    %v1593 = vtanh.pop %v1592
    %1595 = vrot.lane.b32.xlu0 %v1593, 60
    %v1596 = vpop.permute.xlu0 %1595
    %v1598 = vmul.f32 %v1580, %v1596
    %vm1599 = vcmp.ge.f32.partialorder %v1598, 0.0
    %v1600 = vmul.f32 %v1598, 0.1
    %v1601 = vsel %vm1599, %v1598, %v1600
    %1603 = vrot.lane.b32.xlu0 %v1601, 38
    %v1604 = vpop.permute.xlu0 %1603
    %v1605 = vsel %vm526, %v1604, 0
    %1607 = vmatpush.msra.mxu0 0.0
    %1608 = vmatpush.msra.mxu0 0.0
    %1609 = vmatpush.msra.mxu0 0.0
    %1610 = vmatpush.msra.mxu0 0.0
    %1611 = vmatpush.msra.mxu0 0.0
    %1612 = vmatpush.msra.mxu0 0.0
    %1613 = vmatpush.msra.mxu0 0.0
    %1614 = vmatpush.msra.mxu0 0.0
    %1615 = vmatpush.msra.mxu0 0.0
    %1616 = vmatpush.msra.mxu0 0.0
    %1617 = vmatpush.msra.mxu0 0.0
    %1618 = vmatpush.msra.mxu0 0.0
    %1619 = vmatpush.msra.mxu0 %v604
    %1620 = vmatpush.msra.mxu0 %v523
    %1621 = vmatpush.msra.mxu0 %v522
    %1622 = vmatpush.msra.mxu0 %v521
    %1623 = vmatmul.f32.gmra.mxu0 %v1605
    %v1624 = vpop.f32.mrf.mxu0
    %v1625 = vadd.f32 %v596, %v1624
    %1626 = vdwg.mxu0
    %1628 = vrot.lane.b32.xlu0 %v1598, 38
    %v1629 = vpop.permute.xlu0 %1628
    %v1630 = vsel %vm526, %v1629, 0
    %1632 = vmatpush.msra.mxu0 0.0
    %1633 = vmatpush.msra.mxu0 0.0
    %1634 = vmatpush.msra.mxu0 0.0
    %1635 = vmatpush.msra.mxu0 0.0
    %1636 = vmatpush.msra.mxu0 0.0
    %1637 = vmatpush.msra.mxu0 0.0
    %1638 = vmatpush.msra.mxu0 0.0
    %1639 = vmatpush.msra.mxu0 0.0
    %1640 = vmatpush.msra.mxu0 0.0
    %1641 = vmatpush.msra.mxu0 0.0
    %1642 = vmatpush.msra.mxu0 0.0
    %1643 = vmatpush.msra.mxu0 0.0
    %1644 = vmatpush.msra.mxu0 %v532
    %1645 = vmatpush.msra.mxu0 %v519
    %1646 = vmatpush.msra.mxu0 %v518
    %1647 = vmatpush.msra.mxu0 %v517
    %1648 = vmatmul.f32.gmra.mxu0 %v1630
    %v1649 = vpop.f32.mrf.mxu0
    %v1650 = vadd.f32 0.0, %v1649
    %1651 = vdwg.mxu0
    %v1652 = vadd.f32 %v515, %v1650
    %v1653 = vxor.u32 %v1652, 2147483648
    %v1654 = vmul.f32 %v1653, 1.442695
    %v1655 = vpow.pop %v1654
    %v1656 = vadd.f32 %v1655, 1.0
    %v1657 = vrcp.pop %v1656
    %v1658 = vmul.f32 %v1656, %v1657
    %v1659 = vsub.f32 1.0, %v1658
    %v1660 = vmul.f32 %v1657, %v1659
    %v1661 = vadd.f32 %v1657, %v1660
    %vm1662 = vweird.f32 %v1656
    %vm1663 = vweird.f32 %v1657
    %vm1664 = vmor %vm1662, %vm1663
    %v1665 = vsel %vm1664, %v1657, %v1661
    %v1666 = vand.u32 2147483647, %v1656
    %vm1667 = vcmp.eq.f32.partialorder %v1666, 8.507059e+37
    %v1668 = vand.u32 %v1656, 2147483648
    %v1669 = vor.u32 1.1754944e-38, %v1668
    %v1670 = vsel %vm1667, %v1669, %v1665
    %v1671 = vmul.f32 1.0, %v1670
    %v1672 = vtanh.pop %v1652
    %v1673 = vmul.f32 %v1671, %v1592
    %1675 = vrot.lane.b32.xlu0 %v1672, 68
    %v1676 = vpop.permute.xlu0 %1675
    %v1678 = vmul.f32 %v1671, %v1676
    %1680 = vrot.lane.b32.xlu0 %v1678, 30
    %v1681 = vpop.permute.xlu0 %1680
    %v1683 = vadd.f32 %v1673, %v1681
    %v1684 = vtanh.pop %v1683
    %1686 = vrot.lane.b32.xlu0 %v1684, 60
    %v1687 = vpop.permute.xlu0 %1686
    %v1689 = vmul.f32 %v1671, %v1687
    %vm1690 = vcmp.ge.f32.partialorder %v1689, 0.0
    %v1691 = vmul.f32 %v1689, 0.1
    %v1692 = vsel %vm1690, %v1689, %v1691
    %1694 = vrot.lane.b32.xlu0 %v1692, 38
    %v1695 = vpop.permute.xlu0 %1694
    %v1696 = vsel %vm526, %v1695, 0
    %1698 = vmatpush.msra.mxu0 0.0
    %1699 = vmatpush.msra.mxu0 0.0
    %1700 = vmatpush.msra.mxu0 0.0
    %1701 = vmatpush.msra.mxu0 0.0
    %1702 = vmatpush.msra.mxu0 0.0
    %1703 = vmatpush.msra.mxu0 0.0
    %1704 = vmatpush.msra.mxu0 0.0
    %1705 = vmatpush.msra.mxu0 0.0
    %1706 = vmatpush.msra.mxu0 0.0
    %1707 = vmatpush.msra.mxu0 0.0
    %1708 = vmatpush.msra.mxu0 0.0
    %1709 = vmatpush.msra.mxu0 0.0
    %1710 = vmatpush.msra.mxu0 %v604
    %1711 = vmatpush.msra.mxu0 %v523
    %1712 = vmatpush.msra.mxu0 %v522
    %1713 = vmatpush.msra.mxu0 %v521
    %1714 = vmatmul.f32.gmra.mxu0 %v1696
    %v1715 = vpop.f32.mrf.mxu0
    %v1716 = vadd.f32 %v596, %v1715
    %1717 = vdwg.mxu0
    %1719 = vrot.lane.b32.xlu0 %v1689, 38
    %v1720 = vpop.permute.xlu0 %1719
    %v1721 = vsel %vm526, %v1720, 0
    %1723 = vmatpush.msra.mxu0 0.0
    %1724 = vmatpush.msra.mxu0 0.0
    %1725 = vmatpush.msra.mxu0 0.0
    %1726 = vmatpush.msra.mxu0 0.0
    %1727 = vmatpush.msra.mxu0 0.0
    %1728 = vmatpush.msra.mxu0 0.0
    %1729 = vmatpush.msra.mxu0 0.0
    %1730 = vmatpush.msra.mxu0 0.0
    %1731 = vmatpush.msra.mxu0 0.0
    %1732 = vmatpush.msra.mxu0 0.0
    %1733 = vmatpush.msra.mxu0 0.0
    %1734 = vmatpush.msra.mxu0 0.0
    %1735 = vmatpush.msra.mxu0 %v532
    %1736 = vmatpush.msra.mxu0 %v519
    %1737 = vmatpush.msra.mxu0 %v518
    %1738 = vmatpush.msra.mxu0 %v517
    %1739 = vmatmul.f32.gmra.mxu0 %v1721
    %v1740 = vpop.f32.mrf.mxu0
    %v1741 = vadd.f32 0.0, %v1740
    %1742 = vdwg.mxu0
    %v1743 = vadd.f32 %v515, %v1741
    %v1744 = vxor.u32 %v1743, 2147483648
    %v1745 = vmul.f32 %v1744, 1.442695
    %v1746 = vpow.pop %v1745
    %v1747 = vadd.f32 %v1746, 1.0
    %v1748 = vrcp.pop %v1747
    %v1749 = vmul.f32 %v1747, %v1748
    %v1750 = vsub.f32 1.0, %v1749
    %v1751 = vmul.f32 %v1748, %v1750
    %v1752 = vadd.f32 %v1748, %v1751
    %vm1753 = vweird.f32 %v1747
    %vm1754 = vweird.f32 %v1748
    %vm1755 = vmor %vm1753, %vm1754
    %v1756 = vsel %vm1755, %v1748, %v1752
    %v1757 = vand.u32 2147483647, %v1747
    %vm1758 = vcmp.eq.f32.partialorder %v1757, 8.507059e+37
    %v1759 = vand.u32 %v1747, 2147483648
    %v1760 = vor.u32 1.1754944e-38, %v1759
    %v1761 = vsel %vm1758, %v1760, %v1756
    %v1762 = vmul.f32 1.0, %v1761
    %v1763 = vtanh.pop %v1743
    %v1764 = vmul.f32 %v1762, %v1683
    %1766 = vrot.lane.b32.xlu0 %v1763, 68
    %v1767 = vpop.permute.xlu0 %1766
    %v1769 = vmul.f32 %v1762, %v1767
    %1771 = vrot.lane.b32.xlu0 %v1769, 30
    %v1772 = vpop.permute.xlu0 %1771
    %v1774 = vadd.f32 %v1764, %v1772
    %v1775 = vtanh.pop %v1774
    %1777 = vrot.lane.b32.xlu0 %v1775, 60
    %v1778 = vpop.permute.xlu0 %1777
    %v1780 = vmul.f32 %v1762, %v1778
    %vm1781 = vcmp.ge.f32.partialorder %v1780, 0.0
    %v1782 = vmul.f32 %v1780, 0.1
    %v1783 = vsel %vm1781, %v1780, %v1782
    %1785 = vrot.lane.b32.xlu0 %v1783, 38
    %v1786 = vpop.permute.xlu0 %1785
    %v1787 = vsel %vm526, %v1786, 0
    %1789 = vmatpush.msra.mxu0 0.0
    %1790 = vmatpush.msra.mxu0 0.0
    %1791 = vmatpush.msra.mxu0 0.0
    %1792 = vmatpush.msra.mxu0 0.0
    %1793 = vmatpush.msra.mxu0 0.0
    %1794 = vmatpush.msra.mxu0 0.0
    %1795 = vmatpush.msra.mxu0 0.0
    %1796 = vmatpush.msra.mxu0 0.0
    %1797 = vmatpush.msra.mxu0 0.0
    %1798 = vmatpush.msra.mxu0 0.0
    %1799 = vmatpush.msra.mxu0 0.0
    %1800 = vmatpush.msra.mxu0 0.0
    %1801 = vmatpush.msra.mxu0 %v604
    %1802 = vmatpush.msra.mxu0 %v523
    %1803 = vmatpush.msra.mxu0 %v522
    %1804 = vmatpush.msra.mxu0 %v521
    %1805 = vmatmul.f32.gmra.mxu0 %v1787
    %v1806 = vpop.f32.mrf.mxu0
    %v1807 = vadd.f32 %v596, %v1806
    %1808 = vdwg.mxu0
    %1810 = vrot.lane.b32.xlu0 %v1780, 38
    %v1811 = vpop.permute.xlu0 %1810
    %v1812 = vsel %vm526, %v1811, 0
    %1814 = vmatpush.msra.mxu0 0.0
    %1815 = vmatpush.msra.mxu0 0.0
    %1816 = vmatpush.msra.mxu0 0.0
    %1817 = vmatpush.msra.mxu0 0.0
    %1818 = vmatpush.msra.mxu0 0.0
    %1819 = vmatpush.msra.mxu0 0.0
    %1820 = vmatpush.msra.mxu0 0.0
    %1821 = vmatpush.msra.mxu0 0.0
    %1822 = vmatpush.msra.mxu0 0.0
    %1823 = vmatpush.msra.mxu0 0.0
    %1824 = vmatpush.msra.mxu0 0.0
    %1825 = vmatpush.msra.mxu0 0.0
    %1826 = vmatpush.msra.mxu0 %v532
    %1827 = vmatpush.msra.mxu0 %v519
    %1828 = vmatpush.msra.mxu0 %v518
    %1829 = vmatpush.msra.mxu0 %v517
    %1830 = vmatmul.f32.gmra.mxu0 %v1812
    %v1831 = vpop.f32.mrf.mxu0
    %v1832 = vadd.f32 0.0, %v1831
    %1833 = vdwg.mxu0
    %v1834 = vadd.f32 %v515, %v1832
    %v1835 = vxor.u32 %v1834, 2147483648
    %v1836 = vmul.f32 %v1835, 1.442695
    %v1837 = vpow.pop %v1836
    %v1838 = vadd.f32 %v1837, 1.0
    %v1839 = vrcp.pop %v1838
    %v1840 = vmul.f32 %v1838, %v1839
    %v1841 = vsub.f32 1.0, %v1840
    %v1842 = vmul.f32 %v1839, %v1841
    %v1843 = vadd.f32 %v1839, %v1842
    %vm1844 = vweird.f32 %v1838
    %vm1845 = vweird.f32 %v1839
    %vm1846 = vmor %vm1844, %vm1845
    %v1847 = vsel %vm1846, %v1839, %v1843
    %v1848 = vand.u32 2147483647, %v1838
    %vm1849 = vcmp.eq.f32.partialorder %v1848, 8.507059e+37
    %v1850 = vand.u32 %v1838, 2147483648
    %v1851 = vor.u32 1.1754944e-38, %v1850
    %v1852 = vsel %vm1849, %v1851, %v1847
    %v1853 = vmul.f32 1.0, %v1852
    %v1854 = vtanh.pop %v1834
    %v1855 = vmul.f32 %v1853, %v1774
    %1857 = vrot.lane.b32.xlu0 %v1854, 68
    %v1858 = vpop.permute.xlu0 %1857
    %v1860 = vmul.f32 %v1853, %v1858
    %1862 = vrot.lane.b32.xlu0 %v1860, 30
    %v1863 = vpop.permute.xlu0 %1862
    %v1865 = vadd.f32 %v1855, %v1863
    %v1866 = vtanh.pop %v1865
    %1868 = vrot.lane.b32.xlu0 %v1866, 60
    %v1869 = vpop.permute.xlu0 %1868
    %v1871 = vmul.f32 %v1853, %v1869
    %vm1872 = vcmp.ge.f32.partialorder %v1871, 0.0
    %v1873 = vmul.f32 %v1871, 0.1
    %v1874 = vsel %vm1872, %v1871, %v1873
    %1876 = vrot.lane.b32.xlu0 %v1874, 38
    %v1877 = vpop.permute.xlu0 %1876
    %v1878 = vsel %vm526, %v1877, 0
    %1880 = vmatpush.msra.mxu0 0.0
    %1881 = vmatpush.msra.mxu0 0.0
    %1882 = vmatpush.msra.mxu0 0.0
    %1883 = vmatpush.msra.mxu0 0.0
    %1884 = vmatpush.msra.mxu0 0.0
    %1885 = vmatpush.msra.mxu0 0.0
    %1886 = vmatpush.msra.mxu0 0.0
    %1887 = vmatpush.msra.mxu0 0.0
    %1888 = vmatpush.msra.mxu0 0.0
    %1889 = vmatpush.msra.mxu0 0.0
    %1890 = vmatpush.msra.mxu0 0.0
    %1891 = vmatpush.msra.mxu0 0.0
    %1892 = vmatpush.msra.mxu0 %v604
    %1893 = vmatpush.msra.mxu0 %v523
    %1894 = vmatpush.msra.mxu0 %v522
    %1895 = vmatpush.msra.mxu0 %v521
    %1896 = vmatmul.f32.gmra.mxu0 %v1878
    %v1897 = vpop.f32.mrf.mxu0
    %v1898 = vadd.f32 %v596, %v1897
    %1899 = vdwg.mxu0
    %1901 = vrot.lane.b32.xlu0 %v715, 2
    %v1902 = vpop.permute.xlu0 %1901
    %1905 = vrot.lane.b32.xlu0 %v806, 4
    %v1906 = vpop.permute.xlu0 %1905
    %1909 = vrot.lane.b32.xlu0 %v897, 6
    %v1910 = vpop.permute.xlu0 %1909
    %1913 = vrot.lane.b32.xlu0 %v988, 8
    %v1914 = vpop.permute.xlu0 %1913
    %1917 = vrot.lane.b32.xlu0 %v1079, 10
    %v1918 = vpop.permute.xlu0 %1917
    %1921 = vrot.lane.b32.xlu0 %v1170, 12
    %v1922 = vpop.permute.xlu0 %1921
    %1925 = vrot.lane.b32.xlu0 %v1261, 14
    %v1926 = vpop.permute.xlu0 %1925
    %1929 = vrot.lane.b32.xlu0 %v1352, 16
    %v1930 = vpop.permute.xlu0 %1929
    %1933 = vrot.lane.b32.xlu0 %v1443, 18
    %v1934 = vpop.permute.xlu0 %1933
    %1937 = vrot.lane.b32.xlu0 %v1534, 20
    %v1938 = vpop.permute.xlu0 %1937
    %1941 = vrot.lane.b32.xlu0 %v1625, 22
    %v1942 = vpop.permute.xlu0 %1941
    %1945 = vrot.lane.b32.xlu0 %v1716, 24
    %v1946 = vpop.permute.xlu0 %1945
    %1949 = vrot.lane.b32.xlu0 %v1807, 26
    %v1950 = vpop.permute.xlu0 %1949
    %1953 = vrot.lane.b32.xlu0 %v1898, 28
    %v1954 = vpop.permute.xlu0 %1953
    %vm1956 = vcmask 15360
    %v1957 = vsel %vm1956, %v624, %v1902
    %vm1958 = vcmask 31744
    %v1959 = vsel %vm1958, %v1957, %v1906
    %vm1960 = vcmask 48128
    %v1961 = vsel %vm1960, %v1959, %v1910
    %v1962 = vsel %vm433, %v1961, %v1914
    %vm1963 = vcmask 80896
    %v1964 = vsel %vm1963, %v1962, %v1918
    %vm1965 = vcmask 97280
    %v1966 = vsel %vm1965, %v1964, %v1922
    %vm1967 = vcmask 113664
    %v1968 = vsel %vm1967, %v1966, %v1926
    %v1969 = vsel %vm362, %v1968, %v1930
    %vm1970 = vcmask 146432
    %v1971 = vsel %vm1970, %v1969, %v1934
    %vm1972 = vcmask 162816
    %v1973 = vsel %vm1972, %v1971, %v1938
    %vm1974 = vcmask 179200
    %v1975 = vsel %vm1974, %v1973, %v1942
    %vm1976 = vcmask 195584
    %v1977 = vsel %vm1976, %v1975, %v1946
    %vm1978 = vcmask 211968
    %v1979 = vsel %vm1978, %v1977, %v1950
    %vm1980 = vcmask 228352
    %v1981 = vsel %vm1980, %v1979, %v1954
    %v1982 = vld [vmem:[%s37] sm:$0xff]
    %v1983 = vld [vmem:[%s37 + $0x8] sm:$0xff]
    %v1984 = vld [vmem:[%s37 + $0x10] sm:$0xff]
    %v1985 = vld [vmem:[%s37 + $0x18] sm:$0x3f]
    %v1986 = vld [vmem:[%s39] sm:$0x1]
    %v1988 = vperm.slane %v1986, 0
    %v1991 = vsel %vm526, %v455, 0
    %v1994 = vsel %vm530, %v1985, 0
    %1996 = vmatpush.msra.mxu0 0.0
    %1997 = vmatpush.msra.mxu0 0.0
    %1998 = vmatpush.msra.mxu0 0.0
    %1999 = vmatpush.msra.mxu0 0.0
    %2000 = vmatpush.msra.mxu0 0.0
    %2001 = vmatpush.msra.mxu0 0.0
    %2002 = vmatpush.msra.mxu0 0.0
    %2003 = vmatpush.msra.mxu0 0.0
    %2004 = vmatpush.msra.mxu0 0.0
    %2005 = vmatpush.msra.mxu0 0.0
    %2006 = vmatpush.msra.mxu0 0.0
    %2007 = vmatpush.msra.mxu0 0.0
    %2008 = vmatpush.msra.mxu0 %v1994
    %2009 = vmatpush.msra.mxu0 %v1984
    %2010 = vmatpush.msra.mxu0 %v1983
    %2011 = vmatpush.msra.mxu0 %v1982
    %2012 = vmatmul.f32.gmra.mxu0 %v1991
    %v2013 = vpop.f32.mrf.mxu0
    %v2014 = vadd.f32 %v1988, %v2013
    %2015 = vdwg.mxu0
    %v2016 = vld [vmem:[%s41] sm:$0xff]
    %v2017 = vld [vmem:[%s41 + $0x8] sm:$0xff]
    %v2018 = vld [vmem:[%s41 + $0x10] sm:$0xff]
    %v2019 = vld [vmem:[%s41 + $0x18] sm:$0x3f]
    %v2021 = vsel %vm526, %v1981, 0
    %v2024 = vsel %vm530, %v2019, 0
    %2026 = vmatpush.msra.mxu0 0.0
    %2027 = vmatpush.msra.mxu0 0.0
    %2028 = vmatpush.msra.mxu0 0.0
    %2029 = vmatpush.msra.mxu0 0.0
    %2030 = vmatpush.msra.mxu0 0.0
    %2031 = vmatpush.msra.mxu0 0.0
    %2032 = vmatpush.msra.mxu0 0.0
    %2033 = vmatpush.msra.mxu0 0.0
    %2034 = vmatpush.msra.mxu0 0.0
    %2035 = vmatpush.msra.mxu0 0.0
    %2036 = vmatpush.msra.mxu0 0.0
    %2037 = vmatpush.msra.mxu0 0.0
    %2038 = vmatpush.msra.mxu0 %v2024
    %2039 = vmatpush.msra.mxu0 %v2018
    %2040 = vmatpush.msra.mxu0 %v2017
    %2041 = vmatpush.msra.mxu0 %v2016
    %2042 = vmatmul.f32.gmra.mxu0 %v2021
    %v2043 = vpop.f32.mrf.mxu0
    %v2044 = vadd.f32 0.0, %v2043
    %2045 = vdwg.mxu0
    %v2046 = vadd.f32 %v2014, %v2044
    %v2047 = vld [vmem:[%s43] sm:$0x1]
    %v2049 = vperm.slane %v2047, 0
    %v2051 = vadd.f32 %v2046, %v2049
    %vm2052 = vcmask 238592
    %2053 = vst.msk [vmem:[%s57] sm:$0x3] %vm2052, %v2051
    %v2054 = vld [vmem:[%s45] sm:$0xff]
    %v2055 = vld [vmem:[%s45 + $0x8] sm:$0xff]
    %v2056 = vld [vmem:[%s45 + $0x10] sm:$0xff]
    %v2057 = vld [vmem:[%s45 + $0x18] sm:$0x3f]
    %v2058 = vld [vmem:[%s47] sm:$0x1]
    %v2060 = vperm.slane %v2058, 0
    %v2063 = vsel %vm526, %v2051, 0
    %v2066 = vsel %vm530, %v2057, 0
    %2068 = vmatpush.msra.mxu0 0.0
    %2069 = vmatpush.msra.mxu0 0.0
    %2070 = vmatpush.msra.mxu0 0.0
    %2071 = vmatpush.msra.mxu0 0.0
    %2072 = vmatpush.msra.mxu0 0.0
    %2073 = vmatpush.msra.mxu0 0.0
    %2074 = vmatpush.msra.mxu0 0.0
    %2075 = vmatpush.msra.mxu0 0.0
    %2076 = vmatpush.msra.mxu0 0.0
    %2077 = vmatpush.msra.mxu0 0.0
    %2078 = vmatpush.msra.mxu0 0.0
    %2079 = vmatpush.msra.mxu0 0.0
    %2080 = vmatpush.msra.mxu0 %v2066
    %2081 = vmatpush.msra.mxu0 %v2056
    %2082 = vmatpush.msra.mxu0 %v2055
    %2083 = vmatpush.msra.mxu0 %v2054
    %2084 = vmatmul.f32.gmra.mxu0 %v2063
    %v2085 = vpop.f32.mrf.mxu0
    %v2086 = vadd.f32 %v2060, %v2085
    %2087 = vdwg.mxu0
    %vm2088 = vcmask 17408
    %v2089 = vsel %vm2088, %v2086, -inf
    %2090 = vmax.xlane.f32.xlu0 %v2089
    %v2091 = vpop.xlane.xlu0 %2090
    %v2092 = vsub.f32 %v2086, %v2091
    %v2093 = vmul.f32 %v2092, 1.442695
    %v2094 = vpow.pop %v2093
    %v2095 = vsel %vm2088, %v2094, 0.0
    %2096 = vadd.xlane.f32.xlu0 %v2095
    %v2097 = vpop.xlane.xlu0 %2096
    %v2098 = vrcp.pop %v2097
    %v2099 = vmul.f32 %v2094, %v2098
    %v2100 = vld [vmem:[%s49] sm:$0x7]
    %v2101 = vld [vmem:[%s51] sm:$0x1]
    %v2103 = vperm.slane %v2101, 0
    %vm2105 = vcmask 23552
    %v2107 = vsel %vm2105, %v480, 0
    %vm2109 = vcmask 1042432
    %v2111 = vsel %vm2109, %v2100, 0
    %2113 = vmatpush.msra.mxu0 0.0
    %2114 = vmatpush.msra.mxu0 0.0
    %2115 = vmatpush.msra.mxu0 0.0
    %2116 = vmatpush.msra.mxu0 0.0
    %2117 = vmatpush.msra.mxu0 0.0
    %2118 = vmatpush.msra.mxu0 0.0
    %2119 = vmatpush.msra.mxu0 0.0
    %2120 = vmatpush.msra.mxu0 0.0
    %2121 = vmatpush.msra.mxu0 0.0
    %2122 = vmatpush.msra.mxu0 0.0
    %2123 = vmatpush.msra.mxu0 0.0
    %2124 = vmatpush.msra.mxu0 0.0
    %2125 = vmatpush.msra.mxu0 0.0
    %2126 = vmatpush.msra.mxu0 0.0
    %2127 = vmatpush.msra.mxu0 0.0
    %2128 = vmatpush.msra.mxu0 %v2111
    %2129 = vmatmul.f32.gmra.mxu0 %v2107
    %v2130 = vpop.f32.mrf.mxu0
    %v2131 = vadd.f32 %v2103, %v2130
    %2132 = vdwg.mxu0
    %v2133 = vld [vmem:[%s53] sm:$0x7]
    %v2135 = vsel %vm2105, %v2099, 0
    %v2138 = vsel %vm2109, %v2133, 0
    %2140 = vmatpush.msra.mxu0 0.0
    %2141 = vmatpush.msra.mxu0 0.0
    %2142 = vmatpush.msra.mxu0 0.0
    %2143 = vmatpush.msra.mxu0 0.0
    %2144 = vmatpush.msra.mxu0 0.0
    %2145 = vmatpush.msra.mxu0 0.0
    %2146 = vmatpush.msra.mxu0 0.0
    %2147 = vmatpush.msra.mxu0 0.0
    %2148 = vmatpush.msra.mxu0 0.0
    %2149 = vmatpush.msra.mxu0 0.0
    %2150 = vmatpush.msra.mxu0 0.0
    %2151 = vmatpush.msra.mxu0 0.0
    %2152 = vmatpush.msra.mxu0 0.0
    %2153 = vmatpush.msra.mxu0 0.0
    %2154 = vmatpush.msra.mxu0 0.0
    %2155 = vmatpush.msra.mxu0 %v2138
    %2156 = vmatmul.f32.gmra.mxu0 %v2135
    %v2157 = vpop.f32.mrf.mxu0
    %v2158 = vadd.f32 0.0, %v2157
    %2159 = vdwg.mxu0
    %v2160 = vadd.f32 %v2131, %v2158
    %v2161 = vld [vmem:[%s55] sm:$0x1]
    %v2163 = vperm.slane %v2161, 0
    %v2165 = vadd.f32 %v2160, %v2163
    %v2166 = vsel %vm2088, %v2165, -inf
    %2167 = vmax.xlane.f32.xlu0 %v2166
    %v2168 = vpop.xlane.xlu0 %2167
    %v2169 = vsub.f32 %v2165, %v2168
    %v2170 = vmul.f32 %v2169, 1.442695
    %v2171 = vpow.pop %v2170
    %v2172 = vsel %vm2088, %v2171, 0.0
    %2173 = vadd.xlane.f32.xlu0 %v2172
    %v2174 = vpop.xlane.xlu0 %2173
    %v2175 = vrcp.pop %v2174
    %v2176 = vmul.f32 %v2171, %v2175
    %2177 = vst.msk [vmem:[#allocation2] sm:$0x3] %vm2088, %v2176
    // Predicated region
    $region114: #{csp_forward.5} parent=1 // pred_check
      _
    $region115: #{csp_forward.5} parent=1 // pred_check_branch
      %2179 = sbr.rel (0) target = $region117
    $region116: #{csp_forward.5} parent=1 // pred_region
      _
    $region117: #{csp_forward.5} parent=1 // pred_fallthru
      _
    // Predicated region
    $region118: #{csp_forward.5} parent=1 // pred_check
      _
    $region119: #{csp_forward.5} parent=1 // pred_check_branch
      %2181 = sbr.rel (0) target = $region121
    $region120: #{csp_forward.5} parent=1 // pred_region
      %2183 = vsyncadd [#allocation3], 0
      %s2185 = sshll.u32 [#allocation2], 4
      %s2186 = int_to_ptr.vmem [resolvable:$true] %s2185
      %s2187 = sshll.u32 %s59, 4
      %s2188 = int_to_ptr.hbm [resolvable:$true] %s2187
      %2190 = dma.vmem_to_hbm [thread:$0]  %s2186, 32, %s2188, [#allocation3]
    $region121: #{csp_forward.5} parent=1 // pred_fallthru
      _
    // Predicated region
    $region122: #{csp_forward.5} parent=1 // pred_check
      _
    $region123: #{csp_forward.5} parent=1 // pred_check_branch
      %2192 = sbr.rel (0) target = $region125
    $region124: #{csp_forward.5} parent=1 // pred_region
      _
    $region125: #{csp_forward.5} parent=1 // pred_fallthru
      _
    // Predicated region
    $region126: #{csp_forward.5} parent=1 // pred_check
      _
    $region127: #{csp_forward.5} parent=1 // pred_check_branch
      %2194 = sbr.rel (0) target = $region129
    $region128: #{csp_forward.5} parent=1 // pred_region
      %2196 = dma.done [#allocation3], 32
    $region129: #{csp_forward.5} parent=1 // pred_fallthru
      _
    %2197 = vsyncpa [#allocation3], 1

</llo_original>
